<compile_context>
chip_gen: v5e
topology: v5e:2x2
jax: 0.10.0
libtpu: 0.0.40
codegen_flags: <defaults>
</compile_context>

<pallas_src>
import math
import functools

import jax
import jax.numpy as jnp
from jax import lax
from jax.experimental import pallas as pl
from jax.experimental.pallas import tpu as pltpu

# ---------------- reduced model hyper-parameters ----------------------------------
D_MODEL = 32
NUM_HEADS = 4
D_K = D_MODEL // NUM_HEADS
D_FF = 64
NUM_LAYERS = 2
MAX_SEQ_LEN = 16
SRC_VOCAB = 128          # padded to 128 -> lane-dense one-hot gather
TGT_VOCAB = 128          # padded to 128 -> lane-dense final store
LN_EPS = 1e-5            # PyTorch nn.LayerNorm default
NEG_INF = -1e9           # matches masked_fill(mask == 0, -1e9)

# Attention "sites": [0, L) encoder self-attn, [L, 2L) decoder self-attn,
#                    [2L, 3L) decoder cross-attn.  Each site owns (Wq, Wk, Wv, Wo).
N_ATTN_SITES = 3 * NUM_LAYERS
# FFN "sites": [0, L) encoder, [L, 2L) decoder.
N_FFN_SITES = 2 * NUM_LAYERS
# LayerNorms: encoder 2 per layer, decoder 3 per layer.
N_LN = 2 * NUM_LAYERS + 3 * NUM_LAYERS

# Layout of the packed (VEC32_TOTAL, 1, D_MODEL) f32 buffer.
VEC32_ATTN_B = 0                                  # q,k,v,o biases: site*4 + {0,1,2,3}
VEC32_FFN_B2 = VEC32_ATTN_B + 4 * N_ATTN_SITES    # fc2 biases, by ffn site
VEC32_LN_G = VEC32_FFN_B2 + N_FFN_SITES           # LayerNorm gammas, by ln index
VEC32_LN_B = VEC32_LN_G + N_LN                    # LayerNorm betas, by ln index
VEC32_TOTAL = VEC32_LN_B + N_LN


def _ln_index_enc(layer, which):          # which in {0, 1}
    return 2 * layer + which


def _ln_index_dec(layer, which):          # which in {0, 1, 2}
    return 2 * NUM_LAYERS + 3 * layer + which


# ---------------- the single fused kernel ----------------------------------------
def transformer_kernel(src_ids_ref, tgt_ids_ref, enc_emb_ref, dec_emb_ref, pe_ref,
                       attn_w_ref, ffn_w1_ref, ffn_w2_ref, out_w_ref,
                       vec32_ref, vec64_ref, out_b_ref, out_ref):
    B, Ss = src_ids_ref.shape
    St = tgt_ids_ref.shape[1]
    H, dk, D = NUM_HEADS, D_K, D_MODEL

    # ---------------- fused embedding gather (one-hot MXU matmul) + PE -----------
    def embed(ids_ref, emb_ref, S):
        V = emb_ref.shape[0]
        lane_v = lax.broadcasted_iota(jnp.int32, (1, V), 1)
        rows = []
        for b in range(B):
            for s in range(S):
                tok = ids_ref[b, s]                         # SMEM scalar read
                rows.append((lane_v == tok).astype(jnp.float32))
        onehot = jnp.concatenate(rows, axis=0)              # (B*S, V) f32, exact
        e = jnp.dot(onehot, emb_ref[...],
                    preferred_element_type=jnp.float32)     # (B*S, D) exact gather
        pe = pe_ref[:S, :]                                  # (S, D)
        e = e + jnp.concatenate([pe] * B, axis=0)           # positional encoding
        return e, onehot

    x, _ = embed(src_ids_ref, enc_emb_ref, Ss)               # (B*Ss, D) encoder stream
    y, tgt_oh = embed(tgt_ids_ref, dec_emb_ref, St)          # (B*St, D) decoder stream

    # ---------------- masks built in-kernel (generate_mask semantics) ------------
    # src_mask: keep key j iff src[b, j] != 0  -> (B*H, 1, Ss) {1., 0.}
    lane_s = lax.broadcasted_iota(jnp.int32, (1, Ss), 1)
    enc_keep_rows = []
    for b in range(B):
        row = jnp.zeros((1, Ss), jnp.float32)
        for j in range(Ss):
            keep_j = jnp.where(src_ids_ref[b, j] != 0, 1.0, 0.0)
            row = jnp.where(lane_s == j, keep_j, row)
        enc_keep_rows.append(row)
    enc_keep_bh = jnp.stack(
        [enc_keep_rows[b] for b in range(B) for _ in range(H)], axis=0)   # (B*H, 1, Ss)

    # tgt_mask: keep (q, k) iff tgt[b, q] != 0 AND k <= q  -> (B*H, St, St) {1., 0.}
    q_idx = lax.broadcasted_iota(jnp.int32, (St, St), 0)
    k_idx = lax.broadcasted_iota(jnp.int32, (St, St), 1)
    causal = k_idx <= q_idx
    dec_keep = []
    for b in range(B):
        pad_q = tgt_oh[b * St:(b + 1) * St, 0:1]            # (St, 1) 1.0 where PAD token
        keep_b = jnp.where((pad_q < 0.5) & causal, 1.0, 0.0)
        dec_keep.append(keep_b)
    dec_keep_bh = jnp.stack(
        [dec_keep[b] for b in range(B) for _ in range(H)], axis=0)        # (B*H, St, St)

    # ---------------- building blocks --------------------------------------------
    def linear(x2, w, bias):
        # x2 (N, K) f32, w bf16, bias (1, M) f32 -> (N, M) f32
        return jnp.dot(x2.astype(jnp.bfloat16), w,
                       preferred_element_type=jnp.float32) + bias

    def split_heads(x2, S):
        # (B*S, D) -> (B*H, S, dk) via static slices + stack (no tile-crossing reshapes)
        parts = []
        for b in range(B):
            rows = x2[b * S:(b + 1) * S, :]
            for h in range(H):
                parts.append(rows[:, h * dk:(h + 1) * dk])
        return jnp.stack(parts, axis=0)

    def merge_heads(ctx, S):
        # (B*H, S, dk) -> (B*S, H*dk), feature order = head-major (combine_heads)
        rows = []
        for b in range(B):
            heads = [ctx[b * H + h] for h in range(H)]
            rows.append(jnp.concatenate(heads, axis=-1))     # (S, D)
        return jnp.concatenate(rows, axis=0)                 # (B*S, D)

    scale = 1.0 / math.sqrt(dk)

    def mha(xq2, xkv2, Sq, Skv, site, keep_bh):
        base = site * 4
        q2 = linear(xq2, attn_w_ref[base + 0], vec32_ref[VEC32_ATTN_B + base + 0])
        k2 = linear(xkv2, attn_w_ref[base + 1], vec32_ref[VEC32_ATTN_B + base + 1])
        v2 = linear(xkv2, attn_w_ref[base + 2], vec32_ref[VEC32_ATTN_B + base + 2])
        q3 = split_heads(q2, Sq)
        k3 = split_heads(k2, Skv)
        v3 = split_heads(v2, Skv)
        s = jnp.einsum("bqd,bkd->bqk", q3.astype(jnp.bfloat16), k3.astype(jnp.bfloat16),
                       preferred_element_type=jnp.float32) * scale
        s = jnp.where(keep_bh > 0.5, s, NEG_INF)             # exact masked_fill semantics
        s = s - jnp.max(s, axis=-1, keepdims=True)
        p = jnp.exp(s)
        p = p * pl.reciprocal(jnp.sum(p, axis=-1, keepdims=True), approx=True)
        ctx = jnp.einsum("bqk,bkd->bqd", p.astype(jnp.bfloat16), v3.astype(jnp.bfloat16),
                         preferred_element_type=jnp.float32)
        merged = merge_heads(ctx, Sq)                         # (B*Sq, D)
        return linear(merged, attn_w_ref[base + 3], vec32_ref[VEC32_ATTN_B + base + 3])

    def layer_norm(x2, ln_idx):
        g = vec32_ref[VEC32_LN_G + ln_idx]
        bta = vec32_ref[VEC32_LN_B + ln_idx]
        mu = jnp.mean(x2, axis=-1, keepdims=True)
        var = jnp.mean(jnp.square(x2 - mu), axis=-1, keepdims=True)
        return (x2 - mu) * lax.rsqrt(var + LN_EPS) * g + bta

    def ffn(x2, site):
        h = jnp.maximum(linear(x2, ffn_w1_ref[site], vec64_ref[site]), 0.0)
        return linear(h, ffn_w2_ref[site], vec32_ref[VEC32_FFN_B2 + site])

    # ---------------- encoder ------------------------------------------------------
    # TODO(synk): dropout layers are identity (eval-mode semantics).
    for l in range(NUM_LAYERS):
        x = layer_norm(x + mha(x, x, Ss, Ss, l, enc_keep_bh), _ln_index_enc(l, 0))
        x = layer_norm(x + ffn(x, l), _ln_index_enc(l, 1))

    # ---------------- decoder ------------------------------------------------------
    for l in range(NUM_LAYERS):
        y = layer_norm(y + mha(y, y, St, St, NUM_LAYERS + l, dec_keep_bh),
                       _ln_index_dec(l, 0))
        y = layer_norm(y + mha(y, x, St, Ss, 2 * NUM_LAYERS + l, enc_keep_bh),
                       _ln_index_dec(l, 1))
        y = layer_norm(y + ffn(y, NUM_LAYERS + l), _ln_index_dec(l, 2))

    # ---------------- final vocab projection (lane-dense 128-wide store) -----------
    logits = jnp.dot(y.astype(jnp.bfloat16), out_w_ref[...],
                     preferred_element_type=jnp.float32) + out_b_ref[...]
    out_ref[...] = logits


# ---------------- wrapper ----------------------------------------------------------
def transformer_forward(params, src, tgt):
    B, Ss = src.shape
    St = tgt.shape[1]

    inputs = (src, tgt,
              params["enc_emb"], params["dec_emb"], params["pe"],
              params["attn_w"], params["ffn_w1"], params["ffn_w2"], params["out_w"],
              params["vec32"], params["vec64"], params["out_b"])

    in_specs = ([pl.BlockSpec(memory_space=pltpu.MemorySpace.SMEM) for _ in range(2)] +
                [pl.BlockSpec(memory_space=pltpu.MemorySpace.VMEM)
                 for _ in range(len(inputs) - 2)])

    out = pl.pallas_call(
        transformer_kernel,
        out_shape=jax.ShapeDtypeStruct((B * St, TGT_VOCAB), jnp.float32),
        in_specs=in_specs,
        out_specs=pl.BlockSpec(memory_space=pltpu.MemorySpace.VMEM),
    )(*inputs)
    return out.reshape(B, St, TGT_VOCAB)


# ---------------- parameter construction (deterministic) --------------------------
def _positional_encoding():
    pos = jnp.arange(MAX_SEQ_LEN, dtype=jnp.float32)[:, None]
    div = jnp.exp(jnp.arange(0, D_MODEL, 2, dtype=jnp.float32) *
                  (-math.log(10000.0) / D_MODEL))
    pe = jnp.zeros((MAX_SEQ_LEN, D_MODEL), jnp.float32)
    pe = pe.at[:, 0::2].set(jnp.sin(pos * div))
    pe = pe.at[:, 1::2].set(jnp.cos(pos * div))
    return pe


def init_params(key):
    keys = jax.random.split(key, 128)
    ki = iter(keys)

    def nrm(shape, scale=0.02):
        return jax.random.normal(next(ki), shape, jnp.float32) * scale

    def w_bf16(shape):                    # matmul weights stored bf16 (MXU operands)
        return nrm(shape).astype(jnp.bfloat16)

    D, F, V = D_MODEL, D_FF, TGT_VOCAB

    # Weight convention: q = x @ Wq + bq  (i.e. Wq == nn.Linear.weight.T).
    attn_w = jnp.stack([w_bf16((D, D)) for _ in range(4 * N_ATTN_SITES)], axis=0)
    ffn_w1 = jnp.stack([w_bf16((D, F)) for _ in range(N_FFN_SITES)], axis=0)
    ffn_w2 = jnp.stack([w_bf16((F, D)) for _ in range(N_FFN_SITES)], axis=0)
    out_w = w_bf16((D, V))

    attn_b = [nrm((1, D)) for _ in range(4 * N_ATTN_SITES)]
    ffn_b2 = [nrm((1, D)) for _ in range(N_FFN_SITES)]
    ln_g = [jnp.ones((1, D), jnp.float32) for _ in range(N_LN)]
    ln_b = [jnp.zeros((1, D), jnp.float32) for _ in range(N_LN)]
    vec32 = jnp.concatenate(attn_b + ffn_b2 + ln_g + ln_b, axis=0)[:, None, :]
    assert vec32.shape == (VEC32_TOTAL, 1, D)

    vec64 = jnp.concatenate([nrm((1, F)) for _ in range(N_FFN_SITES)], axis=0)[:, None, :]
    out_b = nrm((1, V))

    return {
        "enc_emb": nrm((SRC_VOCAB, D), 1.0),
        "dec_emb": nrm((TGT_VOCAB, D), 1.0),
        "pe": _positional_encoding(),
        "attn_w": attn_w, "ffn_w1": ffn_w1, "ffn_w2": ffn_w2, "out_w": out_w,
        "vec32": vec32, "vec64": vec64, "out_b": out_b,
    }


# ---------------- main ---------------------------------------------------------------
if __name__ == "__main__":
    key = jax.random.PRNGKey(0)
    kp, ks, kt = jax.random.split(key, 3)

    B, Ss, St = 2, 8, 8
    params = init_params(kp)
    src = jax.random.randint(ks, (B, Ss), 0, SRC_VOCAB, dtype=jnp.int32)
    tgt = jax.random.randint(kt, (B, St), 0, TGT_VOCAB, dtype=jnp.int32)

    fwd = jax.jit(functools.partial(transformer_forward, params))
    logits = fwd(src, tgt)
    jax.block_until_ready(logits)

    assert logits.shape == (B, St, TGT_VOCAB), logits.shape
    assert bool(jnp.all(jnp.isfinite(logits)))
    print("KERNEL_OK")
</pallas_src>

<mosaic_0001>
module attributes {stable_mosaic.version = 11 : i64} {
  func.func @transformer_kernel(%arg0: memref<2x8xi32, #tpu.memory_space<smem>>, %arg1: memref<2x8xi32, #tpu.memory_space<smem>>, %arg2: memref<128x32xf32, #tpu.memory_space<vmem>>, %arg3: memref<128x32xf32, #tpu.memory_space<vmem>>, %arg4: memref<16x32xf32, #tpu.memory_space<vmem>>, %arg5: memref<24x32x32xbf16, #tpu.memory_space<vmem>>, %arg6: memref<4x32x64xbf16, #tpu.memory_space<vmem>>, %arg7: memref<4x64x32xbf16, #tpu.memory_space<vmem>>, %arg8: memref<32x128xbf16, #tpu.memory_space<vmem>>, %arg9: memref<48x1x32xf32, #tpu.memory_space<vmem>>, %arg10: memref<4x1x64xf32, #tpu.memory_space<vmem>>, %arg11: memref<1x128xf32, #tpu.memory_space<vmem>>, %arg12: memref<16x128xf32, #tpu.memory_space<vmem>>) attributes {dimension_semantics = [], scalar_prefetch = 0 : i64, scratch_operands = 0 : i64, tpu.core_type = #tpu.core_type<tc>} {
    %0 = tpu.iota {dimensions = array<i32: 1>} : vector<1x128xi32>
    %c0 = arith.constant 0 : index
    %c0_0 = arith.constant 0 : index
    %1 = memref.load %arg0[%c0, %c0_0] : memref<2x8xi32, #tpu.memory_space<smem>>
    %2 = vector.broadcast %1 : i32 to vector<1x128xi32>
    %3 = arith.cmpi eq, %0, %2 : vector<1x128xi32>
    %4 = arith.extui %3 : vector<1x128xi1> to vector<1x128xi32>
    %5 = arith.sitofp %4 : vector<1x128xi32> to vector<1x128xf32>
    %c0_1 = arith.constant 0 : index
    %c1 = arith.constant 1 : index
    %6 = memref.load %arg0[%c0_1, %c1] : memref<2x8xi32, #tpu.memory_space<smem>>
    %7 = vector.broadcast %6 : i32 to vector<1x128xi32>
    %8 = arith.cmpi eq, %0, %7 : vector<1x128xi32>
    %9 = arith.extui %8 : vector<1x128xi1> to vector<1x128xi32>
    %10 = arith.sitofp %9 : vector<1x128xi32> to vector<1x128xf32>
    %c0_2 = arith.constant 0 : index
    %c2 = arith.constant 2 : index
    %11 = memref.load %arg0[%c0_2, %c2] : memref<2x8xi32, #tpu.memory_space<smem>>
    %12 = vector.broadcast %11 : i32 to vector<1x128xi32>
    %13 = arith.cmpi eq, %0, %12 : vector<1x128xi32>
    %14 = arith.extui %13 : vector<1x128xi1> to vector<1x128xi32>
    %15 = arith.sitofp %14 : vector<1x128xi32> to vector<1x128xf32>
    %c0_3 = arith.constant 0 : index
    %c3 = arith.constant 3 : index
    %16 = memref.load %arg0[%c0_3, %c3] : memref<2x8xi32, #tpu.memory_space<smem>>
    %17 = vector.broadcast %16 : i32 to vector<1x128xi32>
    %18 = arith.cmpi eq, %0, %17 : vector<1x128xi32>
    %19 = arith.extui %18 : vector<1x128xi1> to vector<1x128xi32>
    %20 = arith.sitofp %19 : vector<1x128xi32> to vector<1x128xf32>
    %c0_4 = arith.constant 0 : index
    %c4 = arith.constant 4 : index
    %21 = memref.load %arg0[%c0_4, %c4] : memref<2x8xi32, #tpu.memory_space<smem>>
    %22 = vector.broadcast %21 : i32 to vector<1x128xi32>
    %23 = arith.cmpi eq, %0, %22 : vector<1x128xi32>
    %24 = arith.extui %23 : vector<1x128xi1> to vector<1x128xi32>
    %25 = arith.sitofp %24 : vector<1x128xi32> to vector<1x128xf32>
    %c0_5 = arith.constant 0 : index
    %c5 = arith.constant 5 : index
    %26 = memref.load %arg0[%c0_5, %c5] : memref<2x8xi32, #tpu.memory_space<smem>>
    %27 = vector.broadcast %26 : i32 to vector<1x128xi32>
    %28 = arith.cmpi eq, %0, %27 : vector<1x128xi32>
    %29 = arith.extui %28 : vector<1x128xi1> to vector<1x128xi32>
    %30 = arith.sitofp %29 : vector<1x128xi32> to vector<1x128xf32>
    %c0_6 = arith.constant 0 : index
    %c6 = arith.constant 6 : index
    %31 = memref.load %arg0[%c0_6, %c6] : memref<2x8xi32, #tpu.memory_space<smem>>
    %32 = vector.broadcast %31 : i32 to vector<1x128xi32>
    %33 = arith.cmpi eq, %0, %32 : vector<1x128xi32>
    %34 = arith.extui %33 : vector<1x128xi1> to vector<1x128xi32>
    %35 = arith.sitofp %34 : vector<1x128xi32> to vector<1x128xf32>
    %c0_7 = arith.constant 0 : index
    %c7 = arith.constant 7 : index
    %36 = memref.load %arg0[%c0_7, %c7] : memref<2x8xi32, #tpu.memory_space<smem>>
    %37 = vector.broadcast %36 : i32 to vector<1x128xi32>
    %38 = arith.cmpi eq, %0, %37 : vector<1x128xi32>
    %39 = arith.extui %38 : vector<1x128xi1> to vector<1x128xi32>
    %40 = arith.sitofp %39 : vector<1x128xi32> to vector<1x128xf32>
    %c1_8 = arith.constant 1 : index
    %c0_9 = arith.constant 0 : index
    %41 = memref.load %arg0[%c1_8, %c0_9] : memref<2x8xi32, #tpu.memory_space<smem>>
    %42 = vector.broadcast %41 : i32 to vector<1x128xi32>
    %43 = arith.cmpi eq, %0, %42 : vector<1x128xi32>
    %44 = arith.extui %43 : vector<1x128xi1> to vector<1x128xi32>
    %45 = arith.sitofp %44 : vector<1x128xi32> to vector<1x128xf32>
    %c1_10 = arith.constant 1 : index
    %c1_11 = arith.constant 1 : index
    %46 = memref.load %arg0[%c1_10, %c1_11] : memref<2x8xi32, #tpu.memory_space<smem>>
    %47 = vector.broadcast %46 : i32 to vector<1x128xi32>
    %48 = arith.cmpi eq, %0, %47 : vector<1x128xi32>
    %49 = arith.extui %48 : vector<1x128xi1> to vector<1x128xi32>
    %50 = arith.sitofp %49 : vector<1x128xi32> to vector<1x128xf32>
    %c1_12 = arith.constant 1 : index
    %c2_13 = arith.constant 2 : index
    %51 = memref.load %arg0[%c1_12, %c2_13] : memref<2x8xi32, #tpu.memory_space<smem>>
    %52 = vector.broadcast %51 : i32 to vector<1x128xi32>
    %53 = arith.cmpi eq, %0, %52 : vector<1x128xi32>
    %54 = arith.extui %53 : vector<1x128xi1> to vector<1x128xi32>
    %55 = arith.sitofp %54 : vector<1x128xi32> to vector<1x128xf32>
    %c1_14 = arith.constant 1 : index
    %c3_15 = arith.constant 3 : index
    %56 = memref.load %arg0[%c1_14, %c3_15] : memref<2x8xi32, #tpu.memory_space<smem>>
    %57 = vector.broadcast %56 : i32 to vector<1x128xi32>
    %58 = arith.cmpi eq, %0, %57 : vector<1x128xi32>
    %59 = arith.extui %58 : vector<1x128xi1> to vector<1x128xi32>
    %60 = arith.sitofp %59 : vector<1x128xi32> to vector<1x128xf32>
    %c1_16 = arith.constant 1 : index
    %c4_17 = arith.constant 4 : index
    %61 = memref.load %arg0[%c1_16, %c4_17] : memref<2x8xi32, #tpu.memory_space<smem>>
    %62 = vector.broadcast %61 : i32 to vector<1x128xi32>
    %63 = arith.cmpi eq, %0, %62 : vector<1x128xi32>
    %64 = arith.extui %63 : vector<1x128xi1> to vector<1x128xi32>
    %65 = arith.sitofp %64 : vector<1x128xi32> to vector<1x128xf32>
    %c1_18 = arith.constant 1 : index
    %c5_19 = arith.constant 5 : index
    %66 = memref.load %arg0[%c1_18, %c5_19] : memref<2x8xi32, #tpu.memory_space<smem>>
    %67 = vector.broadcast %66 : i32 to vector<1x128xi32>
    %68 = arith.cmpi eq, %0, %67 : vector<1x128xi32>
    %69 = arith.extui %68 : vector<1x128xi1> to vector<1x128xi32>
    %70 = arith.sitofp %69 : vector<1x128xi32> to vector<1x128xf32>
    %c1_20 = arith.constant 1 : index
    %c6_21 = arith.constant 6 : index
    %71 = memref.load %arg0[%c1_20, %c6_21] : memref<2x8xi32, #tpu.memory_space<smem>>
    %72 = vector.broadcast %71 : i32 to vector<1x128xi32>
    %73 = arith.cmpi eq, %0, %72 : vector<1x128xi32>
    %74 = arith.extui %73 : vector<1x128xi1> to vector<1x128xi32>
    %75 = arith.sitofp %74 : vector<1x128xi32> to vector<1x128xf32>
    %c1_22 = arith.constant 1 : index
    %c7_23 = arith.constant 7 : index
    %76 = memref.load %arg0[%c1_22, %c7_23] : memref<2x8xi32, #tpu.memory_space<smem>>
    %77 = vector.broadcast %76 : i32 to vector<1x128xi32>
    %78 = arith.cmpi eq, %0, %77 : vector<1x128xi32>
    %79 = arith.extui %78 : vector<1x128xi1> to vector<1x128xi32>
    %80 = arith.sitofp %79 : vector<1x128xi32> to vector<1x128xf32>
    %81 = tpu.concatenate %5, %10, %15, %20, %25, %30, %35, %40, %45, %50, %55, %60, %65, %70, %75, %80 in 0 : vector<1x128xf32>, vector<1x128xf32>, vector<1x128xf32>, vector<1x128xf32>, vector<1x128xf32>, vector<1x128xf32>, vector<1x128xf32>, vector<1x128xf32>, vector<1x128xf32>, vector<1x128xf32>, vector<1x128xf32>, vector<1x128xf32>, vector<1x128xf32>, vector<1x128xf32>, vector<1x128xf32>, vector<1x128xf32> -> vector<16x128xf32>
    %c0_24 = arith.constant 0 : index
    %c0_25 = arith.constant 0 : index
    %82 = vector.load %arg2[%c0_24, %c0_25] : memref<128x32xf32, #tpu.memory_space<vmem>>, vector<128x32xf32>
    %cst = arith.constant dense<0.000000e+00> : vector<16x32xf32>
    %83 = tpu.matmul %81, %82, %cst {dimension_numbers = #tpu.dot_dimension_numbers<[1], [0], [0], [1], [0, 0, 1, 1], [], []>} : vector<16x128xf32>, vector<128x32xf32>, vector<16x32xf32> -> vector<16x32xf32>
    %c0_26 = arith.constant 0 : index
    %c0_27 = arith.constant 0 : index
    %84 = vector.load %arg4[%c0_26, %c0_27] : memref<16x32xf32, #tpu.memory_space<vmem>>, vector<8x32xf32>
    %85 = tpu.concatenate %84, %84 in 0 : vector<8x32xf32>, vector<8x32xf32> -> vector<16x32xf32>
    %86 = arith.addf %83, %85 : vector<16x32xf32>
    %87 = tpu.iota {dimensions = array<i32: 1>} : vector<1x128xi32>
    %c0_28 = arith.constant 0 : index
    %c0_29 = arith.constant 0 : index
    %88 = memref.load %arg1[%c0_28, %c0_29] : memref<2x8xi32, #tpu.memory_space<smem>>
    %89 = vector.broadcast %88 : i32 to vector<1x128xi32>
    %90 = arith.cmpi eq, %87, %89 : vector<1x128xi32>
    %91 = arith.extui %90 : vector<1x128xi1> to vector<1x128xi32>
    %92 = arith.sitofp %91 : vector<1x128xi32> to vector<1x128xf32>
    %c0_30 = arith.constant 0 : index
    %c1_31 = arith.constant 1 : index
    %93 = memref.load %arg1[%c0_30, %c1_31] : memref<2x8xi32, #tpu.memory_space<smem>>
    %94 = vector.broadcast %93 : i32 to vector<1x128xi32>
    %95 = arith.cmpi eq, %87, %94 : vector<1x128xi32>
    %96 = arith.extui %95 : vector<1x128xi1> to vector<1x128xi32>
    %97 = arith.sitofp %96 : vector<1x128xi32> to vector<1x128xf32>
    %c0_32 = arith.constant 0 : index
    %c2_33 = arith.constant 2 : index
    %98 = memref.load %arg1[%c0_32, %c2_33] : memref<2x8xi32, #tpu.memory_space<smem>>
    %99 = vector.broadcast %98 : i32 to vector<1x128xi32>
    %100 = arith.cmpi eq, %87, %99 : vector<1x128xi32>
    %101 = arith.extui %100 : vector<1x128xi1> to vector<1x128xi32>
    %102 = arith.sitofp %101 : vector<1x128xi32> to vector<1x128xf32>
    %c0_34 = arith.constant 0 : index
    %c3_35 = arith.constant 3 : index
    %103 = memref.load %arg1[%c0_34, %c3_35] : memref<2x8xi32, #tpu.memory_space<smem>>
    %104 = vector.broadcast %103 : i32 to vector<1x128xi32>
    %105 = arith.cmpi eq, %87, %104 : vector<1x128xi32>
    %106 = arith.extui %105 : vector<1x128xi1> to vector<1x128xi32>
    %107 = arith.sitofp %106 : vector<1x128xi32> to vector<1x128xf32>
    %c0_36 = arith.constant 0 : index
    %c4_37 = arith.constant 4 : index
    %108 = memref.load %arg1[%c0_36, %c4_37] : memref<2x8xi32, #tpu.memory_space<smem>>
    %109 = vector.broadcast %108 : i32 to vector<1x128xi32>
    %110 = arith.cmpi eq, %87, %109 : vector<1x128xi32>
    %111 = arith.extui %110 : vector<1x128xi1> to vector<1x128xi32>
    %112 = arith.sitofp %111 : vector<1x128xi32> to vector<1x128xf32>
    %c0_38 = arith.constant 0 : index
    %c5_39 = arith.constant 5 : index
    %113 = memref.load %arg1[%c0_38, %c5_39] : memref<2x8xi32, #tpu.memory_space<smem>>
    %114 = vector.broadcast %113 : i32 to vector<1x128xi32>
    %115 = arith.cmpi eq, %87, %114 : vector<1x128xi32>
    %116 = arith.extui %115 : vector<1x128xi1> to vector<1x128xi32>
    %117 = arith.sitofp %116 : vector<1x128xi32> to vector<1x128xf32>
    %c0_40 = arith.constant 0 : index
    %c6_41 = arith.constant 6 : index
    %118 = memref.load %arg1[%c0_40, %c6_41] : memref<2x8xi32, #tpu.memory_space<smem>>
    %119 = vector.broadcast %118 : i32 to vector<1x128xi32>
    %120 = arith.cmpi eq, %87, %119 : vector<1x128xi32>
    %121 = arith.extui %120 : vector<1x128xi1> to vector<1x128xi32>
    %122 = arith.sitofp %121 : vector<1x128xi32> to vector<1x128xf32>
    %c0_42 = arith.constant 0 : index
    %c7_43 = arith.constant 7 : index
    %123 = memref.load %arg1[%c0_42, %c7_43] : memref<2x8xi32, #tpu.memory_space<smem>>
    %124 = vector.broadcast %123 : i32 to vector<1x128xi32>
    %125 = arith.cmpi eq, %87, %124 : vector<1x128xi32>
    %126 = arith.extui %125 : vector<1x128xi1> to vector<1x128xi32>
    %127 = arith.sitofp %126 : vector<1x128xi32> to vector<1x128xf32>
    %c1_44 = arith.constant 1 : index
    %c0_45 = arith.constant 0 : index
    %128 = memref.load %arg1[%c1_44, %c0_45] : memref<2x8xi32, #tpu.memory_space<smem>>
    %129 = vector.broadcast %128 : i32 to vector<1x128xi32>
    %130 = arith.cmpi eq, %87, %129 : vector<1x128xi32>
    %131 = arith.extui %130 : vector<1x128xi1> to vector<1x128xi32>
    %132 = arith.sitofp %131 : vector<1x128xi32> to vector<1x128xf32>
    %c1_46 = arith.constant 1 : index
    %c1_47 = arith.constant 1 : index
    %133 = memref.load %arg1[%c1_46, %c1_47] : memref<2x8xi32, #tpu.memory_space<smem>>
    %134 = vector.broadcast %133 : i32 to vector<1x128xi32>
    %135 = arith.cmpi eq, %87, %134 : vector<1x128xi32>
    %136 = arith.extui %135 : vector<1x128xi1> to vector<1x128xi32>
    %137 = arith.sitofp %136 : vector<1x128xi32> to vector<1x128xf32>
    %c1_48 = arith.constant 1 : index
    %c2_49 = arith.constant 2 : index
    %138 = memref.load %arg1[%c1_48, %c2_49] : memref<2x8xi32, #tpu.memory_space<smem>>
    %139 = vector.broadcast %138 : i32 to vector<1x128xi32>
    %140 = arith.cmpi eq, %87, %139 : vector<1x128xi32>
    %141 = arith.extui %140 : vector<1x128xi1> to vector<1x128xi32>
    %142 = arith.sitofp %141 : vector<1x128xi32> to vector<1x128xf32>
    %c1_50 = arith.constant 1 : index
    %c3_51 = arith.constant 3 : index
    %143 = memref.load %arg1[%c1_50, %c3_51] : memref<2x8xi32, #tpu.memory_space<smem>>
    %144 = vector.broadcast %143 : i32 to vector<1x128xi32>
    %145 = arith.cmpi eq, %87, %144 : vector<1x128xi32>
    %146 = arith.extui %145 : vector<1x128xi1> to vector<1x128xi32>
    %147 = arith.sitofp %146 : vector<1x128xi32> to vector<1x128xf32>
    %c1_52 = arith.constant 1 : index
    %c4_53 = arith.constant 4 : index
    %148 = memref.load %arg1[%c1_52, %c4_53] : memref<2x8xi32, #tpu.memory_space<smem>>
    %149 = vector.broadcast %148 : i32 to vector<1x128xi32>
    %150 = arith.cmpi eq, %87, %149 : vector<1x128xi32>
    %151 = arith.extui %150 : vector<1x128xi1> to vector<1x128xi32>
    %152 = arith.sitofp %151 : vector<1x128xi32> to vector<1x128xf32>
    %c1_54 = arith.constant 1 : index
    %c5_55 = arith.constant 5 : index
    %153 = memref.load %arg1[%c1_54, %c5_55] : memref<2x8xi32, #tpu.memory_space<smem>>
    %154 = vector.broadcast %153 : i32 to vector<1x128xi32>
    %155 = arith.cmpi eq, %87, %154 : vector<1x128xi32>
    %156 = arith.extui %155 : vector<1x128xi1> to vector<1x128xi32>
    %157 = arith.sitofp %156 : vector<1x128xi32> to vector<1x128xf32>
    %c1_56 = arith.constant 1 : index
    %c6_57 = arith.constant 6 : index
    %158 = memref.load %arg1[%c1_56, %c6_57] : memref<2x8xi32, #tpu.memory_space<smem>>
    %159 = vector.broadcast %158 : i32 to vector<1x128xi32>
    %160 = arith.cmpi eq, %87, %159 : vector<1x128xi32>
    %161 = arith.extui %160 : vector<1x128xi1> to vector<1x128xi32>
    %162 = arith.sitofp %161 : vector<1x128xi32> to vector<1x128xf32>
    %c1_58 = arith.constant 1 : index
    %c7_59 = arith.constant 7 : index
    %163 = memref.load %arg1[%c1_58, %c7_59] : memref<2x8xi32, #tpu.memory_space<smem>>
    %164 = vector.broadcast %163 : i32 to vector<1x128xi32>
    %165 = arith.cmpi eq, %87, %164 : vector<1x128xi32>
    %166 = arith.extui %165 : vector<1x128xi1> to vector<1x128xi32>
    %167 = arith.sitofp %166 : vector<1x128xi32> to vector<1x128xf32>
    %168 = tpu.concatenate %92, %97, %102, %107, %112, %117, %122, %127, %132, %137, %142, %147, %152, %157, %162, %167 in 0 : vector<1x128xf32>, vector<1x128xf32>, vector<1x128xf32>, vector<1x128xf32>, vector<1x128xf32>, vector<1x128xf32>, vector<1x128xf32>, vector<1x128xf32>, vector<1x128xf32>, vector<1x128xf32>, vector<1x128xf32>, vector<1x128xf32>, vector<1x128xf32>, vector<1x128xf32>, vector<1x128xf32>, vector<1x128xf32> -> vector<16x128xf32>
    %c0_60 = arith.constant 0 : index
    %c0_61 = arith.constant 0 : index
    %169 = vector.load %arg3[%c0_60, %c0_61] : memref<128x32xf32, #tpu.memory_space<vmem>>, vector<128x32xf32>
    %cst_62 = arith.constant dense<0.000000e+00> : vector<16x32xf32>
    %170 = tpu.matmul %168, %169, %cst_62 {dimension_numbers = #tpu.dot_dimension_numbers<[1], [0], [0], [1], [0, 0, 1, 1], [], []>} : vector<16x128xf32>, vector<128x32xf32>, vector<16x32xf32> -> vector<16x32xf32>
    %c0_63 = arith.constant 0 : index
    %c0_64 = arith.constant 0 : index
    %171 = vector.load %arg4[%c0_63, %c0_64] : memref<16x32xf32, #tpu.memory_space<vmem>>, vector<8x32xf32>
    %172 = tpu.concatenate %171, %171 in 0 : vector<8x32xf32>, vector<8x32xf32> -> vector<16x32xf32>
    %173 = arith.addf %170, %172 : vector<16x32xf32>
    %174 = tpu.iota {dimensions = array<i32: 1>} : vector<1x8xi32>
    %cst_65 = arith.constant 0.000000e+00 : f32
    %175 = vector.broadcast %cst_65 : f32 to vector<1x8xf32>
    %c0_66 = arith.constant 0 : index
    %c0_67 = arith.constant 0 : index
    %176 = memref.load %arg0[%c0_66, %c0_67] : memref<2x8xi32, #tpu.memory_space<smem>>
    %c0_i32 = arith.constant 0 : i32
    %177 = arith.cmpi ne, %176, %c0_i32 : i32
    %cst_68 = arith.constant 1.000000e+00 : f32
    %cst_69 = arith.constant 0.000000e+00 : f32
    %178 = arith.select %177, %cst_68, %cst_69 : f32
    %c0_i32_70 = arith.constant 0 : i32
    %179 = vector.broadcast %c0_i32_70 : i32 to vector<1x8xi32>
    %180 = arith.cmpi eq, %174, %179 : vector<1x8xi32>
    %181 = vector.broadcast %178 : f32 to vector<1x8xf32>
    %182 = arith.select %180, %181, %175 : vector<1x8xi1>, vector<1x8xf32>
    %c0_71 = arith.constant 0 : index
    %c1_72 = arith.constant 1 : index
    %183 = memref.load %arg0[%c0_71, %c1_72] : memref<2x8xi32, #tpu.memory_space<smem>>
    %c0_i32_73 = arith.constant 0 : i32
    %184 = arith.cmpi ne, %183, %c0_i32_73 : i32
    %cst_74 = arith.constant 1.000000e+00 : f32
    %cst_75 = arith.constant 0.000000e+00 : f32
    %185 = arith.select %184, %cst_74, %cst_75 : f32
    %c1_i32 = arith.constant 1 : i32
    %186 = vector.broadcast %c1_i32 : i32 to vector<1x8xi32>
    %187 = arith.cmpi eq, %174, %186 : vector<1x8xi32>
    %188 = vector.broadcast %185 : f32 to vector<1x8xf32>
    %189 = arith.select %187, %188, %182 : vector<1x8xi1>, vector<1x8xf32>
    %c0_76 = arith.constant 0 : index
    %c2_77 = arith.constant 2 : index
    %190 = memref.load %arg0[%c0_76, %c2_77] : memref<2x8xi32, #tpu.memory_space<smem>>
    %c0_i32_78 = arith.constant 0 : i32
    %191 = arith.cmpi ne, %190, %c0_i32_78 : i32
    %cst_79 = arith.constant 1.000000e+00 : f32
    %cst_80 = arith.constant 0.000000e+00 : f32
    %192 = arith.select %191, %cst_79, %cst_80 : f32
    %c2_i32 = arith.constant 2 : i32
    %193 = vector.broadcast %c2_i32 : i32 to vector<1x8xi32>
    %194 = arith.cmpi eq, %174, %193 : vector<1x8xi32>
    %195 = vector.broadcast %192 : f32 to vector<1x8xf32>
    %196 = arith.select %194, %195, %189 : vector<1x8xi1>, vector<1x8xf32>
    %c0_81 = arith.constant 0 : index
    %c3_82 = arith.constant 3 : index
    %197 = memref.load %arg0[%c0_81, %c3_82] : memref<2x8xi32, #tpu.memory_space<smem>>
    %c0_i32_83 = arith.constant 0 : i32
    %198 = arith.cmpi ne, %197, %c0_i32_83 : i32
    %cst_84 = arith.constant 1.000000e+00 : f32
    %cst_85 = arith.constant 0.000000e+00 : f32
    %199 = arith.select %198, %cst_84, %cst_85 : f32
    %c3_i32 = arith.constant 3 : i32
    %200 = vector.broadcast %c3_i32 : i32 to vector<1x8xi32>
    %201 = arith.cmpi eq, %174, %200 : vector<1x8xi32>
    %202 = vector.broadcast %199 : f32 to vector<1x8xf32>
    %203 = arith.select %201, %202, %196 : vector<1x8xi1>, vector<1x8xf32>
    %c0_86 = arith.constant 0 : index
    %c4_87 = arith.constant 4 : index
    %204 = memref.load %arg0[%c0_86, %c4_87] : memref<2x8xi32, #tpu.memory_space<smem>>
    %c0_i32_88 = arith.constant 0 : i32
    %205 = arith.cmpi ne, %204, %c0_i32_88 : i32
    %cst_89 = arith.constant 1.000000e+00 : f32
    %cst_90 = arith.constant 0.000000e+00 : f32
    %206 = arith.select %205, %cst_89, %cst_90 : f32
    %c4_i32 = arith.constant 4 : i32
    %207 = vector.broadcast %c4_i32 : i32 to vector<1x8xi32>
    %208 = arith.cmpi eq, %174, %207 : vector<1x8xi32>
    %209 = vector.broadcast %206 : f32 to vector<1x8xf32>
    %210 = arith.select %208, %209, %203 : vector<1x8xi1>, vector<1x8xf32>
    %c0_91 = arith.constant 0 : index
    %c5_92 = arith.constant 5 : index
    %211 = memref.load %arg0[%c0_91, %c5_92] : memref<2x8xi32, #tpu.memory_space<smem>>
    %c0_i32_93 = arith.constant 0 : i32
    %212 = arith.cmpi ne, %211, %c0_i32_93 : i32
    %cst_94 = arith.constant 1.000000e+00 : f32
    %cst_95 = arith.constant 0.000000e+00 : f32
    %213 = arith.select %212, %cst_94, %cst_95 : f32
    %c5_i32 = arith.constant 5 : i32
    %214 = vector.broadcast %c5_i32 : i32 to vector<1x8xi32>
    %215 = arith.cmpi eq, %174, %214 : vector<1x8xi32>
    %216 = vector.broadcast %213 : f32 to vector<1x8xf32>
    %217 = arith.select %215, %216, %210 : vector<1x8xi1>, vector<1x8xf32>
    %c0_96 = arith.constant 0 : index
    %c6_97 = arith.constant 6 : index
    %218 = memref.load %arg0[%c0_96, %c6_97] : memref<2x8xi32, #tpu.memory_space<smem>>
    %c0_i32_98 = arith.constant 0 : i32
    %219 = arith.cmpi ne, %218, %c0_i32_98 : i32
    %cst_99 = arith.constant 1.000000e+00 : f32
    %cst_100 = arith.constant 0.000000e+00 : f32
    %220 = arith.select %219, %cst_99, %cst_100 : f32
    %c6_i32 = arith.constant 6 : i32
    %221 = vector.broadcast %c6_i32 : i32 to vector<1x8xi32>
    %222 = arith.cmpi eq, %174, %221 : vector<1x8xi32>
    %223 = vector.broadcast %220 : f32 to vector<1x8xf32>
    %224 = arith.select %222, %223, %217 : vector<1x8xi1>, vector<1x8xf32>
    %c0_101 = arith.constant 0 : index
    %c7_102 = arith.constant 7 : index
    %225 = memref.load %arg0[%c0_101, %c7_102] : memref<2x8xi32, #tpu.memory_space<smem>>
    %c0_i32_103 = arith.constant 0 : i32
    %226 = arith.cmpi ne, %225, %c0_i32_103 : i32
    %cst_104 = arith.constant 1.000000e+00 : f32
    %cst_105 = arith.constant 0.000000e+00 : f32
    %227 = arith.select %226, %cst_104, %cst_105 : f32
    %c7_i32 = arith.constant 7 : i32
    %228 = vector.broadcast %c7_i32 : i32 to vector<1x8xi32>
    %229 = arith.cmpi eq, %174, %228 : vector<1x8xi32>
    %230 = vector.broadcast %227 : f32 to vector<1x8xf32>
    %231 = arith.select %229, %230, %224 : vector<1x8xi1>, vector<1x8xf32>
    %cst_106 = arith.constant 0.000000e+00 : f32
    %232 = vector.broadcast %cst_106 : f32 to vector<1x8xf32>
    %c1_107 = arith.constant 1 : index
    %c0_108 = arith.constant 0 : index
    %233 = memref.load %arg0[%c1_107, %c0_108] : memref<2x8xi32, #tpu.memory_space<smem>>
    %c0_i32_109 = arith.constant 0 : i32
    %234 = arith.cmpi ne, %233, %c0_i32_109 : i32
    %cst_110 = arith.constant 1.000000e+00 : f32
    %cst_111 = arith.constant 0.000000e+00 : f32
    %235 = arith.select %234, %cst_110, %cst_111 : f32
    %c0_i32_112 = arith.constant 0 : i32
    %236 = vector.broadcast %c0_i32_112 : i32 to vector<1x8xi32>
    %237 = arith.cmpi eq, %174, %236 : vector<1x8xi32>
    %238 = vector.broadcast %235 : f32 to vector<1x8xf32>
    %239 = arith.select %237, %238, %232 : vector<1x8xi1>, vector<1x8xf32>
    %c1_113 = arith.constant 1 : index
    %c1_114 = arith.constant 1 : index
    %240 = memref.load %arg0[%c1_113, %c1_114] : memref<2x8xi32, #tpu.memory_space<smem>>
    %c0_i32_115 = arith.constant 0 : i32
    %241 = arith.cmpi ne, %240, %c0_i32_115 : i32
    %cst_116 = arith.constant 1.000000e+00 : f32
    %cst_117 = arith.constant 0.000000e+00 : f32
    %242 = arith.select %241, %cst_116, %cst_117 : f32
    %c1_i32_118 = arith.constant 1 : i32
    %243 = vector.broadcast %c1_i32_118 : i32 to vector<1x8xi32>
    %244 = arith.cmpi eq, %174, %243 : vector<1x8xi32>
    %245 = vector.broadcast %242 : f32 to vector<1x8xf32>
    %246 = arith.select %244, %245, %239 : vector<1x8xi1>, vector<1x8xf32>
    %c1_119 = arith.constant 1 : index
    %c2_120 = arith.constant 2 : index
    %247 = memref.load %arg0[%c1_119, %c2_120] : memref<2x8xi32, #tpu.memory_space<smem>>
    %c0_i32_121 = arith.constant 0 : i32
    %248 = arith.cmpi ne, %247, %c0_i32_121 : i32
    %cst_122 = arith.constant 1.000000e+00 : f32
    %cst_123 = arith.constant 0.000000e+00 : f32
    %249 = arith.select %248, %cst_122, %cst_123 : f32
    %c2_i32_124 = arith.constant 2 : i32
    %250 = vector.broadcast %c2_i32_124 : i32 to vector<1x8xi32>
    %251 = arith.cmpi eq, %174, %250 : vector<1x8xi32>
    %252 = vector.broadcast %249 : f32 to vector<1x8xf32>
    %253 = arith.select %251, %252, %246 : vector<1x8xi1>, vector<1x8xf32>
    %c1_125 = arith.constant 1 : index
    %c3_126 = arith.constant 3 : index
    %254 = memref.load %arg0[%c1_125, %c3_126] : memref<2x8xi32, #tpu.memory_space<smem>>
    %c0_i32_127 = arith.constant 0 : i32
    %255 = arith.cmpi ne, %254, %c0_i32_127 : i32
    %cst_128 = arith.constant 1.000000e+00 : f32
    %cst_129 = arith.constant 0.000000e+00 : f32
    %256 = arith.select %255, %cst_128, %cst_129 : f32
    %c3_i32_130 = arith.constant 3 : i32
    %257 = vector.broadcast %c3_i32_130 : i32 to vector<1x8xi32>
    %258 = arith.cmpi eq, %174, %257 : vector<1x8xi32>
    %259 = vector.broadcast %256 : f32 to vector<1x8xf32>
    %260 = arith.select %258, %259, %253 : vector<1x8xi1>, vector<1x8xf32>
    %c1_131 = arith.constant 1 : index
    %c4_132 = arith.constant 4 : index
    %261 = memref.load %arg0[%c1_131, %c4_132] : memref<2x8xi32, #tpu.memory_space<smem>>
    %c0_i32_133 = arith.constant 0 : i32
    %262 = arith.cmpi ne, %261, %c0_i32_133 : i32
    %cst_134 = arith.constant 1.000000e+00 : f32
    %cst_135 = arith.constant 0.000000e+00 : f32
    %263 = arith.select %262, %cst_134, %cst_135 : f32
    %c4_i32_136 = arith.constant 4 : i32
    %264 = vector.broadcast %c4_i32_136 : i32 to vector<1x8xi32>
    %265 = arith.cmpi eq, %174, %264 : vector<1x8xi32>
    %266 = vector.broadcast %263 : f32 to vector<1x8xf32>
    %267 = arith.select %265, %266, %260 : vector<1x8xi1>, vector<1x8xf32>
    %c1_137 = arith.constant 1 : index
    %c5_138 = arith.constant 5 : index
    %268 = memref.load %arg0[%c1_137, %c5_138] : memref<2x8xi32, #tpu.memory_space<smem>>
    %c0_i32_139 = arith.constant 0 : i32
    %269 = arith.cmpi ne, %268, %c0_i32_139 : i32
    %cst_140 = arith.constant 1.000000e+00 : f32
    %cst_141 = arith.constant 0.000000e+00 : f32
    %270 = arith.select %269, %cst_140, %cst_141 : f32
    %c5_i32_142 = arith.constant 5 : i32
    %271 = vector.broadcast %c5_i32_142 : i32 to vector<1x8xi32>
    %272 = arith.cmpi eq, %174, %271 : vector<1x8xi32>
    %273 = vector.broadcast %270 : f32 to vector<1x8xf32>
    %274 = arith.select %272, %273, %267 : vector<1x8xi1>, vector<1x8xf32>
    %c1_143 = arith.constant 1 : index
    %c6_144 = arith.constant 6 : index
    %275 = memref.load %arg0[%c1_143, %c6_144] : memref<2x8xi32, #tpu.memory_space<smem>>
    %c0_i32_145 = arith.constant 0 : i32
    %276 = arith.cmpi ne, %275, %c0_i32_145 : i32
    %cst_146 = arith.constant 1.000000e+00 : f32
    %cst_147 = arith.constant 0.000000e+00 : f32
    %277 = arith.select %276, %cst_146, %cst_147 : f32
    %c6_i32_148 = arith.constant 6 : i32
    %278 = vector.broadcast %c6_i32_148 : i32 to vector<1x8xi32>
    %279 = arith.cmpi eq, %174, %278 : vector<1x8xi32>
    %280 = vector.broadcast %277 : f32 to vector<1x8xf32>
    %281 = arith.select %279, %280, %274 : vector<1x8xi1>, vector<1x8xf32>
    %c1_149 = arith.constant 1 : index
    %c7_150 = arith.constant 7 : index
    %282 = memref.load %arg0[%c1_149, %c7_150] : memref<2x8xi32, #tpu.memory_space<smem>>
    %c0_i32_151 = arith.constant 0 : i32
    %283 = arith.cmpi ne, %282, %c0_i32_151 : i32
    %cst_152 = arith.constant 1.000000e+00 : f32
    %cst_153 = arith.constant 0.000000e+00 : f32
    %284 = arith.select %283, %cst_152, %cst_153 : f32
    %c7_i32_154 = arith.constant 7 : i32
    %285 = vector.broadcast %c7_i32_154 : i32 to vector<1x8xi32>
    %286 = arith.cmpi eq, %174, %285 : vector<1x8xi32>
    %287 = vector.broadcast %284 : f32 to vector<1x8xf32>
    %288 = arith.select %286, %287, %281 : vector<1x8xi1>, vector<1x8xf32>
    %289 = vector.shape_cast %231 : vector<1x8xf32> to vector<1x1x8xf32>
    %290 = vector.shape_cast %231 : vector<1x8xf32> to vector<1x1x8xf32>
    %291 = vector.shape_cast %231 : vector<1x8xf32> to vector<1x1x8xf32>
    %292 = vector.shape_cast %231 : vector<1x8xf32> to vector<1x1x8xf32>
    %293 = vector.shape_cast %288 : vector<1x8xf32> to vector<1x1x8xf32>
    %294 = vector.shape_cast %288 : vector<1x8xf32> to vector<1x1x8xf32>
    %295 = vector.shape_cast %288 : vector<1x8xf32> to vector<1x1x8xf32>
    %296 = vector.shape_cast %288 : vector<1x8xf32> to vector<1x1x8xf32>
    %297 = tpu.concatenate %289, %290, %291, %292, %293, %294, %295, %296 in 0 : vector<1x1x8xf32>, vector<1x1x8xf32>, vector<1x1x8xf32>, vector<1x1x8xf32>, vector<1x1x8xf32>, vector<1x1x8xf32>, vector<1x1x8xf32>, vector<1x1x8xf32> -> vector<8x1x8xf32>
    %298 = tpu.iota {dimensions = array<i32: 0>} : vector<8x8xi32>
    %299 = tpu.iota {dimensions = array<i32: 1>} : vector<8x8xi32>
    %300 = arith.cmpi sle, %299, %298 : vector<8x8xi32>
    %301 = vector.extract_strided_slice %168 {offsets = [0, 0], sizes = [8, 1], strides = [1, 1]} : vector<16x128xf32> to vector<8x1xf32>
    %cst_155 = arith.constant 5.000000e-01 : f32
    %302 = vector.broadcast %cst_155 : f32 to vector<8x1xf32>
    %303 = arith.cmpf olt, %301, %302 : vector<8x1xf32>
    %304 = vector.broadcast %303 : vector<8x1xi1> to vector<8x8xi1>
    %305 = arith.andi %304, %300 : vector<8x8xi1>
    %cst_156 = arith.constant 1.000000e+00 : f32
    %cst_157 = arith.constant 0.000000e+00 : f32
    %306 = vector.broadcast %cst_156 : f32 to vector<8x8xf32>
    %307 = vector.broadcast %cst_157 : f32 to vector<8x8xf32>
    %308 = arith.select %305, %306, %307 : vector<8x8xi1>, vector<8x8xf32>
    %309 = vector.extract_strided_slice %168 {offsets = [8, 0], sizes = [8, 1], strides = [1, 1]} : vector<16x128xf32> to vector<8x1xf32>
    %cst_158 = arith.constant 5.000000e-01 : f32
    %310 = vector.broadcast %cst_158 : f32 to vector<8x1xf32>
    %311 = arith.cmpf olt, %309, %310 : vector<8x1xf32>
    %312 = vector.broadcast %311 : vector<8x1xi1> to vector<8x8xi1>
    %313 = arith.andi %312, %300 : vector<8x8xi1>
    %cst_159 = arith.constant 1.000000e+00 : f32
    %cst_160 = arith.constant 0.000000e+00 : f32
    %314 = vector.broadcast %cst_159 : f32 to vector<8x8xf32>
    %315 = vector.broadcast %cst_160 : f32 to vector<8x8xf32>
    %316 = arith.select %313, %314, %315 : vector<8x8xi1>, vector<8x8xf32>
    %317 = vector.shape_cast %308 : vector<8x8xf32> to vector<1x8x8xf32>
    %318 = vector.shape_cast %308 : vector<8x8xf32> to vector<1x8x8xf32>
    %319 = vector.shape_cast %308 : vector<8x8xf32> to vector<1x8x8xf32>
    %320 = vector.shape_cast %308 : vector<8x8xf32> to vector<1x8x8xf32>
    %321 = vector.shape_cast %316 : vector<8x8xf32> to vector<1x8x8xf32>
    %322 = vector.shape_cast %316 : vector<8x8xf32> to vector<1x8x8xf32>
    %323 = vector.shape_cast %316 : vector<8x8xf32> to vector<1x8x8xf32>
    %324 = vector.shape_cast %316 : vector<8x8xf32> to vector<1x8x8xf32>
    %325 = tpu.concatenate %317, %318, %319, %320, %321, %322, %323, %324 in 0 : vector<1x8x8xf32>, vector<1x8x8xf32>, vector<1x8x8xf32>, vector<1x8x8xf32>, vector<1x8x8xf32>, vector<1x8x8xf32>, vector<1x8x8xf32>, vector<1x8x8xf32> -> vector<8x8x8xf32>
    %c0_161 = arith.constant 0 : index
    %c0_162 = arith.constant 0 : index
    %c0_163 = arith.constant 0 : index
    %326 = vector.load %arg5[%c0_161, %c0_162, %c0_163] : memref<24x32x32xbf16, #tpu.memory_space<vmem>>, vector<1x32x32xbf16>
    %327 = vector.shape_cast %326 : vector<1x32x32xbf16> to vector<32x32xbf16>
    %c0_164 = arith.constant 0 : index
    %c0_165 = arith.constant 0 : index
    %c0_166 = arith.constant 0 : index
    %328 = vector.load %arg9[%c0_164, %c0_165, %c0_166] : memref<48x1x32xf32, #tpu.memory_space<vmem>>, vector<1x1x32xf32>
    %329 = vector.shape_cast %328 : vector<1x1x32xf32> to vector<1x32xf32>
    %330 = arith.truncf %86 : vector<16x32xf32> to vector<16x32xbf16>
    %cst_167 = arith.constant dense<0.000000e+00> : vector<16x32xf32>
    %331 = tpu.matmul %330, %327, %cst_167 {dimension_numbers = #tpu.dot_dimension_numbers<[1], [0], [0], [1], [0, 0, 1, 1], [], []>} : vector<16x32xbf16>, vector<32x32xbf16>, vector<16x32xf32> -> vector<16x32xf32>
    %332 = vector.broadcast %329 : vector<1x32xf32> to vector<16x32xf32>
    %333 = arith.addf %331, %332 : vector<16x32xf32>
    %c1_168 = arith.constant 1 : index
    %c0_169 = arith.constant 0 : index
    %c0_170 = arith.constant 0 : index
    %334 = vector.load %arg5[%c1_168, %c0_169, %c0_170] : memref<24x32x32xbf16, #tpu.memory_space<vmem>>, vector<1x32x32xbf16>
    %335 = vector.shape_cast %334 : vector<1x32x32xbf16> to vector<32x32xbf16>
    %c1_171 = arith.constant 1 : index
    %c0_172 = arith.constant 0 : index
    %c0_173 = arith.constant 0 : index
    %336 = vector.load %arg9[%c1_171, %c0_172, %c0_173] : memref<48x1x32xf32, #tpu.memory_space<vmem>>, vector<1x1x32xf32>
    %337 = vector.shape_cast %336 : vector<1x1x32xf32> to vector<1x32xf32>
    %338 = arith.truncf %86 : vector<16x32xf32> to vector<16x32xbf16>
    %cst_174 = arith.constant dense<0.000000e+00> : vector<16x32xf32>
    %339 = tpu.matmul %338, %335, %cst_174 {dimension_numbers = #tpu.dot_dimension_numbers<[1], [0], [0], [1], [0, 0, 1, 1], [], []>} : vector<16x32xbf16>, vector<32x32xbf16>, vector<16x32xf32> -> vector<16x32xf32>
    %340 = vector.broadcast %337 : vector<1x32xf32> to vector<16x32xf32>
    %341 = arith.addf %339, %340 : vector<16x32xf32>
    %c2_175 = arith.constant 2 : index
    %c0_176 = arith.constant 0 : index
    %c0_177 = arith.constant 0 : index
    %342 = vector.load %arg5[%c2_175, %c0_176, %c0_177] : memref<24x32x32xbf16, #tpu.memory_space<vmem>>, vector<1x32x32xbf16>
    %343 = vector.shape_cast %342 : vector<1x32x32xbf16> to vector<32x32xbf16>
    %c2_178 = arith.constant 2 : index
    %c0_179 = arith.constant 0 : index
    %c0_180 = arith.constant 0 : index
    %344 = vector.load %arg9[%c2_178, %c0_179, %c0_180] : memref<48x1x32xf32, #tpu.memory_space<vmem>>, vector<1x1x32xf32>
    %345 = vector.shape_cast %344 : vector<1x1x32xf32> to vector<1x32xf32>
    %346 = arith.truncf %86 : vector<16x32xf32> to vector<16x32xbf16>
    %cst_181 = arith.constant dense<0.000000e+00> : vector<16x32xf32>
    %347 = tpu.matmul %346, %343, %cst_181 {dimension_numbers = #tpu.dot_dimension_numbers<[1], [0], [0], [1], [0, 0, 1, 1], [], []>} : vector<16x32xbf16>, vector<32x32xbf16>, vector<16x32xf32> -> vector<16x32xf32>
    %348 = vector.broadcast %345 : vector<1x32xf32> to vector<16x32xf32>
    %349 = arith.addf %347, %348 : vector<16x32xf32>
    %350 = vector.extract_strided_slice %333 {offsets = [0, 0], sizes = [8, 32], strides = [1, 1]} : vector<16x32xf32> to vector<8x32xf32>
    %351 = vector.extract_strided_slice %350 {offsets = [0, 0], sizes = [8, 8], strides = [1, 1]} : vector<8x32xf32> to vector<8x8xf32>
    %352 = vector.extract_strided_slice %350 {offsets = [0, 8], sizes = [8, 8], strides = [1, 1]} : vector<8x32xf32> to vector<8x8xf32>
    %353 = vector.extract_strided_slice %350 {offsets = [0, 16], sizes = [8, 8], strides = [1, 1]} : vector<8x32xf32> to vector<8x8xf32>
    %354 = vector.extract_strided_slice %350 {offsets = [0, 24], sizes = [8, 8], strides = [1, 1]} : vector<8x32xf32> to vector<8x8xf32>
    %355 = vector.extract_strided_slice %333 {offsets = [8, 0], sizes = [8, 32], strides = [1, 1]} : vector<16x32xf32> to vector<8x32xf32>
    %356 = vector.extract_strided_slice %355 {offsets = [0, 0], sizes = [8, 8], strides = [1, 1]} : vector<8x32xf32> to vector<8x8xf32>
    %357 = vector.extract_strided_slice %355 {offsets = [0, 8], sizes = [8, 8], strides = [1, 1]} : vector<8x32xf32> to vector<8x8xf32>
    %358 = vector.extract_strided_slice %355 {offsets = [0, 16], sizes = [8, 8], strides = [1, 1]} : vector<8x32xf32> to vector<8x8xf32>
    %359 = vector.extract_strided_slice %355 {offsets = [0, 24], sizes = [8, 8], strides = [1, 1]} : vector<8x32xf32> to vector<8x8xf32>
    %360 = vector.shape_cast %351 : vector<8x8xf32> to vector<1x8x8xf32>
    %361 = vector.shape_cast %352 : vector<8x8xf32> to vector<1x8x8xf32>
    %362 = vector.shape_cast %353 : vector<8x8xf32> to vector<1x8x8xf32>
    %363 = vector.shape_cast %354 : vector<8x8xf32> to vector<1x8x8xf32>
    %364 = vector.shape_cast %356 : vector<8x8xf32> to vector<1x8x8xf32>
    %365 = vector.shape_cast %357 : vector<8x8xf32> to vector<1x8x8xf32>
    %366 = vector.shape_cast %358 : vector<8x8xf32> to vector<1x8x8xf32>
    %367 = vector.shape_cast %359 : vector<8x8xf32> to vector<1x8x8xf32>
    %368 = tpu.concatenate %360, %361, %362, %363, %364, %365, %366, %367 in 0 : vector<1x8x8xf32>, vector<1x8x8xf32>, vector<1x8x8xf32>, vector<1x8x8xf32>, vector<1x8x8xf32>, vector<1x8x8xf32>, vector<1x8x8xf32>, vector<1x8x8xf32> -> vector<8x8x8xf32>
    %369 = vector.extract_strided_slice %341 {offsets = [0, 0], sizes = [8, 32], strides = [1, 1]} : vector<16x32xf32> to vector<8x32xf32>
    %370 = vector.extract_strided_slice %369 {offsets = [0, 0], sizes = [8, 8], strides = [1, 1]} : vector<8x32xf32> to vector<8x8xf32>
    %371 = vector.extract_strided_slice %369 {offsets = [0, 8], sizes = [8, 8], strides = [1, 1]} : vector<8x32xf32> to vector<8x8xf32>
    %372 = vector.extract_strided_slice %369 {offsets = [0, 16], sizes = [8, 8], strides = [1, 1]} : vector<8x32xf32> to vector<8x8xf32>
    %373 = vector.extract_strided_slice %369 {offsets = [0, 24], sizes = [8, 8], strides = [1, 1]} : vector<8x32xf32> to vector<8x8xf32>
    %374 = vector.extract_strided_slice %341 {offsets = [8, 0], sizes = [8, 32], strides = [1, 1]} : vector<16x32xf32> to vector<8x32xf32>
    %375 = vector.extract_strided_slice %374 {offsets = [0, 0], sizes = [8, 8], strides = [1, 1]} : vector<8x32xf32> to vector<8x8xf32>
    %376 = vector.extract_strided_slice %374 {offsets = [0, 8], sizes = [8, 8], strides = [1, 1]} : vector<8x32xf32> to vector<8x8xf32>
    %377 = vector.extract_strided_slice %374 {offsets = [0, 16], sizes = [8, 8], strides = [1, 1]} : vector<8x32xf32> to vector<8x8xf32>
    %378 = vector.extract_strided_slice %374 {offsets = [0, 24], sizes = [8, 8], strides = [1, 1]} : vector<8x32xf32> to vector<8x8xf32>
    %379 = vector.shape_cast %370 : vector<8x8xf32> to vector<1x8x8xf32>
    %380 = vector.shape_cast %371 : vector<8x8xf32> to vector<1x8x8xf32>
    %381 = vector.shape_cast %372 : vector<8x8xf32> to vector<1x8x8xf32>
    %382 = vector.shape_cast %373 : vector<8x8xf32> to vector<1x8x8xf32>
    %383 = vector.shape_cast %375 : vector<8x8xf32> to vector<1x8x8xf32>
    %384 = vector.shape_cast %376 : vector<8x8xf32> to vector<1x8x8xf32>
    %385 = vector.shape_cast %377 : vector<8x8xf32> to vector<1x8x8xf32>
    %386 = vector.shape_cast %378 : vector<8x8xf32> to vector<1x8x8xf32>
    %387 = tpu.concatenate %379, %380, %381, %382, %383, %384, %385, %386 in 0 : vector<1x8x8xf32>, vector<1x8x8xf32>, vector<1x8x8xf32>, vector<1x8x8xf32>, vector<1x8x8xf32>, vector<1x8x8xf32>, vector<1x8x8xf32>, vector<1x8x8xf32> -> vector<8x8x8xf32>
    %388 = vector.extract_strided_slice %349 {offsets = [0, 0], sizes = [8, 32], strides = [1, 1]} : vector<16x32xf32> to vector<8x32xf32>
    %389 = vector.extract_strided_slice %388 {offsets = [0, 0], sizes = [8, 8], strides = [1, 1]} : vector<8x32xf32> to vector<8x8xf32>
    %390 = vector.extract_strided_slice %388 {offsets = [0, 8], sizes = [8, 8], strides = [1, 1]} : vector<8x32xf32> to vector<8x8xf32>
    %391 = vector.extract_strided_slice %388 {offsets = [0, 16], sizes = [8, 8], strides = [1, 1]} : vector<8x32xf32> to vector<8x8xf32>
    %392 = vector.extract_strided_slice %388 {offsets = [0, 24], sizes = [8, 8], strides = [1, 1]} : vector<8x32xf32> to vector<8x8xf32>
    %393 = vector.extract_strided_slice %349 {offsets = [8, 0], sizes = [8, 32], strides = [1, 1]} : vector<16x32xf32> to vector<8x32xf32>
    %394 = vector.extract_strided_slice %393 {offsets = [0, 0], sizes = [8, 8], strides = [1, 1]} : vector<8x32xf32> to vector<8x8xf32>
    %395 = vector.extract_strided_slice %393 {offsets = [0, 8], sizes = [8, 8], strides = [1, 1]} : vector<8x32xf32> to vector<8x8xf32>
    %396 = vector.extract_strided_slice %393 {offsets = [0, 16], sizes = [8, 8], strides = [1, 1]} : vector<8x32xf32> to vector<8x8xf32>
    %397 = vector.extract_strided_slice %393 {offsets = [0, 24], sizes = [8, 8], strides = [1, 1]} : vector<8x32xf32> to vector<8x8xf32>
    %398 = vector.shape_cast %389 : vector<8x8xf32> to vector<1x8x8xf32>
    %399 = vector.shape_cast %390 : vector<8x8xf32> to vector<1x8x8xf32>
    %400 = vector.shape_cast %391 : vector<8x8xf32> to vector<1x8x8xf32>
    %401 = vector.shape_cast %392 : vector<8x8xf32> to vector<1x8x8xf32>
    %402 = vector.shape_cast %394 : vector<8x8xf32> to vector<1x8x8xf32>
    %403 = vector.shape_cast %395 : vector<8x8xf32> to vector<1x8x8xf32>
    %404 = vector.shape_cast %396 : vector<8x8xf32> to vector<1x8x8xf32>
    %405 = vector.shape_cast %397 : vector<8x8xf32> to vector<1x8x8xf32>
    %406 = tpu.concatenate %398, %399, %400, %401, %402, %403, %404, %405 in 0 : vector<1x8x8xf32>, vector<1x8x8xf32>, vector<1x8x8xf32>, vector<1x8x8xf32>, vector<1x8x8xf32>, vector<1x8x8xf32>, vector<1x8x8xf32>, vector<1x8x8xf32> -> vector<8x8x8xf32>
    %407 = arith.truncf %368 : vector<8x8x8xf32> to vector<8x8x8xbf16>
    %408 = arith.truncf %387 : vector<8x8x8xf32> to vector<8x8x8xbf16>
    "tpu.trace_start"() <{level = 10 : i32, message = "bqd,bkd->bqk"}> : () -> ()
    %cst_182 = arith.constant dense<0.000000e+00> : vector<8x8x8xf32>
    %409 = tpu.matmul %407, %408, %cst_182 {dimension_numbers = #tpu.dot_dimension_numbers<[2], [2], [1], [1], [0, 0, 0, 1, 1, 1], [0], [0]>} : vector<8x8x8xbf16>, vector<8x8x8xbf16>, vector<8x8x8xf32> -> vector<8x8x8xf32>
    "tpu.trace_stop"() : () -> ()
    %cst_183 = arith.constant 0.353553385 : f32
    %410 = vector.broadcast %cst_183 : f32 to vector<8x8x8xf32>
    %411 = arith.mulf %409, %410 : vector<8x8x8xf32>
    %cst_184 = arith.constant 5.000000e-01 : f32
    %412 = vector.broadcast %cst_184 : f32 to vector<8x1x8xf32>
    %413 = arith.cmpf ogt, %297, %412 : vector<8x1x8xf32>
    %cst_185 = arith.constant -1.000000e+09 : f32
    %414 = vector.shape_cast %413 : vector<8x1x8xi1> to vector<8x1x8xi1>
    %415 = vector.broadcast %414 : vector<8x1x8xi1> to vector<8x8x8xi1>
    %416 = vector.broadcast %cst_185 : f32 to vector<8x8x8xf32>
    %417 = arith.select %415, %411, %416 : vector<8x8x8xi1>, vector<8x8x8xf32>
    %cst_186 = arith.constant dense<0xFF800000> : vector<8x8xf32>
    %418 = vector.multi_reduction <maximumf>, %417, %cst_186 [2] : vector<8x8x8xf32> to vector<8x8xf32>
    %419 = vector.shape_cast %418 : vector<8x8xf32> to vector<8x8x1xf32>
    %420 = vector.broadcast %419 : vector<8x8x1xf32> to vector<8x8x8xf32>
    %421 = arith.subf %417, %420 : vector<8x8x8xf32>
    %422 = math.exp %421 : vector<8x8x8xf32>
    %cst_187 = arith.constant dense<0.000000e+00> : vector<8x8xf32>
    %423 = vector.multi_reduction <add>, %422, %cst_187 [2] : vector<8x8x8xf32> to vector<8x8xf32>
    %424 = vector.shape_cast %423 : vector<8x8xf32> to vector<8x8x1xf32>
    %425 = tpu.reciprocal %424 {approx = true} : vector<8x8x1xf32> -> vector<8x8x1xf32>
    %426 = vector.broadcast %425 : vector<8x8x1xf32> to vector<8x8x8xf32>
    %427 = arith.mulf %422, %426 : vector<8x8x8xf32>
    %428 = arith.truncf %427 : vector<8x8x8xf32> to vector<8x8x8xbf16>
    %429 = arith.truncf %406 : vector<8x8x8xf32> to vector<8x8x8xbf16>
    "tpu.trace_start"() <{level = 10 : i32, message = "bqk,bkd->bqd"}> : () -> ()
    %cst_188 = arith.constant dense<0.000000e+00> : vector<8x8x8xf32>
    %430 = tpu.matmul %428, %429, %cst_188 {dimension_numbers = #tpu.dot_dimension_numbers<[2], [1], [1], [2], [0, 0, 0, 1, 1, 2], [0], [0]>} : vector<8x8x8xbf16>, vector<8x8x8xbf16>, vector<8x8x8xf32> -> vector<8x8x8xf32>
    "tpu.trace_stop"() : () -> ()
    %431 = vector.extract_strided_slice %430 {offsets = [0, 0, 0], sizes = [1, 8, 8], strides = [1, 1, 1]} : vector<8x8x8xf32> to vector<1x8x8xf32>
    %432 = vector.shape_cast %431 : vector<1x8x8xf32> to vector<8x8xf32>
    %433 = vector.extract_strided_slice %430 {offsets = [1, 0, 0], sizes = [1, 8, 8], strides = [1, 1, 1]} : vector<8x8x8xf32> to vector<1x8x8xf32>
    %434 = vector.shape_cast %433 : vector<1x8x8xf32> to vector<8x8xf32>
    %435 = vector.extract_strided_slice %430 {offsets = [2, 0, 0], sizes = [1, 8, 8], strides = [1, 1, 1]} : vector<8x8x8xf32> to vector<1x8x8xf32>
    %436 = vector.shape_cast %435 : vector<1x8x8xf32> to vector<8x8xf32>
    %437 = vector.extract_strided_slice %430 {offsets = [3, 0, 0], sizes = [1, 8, 8], strides = [1, 1, 1]} : vector<8x8x8xf32> to vector<1x8x8xf32>
    %438 = vector.shape_cast %437 : vector<1x8x8xf32> to vector<8x8xf32>
    %439 = tpu.concatenate %432, %434, %436, %438 in 1 : vector<8x8xf32>, vector<8x8xf32>, vector<8x8xf32>, vector<8x8xf32> -> vector<8x32xf32>
    %440 = vector.extract_strided_slice %430 {offsets = [4, 0, 0], sizes = [1, 8, 8], strides = [1, 1, 1]} : vector<8x8x8xf32> to vector<1x8x8xf32>
    %441 = vector.shape_cast %440 : vector<1x8x8xf32> to vector<8x8xf32>
    %442 = vector.extract_strided_slice %430 {offsets = [5, 0, 0], sizes = [1, 8, 8], strides = [1, 1, 1]} : vector<8x8x8xf32> to vector<1x8x8xf32>
    %443 = vector.shape_cast %442 : vector<1x8x8xf32> to vector<8x8xf32>
    %444 = vector.extract_strided_slice %430 {offsets = [6, 0, 0], sizes = [1, 8, 8], strides = [1, 1, 1]} : vector<8x8x8xf32> to vector<1x8x8xf32>
    %445 = vector.shape_cast %444 : vector<1x8x8xf32> to vector<8x8xf32>
    %446 = vector.extract_strided_slice %430 {offsets = [7, 0, 0], sizes = [1, 8, 8], strides = [1, 1, 1]} : vector<8x8x8xf32> to vector<1x8x8xf32>
    %447 = vector.shape_cast %446 : vector<1x8x8xf32> to vector<8x8xf32>
    %448 = tpu.concatenate %441, %443, %445, %447 in 1 : vector<8x8xf32>, vector<8x8xf32>, vector<8x8xf32>, vector<8x8xf32> -> vector<8x32xf32>
    %449 = tpu.concatenate %439, %448 in 0 : vector<8x32xf32>, vector<8x32xf32> -> vector<16x32xf32>
    %c3_189 = arith.constant 3 : index
    %c0_190 = arith.constant 0 : index
    %c0_191 = arith.constant 0 : index
    %450 = vector.load %arg5[%c3_189, %c0_190, %c0_191] : memref<24x32x32xbf16, #tpu.memory_space<vmem>>, vector<1x32x32xbf16>
    %451 = vector.shape_cast %450 : vector<1x32x32xbf16> to vector<32x32xbf16>
    %c3_192 = arith.constant 3 : index
    %c0_193 = arith.constant 0 : index
    %c0_194 = arith.constant 0 : index
    %452 = vector.load %arg9[%c3_192, %c0_193, %c0_194] : memref<48x1x32xf32, #tpu.memory_space<vmem>>, vector<1x1x32xf32>
    %453 = vector.shape_cast %452 : vector<1x1x32xf32> to vector<1x32xf32>
    %454 = arith.truncf %449 : vector<16x32xf32> to vector<16x32xbf16>
    %cst_195 = arith.constant dense<0.000000e+00> : vector<16x32xf32>
    %455 = tpu.matmul %454, %451, %cst_195 {dimension_numbers = #tpu.dot_dimension_numbers<[1], [0], [0], [1], [0, 0, 1, 1], [], []>} : vector<16x32xbf16>, vector<32x32xbf16>, vector<16x32xf32> -> vector<16x32xf32>
    %456 = vector.broadcast %453 : vector<1x32xf32> to vector<16x32xf32>
    %457 = arith.addf %455, %456 : vector<16x32xf32>
    %458 = arith.addf %86, %457 : vector<16x32xf32>
    %c28 = arith.constant 28 : index
    %c0_196 = arith.constant 0 : index
    %c0_197 = arith.constant 0 : index
    %459 = vector.load %arg9[%c28, %c0_196, %c0_197] : memref<48x1x32xf32, #tpu.memory_space<vmem>>, vector<1x1x32xf32>
    %460 = vector.shape_cast %459 : vector<1x1x32xf32> to vector<1x32xf32>
    %c38 = arith.constant 38 : index
    %c0_198 = arith.constant 0 : index
    %c0_199 = arith.constant 0 : index
    %461 = vector.load %arg9[%c38, %c0_198, %c0_199] : memref<48x1x32xf32, #tpu.memory_space<vmem>>, vector<1x1x32xf32>
    %462 = vector.shape_cast %461 : vector<1x1x32xf32> to vector<1x32xf32>
    %cst_200 = arith.constant dense<0.000000e+00> : vector<16xf32>
    %463 = vector.multi_reduction <add>, %458, %cst_200 [1] : vector<16x32xf32> to vector<16xf32>
    %464 = vector.shape_cast %463 : vector<16xf32> to vector<16x1xf32>
    %cst_201 = arith.constant 3.200000e+01 : f32
    %465 = vector.broadcast %cst_201 : f32 to vector<16x1xf32>
    %466 = arith.divf %464, %465 : vector<16x1xf32>
    %467 = vector.broadcast %466 : vector<16x1xf32> to vector<16x32xf32>
    %468 = arith.subf %458, %467 : vector<16x32xf32>
    %469 = arith.mulf %468, %468 : vector<16x32xf32>
    %cst_202 = arith.constant dense<0.000000e+00> : vector<16xf32>
    %470 = vector.multi_reduction <add>, %469, %cst_202 [1] : vector<16x32xf32> to vector<16xf32>
    %471 = vector.shape_cast %470 : vector<16xf32> to vector<16x1xf32>
    %cst_203 = arith.constant 3.200000e+01 : f32
    %472 = vector.broadcast %cst_203 : f32 to vector<16x1xf32>
    %473 = arith.divf %471, %472 : vector<16x1xf32>
    %474 = vector.broadcast %466 : vector<16x1xf32> to vector<16x32xf32>
    %475 = arith.subf %458, %474 : vector<16x32xf32>
    %cst_204 = arith.constant 9.99999974E-6 : f32
    %476 = vector.broadcast %cst_204 : f32 to vector<16x1xf32>
    %477 = arith.addf %473, %476 : vector<16x1xf32>
    %478 = math.rsqrt %477 : vector<16x1xf32>
    %479 = vector.broadcast %478 : vector<16x1xf32> to vector<16x32xf32>
    %480 = arith.mulf %475, %479 : vector<16x32xf32>
    %481 = vector.broadcast %460 : vector<1x32xf32> to vector<16x32xf32>
    %482 = arith.mulf %480, %481 : vector<16x32xf32>
    %483 = vector.broadcast %462 : vector<1x32xf32> to vector<16x32xf32>
    %484 = arith.addf %482, %483 : vector<16x32xf32>
    %c0_205 = arith.constant 0 : index
    %c0_206 = arith.constant 0 : index
    %c0_207 = arith.constant 0 : index
    %485 = vector.load %arg6[%c0_205, %c0_206, %c0_207] : memref<4x32x64xbf16, #tpu.memory_space<vmem>>, vector<1x32x64xbf16>
    %486 = vector.shape_cast %485 : vector<1x32x64xbf16> to vector<32x64xbf16>
    %c0_208 = arith.constant 0 : index
    %c0_209 = arith.constant 0 : index
    %c0_210 = arith.constant 0 : index
    %487 = vector.load %arg10[%c0_208, %c0_209, %c0_210] : memref<4x1x64xf32, #tpu.memory_space<vmem>>, vector<1x1x64xf32>
    %488 = vector.shape_cast %487 : vector<1x1x64xf32> to vector<1x64xf32>
    %489 = arith.truncf %484 : vector<16x32xf32> to vector<16x32xbf16>
    %cst_211 = arith.constant dense<0.000000e+00> : vector<16x64xf32>
    %490 = tpu.matmul %489, %486, %cst_211 {dimension_numbers = #tpu.dot_dimension_numbers<[1], [0], [0], [1], [0, 0, 1, 1], [], []>} : vector<16x32xbf16>, vector<32x64xbf16>, vector<16x64xf32> -> vector<16x64xf32>
    %491 = vector.broadcast %488 : vector<1x64xf32> to vector<16x64xf32>
    %492 = arith.addf %490, %491 : vector<16x64xf32>
    %cst_212 = arith.constant 0.000000e+00 : f32
    %493 = vector.broadcast %cst_212 : f32 to vector<16x64xf32>
    %494 = arith.maximumf %492, %493 : vector<16x64xf32>
    %c0_213 = arith.constant 0 : index
    %c0_214 = arith.constant 0 : index
    %c0_215 = arith.constant 0 : index
    %495 = vector.load %arg7[%c0_213, %c0_214, %c0_215] : memref<4x64x32xbf16, #tpu.memory_space<vmem>>, vector<1x64x32xbf16>
    %496 = vector.shape_cast %495 : vector<1x64x32xbf16> to vector<64x32xbf16>
    %c24 = arith.constant 24 : index
    %c0_216 = arith.constant 0 : index
    %c0_217 = arith.constant 0 : index
    %497 = vector.load %arg9[%c24, %c0_216, %c0_217] : memref<48x1x32xf32, #tpu.memory_space<vmem>>, vector<1x1x32xf32>
    %498 = vector.shape_cast %497 : vector<1x1x32xf32> to vector<1x32xf32>
    %499 = arith.truncf %494 : vector<16x64xf32> to vector<16x64xbf16>
    %cst_218 = arith.constant dense<0.000000e+00> : vector<16x32xf32>
    %500 = tpu.matmul %499, %496, %cst_218 {dimension_numbers = #tpu.dot_dimension_numbers<[1], [0], [0], [1], [0, 0, 1, 1], [], []>} : vector<16x64xbf16>, vector<64x32xbf16>, vector<16x32xf32> -> vector<16x32xf32>
    %501 = vector.broadcast %498 : vector<1x32xf32> to vector<16x32xf32>
    %502 = arith.addf %500, %501 : vector<16x32xf32>
    %503 = arith.addf %484, %502 : vector<16x32xf32>
    %c29 = arith.constant 29 : index
    %c0_219 = arith.constant 0 : index
    %c0_220 = arith.constant 0 : index
    %504 = vector.load %arg9[%c29, %c0_219, %c0_220] : memref<48x1x32xf32, #tpu.memory_space<vmem>>, vector<1x1x32xf32>
    %505 = vector.shape_cast %504 : vector<1x1x32xf32> to vector<1x32xf32>
    %c39 = arith.constant 39 : index
    %c0_221 = arith.constant 0 : index
    %c0_222 = arith.constant 0 : index
    %506 = vector.load %arg9[%c39, %c0_221, %c0_222] : memref<48x1x32xf32, #tpu.memory_space<vmem>>, vector<1x1x32xf32>
    %507 = vector.shape_cast %506 : vector<1x1x32xf32> to vector<1x32xf32>
    %cst_223 = arith.constant dense<0.000000e+00> : vector<16xf32>
    %508 = vector.multi_reduction <add>, %503, %cst_223 [1] : vector<16x32xf32> to vector<16xf32>
    %509 = vector.shape_cast %508 : vector<16xf32> to vector<16x1xf32>
    %cst_224 = arith.constant 3.200000e+01 : f32
    %510 = vector.broadcast %cst_224 : f32 to vector<16x1xf32>
    %511 = arith.divf %509, %510 : vector<16x1xf32>
    %512 = vector.broadcast %511 : vector<16x1xf32> to vector<16x32xf32>
    %513 = arith.subf %503, %512 : vector<16x32xf32>
    %514 = arith.mulf %513, %513 : vector<16x32xf32>
    %cst_225 = arith.constant dense<0.000000e+00> : vector<16xf32>
    %515 = vector.multi_reduction <add>, %514, %cst_225 [1] : vector<16x32xf32> to vector<16xf32>
    %516 = vector.shape_cast %515 : vector<16xf32> to vector<16x1xf32>
    %cst_226 = arith.constant 3.200000e+01 : f32
    %517 = vector.broadcast %cst_226 : f32 to vector<16x1xf32>
    %518 = arith.divf %516, %517 : vector<16x1xf32>
    %519 = vector.broadcast %511 : vector<16x1xf32> to vector<16x32xf32>
    %520 = arith.subf %503, %519 : vector<16x32xf32>
    %cst_227 = arith.constant 9.99999974E-6 : f32
    %521 = vector.broadcast %cst_227 : f32 to vector<16x1xf32>
    %522 = arith.addf %518, %521 : vector<16x1xf32>
    %523 = math.rsqrt %522 : vector<16x1xf32>
    %524 = vector.broadcast %523 : vector<16x1xf32> to vector<16x32xf32>
    %525 = arith.mulf %520, %524 : vector<16x32xf32>
    %526 = vector.broadcast %505 : vector<1x32xf32> to vector<16x32xf32>
    %527 = arith.mulf %525, %526 : vector<16x32xf32>
    %528 = vector.broadcast %507 : vector<1x32xf32> to vector<16x32xf32>
    %529 = arith.addf %527, %528 : vector<16x32xf32>
    %c4_228 = arith.constant 4 : index
    %c0_229 = arith.constant 0 : index
    %c0_230 = arith.constant 0 : index
    %530 = vector.load %arg5[%c4_228, %c0_229, %c0_230] : memref<24x32x32xbf16, #tpu.memory_space<vmem>>, vector<1x32x32xbf16>
    %531 = vector.shape_cast %530 : vector<1x32x32xbf16> to vector<32x32xbf16>
    %c4_231 = arith.constant 4 : index
    %c0_232 = arith.constant 0 : index
    %c0_233 = arith.constant 0 : index
    %532 = vector.load %arg9[%c4_231, %c0_232, %c0_233] : memref<48x1x32xf32, #tpu.memory_space<vmem>>, vector<1x1x32xf32>
    %533 = vector.shape_cast %532 : vector<1x1x32xf32> to vector<1x32xf32>
    %534 = arith.truncf %529 : vector<16x32xf32> to vector<16x32xbf16>
    %cst_234 = arith.constant dense<0.000000e+00> : vector<16x32xf32>
    %535 = tpu.matmul %534, %531, %cst_234 {dimension_numbers = #tpu.dot_dimension_numbers<[1], [0], [0], [1], [0, 0, 1, 1], [], []>} : vector<16x32xbf16>, vector<32x32xbf16>, vector<16x32xf32> -> vector<16x32xf32>
    %536 = vector.broadcast %533 : vector<1x32xf32> to vector<16x32xf32>
    %537 = arith.addf %535, %536 : vector<16x32xf32>
    %c5_235 = arith.constant 5 : index
    %c0_236 = arith.constant 0 : index
    %c0_237 = arith.constant 0 : index
    %538 = vector.load %arg5[%c5_235, %c0_236, %c0_237] : memref<24x32x32xbf16, #tpu.memory_space<vmem>>, vector<1x32x32xbf16>
    %539 = vector.shape_cast %538 : vector<1x32x32xbf16> to vector<32x32xbf16>
    %c5_238 = arith.constant 5 : index
    %c0_239 = arith.constant 0 : index
    %c0_240 = arith.constant 0 : index
    %540 = vector.load %arg9[%c5_238, %c0_239, %c0_240] : memref<48x1x32xf32, #tpu.memory_space<vmem>>, vector<1x1x32xf32>
    %541 = vector.shape_cast %540 : vector<1x1x32xf32> to vector<1x32xf32>
    %542 = arith.truncf %529 : vector<16x32xf32> to vector<16x32xbf16>
    %cst_241 = arith.constant dense<0.000000e+00> : vector<16x32xf32>
    %543 = tpu.matmul %542, %539, %cst_241 {dimension_numbers = #tpu.dot_dimension_numbers<[1], [0], [0], [1], [0, 0, 1, 1], [], []>} : vector<16x32xbf16>, vector<32x32xbf16>, vector<16x32xf32> -> vector<16x32xf32>
    %544 = vector.broadcast %541 : vector<1x32xf32> to vector<16x32xf32>
    %545 = arith.addf %543, %544 : vector<16x32xf32>
    %c6_242 = arith.constant 6 : index
    %c0_243 = arith.constant 0 : index
    %c0_244 = arith.constant 0 : index
    %546 = vector.load %arg5[%c6_242, %c0_243, %c0_244] : memref<24x32x32xbf16, #tpu.memory_space<vmem>>, vector<1x32x32xbf16>
    %547 = vector.shape_cast %546 : vector<1x32x32xbf16> to vector<32x32xbf16>
    %c6_245 = arith.constant 6 : index
    %c0_246 = arith.constant 0 : index
    %c0_247 = arith.constant 0 : index
    %548 = vector.load %arg9[%c6_245, %c0_246, %c0_247] : memref<48x1x32xf32, #tpu.memory_space<vmem>>, vector<1x1x32xf32>
    %549 = vector.shape_cast %548 : vector<1x1x32xf32> to vector<1x32xf32>
    %550 = arith.truncf %529 : vector<16x32xf32> to vector<16x32xbf16>
    %cst_248 = arith.constant dense<0.000000e+00> : vector<16x32xf32>
    %551 = tpu.matmul %550, %547, %cst_248 {dimension_numbers = #tpu.dot_dimension_numbers<[1], [0], [0], [1], [0, 0, 1, 1], [], []>} : vector<16x32xbf16>, vector<32x32xbf16>, vector<16x32xf32> -> vector<16x32xf32>
    %552 = vector.broadcast %549 : vector<1x32xf32> to vector<16x32xf32>
    %553 = arith.addf %551, %552 : vector<16x32xf32>
    %554 = vector.extract_strided_slice %537 {offsets = [0, 0], sizes = [8, 32], strides = [1, 1]} : vector<16x32xf32> to vector<8x32xf32>
    %555 = vector.extract_strided_slice %554 {offsets = [0, 0], sizes = [8, 8], strides = [1, 1]} : vector<8x32xf32> to vector<8x8xf32>
    %556 = vector.extract_strided_slice %554 {offsets = [0, 8], sizes = [8, 8], strides = [1, 1]} : vector<8x32xf32> to vector<8x8xf32>
    %557 = vector.extract_strided_slice %554 {offsets = [0, 16], sizes = [8, 8], strides = [1, 1]} : vector<8x32xf32> to vector<8x8xf32>
    %558 = vector.extract_strided_slice %554 {offsets = [0, 24], sizes = [8, 8], strides = [1, 1]} : vector<8x32xf32> to vector<8x8xf32>
    %559 = vector.extract_strided_slice %537 {offsets = [8, 0], sizes = [8, 32], strides = [1, 1]} : vector<16x32xf32> to vector<8x32xf32>
    %560 = vector.extract_strided_slice %559 {offsets = [0, 0], sizes = [8, 8], strides = [1, 1]} : vector<8x32xf32> to vector<8x8xf32>
    %561 = vector.extract_strided_slice %559 {offsets = [0, 8], sizes = [8, 8], strides = [1, 1]} : vector<8x32xf32> to vector<8x8xf32>
    %562 = vector.extract_strided_slice %559 {offsets = [0, 16], sizes = [8, 8], strides = [1, 1]} : vector<8x32xf32> to vector<8x8xf32>
    %563 = vector.extract_strided_slice %559 {offsets = [0, 24], sizes = [8, 8], strides = [1, 1]} : vector<8x32xf32> to vector<8x8xf32>
    %564 = vector.shape_cast %555 : vector<8x8xf32> to vector<1x8x8xf32>
    %565 = vector.shape_cast %556 : vector<8x8xf32> to vector<1x8x8xf32>
    %566 = vector.shape_cast %557 : vector<8x8xf32> to vector<1x8x8xf32>
    %567 = vector.shape_cast %558 : vector<8x8xf32> to vector<1x8x8xf32>
    %568 = vector.shape_cast %560 : vector<8x8xf32> to vector<1x8x8xf32>
    %569 = vector.shape_cast %561 : vector<8x8xf32> to vector<1x8x8xf32>
    %570 = vector.shape_cast %562 : vector<8x8xf32> to vector<1x8x8xf32>
    %571 = vector.shape_cast %563 : vector<8x8xf32> to vector<1x8x8xf32>
    %572 = tpu.concatenate %564, %565, %566, %567, %568, %569, %570, %571 in 0 : vector<1x8x8xf32>, vector<1x8x8xf32>, vector<1x8x8xf32>, vector<1x8x8xf32>, vector<1x8x8xf32>, vector<1x8x8xf32>, vector<1x8x8xf32>, vector<1x8x8xf32> -> vector<8x8x8xf32>
    %573 = vector.extract_strided_slice %545 {offsets = [0, 0], sizes = [8, 32], strides = [1, 1]} : vector<16x32xf32> to vector<8x32xf32>
    %574 = vector.extract_strided_slice %573 {offsets = [0, 0], sizes = [8, 8], strides = [1, 1]} : vector<8x32xf32> to vector<8x8xf32>
    %575 = vector.extract_strided_slice %573 {offsets = [0, 8], sizes = [8, 8], strides = [1, 1]} : vector<8x32xf32> to vector<8x8xf32>
    %576 = vector.extract_strided_slice %573 {offsets = [0, 16], sizes = [8, 8], strides = [1, 1]} : vector<8x32xf32> to vector<8x8xf32>
    %577 = vector.extract_strided_slice %573 {offsets = [0, 24], sizes = [8, 8], strides = [1, 1]} : vector<8x32xf32> to vector<8x8xf32>
    %578 = vector.extract_strided_slice %545 {offsets = [8, 0], sizes = [8, 32], strides = [1, 1]} : vector<16x32xf32> to vector<8x32xf32>
    %579 = vector.extract_strided_slice %578 {offsets = [0, 0], sizes = [8, 8], strides = [1, 1]} : vector<8x32xf32> to vector<8x8xf32>
    %580 = vector.extract_strided_slice %578 {offsets = [0, 8], sizes = [8, 8], strides = [1, 1]} : vector<8x32xf32> to vector<8x8xf32>
    %581 = vector.extract_strided_slice %578 {offsets = [0, 16], sizes = [8, 8], strides = [1, 1]} : vector<8x32xf32> to vector<8x8xf32>
    %582 = vector.extract_strided_slice %578 {offsets = [0, 24], sizes = [8, 8], strides = [1, 1]} : vector<8x32xf32> to vector<8x8xf32>
    %583 = vector.shape_cast %574 : vector<8x8xf32> to vector<1x8x8xf32>
    %584 = vector.shape_cast %575 : vector<8x8xf32> to vector<1x8x8xf32>
    %585 = vector.shape_cast %576 : vector<8x8xf32> to vector<1x8x8xf32>
    %586 = vector.shape_cast %577 : vector<8x8xf32> to vector<1x8x8xf32>
    %587 = vector.shape_cast %579 : vector<8x8xf32> to vector<1x8x8xf32>
    %588 = vector.shape_cast %580 : vector<8x8xf32> to vector<1x8x8xf32>
    %589 = vector.shape_cast %581 : vector<8x8xf32> to vector<1x8x8xf32>
    %590 = vector.shape_cast %582 : vector<8x8xf32> to vector<1x8x8xf32>
    %591 = tpu.concatenate %583, %584, %585, %586, %587, %588, %589, %590 in 0 : vector<1x8x8xf32>, vector<1x8x8xf32>, vector<1x8x8xf32>, vector<1x8x8xf32>, vector<1x8x8xf32>, vector<1x8x8xf32>, vector<1x8x8xf32>, vector<1x8x8xf32> -> vector<8x8x8xf32>
    %592 = vector.extract_strided_slice %553 {offsets = [0, 0], sizes = [8, 32], strides = [1, 1]} : vector<16x32xf32> to vector<8x32xf32>
    %593 = vector.extract_strided_slice %592 {offsets = [0, 0], sizes = [8, 8], strides = [1, 1]} : vector<8x32xf32> to vector<8x8xf32>
    %594 = vector.extract_strided_slice %592 {offsets = [0, 8], sizes = [8, 8], strides = [1, 1]} : vector<8x32xf32> to vector<8x8xf32>
    %595 = vector.extract_strided_slice %592 {offsets = [0, 16], sizes = [8, 8], strides = [1, 1]} : vector<8x32xf32> to vector<8x8xf32>
    %596 = vector.extract_strided_slice %592 {offsets = [0, 24], sizes = [8, 8], strides = [1, 1]} : vector<8x32xf32> to vector<8x8xf32>
    %597 = vector.extract_strided_slice %553 {offsets = [8, 0], sizes = [8, 32], strides = [1, 1]} : vector<16x32xf32> to vector<8x32xf32>
    %598 = vector.extract_strided_slice %597 {offsets = [0, 0], sizes = [8, 8], strides = [1, 1]} : vector<8x32xf32> to vector<8x8xf32>
    %599 = vector.extract_strided_slice %597 {offsets = [0, 8], sizes = [8, 8], strides = [1, 1]} : vector<8x32xf32> to vector<8x8xf32>
    %600 = vector.extract_strided_slice %597 {offsets = [0, 16], sizes = [8, 8], strides = [1, 1]} : vector<8x32xf32> to vector<8x8xf32>
    %601 = vector.extract_strided_slice %597 {offsets = [0, 24], sizes = [8, 8], strides = [1, 1]} : vector<8x32xf32> to vector<8x8xf32>
    %602 = vector.shape_cast %593 : vector<8x8xf32> to vector<1x8x8xf32>
    %603 = vector.shape_cast %594 : vector<8x8xf32> to vector<1x8x8xf32>
    %604 = vector.shape_cast %595 : vector<8x8xf32> to vector<1x8x8xf32>
    %605 = vector.shape_cast %596 : vector<8x8xf32> to vector<1x8x8xf32>
    %606 = vector.shape_cast %598 : vector<8x8xf32> to vector<1x8x8xf32>
    %607 = vector.shape_cast %599 : vector<8x8xf32> to vector<1x8x8xf32>
    %608 = vector.shape_cast %600 : vector<8x8xf32> to vector<1x8x8xf32>
    %609 = vector.shape_cast %601 : vector<8x8xf32> to vector<1x8x8xf32>
    %610 = tpu.concatenate %602, %603, %604, %605, %606, %607, %608, %609 in 0 : vector<1x8x8xf32>, vector<1x8x8xf32>, vector<1x8x8xf32>, vector<1x8x8xf32>, vector<1x8x8xf32>, vector<1x8x8xf32>, vector<1x8x8xf32>, vector<1x8x8xf32> -> vector<8x8x8xf32>
    %611 = arith.truncf %572 : vector<8x8x8xf32> to vector<8x8x8xbf16>
    %612 = arith.truncf %591 : vector<8x8x8xf32> to vector<8x8x8xbf16>
    "tpu.trace_start"() <{level = 10 : i32, message = "bqd,bkd->bqk"}> : () -> ()
    %cst_249 = arith.constant dense<0.000000e+00> : vector<8x8x8xf32>
    %613 = tpu.matmul %611, %612, %cst_249 {dimension_numbers = #tpu.dot_dimension_numbers<[2], [2], [1], [1], [0, 0, 0, 1, 1, 1], [0], [0]>} : vector<8x8x8xbf16>, vector<8x8x8xbf16>, vector<8x8x8xf32> -> vector<8x8x8xf32>
    "tpu.trace_stop"() : () -> ()
    %cst_250 = arith.constant 0.353553385 : f32
    %614 = vector.broadcast %cst_250 : f32 to vector<8x8x8xf32>
    %615 = arith.mulf %613, %614 : vector<8x8x8xf32>
    %cst_251 = arith.constant 5.000000e-01 : f32
    %616 = vector.broadcast %cst_251 : f32 to vector<8x1x8xf32>
    %617 = arith.cmpf ogt, %297, %616 : vector<8x1x8xf32>
    %cst_252 = arith.constant -1.000000e+09 : f32
    %618 = vector.shape_cast %617 : vector<8x1x8xi1> to vector<8x1x8xi1>
    %619 = vector.broadcast %618 : vector<8x1x8xi1> to vector<8x8x8xi1>
    %620 = vector.broadcast %cst_252 : f32 to vector<8x8x8xf32>
    %621 = arith.select %619, %615, %620 : vector<8x8x8xi1>, vector<8x8x8xf32>
    %cst_253 = arith.constant dense<0xFF800000> : vector<8x8xf32>
    %622 = vector.multi_reduction <maximumf>, %621, %cst_253 [2] : vector<8x8x8xf32> to vector<8x8xf32>
    %623 = vector.shape_cast %622 : vector<8x8xf32> to vector<8x8x1xf32>
    %624 = vector.broadcast %623 : vector<8x8x1xf32> to vector<8x8x8xf32>
    %625 = arith.subf %621, %624 : vector<8x8x8xf32>
    %626 = math.exp %625 : vector<8x8x8xf32>
    %cst_254 = arith.constant dense<0.000000e+00> : vector<8x8xf32>
    %627 = vector.multi_reduction <add>, %626, %cst_254 [2] : vector<8x8x8xf32> to vector<8x8xf32>
    %628 = vector.shape_cast %627 : vector<8x8xf32> to vector<8x8x1xf32>
    %629 = tpu.reciprocal %628 {approx = true} : vector<8x8x1xf32> -> vector<8x8x1xf32>
    %630 = vector.broadcast %629 : vector<8x8x1xf32> to vector<8x8x8xf32>
    %631 = arith.mulf %626, %630 : vector<8x8x8xf32>
    %632 = arith.truncf %631 : vector<8x8x8xf32> to vector<8x8x8xbf16>
    %633 = arith.truncf %610 : vector<8x8x8xf32> to vector<8x8x8xbf16>
    "tpu.trace_start"() <{level = 10 : i32, message = "bqk,bkd->bqd"}> : () -> ()
    %cst_255 = arith.constant dense<0.000000e+00> : vector<8x8x8xf32>
    %634 = tpu.matmul %632, %633, %cst_255 {dimension_numbers = #tpu.dot_dimension_numbers<[2], [1], [1], [2], [0, 0, 0, 1, 1, 2], [0], [0]>} : vector<8x8x8xbf16>, vector<8x8x8xbf16>, vector<8x8x8xf32> -> vector<8x8x8xf32>
    "tpu.trace_stop"() : () -> ()
    %635 = vector.extract_strided_slice %634 {offsets = [0, 0, 0], sizes = [1, 8, 8], strides = [1, 1, 1]} : vector<8x8x8xf32> to vector<1x8x8xf32>
    %636 = vector.shape_cast %635 : vector<1x8x8xf32> to vector<8x8xf32>
    %637 = vector.extract_strided_slice %634 {offsets = [1, 0, 0], sizes = [1, 8, 8], strides = [1, 1, 1]} : vector<8x8x8xf32> to vector<1x8x8xf32>
    %638 = vector.shape_cast %637 : vector<1x8x8xf32> to vector<8x8xf32>
    %639 = vector.extract_strided_slice %634 {offsets = [2, 0, 0], sizes = [1, 8, 8], strides = [1, 1, 1]} : vector<8x8x8xf32> to vector<1x8x8xf32>
    %640 = vector.shape_cast %639 : vector<1x8x8xf32> to vector<8x8xf32>
    %641 = vector.extract_strided_slice %634 {offsets = [3, 0, 0], sizes = [1, 8, 8], strides = [1, 1, 1]} : vector<8x8x8xf32> to vector<1x8x8xf32>
    %642 = vector.shape_cast %641 : vector<1x8x8xf32> to vector<8x8xf32>
    %643 = tpu.concatenate %636, %638, %640, %642 in 1 : vector<8x8xf32>, vector<8x8xf32>, vector<8x8xf32>, vector<8x8xf32> -> vector<8x32xf32>
    %644 = vector.extract_strided_slice %634 {offsets = [4, 0, 0], sizes = [1, 8, 8], strides = [1, 1, 1]} : vector<8x8x8xf32> to vector<1x8x8xf32>
    %645 = vector.shape_cast %644 : vector<1x8x8xf32> to vector<8x8xf32>
    %646 = vector.extract_strided_slice %634 {offsets = [5, 0, 0], sizes = [1, 8, 8], strides = [1, 1, 1]} : vector<8x8x8xf32> to vector<1x8x8xf32>
    %647 = vector.shape_cast %646 : vector<1x8x8xf32> to vector<8x8xf32>
    %648 = vector.extract_strided_slice %634 {offsets = [6, 0, 0], sizes = [1, 8, 8], strides = [1, 1, 1]} : vector<8x8x8xf32> to vector<1x8x8xf32>
    %649 = vector.shape_cast %648 : vector<1x8x8xf32> to vector<8x8xf32>
    %650 = vector.extract_strided_slice %634 {offsets = [7, 0, 0], sizes = [1, 8, 8], strides = [1, 1, 1]} : vector<8x8x8xf32> to vector<1x8x8xf32>
    %651 = vector.shape_cast %650 : vector<1x8x8xf32> to vector<8x8xf32>
    %652 = tpu.concatenate %645, %647, %649, %651 in 1 : vector<8x8xf32>, vector<8x8xf32>, vector<8x8xf32>, vector<8x8xf32> -> vector<8x32xf32>
    %653 = tpu.concatenate %643, %652 in 0 : vector<8x32xf32>, vector<8x32xf32> -> vector<16x32xf32>
    %c7_256 = arith.constant 7 : index
    %c0_257 = arith.constant 0 : index
    %c0_258 = arith.constant 0 : index
    %654 = vector.load %arg5[%c7_256, %c0_257, %c0_258] : memref<24x32x32xbf16, #tpu.memory_space<vmem>>, vector<1x32x32xbf16>
    %655 = vector.shape_cast %654 : vector<1x32x32xbf16> to vector<32x32xbf16>
    %c7_259 = arith.constant 7 : index
    %c0_260 = arith.constant 0 : index
    %c0_261 = arith.constant 0 : index
    %656 = vector.load %arg9[%c7_259, %c0_260, %c0_261] : memref<48x1x32xf32, #tpu.memory_space<vmem>>, vector<1x1x32xf32>
    %657 = vector.shape_cast %656 : vector<1x1x32xf32> to vector<1x32xf32>
    %658 = arith.truncf %653 : vector<16x32xf32> to vector<16x32xbf16>
    %cst_262 = arith.constant dense<0.000000e+00> : vector<16x32xf32>
    %659 = tpu.matmul %658, %655, %cst_262 {dimension_numbers = #tpu.dot_dimension_numbers<[1], [0], [0], [1], [0, 0, 1, 1], [], []>} : vector<16x32xbf16>, vector<32x32xbf16>, vector<16x32xf32> -> vector<16x32xf32>
    %660 = vector.broadcast %657 : vector<1x32xf32> to vector<16x32xf32>
    %661 = arith.addf %659, %660 : vector<16x32xf32>
    %662 = arith.addf %529, %661 : vector<16x32xf32>
    %c30 = arith.constant 30 : index
    %c0_263 = arith.constant 0 : index
    %c0_264 = arith.constant 0 : index
    %663 = vector.load %arg9[%c30, %c0_263, %c0_264] : memref<48x1x32xf32, #tpu.memory_space<vmem>>, vector<1x1x32xf32>
    %664 = vector.shape_cast %663 : vector<1x1x32xf32> to vector<1x32xf32>
    %c40 = arith.constant 40 : index
    %c0_265 = arith.constant 0 : index
    %c0_266 = arith.constant 0 : index
    %665 = vector.load %arg9[%c40, %c0_265, %c0_266] : memref<48x1x32xf32, #tpu.memory_space<vmem>>, vector<1x1x32xf32>
    %666 = vector.shape_cast %665 : vector<1x1x32xf32> to vector<1x32xf32>
    %cst_267 = arith.constant dense<0.000000e+00> : vector<16xf32>
    %667 = vector.multi_reduction <add>, %662, %cst_267 [1] : vector<16x32xf32> to vector<16xf32>
    %668 = vector.shape_cast %667 : vector<16xf32> to vector<16x1xf32>
    %cst_268 = arith.constant 3.200000e+01 : f32
    %669 = vector.broadcast %cst_268 : f32 to vector<16x1xf32>
    %670 = arith.divf %668, %669 : vector<16x1xf32>
    %671 = vector.broadcast %670 : vector<16x1xf32> to vector<16x32xf32>
    %672 = arith.subf %662, %671 : vector<16x32xf32>
    %673 = arith.mulf %672, %672 : vector<16x32xf32>
    %cst_269 = arith.constant dense<0.000000e+00> : vector<16xf32>
    %674 = vector.multi_reduction <add>, %673, %cst_269 [1] : vector<16x32xf32> to vector<16xf32>
    %675 = vector.shape_cast %674 : vector<16xf32> to vector<16x1xf32>
    %cst_270 = arith.constant 3.200000e+01 : f32
    %676 = vector.broadcast %cst_270 : f32 to vector<16x1xf32>
    %677 = arith.divf %675, %676 : vector<16x1xf32>
    %678 = vector.broadcast %670 : vector<16x1xf32> to vector<16x32xf32>
    %679 = arith.subf %662, %678 : vector<16x32xf32>
    %cst_271 = arith.constant 9.99999974E-6 : f32
    %680 = vector.broadcast %cst_271 : f32 to vector<16x1xf32>
    %681 = arith.addf %677, %680 : vector<16x1xf32>
    %682 = math.rsqrt %681 : vector<16x1xf32>
    %683 = vector.broadcast %682 : vector<16x1xf32> to vector<16x32xf32>
    %684 = arith.mulf %679, %683 : vector<16x32xf32>
    %685 = vector.broadcast %664 : vector<1x32xf32> to vector<16x32xf32>
    %686 = arith.mulf %684, %685 : vector<16x32xf32>
    %687 = vector.broadcast %666 : vector<1x32xf32> to vector<16x32xf32>
    %688 = arith.addf %686, %687 : vector<16x32xf32>
    %c1_272 = arith.constant 1 : index
    %c0_273 = arith.constant 0 : index
    %c0_274 = arith.constant 0 : index
    %689 = vector.load %arg6[%c1_272, %c0_273, %c0_274] : memref<4x32x64xbf16, #tpu.memory_space<vmem>>, vector<1x32x64xbf16>
    %690 = vector.shape_cast %689 : vector<1x32x64xbf16> to vector<32x64xbf16>
    %c1_275 = arith.constant 1 : index
    %c0_276 = arith.constant 0 : index
    %c0_277 = arith.constant 0 : index
    %691 = vector.load %arg10[%c1_275, %c0_276, %c0_277] : memref<4x1x64xf32, #tpu.memory_space<vmem>>, vector<1x1x64xf32>
    %692 = vector.shape_cast %691 : vector<1x1x64xf32> to vector<1x64xf32>
    %693 = arith.truncf %688 : vector<16x32xf32> to vector<16x32xbf16>
    %cst_278 = arith.constant dense<0.000000e+00> : vector<16x64xf32>
    %694 = tpu.matmul %693, %690, %cst_278 {dimension_numbers = #tpu.dot_dimension_numbers<[1], [0], [0], [1], [0, 0, 1, 1], [], []>} : vector<16x32xbf16>, vector<32x64xbf16>, vector<16x64xf32> -> vector<16x64xf32>
    %695 = vector.broadcast %692 : vector<1x64xf32> to vector<16x64xf32>
    %696 = arith.addf %694, %695 : vector<16x64xf32>
    %cst_279 = arith.constant 0.000000e+00 : f32
    %697 = vector.broadcast %cst_279 : f32 to vector<16x64xf32>
    %698 = arith.maximumf %696, %697 : vector<16x64xf32>
    %c1_280 = arith.constant 1 : index
    %c0_281 = arith.constant 0 : index
    %c0_282 = arith.constant 0 : index
    %699 = vector.load %arg7[%c1_280, %c0_281, %c0_282] : memref<4x64x32xbf16, #tpu.memory_space<vmem>>, vector<1x64x32xbf16>
    %700 = vector.shape_cast %699 : vector<1x64x32xbf16> to vector<64x32xbf16>
    %c25 = arith.constant 25 : index
    %c0_283 = arith.constant 0 : index
    %c0_284 = arith.constant 0 : index
    %701 = vector.load %arg9[%c25, %c0_283, %c0_284] : memref<48x1x32xf32, #tpu.memory_space<vmem>>, vector<1x1x32xf32>
    %702 = vector.shape_cast %701 : vector<1x1x32xf32> to vector<1x32xf32>
    %703 = arith.truncf %698 : vector<16x64xf32> to vector<16x64xbf16>
    %cst_285 = arith.constant dense<0.000000e+00> : vector<16x32xf32>
    %704 = tpu.matmul %703, %700, %cst_285 {dimension_numbers = #tpu.dot_dimension_numbers<[1], [0], [0], [1], [0, 0, 1, 1], [], []>} : vector<16x64xbf16>, vector<64x32xbf16>, vector<16x32xf32> -> vector<16x32xf32>
    %705 = vector.broadcast %702 : vector<1x32xf32> to vector<16x32xf32>
    %706 = arith.addf %704, %705 : vector<16x32xf32>
    %707 = arith.addf %688, %706 : vector<16x32xf32>
    %c31 = arith.constant 31 : index
    %c0_286 = arith.constant 0 : index
    %c0_287 = arith.constant 0 : index
    %708 = vector.load %arg9[%c31, %c0_286, %c0_287] : memref<48x1x32xf32, #tpu.memory_space<vmem>>, vector<1x1x32xf32>
    %709 = vector.shape_cast %708 : vector<1x1x32xf32> to vector<1x32xf32>
    %c41 = arith.constant 41 : index
    %c0_288 = arith.constant 0 : index
    %c0_289 = arith.constant 0 : index
    %710 = vector.load %arg9[%c41, %c0_288, %c0_289] : memref<48x1x32xf32, #tpu.memory_space<vmem>>, vector<1x1x32xf32>
    %711 = vector.shape_cast %710 : vector<1x1x32xf32> to vector<1x32xf32>
    %cst_290 = arith.constant dense<0.000000e+00> : vector<16xf32>
    %712 = vector.multi_reduction <add>, %707, %cst_290 [1] : vector<16x32xf32> to vector<16xf32>
    %713 = vector.shape_cast %712 : vector<16xf32> to vector<16x1xf32>
    %cst_291 = arith.constant 3.200000e+01 : f32
    %714 = vector.broadcast %cst_291 : f32 to vector<16x1xf32>
    %715 = arith.divf %713, %714 : vector<16x1xf32>
    %716 = vector.broadcast %715 : vector<16x1xf32> to vector<16x32xf32>
    %717 = arith.subf %707, %716 : vector<16x32xf32>
    %718 = arith.mulf %717, %717 : vector<16x32xf32>
    %cst_292 = arith.constant dense<0.000000e+00> : vector<16xf32>
    %719 = vector.multi_reduction <add>, %718, %cst_292 [1] : vector<16x32xf32> to vector<16xf32>
    %720 = vector.shape_cast %719 : vector<16xf32> to vector<16x1xf32>
    %cst_293 = arith.constant 3.200000e+01 : f32
    %721 = vector.broadcast %cst_293 : f32 to vector<16x1xf32>
    %722 = arith.divf %720, %721 : vector<16x1xf32>
    %723 = vector.broadcast %715 : vector<16x1xf32> to vector<16x32xf32>
    %724 = arith.subf %707, %723 : vector<16x32xf32>
    %cst_294 = arith.constant 9.99999974E-6 : f32
    %725 = vector.broadcast %cst_294 : f32 to vector<16x1xf32>
    %726 = arith.addf %722, %725 : vector<16x1xf32>
    %727 = math.rsqrt %726 : vector<16x1xf32>
    %728 = vector.broadcast %727 : vector<16x1xf32> to vector<16x32xf32>
    %729 = arith.mulf %724, %728 : vector<16x32xf32>
    %730 = vector.broadcast %709 : vector<1x32xf32> to vector<16x32xf32>
    %731 = arith.mulf %729, %730 : vector<16x32xf32>
    %732 = vector.broadcast %711 : vector<1x32xf32> to vector<16x32xf32>
    %733 = arith.addf %731, %732 : vector<16x32xf32>
    %c8 = arith.constant 8 : index
    %c0_295 = arith.constant 0 : index
    %c0_296 = arith.constant 0 : index
    %734 = vector.load %arg5[%c8, %c0_295, %c0_296] : memref<24x32x32xbf16, #tpu.memory_space<vmem>>, vector<1x32x32xbf16>
    %735 = vector.shape_cast %734 : vector<1x32x32xbf16> to vector<32x32xbf16>
    %c8_297 = arith.constant 8 : index
    %c0_298 = arith.constant 0 : index
    %c0_299 = arith.constant 0 : index
    %736 = vector.load %arg9[%c8_297, %c0_298, %c0_299] : memref<48x1x32xf32, #tpu.memory_space<vmem>>, vector<1x1x32xf32>
    %737 = vector.shape_cast %736 : vector<1x1x32xf32> to vector<1x32xf32>
    %738 = arith.truncf %173 : vector<16x32xf32> to vector<16x32xbf16>
    %cst_300 = arith.constant dense<0.000000e+00> : vector<16x32xf32>
    %739 = tpu.matmul %738, %735, %cst_300 {dimension_numbers = #tpu.dot_dimension_numbers<[1], [0], [0], [1], [0, 0, 1, 1], [], []>} : vector<16x32xbf16>, vector<32x32xbf16>, vector<16x32xf32> -> vector<16x32xf32>
    %740 = vector.broadcast %737 : vector<1x32xf32> to vector<16x32xf32>
    %741 = arith.addf %739, %740 : vector<16x32xf32>
    %c9 = arith.constant 9 : index
    %c0_301 = arith.constant 0 : index
    %c0_302 = arith.constant 0 : index
    %742 = vector.load %arg5[%c9, %c0_301, %c0_302] : memref<24x32x32xbf16, #tpu.memory_space<vmem>>, vector<1x32x32xbf16>
    %743 = vector.shape_cast %742 : vector<1x32x32xbf16> to vector<32x32xbf16>
    %c9_303 = arith.constant 9 : index
    %c0_304 = arith.constant 0 : index
    %c0_305 = arith.constant 0 : index
    %744 = vector.load %arg9[%c9_303, %c0_304, %c0_305] : memref<48x1x32xf32, #tpu.memory_space<vmem>>, vector<1x1x32xf32>
    %745 = vector.shape_cast %744 : vector<1x1x32xf32> to vector<1x32xf32>
    %746 = arith.truncf %173 : vector<16x32xf32> to vector<16x32xbf16>
    %cst_306 = arith.constant dense<0.000000e+00> : vector<16x32xf32>
    %747 = tpu.matmul %746, %743, %cst_306 {dimension_numbers = #tpu.dot_dimension_numbers<[1], [0], [0], [1], [0, 0, 1, 1], [], []>} : vector<16x32xbf16>, vector<32x32xbf16>, vector<16x32xf32> -> vector<16x32xf32>
    %748 = vector.broadcast %745 : vector<1x32xf32> to vector<16x32xf32>
    %749 = arith.addf %747, %748 : vector<16x32xf32>
    %c10 = arith.constant 10 : index
    %c0_307 = arith.constant 0 : index
    %c0_308 = arith.constant 0 : index
    %750 = vector.load %arg5[%c10, %c0_307, %c0_308] : memref<24x32x32xbf16, #tpu.memory_space<vmem>>, vector<1x32x32xbf16>
    %751 = vector.shape_cast %750 : vector<1x32x32xbf16> to vector<32x32xbf16>
    %c10_309 = arith.constant 10 : index
    %c0_310 = arith.constant 0 : index
    %c0_311 = arith.constant 0 : index
    %752 = vector.load %arg9[%c10_309, %c0_310, %c0_311] : memref<48x1x32xf32, #tpu.memory_space<vmem>>, vector<1x1x32xf32>
    %753 = vector.shape_cast %752 : vector<1x1x32xf32> to vector<1x32xf32>
    %754 = arith.truncf %173 : vector<16x32xf32> to vector<16x32xbf16>
    %cst_312 = arith.constant dense<0.000000e+00> : vector<16x32xf32>
    %755 = tpu.matmul %754, %751, %cst_312 {dimension_numbers = #tpu.dot_dimension_numbers<[1], [0], [0], [1], [0, 0, 1, 1], [], []>} : vector<16x32xbf16>, vector<32x32xbf16>, vector<16x32xf32> -> vector<16x32xf32>
    %756 = vector.broadcast %753 : vector<1x32xf32> to vector<16x32xf32>
    %757 = arith.addf %755, %756 : vector<16x32xf32>
    %758 = vector.extract_strided_slice %741 {offsets = [0, 0], sizes = [8, 32], strides = [1, 1]} : vector<16x32xf32> to vector<8x32xf32>
    %759 = vector.extract_strided_slice %758 {offsets = [0, 0], sizes = [8, 8], strides = [1, 1]} : vector<8x32xf32> to vector<8x8xf32>
    %760 = vector.extract_strided_slice %758 {offsets = [0, 8], sizes = [8, 8], strides = [1, 1]} : vector<8x32xf32> to vector<8x8xf32>
    %761 = vector.extract_strided_slice %758 {offsets = [0, 16], sizes = [8, 8], strides = [1, 1]} : vector<8x32xf32> to vector<8x8xf32>
    %762 = vector.extract_strided_slice %758 {offsets = [0, 24], sizes = [8, 8], strides = [1, 1]} : vector<8x32xf32> to vector<8x8xf32>
    %763 = vector.extract_strided_slice %741 {offsets = [8, 0], sizes = [8, 32], strides = [1, 1]} : vector<16x32xf32> to vector<8x32xf32>
    %764 = vector.extract_strided_slice %763 {offsets = [0, 0], sizes = [8, 8], strides = [1, 1]} : vector<8x32xf32> to vector<8x8xf32>
    %765 = vector.extract_strided_slice %763 {offsets = [0, 8], sizes = [8, 8], strides = [1, 1]} : vector<8x32xf32> to vector<8x8xf32>
    %766 = vector.extract_strided_slice %763 {offsets = [0, 16], sizes = [8, 8], strides = [1, 1]} : vector<8x32xf32> to vector<8x8xf32>
    %767 = vector.extract_strided_slice %763 {offsets = [0, 24], sizes = [8, 8], strides = [1, 1]} : vector<8x32xf32> to vector<8x8xf32>
    %768 = vector.shape_cast %759 : vector<8x8xf32> to vector<1x8x8xf32>
    %769 = vector.shape_cast %760 : vector<8x8xf32> to vector<1x8x8xf32>
    %770 = vector.shape_cast %761 : vector<8x8xf32> to vector<1x8x8xf32>
    %771 = vector.shape_cast %762 : vector<8x8xf32> to vector<1x8x8xf32>
    %772 = vector.shape_cast %764 : vector<8x8xf32> to vector<1x8x8xf32>
    %773 = vector.shape_cast %765 : vector<8x8xf32> to vector<1x8x8xf32>
    %774 = vector.shape_cast %766 : vector<8x8xf32> to vector<1x8x8xf32>
    %775 = vector.shape_cast %767 : vector<8x8xf32> to vector<1x8x8xf32>
    %776 = tpu.concatenate %768, %769, %770, %771, %772, %773, %774, %775 in 0 : vector<1x8x8xf32>, vector<1x8x8xf32>, vector<1x8x8xf32>, vector<1x8x8xf32>, vector<1x8x8xf32>, vector<1x8x8xf32>, vector<1x8x8xf32>, vector<1x8x8xf32> -> vector<8x8x8xf32>
    %777 = vector.extract_strided_slice %749 {offsets = [0, 0], sizes = [8, 32], strides = [1, 1]} : vector<16x32xf32> to vector<8x32xf32>
    %778 = vector.extract_strided_slice %777 {offsets = [0, 0], sizes = [8, 8], strides = [1, 1]} : vector<8x32xf32> to vector<8x8xf32>
    %779 = vector.extract_strided_slice %777 {offsets = [0, 8], sizes = [8, 8], strides = [1, 1]} : vector<8x32xf32> to vector<8x8xf32>
    %780 = vector.extract_strided_slice %777 {offsets = [0, 16], sizes = [8, 8], strides = [1, 1]} : vector<8x32xf32> to vector<8x8xf32>
    %781 = vector.extract_strided_slice %777 {offsets = [0, 24], sizes = [8, 8], strides = [1, 1]} : vector<8x32xf32> to vector<8x8xf32>
    %782 = vector.extract_strided_slice %749 {offsets = [8, 0], sizes = [8, 32], strides = [1, 1]} : vector<16x32xf32> to vector<8x32xf32>
    %783 = vector.extract_strided_slice %782 {offsets = [0, 0], sizes = [8, 8], strides = [1, 1]} : vector<8x32xf32> to vector<8x8xf32>
    %784 = vector.extract_strided_slice %782 {offsets = [0, 8], sizes = [8, 8], strides = [1, 1]} : vector<8x32xf32> to vector<8x8xf32>
    %785 = vector.extract_strided_slice %782 {offsets = [0, 16], sizes = [8, 8], strides = [1, 1]} : vector<8x32xf32> to vector<8x8xf32>
    %786 = vector.extract_strided_slice %782 {offsets = [0, 24], sizes = [8, 8], strides = [1, 1]} : vector<8x32xf32> to vector<8x8xf32>
    %787 = vector.shape_cast %778 : vector<8x8xf32> to vector<1x8x8xf32>
    %788 = vector.shape_cast %779 : vector<8x8xf32> to vector<1x8x8xf32>
    %789 = vector.shape_cast %780 : vector<8x8xf32> to vector<1x8x8xf32>
    %790 = vector.shape_cast %781 : vector<8x8xf32> to vector<1x8x8xf32>
    %791 = vector.shape_cast %783 : vector<8x8xf32> to vector<1x8x8xf32>
    %792 = vector.shape_cast %784 : vector<8x8xf32> to vector<1x8x8xf32>
    %793 = vector.shape_cast %785 : vector<8x8xf32> to vector<1x8x8xf32>
    %794 = vector.shape_cast %786 : vector<8x8xf32> to vector<1x8x8xf32>
    %795 = tpu.concatenate %787, %788, %789, %790, %791, %792, %793, %794 in 0 : vector<1x8x8xf32>, vector<1x8x8xf32>, vector<1x8x8xf32>, vector<1x8x8xf32>, vector<1x8x8xf32>, vector<1x8x8xf32>, vector<1x8x8xf32>, vector<1x8x8xf32> -> vector<8x8x8xf32>
    %796 = vector.extract_strided_slice %757 {offsets = [0, 0], sizes = [8, 32], strides = [1, 1]} : vector<16x32xf32> to vector<8x32xf32>
    %797 = vector.extract_strided_slice %796 {offsets = [0, 0], sizes = [8, 8], strides = [1, 1]} : vector<8x32xf32> to vector<8x8xf32>
    %798 = vector.extract_strided_slice %796 {offsets = [0, 8], sizes = [8, 8], strides = [1, 1]} : vector<8x32xf32> to vector<8x8xf32>
    %799 = vector.extract_strided_slice %796 {offsets = [0, 16], sizes = [8, 8], strides = [1, 1]} : vector<8x32xf32> to vector<8x8xf32>
    %800 = vector.extract_strided_slice %796 {offsets = [0, 24], sizes = [8, 8], strides = [1, 1]} : vector<8x32xf32> to vector<8x8xf32>
    %801 = vector.extract_strided_slice %757 {offsets = [8, 0], sizes = [8, 32], strides = [1, 1]} : vector<16x32xf32> to vector<8x32xf32>
    %802 = vector.extract_strided_slice %801 {offsets = [0, 0], sizes = [8, 8], strides = [1, 1]} : vector<8x32xf32> to vector<8x8xf32>
    %803 = vector.extract_strided_slice %801 {offsets = [0, 8], sizes = [8, 8], strides = [1, 1]} : vector<8x32xf32> to vector<8x8xf32>
    %804 = vector.extract_strided_slice %801 {offsets = [0, 16], sizes = [8, 8], strides = [1, 1]} : vector<8x32xf32> to vector<8x8xf32>
    %805 = vector.extract_strided_slice %801 {offsets = [0, 24], sizes = [8, 8], strides = [1, 1]} : vector<8x32xf32> to vector<8x8xf32>
    %806 = vector.shape_cast %797 : vector<8x8xf32> to vector<1x8x8xf32>
    %807 = vector.shape_cast %798 : vector<8x8xf32> to vector<1x8x8xf32>
    %808 = vector.shape_cast %799 : vector<8x8xf32> to vector<1x8x8xf32>
    %809 = vector.shape_cast %800 : vector<8x8xf32> to vector<1x8x8xf32>
    %810 = vector.shape_cast %802 : vector<8x8xf32> to vector<1x8x8xf32>
    %811 = vector.shape_cast %803 : vector<8x8xf32> to vector<1x8x8xf32>
    %812 = vector.shape_cast %804 : vector<8x8xf32> to vector<1x8x8xf32>
    %813 = vector.shape_cast %805 : vector<8x8xf32> to vector<1x8x8xf32>
    %814 = tpu.concatenate %806, %807, %808, %809, %810, %811, %812, %813 in 0 : vector<1x8x8xf32>, vector<1x8x8xf32>, vector<1x8x8xf32>, vector<1x8x8xf32>, vector<1x8x8xf32>, vector<1x8x8xf32>, vector<1x8x8xf32>, vector<1x8x8xf32> -> vector<8x8x8xf32>
    %815 = arith.truncf %776 : vector<8x8x8xf32> to vector<8x8x8xbf16>
    %816 = arith.truncf %795 : vector<8x8x8xf32> to vector<8x8x8xbf16>
    "tpu.trace_start"() <{level = 10 : i32, message = "bqd,bkd->bqk"}> : () -> ()
    %cst_313 = arith.constant dense<0.000000e+00> : vector<8x8x8xf32>
    %817 = tpu.matmul %815, %816, %cst_313 {dimension_numbers = #tpu.dot_dimension_numbers<[2], [2], [1], [1], [0, 0, 0, 1, 1, 1], [0], [0]>} : vector<8x8x8xbf16>, vector<8x8x8xbf16>, vector<8x8x8xf32> -> vector<8x8x8xf32>
    "tpu.trace_stop"() : () -> ()
    %cst_314 = arith.constant 0.353553385 : f32
    %818 = vector.broadcast %cst_314 : f32 to vector<8x8x8xf32>
    %819 = arith.mulf %817, %818 : vector<8x8x8xf32>
    %cst_315 = arith.constant 5.000000e-01 : f32
    %820 = vector.broadcast %cst_315 : f32 to vector<8x8x8xf32>
    %821 = arith.cmpf ogt, %325, %820 : vector<8x8x8xf32>
    %cst_316 = arith.constant -1.000000e+09 : f32
    %822 = vector.broadcast %cst_316 : f32 to vector<8x8x8xf32>
    %823 = arith.select %821, %819, %822 : vector<8x8x8xi1>, vector<8x8x8xf32>
    %cst_317 = arith.constant dense<0xFF800000> : vector<8x8xf32>
    %824 = vector.multi_reduction <maximumf>, %823, %cst_317 [2] : vector<8x8x8xf32> to vector<8x8xf32>
    %825 = vector.shape_cast %824 : vector<8x8xf32> to vector<8x8x1xf32>
    %826 = vector.broadcast %825 : vector<8x8x1xf32> to vector<8x8x8xf32>
    %827 = arith.subf %823, %826 : vector<8x8x8xf32>
    %828 = math.exp %827 : vector<8x8x8xf32>
    %cst_318 = arith.constant dense<0.000000e+00> : vector<8x8xf32>
    %829 = vector.multi_reduction <add>, %828, %cst_318 [2] : vector<8x8x8xf32> to vector<8x8xf32>
    %830 = vector.shape_cast %829 : vector<8x8xf32> to vector<8x8x1xf32>
    %831 = tpu.reciprocal %830 {approx = true} : vector<8x8x1xf32> -> vector<8x8x1xf32>
    %832 = vector.broadcast %831 : vector<8x8x1xf32> to vector<8x8x8xf32>
    %833 = arith.mulf %828, %832 : vector<8x8x8xf32>
    %834 = arith.truncf %833 : vector<8x8x8xf32> to vector<8x8x8xbf16>
    %835 = arith.truncf %814 : vector<8x8x8xf32> to vector<8x8x8xbf16>
    "tpu.trace_start"() <{level = 10 : i32, message = "bqk,bkd->bqd"}> : () -> ()
    %cst_319 = arith.constant dense<0.000000e+00> : vector<8x8x8xf32>
    %836 = tpu.matmul %834, %835, %cst_319 {dimension_numbers = #tpu.dot_dimension_numbers<[2], [1], [1], [2], [0, 0, 0, 1, 1, 2], [0], [0]>} : vector<8x8x8xbf16>, vector<8x8x8xbf16>, vector<8x8x8xf32> -> vector<8x8x8xf32>
    "tpu.trace_stop"() : () -> ()
    %837 = vector.extract_strided_slice %836 {offsets = [0, 0, 0], sizes = [1, 8, 8], strides = [1, 1, 1]} : vector<8x8x8xf32> to vector<1x8x8xf32>
    %838 = vector.shape_cast %837 : vector<1x8x8xf32> to vector<8x8xf32>
    %839 = vector.extract_strided_slice %836 {offsets = [1, 0, 0], sizes = [1, 8, 8], strides = [1, 1, 1]} : vector<8x8x8xf32> to vector<1x8x8xf32>
    %840 = vector.shape_cast %839 : vector<1x8x8xf32> to vector<8x8xf32>
    %841 = vector.extract_strided_slice %836 {offsets = [2, 0, 0], sizes = [1, 8, 8], strides = [1, 1, 1]} : vector<8x8x8xf32> to vector<1x8x8xf32>
    %842 = vector.shape_cast %841 : vector<1x8x8xf32> to vector<8x8xf32>
    %843 = vector.extract_strided_slice %836 {offsets = [3, 0, 0], sizes = [1, 8, 8], strides = [1, 1, 1]} : vector<8x8x8xf32> to vector<1x8x8xf32>
    %844 = vector.shape_cast %843 : vector<1x8x8xf32> to vector<8x8xf32>
    %845 = tpu.concatenate %838, %840, %842, %844 in 1 : vector<8x8xf32>, vector<8x8xf32>, vector<8x8xf32>, vector<8x8xf32> -> vector<8x32xf32>
    %846 = vector.extract_strided_slice %836 {offsets = [4, 0, 0], sizes = [1, 8, 8], strides = [1, 1, 1]} : vector<8x8x8xf32> to vector<1x8x8xf32>
    %847 = vector.shape_cast %846 : vector<1x8x8xf32> to vector<8x8xf32>
    %848 = vector.extract_strided_slice %836 {offsets = [5, 0, 0], sizes = [1, 8, 8], strides = [1, 1, 1]} : vector<8x8x8xf32> to vector<1x8x8xf32>
    %849 = vector.shape_cast %848 : vector<1x8x8xf32> to vector<8x8xf32>
    %850 = vector.extract_strided_slice %836 {offsets = [6, 0, 0], sizes = [1, 8, 8], strides = [1, 1, 1]} : vector<8x8x8xf32> to vector<1x8x8xf32>
    %851 = vector.shape_cast %850 : vector<1x8x8xf32> to vector<8x8xf32>
    %852 = vector.extract_strided_slice %836 {offsets = [7, 0, 0], sizes = [1, 8, 8], strides = [1, 1, 1]} : vector<8x8x8xf32> to vector<1x8x8xf32>
    %853 = vector.shape_cast %852 : vector<1x8x8xf32> to vector<8x8xf32>
    %854 = tpu.concatenate %847, %849, %851, %853 in 1 : vector<8x8xf32>, vector<8x8xf32>, vector<8x8xf32>, vector<8x8xf32> -> vector<8x32xf32>
    %855 = tpu.concatenate %845, %854 in 0 : vector<8x32xf32>, vector<8x32xf32> -> vector<16x32xf32>
    %c11 = arith.constant 11 : index
    %c0_320 = arith.constant 0 : index
    %c0_321 = arith.constant 0 : index
    %856 = vector.load %arg5[%c11, %c0_320, %c0_321] : memref<24x32x32xbf16, #tpu.memory_space<vmem>>, vector<1x32x32xbf16>
    %857 = vector.shape_cast %856 : vector<1x32x32xbf16> to vector<32x32xbf16>
    %c11_322 = arith.constant 11 : index
    %c0_323 = arith.constant 0 : index
    %c0_324 = arith.constant 0 : index
    %858 = vector.load %arg9[%c11_322, %c0_323, %c0_324] : memref<48x1x32xf32, #tpu.memory_space<vmem>>, vector<1x1x32xf32>
    %859 = vector.shape_cast %858 : vector<1x1x32xf32> to vector<1x32xf32>
    %860 = arith.truncf %855 : vector<16x32xf32> to vector<16x32xbf16>
    %cst_325 = arith.constant dense<0.000000e+00> : vector<16x32xf32>
    %861 = tpu.matmul %860, %857, %cst_325 {dimension_numbers = #tpu.dot_dimension_numbers<[1], [0], [0], [1], [0, 0, 1, 1], [], []>} : vector<16x32xbf16>, vector<32x32xbf16>, vector<16x32xf32> -> vector<16x32xf32>
    %862 = vector.broadcast %859 : vector<1x32xf32> to vector<16x32xf32>
    %863 = arith.addf %861, %862 : vector<16x32xf32>
    %864 = arith.addf %173, %863 : vector<16x32xf32>
    %c32 = arith.constant 32 : index
    %c0_326 = arith.constant 0 : index
    %c0_327 = arith.constant 0 : index
    %865 = vector.load %arg9[%c32, %c0_326, %c0_327] : memref<48x1x32xf32, #tpu.memory_space<vmem>>, vector<1x1x32xf32>
    %866 = vector.shape_cast %865 : vector<1x1x32xf32> to vector<1x32xf32>
    %c42 = arith.constant 42 : index
    %c0_328 = arith.constant 0 : index
    %c0_329 = arith.constant 0 : index
    %867 = vector.load %arg9[%c42, %c0_328, %c0_329] : memref<48x1x32xf32, #tpu.memory_space<vmem>>, vector<1x1x32xf32>
    %868 = vector.shape_cast %867 : vector<1x1x32xf32> to vector<1x32xf32>
    %cst_330 = arith.constant dense<0.000000e+00> : vector<16xf32>
    %869 = vector.multi_reduction <add>, %864, %cst_330 [1] : vector<16x32xf32> to vector<16xf32>
    %870 = vector.shape_cast %869 : vector<16xf32> to vector<16x1xf32>
    %cst_331 = arith.constant 3.200000e+01 : f32
    %871 = vector.broadcast %cst_331 : f32 to vector<16x1xf32>
    %872 = arith.divf %870, %871 : vector<16x1xf32>
    %873 = vector.broadcast %872 : vector<16x1xf32> to vector<16x32xf32>
    %874 = arith.subf %864, %873 : vector<16x32xf32>
    %875 = arith.mulf %874, %874 : vector<16x32xf32>
    %cst_332 = arith.constant dense<0.000000e+00> : vector<16xf32>
    %876 = vector.multi_reduction <add>, %875, %cst_332 [1] : vector<16x32xf32> to vector<16xf32>
    %877 = vector.shape_cast %876 : vector<16xf32> to vector<16x1xf32>
    %cst_333 = arith.constant 3.200000e+01 : f32
    %878 = vector.broadcast %cst_333 : f32 to vector<16x1xf32>
    %879 = arith.divf %877, %878 : vector<16x1xf32>
    %880 = vector.broadcast %872 : vector<16x1xf32> to vector<16x32xf32>
    %881 = arith.subf %864, %880 : vector<16x32xf32>
    %cst_334 = arith.constant 9.99999974E-6 : f32
    %882 = vector.broadcast %cst_334 : f32 to vector<16x1xf32>
    %883 = arith.addf %879, %882 : vector<16x1xf32>
    %884 = math.rsqrt %883 : vector<16x1xf32>
    %885 = vector.broadcast %884 : vector<16x1xf32> to vector<16x32xf32>
    %886 = arith.mulf %881, %885 : vector<16x32xf32>
    %887 = vector.broadcast %866 : vector<1x32xf32> to vector<16x32xf32>
    %888 = arith.mulf %886, %887 : vector<16x32xf32>
    %889 = vector.broadcast %868 : vector<1x32xf32> to vector<16x32xf32>
    %890 = arith.addf %888, %889 : vector<16x32xf32>
    %c16 = arith.constant 16 : index
    %c0_335 = arith.constant 0 : index
    %c0_336 = arith.constant 0 : index
    %891 = vector.load %arg5[%c16, %c0_335, %c0_336] : memref<24x32x32xbf16, #tpu.memory_space<vmem>>, vector<1x32x32xbf16>
    %892 = vector.shape_cast %891 : vector<1x32x32xbf16> to vector<32x32xbf16>
    %c16_337 = arith.constant 16 : index
    %c0_338 = arith.constant 0 : index
    %c0_339 = arith.constant 0 : index
    %893 = vector.load %arg9[%c16_337, %c0_338, %c0_339] : memref<48x1x32xf32, #tpu.memory_space<vmem>>, vector<1x1x32xf32>
    %894 = vector.shape_cast %893 : vector<1x1x32xf32> to vector<1x32xf32>
    %895 = arith.truncf %890 : vector<16x32xf32> to vector<16x32xbf16>
    %cst_340 = arith.constant dense<0.000000e+00> : vector<16x32xf32>
    %896 = tpu.matmul %895, %892, %cst_340 {dimension_numbers = #tpu.dot_dimension_numbers<[1], [0], [0], [1], [0, 0, 1, 1], [], []>} : vector<16x32xbf16>, vector<32x32xbf16>, vector<16x32xf32> -> vector<16x32xf32>
    %897 = vector.broadcast %894 : vector<1x32xf32> to vector<16x32xf32>
    %898 = arith.addf %896, %897 : vector<16x32xf32>
    %c17 = arith.constant 17 : index
    %c0_341 = arith.constant 0 : index
    %c0_342 = arith.constant 0 : index
    %899 = vector.load %arg5[%c17, %c0_341, %c0_342] : memref<24x32x32xbf16, #tpu.memory_space<vmem>>, vector<1x32x32xbf16>
    %900 = vector.shape_cast %899 : vector<1x32x32xbf16> to vector<32x32xbf16>
    %c17_343 = arith.constant 17 : index
    %c0_344 = arith.constant 0 : index
    %c0_345 = arith.constant 0 : index
    %901 = vector.load %arg9[%c17_343, %c0_344, %c0_345] : memref<48x1x32xf32, #tpu.memory_space<vmem>>, vector<1x1x32xf32>
    %902 = vector.shape_cast %901 : vector<1x1x32xf32> to vector<1x32xf32>
    %903 = arith.truncf %733 : vector<16x32xf32> to vector<16x32xbf16>
    %cst_346 = arith.constant dense<0.000000e+00> : vector<16x32xf32>
    %904 = tpu.matmul %903, %900, %cst_346 {dimension_numbers = #tpu.dot_dimension_numbers<[1], [0], [0], [1], [0, 0, 1, 1], [], []>} : vector<16x32xbf16>, vector<32x32xbf16>, vector<16x32xf32> -> vector<16x32xf32>
    %905 = vector.broadcast %902 : vector<1x32xf32> to vector<16x32xf32>
    %906 = arith.addf %904, %905 : vector<16x32xf32>
    %c18 = arith.constant 18 : index
    %c0_347 = arith.constant 0 : index
    %c0_348 = arith.constant 0 : index
    %907 = vector.load %arg5[%c18, %c0_347, %c0_348] : memref<24x32x32xbf16, #tpu.memory_space<vmem>>, vector<1x32x32xbf16>
    %908 = vector.shape_cast %907 : vector<1x32x32xbf16> to vector<32x32xbf16>
    %c18_349 = arith.constant 18 : index
    %c0_350 = arith.constant 0 : index
    %c0_351 = arith.constant 0 : index
    %909 = vector.load %arg9[%c18_349, %c0_350, %c0_351] : memref<48x1x32xf32, #tpu.memory_space<vmem>>, vector<1x1x32xf32>
    %910 = vector.shape_cast %909 : vector<1x1x32xf32> to vector<1x32xf32>
    %911 = arith.truncf %733 : vector<16x32xf32> to vector<16x32xbf16>
    %cst_352 = arith.constant dense<0.000000e+00> : vector<16x32xf32>
    %912 = tpu.matmul %911, %908, %cst_352 {dimension_numbers = #tpu.dot_dimension_numbers<[1], [0], [0], [1], [0, 0, 1, 1], [], []>} : vector<16x32xbf16>, vector<32x32xbf16>, vector<16x32xf32> -> vector<16x32xf32>
    %913 = vector.broadcast %910 : vector<1x32xf32> to vector<16x32xf32>
    %914 = arith.addf %912, %913 : vector<16x32xf32>
    %915 = vector.extract_strided_slice %898 {offsets = [0, 0], sizes = [8, 32], strides = [1, 1]} : vector<16x32xf32> to vector<8x32xf32>
    %916 = vector.extract_strided_slice %915 {offsets = [0, 0], sizes = [8, 8], strides = [1, 1]} : vector<8x32xf32> to vector<8x8xf32>
    %917 = vector.extract_strided_slice %915 {offsets = [0, 8], sizes = [8, 8], strides = [1, 1]} : vector<8x32xf32> to vector<8x8xf32>
    %918 = vector.extract_strided_slice %915 {offsets = [0, 16], sizes = [8, 8], strides = [1, 1]} : vector<8x32xf32> to vector<8x8xf32>
    %919 = vector.extract_strided_slice %915 {offsets = [0, 24], sizes = [8, 8], strides = [1, 1]} : vector<8x32xf32> to vector<8x8xf32>
    %920 = vector.extract_strided_slice %898 {offsets = [8, 0], sizes = [8, 32], strides = [1, 1]} : vector<16x32xf32> to vector<8x32xf32>
    %921 = vector.extract_strided_slice %920 {offsets = [0, 0], sizes = [8, 8], strides = [1, 1]} : vector<8x32xf32> to vector<8x8xf32>
    %922 = vector.extract_strided_slice %920 {offsets = [0, 8], sizes = [8, 8], strides = [1, 1]} : vector<8x32xf32> to vector<8x8xf32>
    %923 = vector.extract_strided_slice %920 {offsets = [0, 16], sizes = [8, 8], strides = [1, 1]} : vector<8x32xf32> to vector<8x8xf32>
    %924 = vector.extract_strided_slice %920 {offsets = [0, 24], sizes = [8, 8], strides = [1, 1]} : vector<8x32xf32> to vector<8x8xf32>
    %925 = vector.shape_cast %916 : vector<8x8xf32> to vector<1x8x8xf32>
    %926 = vector.shape_cast %917 : vector<8x8xf32> to vector<1x8x8xf32>
    %927 = vector.shape_cast %918 : vector<8x8xf32> to vector<1x8x8xf32>
    %928 = vector.shape_cast %919 : vector<8x8xf32> to vector<1x8x8xf32>
    %929 = vector.shape_cast %921 : vector<8x8xf32> to vector<1x8x8xf32>
    %930 = vector.shape_cast %922 : vector<8x8xf32> to vector<1x8x8xf32>
    %931 = vector.shape_cast %923 : vector<8x8xf32> to vector<1x8x8xf32>
    %932 = vector.shape_cast %924 : vector<8x8xf32> to vector<1x8x8xf32>
    %933 = tpu.concatenate %925, %926, %927, %928, %929, %930, %931, %932 in 0 : vector<1x8x8xf32>, vector<1x8x8xf32>, vector<1x8x8xf32>, vector<1x8x8xf32>, vector<1x8x8xf32>, vector<1x8x8xf32>, vector<1x8x8xf32>, vector<1x8x8xf32> -> vector<8x8x8xf32>
    %934 = vector.extract_strided_slice %906 {offsets = [0, 0], sizes = [8, 32], strides = [1, 1]} : vector<16x32xf32> to vector<8x32xf32>
    %935 = vector.extract_strided_slice %934 {offsets = [0, 0], sizes = [8, 8], strides = [1, 1]} : vector<8x32xf32> to vector<8x8xf32>
    %936 = vector.extract_strided_slice %934 {offsets = [0, 8], sizes = [8, 8], strides = [1, 1]} : vector<8x32xf32> to vector<8x8xf32>
    %937 = vector.extract_strided_slice %934 {offsets = [0, 16], sizes = [8, 8], strides = [1, 1]} : vector<8x32xf32> to vector<8x8xf32>
    %938 = vector.extract_strided_slice %934 {offsets = [0, 24], sizes = [8, 8], strides = [1, 1]} : vector<8x32xf32> to vector<8x8xf32>
    %939 = vector.extract_strided_slice %906 {offsets = [8, 0], sizes = [8, 32], strides = [1, 1]} : vector<16x32xf32> to vector<8x32xf32>
    %940 = vector.extract_strided_slice %939 {offsets = [0, 0], sizes = [8, 8], strides = [1, 1]} : vector<8x32xf32> to vector<8x8xf32>
    %941 = vector.extract_strided_slice %939 {offsets = [0, 8], sizes = [8, 8], strides = [1, 1]} : vector<8x32xf32> to vector<8x8xf32>
    %942 = vector.extract_strided_slice %939 {offsets = [0, 16], sizes = [8, 8], strides = [1, 1]} : vector<8x32xf32> to vector<8x8xf32>
    %943 = vector.extract_strided_slice %939 {offsets = [0, 24], sizes = [8, 8], strides = [1, 1]} : vector<8x32xf32> to vector<8x8xf32>
    %944 = vector.shape_cast %935 : vector<8x8xf32> to vector<1x8x8xf32>
    %945 = vector.shape_cast %936 : vector<8x8xf32> to vector<1x8x8xf32>
    %946 = vector.shape_cast %937 : vector<8x8xf32> to vector<1x8x8xf32>
    %947 = vector.shape_cast %938 : vector<8x8xf32> to vector<1x8x8xf32>
    %948 = vector.shape_cast %940 : vector<8x8xf32> to vector<1x8x8xf32>
    %949 = vector.shape_cast %941 : vector<8x8xf32> to vector<1x8x8xf32>
    %950 = vector.shape_cast %942 : vector<8x8xf32> to vector<1x8x8xf32>
    %951 = vector.shape_cast %943 : vector<8x8xf32> to vector<1x8x8xf32>
    %952 = tpu.concatenate %944, %945, %946, %947, %948, %949, %950, %951 in 0 : vector<1x8x8xf32>, vector<1x8x8xf32>, vector<1x8x8xf32>, vector<1x8x8xf32>, vector<1x8x8xf32>, vector<1x8x8xf32>, vector<1x8x8xf32>, vector<1x8x8xf32> -> vector<8x8x8xf32>
    %953 = vector.extract_strided_slice %914 {offsets = [0, 0], sizes = [8, 32], strides = [1, 1]} : vector<16x32xf32> to vector<8x32xf32>
    %954 = vector.extract_strided_slice %953 {offsets = [0, 0], sizes = [8, 8], strides = [1, 1]} : vector<8x32xf32> to vector<8x8xf32>
    %955 = vector.extract_strided_slice %953 {offsets = [0, 8], sizes = [8, 8], strides = [1, 1]} : vector<8x32xf32> to vector<8x8xf32>
    %956 = vector.extract_strided_slice %953 {offsets = [0, 16], sizes = [8, 8], strides = [1, 1]} : vector<8x32xf32> to vector<8x8xf32>
    %957 = vector.extract_strided_slice %953 {offsets = [0, 24], sizes = [8, 8], strides = [1, 1]} : vector<8x32xf32> to vector<8x8xf32>
    %958 = vector.extract_strided_slice %914 {offsets = [8, 0], sizes = [8, 32], strides = [1, 1]} : vector<16x32xf32> to vector<8x32xf32>
    %959 = vector.extract_strided_slice %958 {offsets = [0, 0], sizes = [8, 8], strides = [1, 1]} : vector<8x32xf32> to vector<8x8xf32>
    %960 = vector.extract_strided_slice %958 {offsets = [0, 8], sizes = [8, 8], strides = [1, 1]} : vector<8x32xf32> to vector<8x8xf32>
    %961 = vector.extract_strided_slice %958 {offsets = [0, 16], sizes = [8, 8], strides = [1, 1]} : vector<8x32xf32> to vector<8x8xf32>
    %962 = vector.extract_strided_slice %958 {offsets = [0, 24], sizes = [8, 8], strides = [1, 1]} : vector<8x32xf32> to vector<8x8xf32>
    %963 = vector.shape_cast %954 : vector<8x8xf32> to vector<1x8x8xf32>
    %964 = vector.shape_cast %955 : vector<8x8xf32> to vector<1x8x8xf32>
    %965 = vector.shape_cast %956 : vector<8x8xf32> to vector<1x8x8xf32>
    %966 = vector.shape_cast %957 : vector<8x8xf32> to vector<1x8x8xf32>
    %967 = vector.shape_cast %959 : vector<8x8xf32> to vector<1x8x8xf32>
    %968 = vector.shape_cast %960 : vector<8x8xf32> to vector<1x8x8xf32>
    %969 = vector.shape_cast %961 : vector<8x8xf32> to vector<1x8x8xf32>
    %970 = vector.shape_cast %962 : vector<8x8xf32> to vector<1x8x8xf32>
    %971 = tpu.concatenate %963, %964, %965, %966, %967, %968, %969, %970 in 0 : vector<1x8x8xf32>, vector<1x8x8xf32>, vector<1x8x8xf32>, vector<1x8x8xf32>, vector<1x8x8xf32>, vector<1x8x8xf32>, vector<1x8x8xf32>, vector<1x8x8xf32> -> vector<8x8x8xf32>
    %972 = arith.truncf %933 : vector<8x8x8xf32> to vector<8x8x8xbf16>
    %973 = arith.truncf %952 : vector<8x8x8xf32> to vector<8x8x8xbf16>
    "tpu.trace_start"() <{level = 10 : i32, message = "bqd,bkd->bqk"}> : () -> ()
    %cst_353 = arith.constant dense<0.000000e+00> : vector<8x8x8xf32>
    %974 = tpu.matmul %972, %973, %cst_353 {dimension_numbers = #tpu.dot_dimension_numbers<[2], [2], [1], [1], [0, 0, 0, 1, 1, 1], [0], [0]>} : vector<8x8x8xbf16>, vector<8x8x8xbf16>, vector<8x8x8xf32> -> vector<8x8x8xf32>
    "tpu.trace_stop"() : () -> ()
    %cst_354 = arith.constant 0.353553385 : f32
    %975 = vector.broadcast %cst_354 : f32 to vector<8x8x8xf32>
    %976 = arith.mulf %974, %975 : vector<8x8x8xf32>
    %cst_355 = arith.constant 5.000000e-01 : f32
    %977 = vector.broadcast %cst_355 : f32 to vector<8x1x8xf32>
    %978 = arith.cmpf ogt, %297, %977 : vector<8x1x8xf32>
    %cst_356 = arith.constant -1.000000e+09 : f32
    %979 = vector.shape_cast %978 : vector<8x1x8xi1> to vector<8x1x8xi1>
    %980 = vector.broadcast %979 : vector<8x1x8xi1> to vector<8x8x8xi1>
    %981 = vector.broadcast %cst_356 : f32 to vector<8x8x8xf32>
    %982 = arith.select %980, %976, %981 : vector<8x8x8xi1>, vector<8x8x8xf32>
    %cst_357 = arith.constant dense<0xFF800000> : vector<8x8xf32>
    %983 = vector.multi_reduction <maximumf>, %982, %cst_357 [2] : vector<8x8x8xf32> to vector<8x8xf32>
    %984 = vector.shape_cast %983 : vector<8x8xf32> to vector<8x8x1xf32>
    %985 = vector.broadcast %984 : vector<8x8x1xf32> to vector<8x8x8xf32>
    %986 = arith.subf %982, %985 : vector<8x8x8xf32>
    %987 = math.exp %986 : vector<8x8x8xf32>
    %cst_358 = arith.constant dense<0.000000e+00> : vector<8x8xf32>
    %988 = vector.multi_reduction <add>, %987, %cst_358 [2] : vector<8x8x8xf32> to vector<8x8xf32>
    %989 = vector.shape_cast %988 : vector<8x8xf32> to vector<8x8x1xf32>
    %990 = tpu.reciprocal %989 {approx = true} : vector<8x8x1xf32> -> vector<8x8x1xf32>
    %991 = vector.broadcast %990 : vector<8x8x1xf32> to vector<8x8x8xf32>
    %992 = arith.mulf %987, %991 : vector<8x8x8xf32>
    %993 = arith.truncf %992 : vector<8x8x8xf32> to vector<8x8x8xbf16>
    %994 = arith.truncf %971 : vector<8x8x8xf32> to vector<8x8x8xbf16>
    "tpu.trace_start"() <{level = 10 : i32, message = "bqk,bkd->bqd"}> : () -> ()
    %cst_359 = arith.constant dense<0.000000e+00> : vector<8x8x8xf32>
    %995 = tpu.matmul %993, %994, %cst_359 {dimension_numbers = #tpu.dot_dimension_numbers<[2], [1], [1], [2], [0, 0, 0, 1, 1, 2], [0], [0]>} : vector<8x8x8xbf16>, vector<8x8x8xbf16>, vector<8x8x8xf32> -> vector<8x8x8xf32>
    "tpu.trace_stop"() : () -> ()
    %996 = vector.extract_strided_slice %995 {offsets = [0, 0, 0], sizes = [1, 8, 8], strides = [1, 1, 1]} : vector<8x8x8xf32> to vector<1x8x8xf32>
    %997 = vector.shape_cast %996 : vector<1x8x8xf32> to vector<8x8xf32>
    %998 = vector.extract_strided_slice %995 {offsets = [1, 0, 0], sizes = [1, 8, 8], strides = [1, 1, 1]} : vector<8x8x8xf32> to vector<1x8x8xf32>
    %999 = vector.shape_cast %998 : vector<1x8x8xf32> to vector<8x8xf32>
    %1000 = vector.extract_strided_slice %995 {offsets = [2, 0, 0], sizes = [1, 8, 8], strides = [1, 1, 1]} : vector<8x8x8xf32> to vector<1x8x8xf32>
    %1001 = vector.shape_cast %1000 : vector<1x8x8xf32> to vector<8x8xf32>
    %1002 = vector.extract_strided_slice %995 {offsets = [3, 0, 0], sizes = [1, 8, 8], strides = [1, 1, 1]} : vector<8x8x8xf32> to vector<1x8x8xf32>
    %1003 = vector.shape_cast %1002 : vector<1x8x8xf32> to vector<8x8xf32>
    %1004 = tpu.concatenate %997, %999, %1001, %1003 in 1 : vector<8x8xf32>, vector<8x8xf32>, vector<8x8xf32>, vector<8x8xf32> -> vector<8x32xf32>
    %1005 = vector.extract_strided_slice %995 {offsets = [4, 0, 0], sizes = [1, 8, 8], strides = [1, 1, 1]} : vector<8x8x8xf32> to vector<1x8x8xf32>
    %1006 = vector.shape_cast %1005 : vector<1x8x8xf32> to vector<8x8xf32>
    %1007 = vector.extract_strided_slice %995 {offsets = [5, 0, 0], sizes = [1, 8, 8], strides = [1, 1, 1]} : vector<8x8x8xf32> to vector<1x8x8xf32>
    %1008 = vector.shape_cast %1007 : vector<1x8x8xf32> to vector<8x8xf32>
    %1009 = vector.extract_strided_slice %995 {offsets = [6, 0, 0], sizes = [1, 8, 8], strides = [1, 1, 1]} : vector<8x8x8xf32> to vector<1x8x8xf32>
    %1010 = vector.shape_cast %1009 : vector<1x8x8xf32> to vector<8x8xf32>
    %1011 = vector.extract_strided_slice %995 {offsets = [7, 0, 0], sizes = [1, 8, 8], strides = [1, 1, 1]} : vector<8x8x8xf32> to vector<1x8x8xf32>
    %1012 = vector.shape_cast %1011 : vector<1x8x8xf32> to vector<8x8xf32>
    %1013 = tpu.concatenate %1006, %1008, %1010, %1012 in 1 : vector<8x8xf32>, vector<8x8xf32>, vector<8x8xf32>, vector<8x8xf32> -> vector<8x32xf32>
    %1014 = tpu.concatenate %1004, %1013 in 0 : vector<8x32xf32>, vector<8x32xf32> -> vector<16x32xf32>
    %c19 = arith.constant 19 : index
    %c0_360 = arith.constant 0 : index
    %c0_361 = arith.constant 0 : index
    %1015 = vector.load %arg5[%c19, %c0_360, %c0_361] : memref<24x32x32xbf16, #tpu.memory_space<vmem>>, vector<1x32x32xbf16>
    %1016 = vector.shape_cast %1015 : vector<1x32x32xbf16> to vector<32x32xbf16>
    %c19_362 = arith.constant 19 : index
    %c0_363 = arith.constant 0 : index
    %c0_364 = arith.constant 0 : index
    %1017 = vector.load %arg9[%c19_362, %c0_363, %c0_364] : memref<48x1x32xf32, #tpu.memory_space<vmem>>, vector<1x1x32xf32>
    %1018 = vector.shape_cast %1017 : vector<1x1x32xf32> to vector<1x32xf32>
    %1019 = arith.truncf %1014 : vector<16x32xf32> to vector<16x32xbf16>
    %cst_365 = arith.constant dense<0.000000e+00> : vector<16x32xf32>
    %1020 = tpu.matmul %1019, %1016, %cst_365 {dimension_numbers = #tpu.dot_dimension_numbers<[1], [0], [0], [1], [0, 0, 1, 1], [], []>} : vector<16x32xbf16>, vector<32x32xbf16>, vector<16x32xf32> -> vector<16x32xf32>
    %1021 = vector.broadcast %1018 : vector<1x32xf32> to vector<16x32xf32>
    %1022 = arith.addf %1020, %1021 : vector<16x32xf32>
    %1023 = arith.addf %890, %1022 : vector<16x32xf32>
    %c33 = arith.constant 33 : index
    %c0_366 = arith.constant 0 : index
    %c0_367 = arith.constant 0 : index
    %1024 = vector.load %arg9[%c33, %c0_366, %c0_367] : memref<48x1x32xf32, #tpu.memory_space<vmem>>, vector<1x1x32xf32>
    %1025 = vector.shape_cast %1024 : vector<1x1x32xf32> to vector<1x32xf32>
    %c43 = arith.constant 43 : index
    %c0_368 = arith.constant 0 : index
    %c0_369 = arith.constant 0 : index
    %1026 = vector.load %arg9[%c43, %c0_368, %c0_369] : memref<48x1x32xf32, #tpu.memory_space<vmem>>, vector<1x1x32xf32>
    %1027 = vector.shape_cast %1026 : vector<1x1x32xf32> to vector<1x32xf32>
    %cst_370 = arith.constant dense<0.000000e+00> : vector<16xf32>
    %1028 = vector.multi_reduction <add>, %1023, %cst_370 [1] : vector<16x32xf32> to vector<16xf32>
    %1029 = vector.shape_cast %1028 : vector<16xf32> to vector<16x1xf32>
    %cst_371 = arith.constant 3.200000e+01 : f32
    %1030 = vector.broadcast %cst_371 : f32 to vector<16x1xf32>
    %1031 = arith.divf %1029, %1030 : vector<16x1xf32>
    %1032 = vector.broadcast %1031 : vector<16x1xf32> to vector<16x32xf32>
    %1033 = arith.subf %1023, %1032 : vector<16x32xf32>
    %1034 = arith.mulf %1033, %1033 : vector<16x32xf32>
    %cst_372 = arith.constant dense<0.000000e+00> : vector<16xf32>
    %1035 = vector.multi_reduction <add>, %1034, %cst_372 [1] : vector<16x32xf32> to vector<16xf32>
    %1036 = vector.shape_cast %1035 : vector<16xf32> to vector<16x1xf32>
    %cst_373 = arith.constant 3.200000e+01 : f32
    %1037 = vector.broadcast %cst_373 : f32 to vector<16x1xf32>
    %1038 = arith.divf %1036, %1037 : vector<16x1xf32>
    %1039 = vector.broadcast %1031 : vector<16x1xf32> to vector<16x32xf32>
    %1040 = arith.subf %1023, %1039 : vector<16x32xf32>
    %cst_374 = arith.constant 9.99999974E-6 : f32
    %1041 = vector.broadcast %cst_374 : f32 to vector<16x1xf32>
    %1042 = arith.addf %1038, %1041 : vector<16x1xf32>
    %1043 = math.rsqrt %1042 : vector<16x1xf32>
    %1044 = vector.broadcast %1043 : vector<16x1xf32> to vector<16x32xf32>
    %1045 = arith.mulf %1040, %1044 : vector<16x32xf32>
    %1046 = vector.broadcast %1025 : vector<1x32xf32> to vector<16x32xf32>
    %1047 = arith.mulf %1045, %1046 : vector<16x32xf32>
    %1048 = vector.broadcast %1027 : vector<1x32xf32> to vector<16x32xf32>
    %1049 = arith.addf %1047, %1048 : vector<16x32xf32>
    %c2_375 = arith.constant 2 : index
    %c0_376 = arith.constant 0 : index
    %c0_377 = arith.constant 0 : index
    %1050 = vector.load %arg6[%c2_375, %c0_376, %c0_377] : memref<4x32x64xbf16, #tpu.memory_space<vmem>>, vector<1x32x64xbf16>
    %1051 = vector.shape_cast %1050 : vector<1x32x64xbf16> to vector<32x64xbf16>
    %c2_378 = arith.constant 2 : index
    %c0_379 = arith.constant 0 : index
    %c0_380 = arith.constant 0 : index
    %1052 = vector.load %arg10[%c2_378, %c0_379, %c0_380] : memref<4x1x64xf32, #tpu.memory_space<vmem>>, vector<1x1x64xf32>
    %1053 = vector.shape_cast %1052 : vector<1x1x64xf32> to vector<1x64xf32>
    %1054 = arith.truncf %1049 : vector<16x32xf32> to vector<16x32xbf16>
    %cst_381 = arith.constant dense<0.000000e+00> : vector<16x64xf32>
    %1055 = tpu.matmul %1054, %1051, %cst_381 {dimension_numbers = #tpu.dot_dimension_numbers<[1], [0], [0], [1], [0, 0, 1, 1], [], []>} : vector<16x32xbf16>, vector<32x64xbf16>, vector<16x64xf32> -> vector<16x64xf32>
    %1056 = vector.broadcast %1053 : vector<1x64xf32> to vector<16x64xf32>
    %1057 = arith.addf %1055, %1056 : vector<16x64xf32>
    %cst_382 = arith.constant 0.000000e+00 : f32
    %1058 = vector.broadcast %cst_382 : f32 to vector<16x64xf32>
    %1059 = arith.maximumf %1057, %1058 : vector<16x64xf32>
    %c2_383 = arith.constant 2 : index
    %c0_384 = arith.constant 0 : index
    %c0_385 = arith.constant 0 : index
    %1060 = vector.load %arg7[%c2_383, %c0_384, %c0_385] : memref<4x64x32xbf16, #tpu.memory_space<vmem>>, vector<1x64x32xbf16>
    %1061 = vector.shape_cast %1060 : vector<1x64x32xbf16> to vector<64x32xbf16>
    %c26 = arith.constant 26 : index
    %c0_386 = arith.constant 0 : index
    %c0_387 = arith.constant 0 : index
    %1062 = vector.load %arg9[%c26, %c0_386, %c0_387] : memref<48x1x32xf32, #tpu.memory_space<vmem>>, vector<1x1x32xf32>
    %1063 = vector.shape_cast %1062 : vector<1x1x32xf32> to vector<1x32xf32>
    %1064 = arith.truncf %1059 : vector<16x64xf32> to vector<16x64xbf16>
    %cst_388 = arith.constant dense<0.000000e+00> : vector<16x32xf32>
    %1065 = tpu.matmul %1064, %1061, %cst_388 {dimension_numbers = #tpu.dot_dimension_numbers<[1], [0], [0], [1], [0, 0, 1, 1], [], []>} : vector<16x64xbf16>, vector<64x32xbf16>, vector<16x32xf32> -> vector<16x32xf32>
    %1066 = vector.broadcast %1063 : vector<1x32xf32> to vector<16x32xf32>
    %1067 = arith.addf %1065, %1066 : vector<16x32xf32>
    %1068 = arith.addf %1049, %1067 : vector<16x32xf32>
    %c34 = arith.constant 34 : index
    %c0_389 = arith.constant 0 : index
    %c0_390 = arith.constant 0 : index
    %1069 = vector.load %arg9[%c34, %c0_389, %c0_390] : memref<48x1x32xf32, #tpu.memory_space<vmem>>, vector<1x1x32xf32>
    %1070 = vector.shape_cast %1069 : vector<1x1x32xf32> to vector<1x32xf32>
    %c44 = arith.constant 44 : index
    %c0_391 = arith.constant 0 : index
    %c0_392 = arith.constant 0 : index
    %1071 = vector.load %arg9[%c44, %c0_391, %c0_392] : memref<48x1x32xf32, #tpu.memory_space<vmem>>, vector<1x1x32xf32>
    %1072 = vector.shape_cast %1071 : vector<1x1x32xf32> to vector<1x32xf32>
    %cst_393 = arith.constant dense<0.000000e+00> : vector<16xf32>
    %1073 = vector.multi_reduction <add>, %1068, %cst_393 [1] : vector<16x32xf32> to vector<16xf32>
    %1074 = vector.shape_cast %1073 : vector<16xf32> to vector<16x1xf32>
    %cst_394 = arith.constant 3.200000e+01 : f32
    %1075 = vector.broadcast %cst_394 : f32 to vector<16x1xf32>
    %1076 = arith.divf %1074, %1075 : vector<16x1xf32>
    %1077 = vector.broadcast %1076 : vector<16x1xf32> to vector<16x32xf32>
    %1078 = arith.subf %1068, %1077 : vector<16x32xf32>
    %1079 = arith.mulf %1078, %1078 : vector<16x32xf32>
    %cst_395 = arith.constant dense<0.000000e+00> : vector<16xf32>
    %1080 = vector.multi_reduction <add>, %1079, %cst_395 [1] : vector<16x32xf32> to vector<16xf32>
    %1081 = vector.shape_cast %1080 : vector<16xf32> to vector<16x1xf32>
    %cst_396 = arith.constant 3.200000e+01 : f32
    %1082 = vector.broadcast %cst_396 : f32 to vector<16x1xf32>
    %1083 = arith.divf %1081, %1082 : vector<16x1xf32>
    %1084 = vector.broadcast %1076 : vector<16x1xf32> to vector<16x32xf32>
    %1085 = arith.subf %1068, %1084 : vector<16x32xf32>
    %cst_397 = arith.constant 9.99999974E-6 : f32
    %1086 = vector.broadcast %cst_397 : f32 to vector<16x1xf32>
    %1087 = arith.addf %1083, %1086 : vector<16x1xf32>
    %1088 = math.rsqrt %1087 : vector<16x1xf32>
    %1089 = vector.broadcast %1088 : vector<16x1xf32> to vector<16x32xf32>
    %1090 = arith.mulf %1085, %1089 : vector<16x32xf32>
    %1091 = vector.broadcast %1070 : vector<1x32xf32> to vector<16x32xf32>
    %1092 = arith.mulf %1090, %1091 : vector<16x32xf32>
    %1093 = vector.broadcast %1072 : vector<1x32xf32> to vector<16x32xf32>
    %1094 = arith.addf %1092, %1093 : vector<16x32xf32>
    %c12 = arith.constant 12 : index
    %c0_398 = arith.constant 0 : index
    %c0_399 = arith.constant 0 : index
    %1095 = vector.load %arg5[%c12, %c0_398, %c0_399] : memref<24x32x32xbf16, #tpu.memory_space<vmem>>, vector<1x32x32xbf16>
    %1096 = vector.shape_cast %1095 : vector<1x32x32xbf16> to vector<32x32xbf16>
    %c12_400 = arith.constant 12 : index
    %c0_401 = arith.constant 0 : index
    %c0_402 = arith.constant 0 : index
    %1097 = vector.load %arg9[%c12_400, %c0_401, %c0_402] : memref<48x1x32xf32, #tpu.memory_space<vmem>>, vector<1x1x32xf32>
    %1098 = vector.shape_cast %1097 : vector<1x1x32xf32> to vector<1x32xf32>
    %1099 = arith.truncf %1094 : vector<16x32xf32> to vector<16x32xbf16>
    %cst_403 = arith.constant dense<0.000000e+00> : vector<16x32xf32>
    %1100 = tpu.matmul %1099, %1096, %cst_403 {dimension_numbers = #tpu.dot_dimension_numbers<[1], [0], [0], [1], [0, 0, 1, 1], [], []>} : vector<16x32xbf16>, vector<32x32xbf16>, vector<16x32xf32> -> vector<16x32xf32>
    %1101 = vector.broadcast %1098 : vector<1x32xf32> to vector<16x32xf32>
    %1102 = arith.addf %1100, %1101 : vector<16x32xf32>
    %c13 = arith.constant 13 : index
    %c0_404 = arith.constant 0 : index
    %c0_405 = arith.constant 0 : index
    %1103 = vector.load %arg5[%c13, %c0_404, %c0_405] : memref<24x32x32xbf16, #tpu.memory_space<vmem>>, vector<1x32x32xbf16>
    %1104 = vector.shape_cast %1103 : vector<1x32x32xbf16> to vector<32x32xbf16>
    %c13_406 = arith.constant 13 : index
    %c0_407 = arith.constant 0 : index
    %c0_408 = arith.constant 0 : index
    %1105 = vector.load %arg9[%c13_406, %c0_407, %c0_408] : memref<48x1x32xf32, #tpu.memory_space<vmem>>, vector<1x1x32xf32>
    %1106 = vector.shape_cast %1105 : vector<1x1x32xf32> to vector<1x32xf32>
    %1107 = arith.truncf %1094 : vector<16x32xf32> to vector<16x32xbf16>
    %cst_409 = arith.constant dense<0.000000e+00> : vector<16x32xf32>
    %1108 = tpu.matmul %1107, %1104, %cst_409 {dimension_numbers = #tpu.dot_dimension_numbers<[1], [0], [0], [1], [0, 0, 1, 1], [], []>} : vector<16x32xbf16>, vector<32x32xbf16>, vector<16x32xf32> -> vector<16x32xf32>
    %1109 = vector.broadcast %1106 : vector<1x32xf32> to vector<16x32xf32>
    %1110 = arith.addf %1108, %1109 : vector<16x32xf32>
    %c14 = arith.constant 14 : index
    %c0_410 = arith.constant 0 : index
    %c0_411 = arith.constant 0 : index
    %1111 = vector.load %arg5[%c14, %c0_410, %c0_411] : memref<24x32x32xbf16, #tpu.memory_space<vmem>>, vector<1x32x32xbf16>
    %1112 = vector.shape_cast %1111 : vector<1x32x32xbf16> to vector<32x32xbf16>
    %c14_412 = arith.constant 14 : index
    %c0_413 = arith.constant 0 : index
    %c0_414 = arith.constant 0 : index
    %1113 = vector.load %arg9[%c14_412, %c0_413, %c0_414] : memref<48x1x32xf32, #tpu.memory_space<vmem>>, vector<1x1x32xf32>
    %1114 = vector.shape_cast %1113 : vector<1x1x32xf32> to vector<1x32xf32>
    %1115 = arith.truncf %1094 : vector<16x32xf32> to vector<16x32xbf16>
    %cst_415 = arith.constant dense<0.000000e+00> : vector<16x32xf32>
    %1116 = tpu.matmul %1115, %1112, %cst_415 {dimension_numbers = #tpu.dot_dimension_numbers<[1], [0], [0], [1], [0, 0, 1, 1], [], []>} : vector<16x32xbf16>, vector<32x32xbf16>, vector<16x32xf32> -> vector<16x32xf32>
    %1117 = vector.broadcast %1114 : vector<1x32xf32> to vector<16x32xf32>
    %1118 = arith.addf %1116, %1117 : vector<16x32xf32>
    %1119 = vector.extract_strided_slice %1102 {offsets = [0, 0], sizes = [8, 32], strides = [1, 1]} : vector<16x32xf32> to vector<8x32xf32>
    %1120 = vector.extract_strided_slice %1119 {offsets = [0, 0], sizes = [8, 8], strides = [1, 1]} : vector<8x32xf32> to vector<8x8xf32>
    %1121 = vector.extract_strided_slice %1119 {offsets = [0, 8], sizes = [8, 8], strides = [1, 1]} : vector<8x32xf32> to vector<8x8xf32>
    %1122 = vector.extract_strided_slice %1119 {offsets = [0, 16], sizes = [8, 8], strides = [1, 1]} : vector<8x32xf32> to vector<8x8xf32>
    %1123 = vector.extract_strided_slice %1119 {offsets = [0, 24], sizes = [8, 8], strides = [1, 1]} : vector<8x32xf32> to vector<8x8xf32>
    %1124 = vector.extract_strided_slice %1102 {offsets = [8, 0], sizes = [8, 32], strides = [1, 1]} : vector<16x32xf32> to vector<8x32xf32>
    %1125 = vector.extract_strided_slice %1124 {offsets = [0, 0], sizes = [8, 8], strides = [1, 1]} : vector<8x32xf32> to vector<8x8xf32>
    %1126 = vector.extract_strided_slice %1124 {offsets = [0, 8], sizes = [8, 8], strides = [1, 1]} : vector<8x32xf32> to vector<8x8xf32>
    %1127 = vector.extract_strided_slice %1124 {offsets = [0, 16], sizes = [8, 8], strides = [1, 1]} : vector<8x32xf32> to vector<8x8xf32>
    %1128 = vector.extract_strided_slice %1124 {offsets = [0, 24], sizes = [8, 8], strides = [1, 1]} : vector<8x32xf32> to vector<8x8xf32>
    %1129 = vector.shape_cast %1120 : vector<8x8xf32> to vector<1x8x8xf32>
    %1130 = vector.shape_cast %1121 : vector<8x8xf32> to vector<1x8x8xf32>
    %1131 = vector.shape_cast %1122 : vector<8x8xf32> to vector<1x8x8xf32>
    %1132 = vector.shape_cast %1123 : vector<8x8xf32> to vector<1x8x8xf32>
    %1133 = vector.shape_cast %1125 : vector<8x8xf32> to vector<1x8x8xf32>
    %1134 = vector.shape_cast %1126 : vector<8x8xf32> to vector<1x8x8xf32>
    %1135 = vector.shape_cast %1127 : vector<8x8xf32> to vector<1x8x8xf32>
    %1136 = vector.shape_cast %1128 : vector<8x8xf32> to vector<1x8x8xf32>
    %1137 = tpu.concatenate %1129, %1130, %1131, %1132, %1133, %1134, %1135, %1136 in 0 : vector<1x8x8xf32>, vector<1x8x8xf32>, vector<1x8x8xf32>, vector<1x8x8xf32>, vector<1x8x8xf32>, vector<1x8x8xf32>, vector<1x8x8xf32>, vector<1x8x8xf32> -> vector<8x8x8xf32>
    %1138 = vector.extract_strided_slice %1110 {offsets = [0, 0], sizes = [8, 32], strides = [1, 1]} : vector<16x32xf32> to vector<8x32xf32>
    %1139 = vector.extract_strided_slice %1138 {offsets = [0, 0], sizes = [8, 8], strides = [1, 1]} : vector<8x32xf32> to vector<8x8xf32>
    %1140 = vector.extract_strided_slice %1138 {offsets = [0, 8], sizes = [8, 8], strides = [1, 1]} : vector<8x32xf32> to vector<8x8xf32>
    %1141 = vector.extract_strided_slice %1138 {offsets = [0, 16], sizes = [8, 8], strides = [1, 1]} : vector<8x32xf32> to vector<8x8xf32>
    %1142 = vector.extract_strided_slice %1138 {offsets = [0, 24], sizes = [8, 8], strides = [1, 1]} : vector<8x32xf32> to vector<8x8xf32>
    %1143 = vector.extract_strided_slice %1110 {offsets = [8, 0], sizes = [8, 32], strides = [1, 1]} : vector<16x32xf32> to vector<8x32xf32>
    %1144 = vector.extract_strided_slice %1143 {offsets = [0, 0], sizes = [8, 8], strides = [1, 1]} : vector<8x32xf32> to vector<8x8xf32>
    %1145 = vector.extract_strided_slice %1143 {offsets = [0, 8], sizes = [8, 8], strides = [1, 1]} : vector<8x32xf32> to vector<8x8xf32>
    %1146 = vector.extract_strided_slice %1143 {offsets = [0, 16], sizes = [8, 8], strides = [1, 1]} : vector<8x32xf32> to vector<8x8xf32>
    %1147 = vector.extract_strided_slice %1143 {offsets = [0, 24], sizes = [8, 8], strides = [1, 1]} : vector<8x32xf32> to vector<8x8xf32>
    %1148 = vector.shape_cast %1139 : vector<8x8xf32> to vector<1x8x8xf32>
    %1149 = vector.shape_cast %1140 : vector<8x8xf32> to vector<1x8x8xf32>
    %1150 = vector.shape_cast %1141 : vector<8x8xf32> to vector<1x8x8xf32>
    %1151 = vector.shape_cast %1142 : vector<8x8xf32> to vector<1x8x8xf32>
    %1152 = vector.shape_cast %1144 : vector<8x8xf32> to vector<1x8x8xf32>
    %1153 = vector.shape_cast %1145 : vector<8x8xf32> to vector<1x8x8xf32>
    %1154 = vector.shape_cast %1146 : vector<8x8xf32> to vector<1x8x8xf32>
    %1155 = vector.shape_cast %1147 : vector<8x8xf32> to vector<1x8x8xf32>
    %1156 = tpu.concatenate %1148, %1149, %1150, %1151, %1152, %1153, %1154, %1155 in 0 : vector<1x8x8xf32>, vector<1x8x8xf32>, vector<1x8x8xf32>, vector<1x8x8xf32>, vector<1x8x8xf32>, vector<1x8x8xf32>, vector<1x8x8xf32>, vector<1x8x8xf32> -> vector<8x8x8xf32>
    %1157 = vector.extract_strided_slice %1118 {offsets = [0, 0], sizes = [8, 32], strides = [1, 1]} : vector<16x32xf32> to vector<8x32xf32>
    %1158 = vector.extract_strided_slice %1157 {offsets = [0, 0], sizes = [8, 8], strides = [1, 1]} : vector<8x32xf32> to vector<8x8xf32>
    %1159 = vector.extract_strided_slice %1157 {offsets = [0, 8], sizes = [8, 8], strides = [1, 1]} : vector<8x32xf32> to vector<8x8xf32>
    %1160 = vector.extract_strided_slice %1157 {offsets = [0, 16], sizes = [8, 8], strides = [1, 1]} : vector<8x32xf32> to vector<8x8xf32>
    %1161 = vector.extract_strided_slice %1157 {offsets = [0, 24], sizes = [8, 8], strides = [1, 1]} : vector<8x32xf32> to vector<8x8xf32>
    %1162 = vector.extract_strided_slice %1118 {offsets = [8, 0], sizes = [8, 32], strides = [1, 1]} : vector<16x32xf32> to vector<8x32xf32>
    %1163 = vector.extract_strided_slice %1162 {offsets = [0, 0], sizes = [8, 8], strides = [1, 1]} : vector<8x32xf32> to vector<8x8xf32>
    %1164 = vector.extract_strided_slice %1162 {offsets = [0, 8], sizes = [8, 8], strides = [1, 1]} : vector<8x32xf32> to vector<8x8xf32>
    %1165 = vector.extract_strided_slice %1162 {offsets = [0, 16], sizes = [8, 8], strides = [1, 1]} : vector<8x32xf32> to vector<8x8xf32>
    %1166 = vector.extract_strided_slice %1162 {offsets = [0, 24], sizes = [8, 8], strides = [1, 1]} : vector<8x32xf32> to vector<8x8xf32>
    %1167 = vector.shape_cast %1158 : vector<8x8xf32> to vector<1x8x8xf32>
    %1168 = vector.shape_cast %1159 : vector<8x8xf32> to vector<1x8x8xf32>
    %1169 = vector.shape_cast %1160 : vector<8x8xf32> to vector<1x8x8xf32>
    %1170 = vector.shape_cast %1161 : vector<8x8xf32> to vector<1x8x8xf32>
    %1171 = vector.shape_cast %1163 : vector<8x8xf32> to vector<1x8x8xf32>
    %1172 = vector.shape_cast %1164 : vector<8x8xf32> to vector<1x8x8xf32>
    %1173 = vector.shape_cast %1165 : vector<8x8xf32> to vector<1x8x8xf32>
    %1174 = vector.shape_cast %1166 : vector<8x8xf32> to vector<1x8x8xf32>
    %1175 = tpu.concatenate %1167, %1168, %1169, %1170, %1171, %1172, %1173, %1174 in 0 : vector<1x8x8xf32>, vector<1x8x8xf32>, vector<1x8x8xf32>, vector<1x8x8xf32>, vector<1x8x8xf32>, vector<1x8x8xf32>, vector<1x8x8xf32>, vector<1x8x8xf32> -> vector<8x8x8xf32>
    %1176 = arith.truncf %1137 : vector<8x8x8xf32> to vector<8x8x8xbf16>
    %1177 = arith.truncf %1156 : vector<8x8x8xf32> to vector<8x8x8xbf16>
    "tpu.trace_start"() <{level = 10 : i32, message = "bqd,bkd->bqk"}> : () -> ()
    %cst_416 = arith.constant dense<0.000000e+00> : vector<8x8x8xf32>
    %1178 = tpu.matmul %1176, %1177, %cst_416 {dimension_numbers = #tpu.dot_dimension_numbers<[2], [2], [1], [1], [0, 0, 0, 1, 1, 1], [0], [0]>} : vector<8x8x8xbf16>, vector<8x8x8xbf16>, vector<8x8x8xf32> -> vector<8x8x8xf32>
    "tpu.trace_stop"() : () -> ()
    %cst_417 = arith.constant 0.353553385 : f32
    %1179 = vector.broadcast %cst_417 : f32 to vector<8x8x8xf32>
    %1180 = arith.mulf %1178, %1179 : vector<8x8x8xf32>
    %cst_418 = arith.constant 5.000000e-01 : f32
    %1181 = vector.broadcast %cst_418 : f32 to vector<8x8x8xf32>
    %1182 = arith.cmpf ogt, %325, %1181 : vector<8x8x8xf32>
    %cst_419 = arith.constant -1.000000e+09 : f32
    %1183 = vector.broadcast %cst_419 : f32 to vector<8x8x8xf32>
    %1184 = arith.select %1182, %1180, %1183 : vector<8x8x8xi1>, vector<8x8x8xf32>
    %cst_420 = arith.constant dense<0xFF800000> : vector<8x8xf32>
    %1185 = vector.multi_reduction <maximumf>, %1184, %cst_420 [2] : vector<8x8x8xf32> to vector<8x8xf32>
    %1186 = vector.shape_cast %1185 : vector<8x8xf32> to vector<8x8x1xf32>
    %1187 = vector.broadcast %1186 : vector<8x8x1xf32> to vector<8x8x8xf32>
    %1188 = arith.subf %1184, %1187 : vector<8x8x8xf32>
    %1189 = math.exp %1188 : vector<8x8x8xf32>
    %cst_421 = arith.constant dense<0.000000e+00> : vector<8x8xf32>
    %1190 = vector.multi_reduction <add>, %1189, %cst_421 [2] : vector<8x8x8xf32> to vector<8x8xf32>
    %1191 = vector.shape_cast %1190 : vector<8x8xf32> to vector<8x8x1xf32>
    %1192 = tpu.reciprocal %1191 {approx = true} : vector<8x8x1xf32> -> vector<8x8x1xf32>
    %1193 = vector.broadcast %1192 : vector<8x8x1xf32> to vector<8x8x8xf32>
    %1194 = arith.mulf %1189, %1193 : vector<8x8x8xf32>
    %1195 = arith.truncf %1194 : vector<8x8x8xf32> to vector<8x8x8xbf16>
    %1196 = arith.truncf %1175 : vector<8x8x8xf32> to vector<8x8x8xbf16>
    "tpu.trace_start"() <{level = 10 : i32, message = "bqk,bkd->bqd"}> : () -> ()
    %cst_422 = arith.constant dense<0.000000e+00> : vector<8x8x8xf32>
    %1197 = tpu.matmul %1195, %1196, %cst_422 {dimension_numbers = #tpu.dot_dimension_numbers<[2], [1], [1], [2], [0, 0, 0, 1, 1, 2], [0], [0]>} : vector<8x8x8xbf16>, vector<8x8x8xbf16>, vector<8x8x8xf32> -> vector<8x8x8xf32>
    "tpu.trace_stop"() : () -> ()
    %1198 = vector.extract_strided_slice %1197 {offsets = [0, 0, 0], sizes = [1, 8, 8], strides = [1, 1, 1]} : vector<8x8x8xf32> to vector<1x8x8xf32>
    %1199 = vector.shape_cast %1198 : vector<1x8x8xf32> to vector<8x8xf32>
    %1200 = vector.extract_strided_slice %1197 {offsets = [1, 0, 0], sizes = [1, 8, 8], strides = [1, 1, 1]} : vector<8x8x8xf32> to vector<1x8x8xf32>
    %1201 = vector.shape_cast %1200 : vector<1x8x8xf32> to vector<8x8xf32>
    %1202 = vector.extract_strided_slice %1197 {offsets = [2, 0, 0], sizes = [1, 8, 8], strides = [1, 1, 1]} : vector<8x8x8xf32> to vector<1x8x8xf32>
    %1203 = vector.shape_cast %1202 : vector<1x8x8xf32> to vector<8x8xf32>
    %1204 = vector.extract_strided_slice %1197 {offsets = [3, 0, 0], sizes = [1, 8, 8], strides = [1, 1, 1]} : vector<8x8x8xf32> to vector<1x8x8xf32>
    %1205 = vector.shape_cast %1204 : vector<1x8x8xf32> to vector<8x8xf32>
    %1206 = tpu.concatenate %1199, %1201, %1203, %1205 in 1 : vector<8x8xf32>, vector<8x8xf32>, vector<8x8xf32>, vector<8x8xf32> -> vector<8x32xf32>
    %1207 = vector.extract_strided_slice %1197 {offsets = [4, 0, 0], sizes = [1, 8, 8], strides = [1, 1, 1]} : vector<8x8x8xf32> to vector<1x8x8xf32>
    %1208 = vector.shape_cast %1207 : vector<1x8x8xf32> to vector<8x8xf32>
    %1209 = vector.extract_strided_slice %1197 {offsets = [5, 0, 0], sizes = [1, 8, 8], strides = [1, 1, 1]} : vector<8x8x8xf32> to vector<1x8x8xf32>
    %1210 = vector.shape_cast %1209 : vector<1x8x8xf32> to vector<8x8xf32>
    %1211 = vector.extract_strided_slice %1197 {offsets = [6, 0, 0], sizes = [1, 8, 8], strides = [1, 1, 1]} : vector<8x8x8xf32> to vector<1x8x8xf32>
    %1212 = vector.shape_cast %1211 : vector<1x8x8xf32> to vector<8x8xf32>
    %1213 = vector.extract_strided_slice %1197 {offsets = [7, 0, 0], sizes = [1, 8, 8], strides = [1, 1, 1]} : vector<8x8x8xf32> to vector<1x8x8xf32>
    %1214 = vector.shape_cast %1213 : vector<1x8x8xf32> to vector<8x8xf32>
    %1215 = tpu.concatenate %1208, %1210, %1212, %1214 in 1 : vector<8x8xf32>, vector<8x8xf32>, vector<8x8xf32>, vector<8x8xf32> -> vector<8x32xf32>
    %1216 = tpu.concatenate %1206, %1215 in 0 : vector<8x32xf32>, vector<8x32xf32> -> vector<16x32xf32>
    %c15 = arith.constant 15 : index
    %c0_423 = arith.constant 0 : index
    %c0_424 = arith.constant 0 : index
    %1217 = vector.load %arg5[%c15, %c0_423, %c0_424] : memref<24x32x32xbf16, #tpu.memory_space<vmem>>, vector<1x32x32xbf16>
    %1218 = vector.shape_cast %1217 : vector<1x32x32xbf16> to vector<32x32xbf16>
    %c15_425 = arith.constant 15 : index
    %c0_426 = arith.constant 0 : index
    %c0_427 = arith.constant 0 : index
    %1219 = vector.load %arg9[%c15_425, %c0_426, %c0_427] : memref<48x1x32xf32, #tpu.memory_space<vmem>>, vector<1x1x32xf32>
    %1220 = vector.shape_cast %1219 : vector<1x1x32xf32> to vector<1x32xf32>
    %1221 = arith.truncf %1216 : vector<16x32xf32> to vector<16x32xbf16>
    %cst_428 = arith.constant dense<0.000000e+00> : vector<16x32xf32>
    %1222 = tpu.matmul %1221, %1218, %cst_428 {dimension_numbers = #tpu.dot_dimension_numbers<[1], [0], [0], [1], [0, 0, 1, 1], [], []>} : vector<16x32xbf16>, vector<32x32xbf16>, vector<16x32xf32> -> vector<16x32xf32>
    %1223 = vector.broadcast %1220 : vector<1x32xf32> to vector<16x32xf32>
    %1224 = arith.addf %1222, %1223 : vector<16x32xf32>
    %1225 = arith.addf %1094, %1224 : vector<16x32xf32>
    %c35 = arith.constant 35 : index
    %c0_429 = arith.constant 0 : index
    %c0_430 = arith.constant 0 : index
    %1226 = vector.load %arg9[%c35, %c0_429, %c0_430] : memref<48x1x32xf32, #tpu.memory_space<vmem>>, vector<1x1x32xf32>
    %1227 = vector.shape_cast %1226 : vector<1x1x32xf32> to vector<1x32xf32>
    %c45 = arith.constant 45 : index
    %c0_431 = arith.constant 0 : index
    %c0_432 = arith.constant 0 : index
    %1228 = vector.load %arg9[%c45, %c0_431, %c0_432] : memref<48x1x32xf32, #tpu.memory_space<vmem>>, vector<1x1x32xf32>
    %1229 = vector.shape_cast %1228 : vector<1x1x32xf32> to vector<1x32xf32>
    %cst_433 = arith.constant dense<0.000000e+00> : vector<16xf32>
    %1230 = vector.multi_reduction <add>, %1225, %cst_433 [1] : vector<16x32xf32> to vector<16xf32>
    %1231 = vector.shape_cast %1230 : vector<16xf32> to vector<16x1xf32>
    %cst_434 = arith.constant 3.200000e+01 : f32
    %1232 = vector.broadcast %cst_434 : f32 to vector<16x1xf32>
    %1233 = arith.divf %1231, %1232 : vector<16x1xf32>
    %1234 = vector.broadcast %1233 : vector<16x1xf32> to vector<16x32xf32>
    %1235 = arith.subf %1225, %1234 : vector<16x32xf32>
    %1236 = arith.mulf %1235, %1235 : vector<16x32xf32>
    %cst_435 = arith.constant dense<0.000000e+00> : vector<16xf32>
    %1237 = vector.multi_reduction <add>, %1236, %cst_435 [1] : vector<16x32xf32> to vector<16xf32>
    %1238 = vector.shape_cast %1237 : vector<16xf32> to vector<16x1xf32>
    %cst_436 = arith.constant 3.200000e+01 : f32
    %1239 = vector.broadcast %cst_436 : f32 to vector<16x1xf32>
    %1240 = arith.divf %1238, %1239 : vector<16x1xf32>
    %1241 = vector.broadcast %1233 : vector<16x1xf32> to vector<16x32xf32>
    %1242 = arith.subf %1225, %1241 : vector<16x32xf32>
    %cst_437 = arith.constant 9.99999974E-6 : f32
    %1243 = vector.broadcast %cst_437 : f32 to vector<16x1xf32>
    %1244 = arith.addf %1240, %1243 : vector<16x1xf32>
    %1245 = math.rsqrt %1244 : vector<16x1xf32>
    %1246 = vector.broadcast %1245 : vector<16x1xf32> to vector<16x32xf32>
    %1247 = arith.mulf %1242, %1246 : vector<16x32xf32>
    %1248 = vector.broadcast %1227 : vector<1x32xf32> to vector<16x32xf32>
    %1249 = arith.mulf %1247, %1248 : vector<16x32xf32>
    %1250 = vector.broadcast %1229 : vector<1x32xf32> to vector<16x32xf32>
    %1251 = arith.addf %1249, %1250 : vector<16x32xf32>
    %c20 = arith.constant 20 : index
    %c0_438 = arith.constant 0 : index
    %c0_439 = arith.constant 0 : index
    %1252 = vector.load %arg5[%c20, %c0_438, %c0_439] : memref<24x32x32xbf16, #tpu.memory_space<vmem>>, vector<1x32x32xbf16>
    %1253 = vector.shape_cast %1252 : vector<1x32x32xbf16> to vector<32x32xbf16>
    %c20_440 = arith.constant 20 : index
    %c0_441 = arith.constant 0 : index
    %c0_442 = arith.constant 0 : index
    %1254 = vector.load %arg9[%c20_440, %c0_441, %c0_442] : memref<48x1x32xf32, #tpu.memory_space<vmem>>, vector<1x1x32xf32>
    %1255 = vector.shape_cast %1254 : vector<1x1x32xf32> to vector<1x32xf32>
    %1256 = arith.truncf %1251 : vector<16x32xf32> to vector<16x32xbf16>
    %cst_443 = arith.constant dense<0.000000e+00> : vector<16x32xf32>
    %1257 = tpu.matmul %1256, %1253, %cst_443 {dimension_numbers = #tpu.dot_dimension_numbers<[1], [0], [0], [1], [0, 0, 1, 1], [], []>} : vector<16x32xbf16>, vector<32x32xbf16>, vector<16x32xf32> -> vector<16x32xf32>
    %1258 = vector.broadcast %1255 : vector<1x32xf32> to vector<16x32xf32>
    %1259 = arith.addf %1257, %1258 : vector<16x32xf32>
    %c21 = arith.constant 21 : index
    %c0_444 = arith.constant 0 : index
    %c0_445 = arith.constant 0 : index
    %1260 = vector.load %arg5[%c21, %c0_444, %c0_445] : memref<24x32x32xbf16, #tpu.memory_space<vmem>>, vector<1x32x32xbf16>
    %1261 = vector.shape_cast %1260 : vector<1x32x32xbf16> to vector<32x32xbf16>
    %c21_446 = arith.constant 21 : index
    %c0_447 = arith.constant 0 : index
    %c0_448 = arith.constant 0 : index
    %1262 = vector.load %arg9[%c21_446, %c0_447, %c0_448] : memref<48x1x32xf32, #tpu.memory_space<vmem>>, vector<1x1x32xf32>
    %1263 = vector.shape_cast %1262 : vector<1x1x32xf32> to vector<1x32xf32>
    %1264 = arith.truncf %733 : vector<16x32xf32> to vector<16x32xbf16>
    %cst_449 = arith.constant dense<0.000000e+00> : vector<16x32xf32>
    %1265 = tpu.matmul %1264, %1261, %cst_449 {dimension_numbers = #tpu.dot_dimension_numbers<[1], [0], [0], [1], [0, 0, 1, 1], [], []>} : vector<16x32xbf16>, vector<32x32xbf16>, vector<16x32xf32> -> vector<16x32xf32>
    %1266 = vector.broadcast %1263 : vector<1x32xf32> to vector<16x32xf32>
    %1267 = arith.addf %1265, %1266 : vector<16x32xf32>
    %c22 = arith.constant 22 : index
    %c0_450 = arith.constant 0 : index
    %c0_451 = arith.constant 0 : index
    %1268 = vector.load %arg5[%c22, %c0_450, %c0_451] : memref<24x32x32xbf16, #tpu.memory_space<vmem>>, vector<1x32x32xbf16>
    %1269 = vector.shape_cast %1268 : vector<1x32x32xbf16> to vector<32x32xbf16>
    %c22_452 = arith.constant 22 : index
    %c0_453 = arith.constant 0 : index
    %c0_454 = arith.constant 0 : index
    %1270 = vector.load %arg9[%c22_452, %c0_453, %c0_454] : memref<48x1x32xf32, #tpu.memory_space<vmem>>, vector<1x1x32xf32>
    %1271 = vector.shape_cast %1270 : vector<1x1x32xf32> to vector<1x32xf32>
    %1272 = arith.truncf %733 : vector<16x32xf32> to vector<16x32xbf16>
    %cst_455 = arith.constant dense<0.000000e+00> : vector<16x32xf32>
    %1273 = tpu.matmul %1272, %1269, %cst_455 {dimension_numbers = #tpu.dot_dimension_numbers<[1], [0], [0], [1], [0, 0, 1, 1], [], []>} : vector<16x32xbf16>, vector<32x32xbf16>, vector<16x32xf32> -> vector<16x32xf32>
    %1274 = vector.broadcast %1271 : vector<1x32xf32> to vector<16x32xf32>
    %1275 = arith.addf %1273, %1274 : vector<16x32xf32>
    %1276 = vector.extract_strided_slice %1259 {offsets = [0, 0], sizes = [8, 32], strides = [1, 1]} : vector<16x32xf32> to vector<8x32xf32>
    %1277 = vector.extract_strided_slice %1276 {offsets = [0, 0], sizes = [8, 8], strides = [1, 1]} : vector<8x32xf32> to vector<8x8xf32>
    %1278 = vector.extract_strided_slice %1276 {offsets = [0, 8], sizes = [8, 8], strides = [1, 1]} : vector<8x32xf32> to vector<8x8xf32>
    %1279 = vector.extract_strided_slice %1276 {offsets = [0, 16], sizes = [8, 8], strides = [1, 1]} : vector<8x32xf32> to vector<8x8xf32>
    %1280 = vector.extract_strided_slice %1276 {offsets = [0, 24], sizes = [8, 8], strides = [1, 1]} : vector<8x32xf32> to vector<8x8xf32>
    %1281 = vector.extract_strided_slice %1259 {offsets = [8, 0], sizes = [8, 32], strides = [1, 1]} : vector<16x32xf32> to vector<8x32xf32>
    %1282 = vector.extract_strided_slice %1281 {offsets = [0, 0], sizes = [8, 8], strides = [1, 1]} : vector<8x32xf32> to vector<8x8xf32>
    %1283 = vector.extract_strided_slice %1281 {offsets = [0, 8], sizes = [8, 8], strides = [1, 1]} : vector<8x32xf32> to vector<8x8xf32>
    %1284 = vector.extract_strided_slice %1281 {offsets = [0, 16], sizes = [8, 8], strides = [1, 1]} : vector<8x32xf32> to vector<8x8xf32>
    %1285 = vector.extract_strided_slice %1281 {offsets = [0, 24], sizes = [8, 8], strides = [1, 1]} : vector<8x32xf32> to vector<8x8xf32>
    %1286 = vector.shape_cast %1277 : vector<8x8xf32> to vector<1x8x8xf32>
    %1287 = vector.shape_cast %1278 : vector<8x8xf32> to vector<1x8x8xf32>
    %1288 = vector.shape_cast %1279 : vector<8x8xf32> to vector<1x8x8xf32>
    %1289 = vector.shape_cast %1280 : vector<8x8xf32> to vector<1x8x8xf32>
    %1290 = vector.shape_cast %1282 : vector<8x8xf32> to vector<1x8x8xf32>
    %1291 = vector.shape_cast %1283 : vector<8x8xf32> to vector<1x8x8xf32>
    %1292 = vector.shape_cast %1284 : vector<8x8xf32> to vector<1x8x8xf32>
    %1293 = vector.shape_cast %1285 : vector<8x8xf32> to vector<1x8x8xf32>
    %1294 = tpu.concatenate %1286, %1287, %1288, %1289, %1290, %1291, %1292, %1293 in 0 : vector<1x8x8xf32>, vector<1x8x8xf32>, vector<1x8x8xf32>, vector<1x8x8xf32>, vector<1x8x8xf32>, vector<1x8x8xf32>, vector<1x8x8xf32>, vector<1x8x8xf32> -> vector<8x8x8xf32>
    %1295 = vector.extract_strided_slice %1267 {offsets = [0, 0], sizes = [8, 32], strides = [1, 1]} : vector<16x32xf32> to vector<8x32xf32>
    %1296 = vector.extract_strided_slice %1295 {offsets = [0, 0], sizes = [8, 8], strides = [1, 1]} : vector<8x32xf32> to vector<8x8xf32>
    %1297 = vector.extract_strided_slice %1295 {offsets = [0, 8], sizes = [8, 8], strides = [1, 1]} : vector<8x32xf32> to vector<8x8xf32>
    %1298 = vector.extract_strided_slice %1295 {offsets = [0, 16], sizes = [8, 8], strides = [1, 1]} : vector<8x32xf32> to vector<8x8xf32>
    %1299 = vector.extract_strided_slice %1295 {offsets = [0, 24], sizes = [8, 8], strides = [1, 1]} : vector<8x32xf32> to vector<8x8xf32>
    %1300 = vector.extract_strided_slice %1267 {offsets = [8, 0], sizes = [8, 32], strides = [1, 1]} : vector<16x32xf32> to vector<8x32xf32>
    %1301 = vector.extract_strided_slice %1300 {offsets = [0, 0], sizes = [8, 8], strides = [1, 1]} : vector<8x32xf32> to vector<8x8xf32>
    %1302 = vector.extract_strided_slice %1300 {offsets = [0, 8], sizes = [8, 8], strides = [1, 1]} : vector<8x32xf32> to vector<8x8xf32>
    %1303 = vector.extract_strided_slice %1300 {offsets = [0, 16], sizes = [8, 8], strides = [1, 1]} : vector<8x32xf32> to vector<8x8xf32>
    %1304 = vector.extract_strided_slice %1300 {offsets = [0, 24], sizes = [8, 8], strides = [1, 1]} : vector<8x32xf32> to vector<8x8xf32>
    %1305 = vector.shape_cast %1296 : vector<8x8xf32> to vector<1x8x8xf32>
    %1306 = vector.shape_cast %1297 : vector<8x8xf32> to vector<1x8x8xf32>
    %1307 = vector.shape_cast %1298 : vector<8x8xf32> to vector<1x8x8xf32>
    %1308 = vector.shape_cast %1299 : vector<8x8xf32> to vector<1x8x8xf32>
    %1309 = vector.shape_cast %1301 : vector<8x8xf32> to vector<1x8x8xf32>
    %1310 = vector.shape_cast %1302 : vector<8x8xf32> to vector<1x8x8xf32>
    %1311 = vector.shape_cast %1303 : vector<8x8xf32> to vector<1x8x8xf32>
    %1312 = vector.shape_cast %1304 : vector<8x8xf32> to vector<1x8x8xf32>
    %1313 = tpu.concatenate %1305, %1306, %1307, %1308, %1309, %1310, %1311, %1312 in 0 : vector<1x8x8xf32>, vector<1x8x8xf32>, vector<1x8x8xf32>, vector<1x8x8xf32>, vector<1x8x8xf32>, vector<1x8x8xf32>, vector<1x8x8xf32>, vector<1x8x8xf32> -> vector<8x8x8xf32>
    %1314 = vector.extract_strided_slice %1275 {offsets = [0, 0], sizes = [8, 32], strides = [1, 1]} : vector<16x32xf32> to vector<8x32xf32>
    %1315 = vector.extract_strided_slice %1314 {offsets = [0, 0], sizes = [8, 8], strides = [1, 1]} : vector<8x32xf32> to vector<8x8xf32>
    %1316 = vector.extract_strided_slice %1314 {offsets = [0, 8], sizes = [8, 8], strides = [1, 1]} : vector<8x32xf32> to vector<8x8xf32>
    %1317 = vector.extract_strided_slice %1314 {offsets = [0, 16], sizes = [8, 8], strides = [1, 1]} : vector<8x32xf32> to vector<8x8xf32>
    %1318 = vector.extract_strided_slice %1314 {offsets = [0, 24], sizes = [8, 8], strides = [1, 1]} : vector<8x32xf32> to vector<8x8xf32>
    %1319 = vector.extract_strided_slice %1275 {offsets = [8, 0], sizes = [8, 32], strides = [1, 1]} : vector<16x32xf32> to vector<8x32xf32>
    %1320 = vector.extract_strided_slice %1319 {offsets = [0, 0], sizes = [8, 8], strides = [1, 1]} : vector<8x32xf32> to vector<8x8xf32>
    %1321 = vector.extract_strided_slice %1319 {offsets = [0, 8], sizes = [8, 8], strides = [1, 1]} : vector<8x32xf32> to vector<8x8xf32>
    %1322 = vector.extract_strided_slice %1319 {offsets = [0, 16], sizes = [8, 8], strides = [1, 1]} : vector<8x32xf32> to vector<8x8xf32>
    %1323 = vector.extract_strided_slice %1319 {offsets = [0, 24], sizes = [8, 8], strides = [1, 1]} : vector<8x32xf32> to vector<8x8xf32>
    %1324 = vector.shape_cast %1315 : vector<8x8xf32> to vector<1x8x8xf32>
    %1325 = vector.shape_cast %1316 : vector<8x8xf32> to vector<1x8x8xf32>
    %1326 = vector.shape_cast %1317 : vector<8x8xf32> to vector<1x8x8xf32>
    %1327 = vector.shape_cast %1318 : vector<8x8xf32> to vector<1x8x8xf32>
    %1328 = vector.shape_cast %1320 : vector<8x8xf32> to vector<1x8x8xf32>
    %1329 = vector.shape_cast %1321 : vector<8x8xf32> to vector<1x8x8xf32>
    %1330 = vector.shape_cast %1322 : vector<8x8xf32> to vector<1x8x8xf32>
    %1331 = vector.shape_cast %1323 : vector<8x8xf32> to vector<1x8x8xf32>
    %1332 = tpu.concatenate %1324, %1325, %1326, %1327, %1328, %1329, %1330, %1331 in 0 : vector<1x8x8xf32>, vector<1x8x8xf32>, vector<1x8x8xf32>, vector<1x8x8xf32>, vector<1x8x8xf32>, vector<1x8x8xf32>, vector<1x8x8xf32>, vector<1x8x8xf32> -> vector<8x8x8xf32>
    %1333 = arith.truncf %1294 : vector<8x8x8xf32> to vector<8x8x8xbf16>
    %1334 = arith.truncf %1313 : vector<8x8x8xf32> to vector<8x8x8xbf16>
    "tpu.trace_start"() <{level = 10 : i32, message = "bqd,bkd->bqk"}> : () -> ()
    %cst_456 = arith.constant dense<0.000000e+00> : vector<8x8x8xf32>
    %1335 = tpu.matmul %1333, %1334, %cst_456 {dimension_numbers = #tpu.dot_dimension_numbers<[2], [2], [1], [1], [0, 0, 0, 1, 1, 1], [0], [0]>} : vector<8x8x8xbf16>, vector<8x8x8xbf16>, vector<8x8x8xf32> -> vector<8x8x8xf32>
    "tpu.trace_stop"() : () -> ()
    %cst_457 = arith.constant 0.353553385 : f32
    %1336 = vector.broadcast %cst_457 : f32 to vector<8x8x8xf32>
    %1337 = arith.mulf %1335, %1336 : vector<8x8x8xf32>
    %cst_458 = arith.constant 5.000000e-01 : f32
    %1338 = vector.broadcast %cst_458 : f32 to vector<8x1x8xf32>
    %1339 = arith.cmpf ogt, %297, %1338 : vector<8x1x8xf32>
    %cst_459 = arith.constant -1.000000e+09 : f32
    %1340 = vector.shape_cast %1339 : vector<8x1x8xi1> to vector<8x1x8xi1>
    %1341 = vector.broadcast %1340 : vector<8x1x8xi1> to vector<8x8x8xi1>
    %1342 = vector.broadcast %cst_459 : f32 to vector<8x8x8xf32>
    %1343 = arith.select %1341, %1337, %1342 : vector<8x8x8xi1>, vector<8x8x8xf32>
    %cst_460 = arith.constant dense<0xFF800000> : vector<8x8xf32>
    %1344 = vector.multi_reduction <maximumf>, %1343, %cst_460 [2] : vector<8x8x8xf32> to vector<8x8xf32>
    %1345 = vector.shape_cast %1344 : vector<8x8xf32> to vector<8x8x1xf32>
    %1346 = vector.broadcast %1345 : vector<8x8x1xf32> to vector<8x8x8xf32>
    %1347 = arith.subf %1343, %1346 : vector<8x8x8xf32>
    %1348 = math.exp %1347 : vector<8x8x8xf32>
    %cst_461 = arith.constant dense<0.000000e+00> : vector<8x8xf32>
    %1349 = vector.multi_reduction <add>, %1348, %cst_461 [2] : vector<8x8x8xf32> to vector<8x8xf32>
    %1350 = vector.shape_cast %1349 : vector<8x8xf32> to vector<8x8x1xf32>
    %1351 = tpu.reciprocal %1350 {approx = true} : vector<8x8x1xf32> -> vector<8x8x1xf32>
    %1352 = vector.broadcast %1351 : vector<8x8x1xf32> to vector<8x8x8xf32>
    %1353 = arith.mulf %1348, %1352 : vector<8x8x8xf32>
    %1354 = arith.truncf %1353 : vector<8x8x8xf32> to vector<8x8x8xbf16>
    %1355 = arith.truncf %1332 : vector<8x8x8xf32> to vector<8x8x8xbf16>
    "tpu.trace_start"() <{level = 10 : i32, message = "bqk,bkd->bqd"}> : () -> ()
    %cst_462 = arith.constant dense<0.000000e+00> : vector<8x8x8xf32>
    %1356 = tpu.matmul %1354, %1355, %cst_462 {dimension_numbers = #tpu.dot_dimension_numbers<[2], [1], [1], [2], [0, 0, 0, 1, 1, 2], [0], [0]>} : vector<8x8x8xbf16>, vector<8x8x8xbf16>, vector<8x8x8xf32> -> vector<8x8x8xf32>
    "tpu.trace_stop"() : () -> ()
    %1357 = vector.extract_strided_slice %1356 {offsets = [0, 0, 0], sizes = [1, 8, 8], strides = [1, 1, 1]} : vector<8x8x8xf32> to vector<1x8x8xf32>
    %1358 = vector.shape_cast %1357 : vector<1x8x8xf32> to vector<8x8xf32>
    %1359 = vector.extract_strided_slice %1356 {offsets = [1, 0, 0], sizes = [1, 8, 8], strides = [1, 1, 1]} : vector<8x8x8xf32> to vector<1x8x8xf32>
    %1360 = vector.shape_cast %1359 : vector<1x8x8xf32> to vector<8x8xf32>
    %1361 = vector.extract_strided_slice %1356 {offsets = [2, 0, 0], sizes = [1, 8, 8], strides = [1, 1, 1]} : vector<8x8x8xf32> to vector<1x8x8xf32>
    %1362 = vector.shape_cast %1361 : vector<1x8x8xf32> to vector<8x8xf32>
    %1363 = vector.extract_strided_slice %1356 {offsets = [3, 0, 0], sizes = [1, 8, 8], strides = [1, 1, 1]} : vector<8x8x8xf32> to vector<1x8x8xf32>
    %1364 = vector.shape_cast %1363 : vector<1x8x8xf32> to vector<8x8xf32>
    %1365 = tpu.concatenate %1358, %1360, %1362, %1364 in 1 : vector<8x8xf32>, vector<8x8xf32>, vector<8x8xf32>, vector<8x8xf32> -> vector<8x32xf32>
    %1366 = vector.extract_strided_slice %1356 {offsets = [4, 0, 0], sizes = [1, 8, 8], strides = [1, 1, 1]} : vector<8x8x8xf32> to vector<1x8x8xf32>
    %1367 = vector.shape_cast %1366 : vector<1x8x8xf32> to vector<8x8xf32>
    %1368 = vector.extract_strided_slice %1356 {offsets = [5, 0, 0], sizes = [1, 8, 8], strides = [1, 1, 1]} : vector<8x8x8xf32> to vector<1x8x8xf32>
    %1369 = vector.shape_cast %1368 : vector<1x8x8xf32> to vector<8x8xf32>
    %1370 = vector.extract_strided_slice %1356 {offsets = [6, 0, 0], sizes = [1, 8, 8], strides = [1, 1, 1]} : vector<8x8x8xf32> to vector<1x8x8xf32>
    %1371 = vector.shape_cast %1370 : vector<1x8x8xf32> to vector<8x8xf32>
    %1372 = vector.extract_strided_slice %1356 {offsets = [7, 0, 0], sizes = [1, 8, 8], strides = [1, 1, 1]} : vector<8x8x8xf32> to vector<1x8x8xf32>
    %1373 = vector.shape_cast %1372 : vector<1x8x8xf32> to vector<8x8xf32>
    %1374 = tpu.concatenate %1367, %1369, %1371, %1373 in 1 : vector<8x8xf32>, vector<8x8xf32>, vector<8x8xf32>, vector<8x8xf32> -> vector<8x32xf32>
    %1375 = tpu.concatenate %1365, %1374 in 0 : vector<8x32xf32>, vector<8x32xf32> -> vector<16x32xf32>
    %c23 = arith.constant 23 : index
    %c0_463 = arith.constant 0 : index
    %c0_464 = arith.constant 0 : index
    %1376 = vector.load %arg5[%c23, %c0_463, %c0_464] : memref<24x32x32xbf16, #tpu.memory_space<vmem>>, vector<1x32x32xbf16>
    %1377 = vector.shape_cast %1376 : vector<1x32x32xbf16> to vector<32x32xbf16>
    %c23_465 = arith.constant 23 : index
    %c0_466 = arith.constant 0 : index
    %c0_467 = arith.constant 0 : index
    %1378 = vector.load %arg9[%c23_465, %c0_466, %c0_467] : memref<48x1x32xf32, #tpu.memory_space<vmem>>, vector<1x1x32xf32>
    %1379 = vector.shape_cast %1378 : vector<1x1x32xf32> to vector<1x32xf32>
    %1380 = arith.truncf %1375 : vector<16x32xf32> to vector<16x32xbf16>
    %cst_468 = arith.constant dense<0.000000e+00> : vector<16x32xf32>
    %1381 = tpu.matmul %1380, %1377, %cst_468 {dimension_numbers = #tpu.dot_dimension_numbers<[1], [0], [0], [1], [0, 0, 1, 1], [], []>} : vector<16x32xbf16>, vector<32x32xbf16>, vector<16x32xf32> -> vector<16x32xf32>
    %1382 = vector.broadcast %1379 : vector<1x32xf32> to vector<16x32xf32>
    %1383 = arith.addf %1381, %1382 : vector<16x32xf32>
    %1384 = arith.addf %1251, %1383 : vector<16x32xf32>
    %c36 = arith.constant 36 : index
    %c0_469 = arith.constant 0 : index
    %c0_470 = arith.constant 0 : index
    %1385 = vector.load %arg9[%c36, %c0_469, %c0_470] : memref<48x1x32xf32, #tpu.memory_space<vmem>>, vector<1x1x32xf32>
    %1386 = vector.shape_cast %1385 : vector<1x1x32xf32> to vector<1x32xf32>
    %c46 = arith.constant 46 : index
    %c0_471 = arith.constant 0 : index
    %c0_472 = arith.constant 0 : index
    %1387 = vector.load %arg9[%c46, %c0_471, %c0_472] : memref<48x1x32xf32, #tpu.memory_space<vmem>>, vector<1x1x32xf32>
    %1388 = vector.shape_cast %1387 : vector<1x1x32xf32> to vector<1x32xf32>
    %cst_473 = arith.constant dense<0.000000e+00> : vector<16xf32>
    %1389 = vector.multi_reduction <add>, %1384, %cst_473 [1] : vector<16x32xf32> to vector<16xf32>
    %1390 = vector.shape_cast %1389 : vector<16xf32> to vector<16x1xf32>
    %cst_474 = arith.constant 3.200000e+01 : f32
    %1391 = vector.broadcast %cst_474 : f32 to vector<16x1xf32>
    %1392 = arith.divf %1390, %1391 : vector<16x1xf32>
    %1393 = vector.broadcast %1392 : vector<16x1xf32> to vector<16x32xf32>
    %1394 = arith.subf %1384, %1393 : vector<16x32xf32>
    %1395 = arith.mulf %1394, %1394 : vector<16x32xf32>
    %cst_475 = arith.constant dense<0.000000e+00> : vector<16xf32>
    %1396 = vector.multi_reduction <add>, %1395, %cst_475 [1] : vector<16x32xf32> to vector<16xf32>
    %1397 = vector.shape_cast %1396 : vector<16xf32> to vector<16x1xf32>
    %cst_476 = arith.constant 3.200000e+01 : f32
    %1398 = vector.broadcast %cst_476 : f32 to vector<16x1xf32>
    %1399 = arith.divf %1397, %1398 : vector<16x1xf32>
    %1400 = vector.broadcast %1392 : vector<16x1xf32> to vector<16x32xf32>
    %1401 = arith.subf %1384, %1400 : vector<16x32xf32>
    %cst_477 = arith.constant 9.99999974E-6 : f32
    %1402 = vector.broadcast %cst_477 : f32 to vector<16x1xf32>
    %1403 = arith.addf %1399, %1402 : vector<16x1xf32>
    %1404 = math.rsqrt %1403 : vector<16x1xf32>
    %1405 = vector.broadcast %1404 : vector<16x1xf32> to vector<16x32xf32>
    %1406 = arith.mulf %1401, %1405 : vector<16x32xf32>
    %1407 = vector.broadcast %1386 : vector<1x32xf32> to vector<16x32xf32>
    %1408 = arith.mulf %1406, %1407 : vector<16x32xf32>
    %1409 = vector.broadcast %1388 : vector<1x32xf32> to vector<16x32xf32>
    %1410 = arith.addf %1408, %1409 : vector<16x32xf32>
    %c3_478 = arith.constant 3 : index
    %c0_479 = arith.constant 0 : index
    %c0_480 = arith.constant 0 : index
    %1411 = vector.load %arg6[%c3_478, %c0_479, %c0_480] : memref<4x32x64xbf16, #tpu.memory_space<vmem>>, vector<1x32x64xbf16>
    %1412 = vector.shape_cast %1411 : vector<1x32x64xbf16> to vector<32x64xbf16>
    %c3_481 = arith.constant 3 : index
    %c0_482 = arith.constant 0 : index
    %c0_483 = arith.constant 0 : index
    %1413 = vector.load %arg10[%c3_481, %c0_482, %c0_483] : memref<4x1x64xf32, #tpu.memory_space<vmem>>, vector<1x1x64xf32>
    %1414 = vector.shape_cast %1413 : vector<1x1x64xf32> to vector<1x64xf32>
    %1415 = arith.truncf %1410 : vector<16x32xf32> to vector<16x32xbf16>
    %cst_484 = arith.constant dense<0.000000e+00> : vector<16x64xf32>
    %1416 = tpu.matmul %1415, %1412, %cst_484 {dimension_numbers = #tpu.dot_dimension_numbers<[1], [0], [0], [1], [0, 0, 1, 1], [], []>} : vector<16x32xbf16>, vector<32x64xbf16>, vector<16x64xf32> -> vector<16x64xf32>
    %1417 = vector.broadcast %1414 : vector<1x64xf32> to vector<16x64xf32>
    %1418 = arith.addf %1416, %1417 : vector<16x64xf32>
    %cst_485 = arith.constant 0.000000e+00 : f32
    %1419 = vector.broadcast %cst_485 : f32 to vector<16x64xf32>
    %1420 = arith.maximumf %1418, %1419 : vector<16x64xf32>
    %c3_486 = arith.constant 3 : index
    %c0_487 = arith.constant 0 : index
    %c0_488 = arith.constant 0 : index
    %1421 = vector.load %arg7[%c3_486, %c0_487, %c0_488] : memref<4x64x32xbf16, #tpu.memory_space<vmem>>, vector<1x64x32xbf16>
    %1422 = vector.shape_cast %1421 : vector<1x64x32xbf16> to vector<64x32xbf16>
    %c27 = arith.constant 27 : index
    %c0_489 = arith.constant 0 : index
    %c0_490 = arith.constant 0 : index
    %1423 = vector.load %arg9[%c27, %c0_489, %c0_490] : memref<48x1x32xf32, #tpu.memory_space<vmem>>, vector<1x1x32xf32>
    %1424 = vector.shape_cast %1423 : vector<1x1x32xf32> to vector<1x32xf32>
    %1425 = arith.truncf %1420 : vector<16x64xf32> to vector<16x64xbf16>
    %cst_491 = arith.constant dense<0.000000e+00> : vector<16x32xf32>
    %1426 = tpu.matmul %1425, %1422, %cst_491 {dimension_numbers = #tpu.dot_dimension_numbers<[1], [0], [0], [1], [0, 0, 1, 1], [], []>} : vector<16x64xbf16>, vector<64x32xbf16>, vector<16x32xf32> -> vector<16x32xf32>
    %1427 = vector.broadcast %1424 : vector<1x32xf32> to vector<16x32xf32>
    %1428 = arith.addf %1426, %1427 : vector<16x32xf32>
    %1429 = arith.addf %1410, %1428 : vector<16x32xf32>
    %c37 = arith.constant 37 : index
    %c0_492 = arith.constant 0 : index
    %c0_493 = arith.constant 0 : index
    %1430 = vector.load %arg9[%c37, %c0_492, %c0_493] : memref<48x1x32xf32, #tpu.memory_space<vmem>>, vector<1x1x32xf32>
    %1431 = vector.shape_cast %1430 : vector<1x1x32xf32> to vector<1x32xf32>
    %c47 = arith.constant 47 : index
    %c0_494 = arith.constant 0 : index
    %c0_495 = arith.constant 0 : index
    %1432 = vector.load %arg9[%c47, %c0_494, %c0_495] : memref<48x1x32xf32, #tpu.memory_space<vmem>>, vector<1x1x32xf32>
    %1433 = vector.shape_cast %1432 : vector<1x1x32xf32> to vector<1x32xf32>
    %cst_496 = arith.constant dense<0.000000e+00> : vector<16xf32>
    %1434 = vector.multi_reduction <add>, %1429, %cst_496 [1] : vector<16x32xf32> to vector<16xf32>
    %1435 = vector.shape_cast %1434 : vector<16xf32> to vector<16x1xf32>
    %cst_497 = arith.constant 3.200000e+01 : f32
    %1436 = vector.broadcast %cst_497 : f32 to vector<16x1xf32>
    %1437 = arith.divf %1435, %1436 : vector<16x1xf32>
    %1438 = vector.broadcast %1437 : vector<16x1xf32> to vector<16x32xf32>
    %1439 = arith.subf %1429, %1438 : vector<16x32xf32>
    %1440 = arith.mulf %1439, %1439 : vector<16x32xf32>
    %cst_498 = arith.constant dense<0.000000e+00> : vector<16xf32>
    %1441 = vector.multi_reduction <add>, %1440, %cst_498 [1] : vector<16x32xf32> to vector<16xf32>
    %1442 = vector.shape_cast %1441 : vector<16xf32> to vector<16x1xf32>
    %cst_499 = arith.constant 3.200000e+01 : f32
    %1443 = vector.broadcast %cst_499 : f32 to vector<16x1xf32>
    %1444 = arith.divf %1442, %1443 : vector<16x1xf32>
    %1445 = vector.broadcast %1437 : vector<16x1xf32> to vector<16x32xf32>
    %1446 = arith.subf %1429, %1445 : vector<16x32xf32>
    %cst_500 = arith.constant 9.99999974E-6 : f32
    %1447 = vector.broadcast %cst_500 : f32 to vector<16x1xf32>
    %1448 = arith.addf %1444, %1447 : vector<16x1xf32>
    %1449 = math.rsqrt %1448 : vector<16x1xf32>
    %1450 = vector.broadcast %1449 : vector<16x1xf32> to vector<16x32xf32>
    %1451 = arith.mulf %1446, %1450 : vector<16x32xf32>
    %1452 = vector.broadcast %1431 : vector<1x32xf32> to vector<16x32xf32>
    %1453 = arith.mulf %1451, %1452 : vector<16x32xf32>
    %1454 = vector.broadcast %1433 : vector<1x32xf32> to vector<16x32xf32>
    %1455 = arith.addf %1453, %1454 : vector<16x32xf32>
    %1456 = arith.truncf %1455 : vector<16x32xf32> to vector<16x32xbf16>
    %c0_501 = arith.constant 0 : index
    %c0_502 = arith.constant 0 : index
    %1457 = vector.load %arg8[%c0_501, %c0_502] : memref<32x128xbf16, #tpu.memory_space<vmem>>, vector<32x128xbf16>
    %cst_503 = arith.constant dense<0.000000e+00> : vector<16x128xf32>
    %1458 = tpu.matmul %1456, %1457, %cst_503 {dimension_numbers = #tpu.dot_dimension_numbers<[1], [0], [0], [1], [0, 0, 1, 1], [], []>} : vector<16x32xbf16>, vector<32x128xbf16>, vector<16x128xf32> -> vector<16x128xf32>
    %c0_504 = arith.constant 0 : index
    %c0_505 = arith.constant 0 : index
    %1459 = vector.load %arg11[%c0_504, %c0_505] : memref<1x128xf32, #tpu.memory_space<vmem>>, vector<1x128xf32>
    %1460 = vector.broadcast %1459 : vector<1x128xf32> to vector<16x128xf32>
    %1461 = arith.addf %1458, %1460 : vector<16x128xf32>
    %c0_506 = arith.constant 0 : index
    %c0_507 = arith.constant 0 : index
    %1462 = vector.load %arg12[%c0_506, %c0_507] : memref<16x128xf32, #tpu.memory_space<vmem>>, vector<16x128xf32>
    tpu.vector_store %arg12[%c0_506, %c0_507], %1461 {strides = array<i32>} : memref<16x128xf32, #tpu.memory_space<vmem>>, vector<16x128xf32>,
    return
  }
}

</mosaic_0001>

<llo_original>
// kernel: transformer_forward.1
$region0: #{transformer_forward.1}
  #allocation0 [shape = 'u32[]', space=smem, size = 0x4, offset = 0x4, fixed_abs, tag = 'smem constant byte address 0x4 - core index']
  #allocation1 [shape = 'u32[72,128]{1,0:T(1,128)}', space=vmem, size = 0x9000, scoped, tag = 'internal scratch']
  %s0 = inlined_call_operand.hbm [shape: s32[2,8], index: 0, kind: input, shape index: {}]
  %s1 = inlined_call_operand.hbm [shape: s32[2,8], index: 1, kind: input, shape index: {}]
  %s2 = inlined_call_operand.hbm [shape: f32[128,32], index: 2, kind: input, shape index: {}]
  %s3 = inlined_call_operand.hbm [shape: f32[128,32], index: 3, kind: input, shape index: {}]
  %s4 = inlined_call_operand.hbm [shape: f32[16,32], index: 4, kind: input, shape index: {}]
  %s5 = inlined_call_operand.hbm [shape: bf16[24,32,32], index: 5, kind: input, shape index: {}]
  %s6 = inlined_call_operand.hbm [shape: bf16[4,32,64], index: 6, kind: input, shape index: {}]
  %s7 = inlined_call_operand.hbm [shape: bf16[4,64,32], index: 7, kind: input, shape index: {}]
  %s8 = inlined_call_operand.hbm [shape: bf16[32,128], index: 8, kind: input, shape index: {}]
  %s9 = inlined_call_operand.hbm [shape: f32[48,1,32], index: 9, kind: input, shape index: {}]
  %s10 = inlined_call_operand.vmem [shape: f32[4,1,64], index: 10, kind: input, shape index: {}]
  %s11 = inlined_call_operand.vmem [shape: f32[1,128], index: 11, kind: input, shape index: {}]
  %s12 = inlined_call_operand.hbm [shape: f32[16,128], index: 12, kind: output, shape index: {}]
  %s13 = sld [smem:[#allocation0]]
  $region98: #{transformer_forward.1} parent=0
    _
  %s15 = ssub.s32 1, %s13
  %s16 = scalar_select 0, %s15, %s13
  $region1: #{transformer_forward.1} parent=0
    #allocation2 [shape = 'u8[1024]{0}', space=smem, size = 0x400, scoped, tag = 'input window, operand 0, single buffered']
    #allocation3 [shape = 's32[1]{0}', space=sflag, size = 0x4, scoped, tag = 'scoped memory for transformer_forward.1']
    #allocation4 [shape = 's32[1]{0}', space=sflag, size = 0x4, scoped, tag = 'scoped memory for transformer_forward.1']
    #allocation5 [shape = 's32[1]{0}', space=sflag, size = 0x4, scoped, tag = 'scoped memory for transformer_forward.1']
    #allocation6 [shape = 'u8[1024]{0}', space=smem, size = 0x400, scoped, tag = 'input window, operand 1, single buffered']
    #allocation7 [shape = 's32[1]{0}', space=sflag, size = 0x4, scoped, tag = 'scoped memory for transformer_forward.1']
    #allocation8 [shape = 'u8[65536]{0}', space=vmem, size = 0x10000, scoped, tag = 'input window, operand 2, single buffered']
    #allocation9 [shape = 'u8[65536]{0}', space=vmem, size = 0x10000, scoped, tag = 'input window, operand 3, single buffered']
    #allocation10 [shape = 's32[1]{0}', space=sflag, size = 0x4, scoped, tag = 'scoped memory for transformer_forward.1']
    #allocation11 [shape = 'u8[8192]{0}', space=vmem, size = 0x2000, scoped, tag = 'input window, operand 4, single buffered']
    #allocation12 [shape = 'u8[196608]{0}', space=vmem, size = 0x30000, scoped, tag = 'input window, operand 5, single buffered']
    #allocation13 [shape = 's32[1]{0}', space=sflag, size = 0x4, scoped, tag = 'scoped memory for transformer_forward.1']
    #allocation14 [shape = 'u8[32768]{0}', space=vmem, size = 0x8000, scoped, tag = 'input window, operand 6, single buffered']
    #allocation15 [shape = 'u8[65536]{0}', space=vmem, size = 0x10000, scoped, tag = 'input window, operand 7, single buffered']
    #allocation16 [shape = 's32[1]{0}', space=sflag, size = 0x4, scoped, tag = 'scoped memory for transformer_forward.1']
    #allocation17 [shape = 'u8[8192]{0}', space=vmem, size = 0x2000, scoped, tag = 'input window, operand 8, single buffered']
    #allocation18 [shape = 'u8[24576]{0}', space=vmem, size = 0x6000, scoped, tag = 'input window, operand 9, single buffered']
    #allocation19 [shape = 's32[1]{0}', space=sflag, size = 0x4, scoped, tag = 'scoped memory for transformer_forward.1']
    #allocation20 [shape = 'u8[8192]{0}', space=vmem, size = 0x2000, scoped, tag = 'output window, operand 0, single buffered']
    %17 = vsyncpa [#allocation5], 0
    %18 = vsyncpa [#allocation7], 0
    %19 = vsyncpa [#allocation3], 0
    %20 = vsyncpa [#allocation10], 0
    %21 = vsyncpa [#allocation13], 0
    %22 = vsyncpa [#allocation16], 0
    %23 = vsyncpa [#allocation19], 0
    %24 = vsyncpa [#allocation4], 0
    // Predicated region
    $region2: #{transformer_forward.1} parent=1 // pred_check
      _
    $region3: #{transformer_forward.1} parent=1 // pred_check_branch
      %26 = sbr.rel (0) target = $region5
    $region4: #{transformer_forward.1} parent=1 // pred_region
      %28 = vsyncadd [#allocation5], 0
      %s30 = sshll.u32 %s0, 4
      %s31 = int_to_ptr.hbm [resolvable:$true] %s30
      %33 = dma.hbm_to_smem %s31, 32, [#allocation2], [#allocation5]
    $region5: #{transformer_forward.1} parent=1 // pred_fallthru
      _
    // Predicated region
    $region6: #{transformer_forward.1} parent=1 // pred_check
      _
    $region7: #{transformer_forward.1} parent=1 // pred_check_branch
      %35 = sbr.rel (0) target = $region9
    $region8: #{transformer_forward.1} parent=1 // pred_region
      %37 = vsyncadd [#allocation7], 0
      %s39 = sshll.u32 %s1, 4
      %s40 = int_to_ptr.hbm [resolvable:$true] %s39
      %42 = dma.hbm_to_smem %s40, 32, [#allocation6], [#allocation7]
    $region9: #{transformer_forward.1} parent=1 // pred_fallthru
      _
    // Predicated region
    $region10: #{transformer_forward.1} parent=1 // pred_check
      _
    $region11: #{transformer_forward.1} parent=1 // pred_check_branch
      %44 = sbr.rel (0) target = $region13
    $region12: #{transformer_forward.1} parent=1 // pred_region
      %46 = vsyncadd [#allocation3], 0
      %s47 = sshll.u32 %s2, 4
      %s48 = int_to_ptr.hbm [resolvable:$true] %s47
      %s49 = sshll.u32 [#allocation8], 4
      %s50 = int_to_ptr.vmem [resolvable:$true] %s49
      %55 = dma.hbm_to_vmem [thread:$0]  %s48, 2048, %s50, [#allocation3], 128, 128, 8
    $region13: #{transformer_forward.1} parent=1 // pred_fallthru
      _
    // Predicated region
    $region14: #{transformer_forward.1} parent=1 // pred_check
      _
    $region15: #{transformer_forward.1} parent=1 // pred_check_branch
      %57 = sbr.rel (0) target = $region17
    $region16: #{transformer_forward.1} parent=1 // pred_region
      %59 = vsyncadd [#allocation10], 0
      %s60 = sshll.u32 %s3, 4
      %s61 = int_to_ptr.hbm [resolvable:$true] %s60
      %s62 = sshll.u32 [#allocation9], 4
      %s63 = int_to_ptr.vmem [resolvable:$true] %s62
      %68 = dma.hbm_to_vmem [thread:$0]  %s61, 2048, %s63, [#allocation10], 128, 128, 8
    $region17: #{transformer_forward.1} parent=1 // pred_fallthru
      _
    // Predicated region
    $region18: #{transformer_forward.1} parent=1 // pred_check
      _
    $region19: #{transformer_forward.1} parent=1 // pred_check_branch
      %70 = sbr.rel (0) target = $region21
    $region20: #{transformer_forward.1} parent=1 // pred_region
      %72 = vsyncadd [#allocation10], 0
      %s73 = sshll.u32 %s4, 4
      %s74 = int_to_ptr.hbm [resolvable:$true] %s73
      %s75 = sshll.u32 [#allocation11], 4
      %s76 = int_to_ptr.vmem [resolvable:$true] %s75
      %81 = dma.hbm_to_vmem [thread:$0]  %s74, 256, %s76, [#allocation10], 128, 128, 8
    $region21: #{transformer_forward.1} parent=1 // pred_fallthru
      _
    // Predicated region
    $region22: #{transformer_forward.1} parent=1 // pred_check
      _
    $region23: #{transformer_forward.1} parent=1 // pred_check_branch
      %83 = sbr.rel (0) target = $region25
    $region24: #{transformer_forward.1} parent=1 // pred_region
      %85 = vsyncadd [#allocation13], 0
      %s86 = sshll.u32 %s5, 4
      %s87 = int_to_ptr.hbm [resolvable:$true] %s86
      %s88 = sshll.u32 [#allocation12], 4
      %s89 = int_to_ptr.vmem [resolvable:$true] %s88
      %94 = dma.hbm_to_vmem [thread:$0]  %s87, 6144, %s89, [#allocation13], 64, 64, 4
    $region25: #{transformer_forward.1} parent=1 // pred_fallthru
      _
    // Predicated region
    $region26: #{transformer_forward.1} parent=1 // pred_check
      _
    $region27: #{transformer_forward.1} parent=1 // pred_check_branch
      %96 = sbr.rel (0) target = $region29
    $region28: #{transformer_forward.1} parent=1 // pred_region
      %98 = vsyncadd [#allocation13], 0
      %s99 = sshll.u32 %s6, 4
      %s100 = int_to_ptr.hbm [resolvable:$true] %s99
      %s101 = sshll.u32 [#allocation14], 4
      %s102 = int_to_ptr.vmem [resolvable:$true] %s101
      %107 = dma.hbm_to_vmem [thread:$0]  %s100, 1024, %s102, [#allocation13], 64, 64, 4
    $region29: #{transformer_forward.1} parent=1 // pred_fallthru
      _
    // Predicated region
    $region30: #{transformer_forward.1} parent=1 // pred_check
      _
    $region31: #{transformer_forward.1} parent=1 // pred_check_branch
      %109 = sbr.rel (0) target = $region33
    $region32: #{transformer_forward.1} parent=1 // pred_region
      %111 = vsyncadd [#allocation16], 0
      %s112 = sshll.u32 %s7, 4
      %s113 = int_to_ptr.hbm [resolvable:$true] %s112
      %s114 = sshll.u32 [#allocation15], 4
      %s115 = int_to_ptr.vmem [resolvable:$true] %s114
      %120 = dma.hbm_to_vmem [thread:$0]  %s113, 2048, %s115, [#allocation16], 64, 64, 4
    $region33: #{transformer_forward.1} parent=1 // pred_fallthru
      _
    // Predicated region
    $region34: #{transformer_forward.1} parent=1 // pred_check
      _
    $region35: #{transformer_forward.1} parent=1 // pred_check_branch
      %122 = sbr.rel (0) target = $region37
    $region36: #{transformer_forward.1} parent=1 // pred_region
      %124 = vsyncadd [#allocation16], 0
      %s125 = sshll.u32 %s8, 4
      %s126 = int_to_ptr.hbm [resolvable:$true] %s125
      %s127 = sshll.u32 [#allocation17], 4
      %s128 = int_to_ptr.vmem [resolvable:$true] %s127
      %133 = dma.hbm_to_vmem [thread:$0]  %s126, 256, %s128, [#allocation16], 64, 64, 4
    $region37: #{transformer_forward.1} parent=1 // pred_fallthru
      _
    // Predicated region
    $region38: #{transformer_forward.1} parent=1 // pred_check
      _
    $region39: #{transformer_forward.1} parent=1 // pred_check_branch
      %135 = sbr.rel (0) target = $region41
    $region40: #{transformer_forward.1} parent=1 // pred_region
      %137 = vsyncadd [#allocation19], 0
      %s138 = sshll.u32 %s9, 4
      %s139 = int_to_ptr.hbm [resolvable:$true] %s138
      %s140 = sshll.u32 [#allocation18], 4
      %s141 = int_to_ptr.vmem [resolvable:$true] %s140
      %146 = dma.hbm_to_vmem [thread:$0]  %s139, 768, %s141, [#allocation19], 16, 16, 1
    $region41: #{transformer_forward.1} parent=1 // pred_fallthru
      _
    // Predicated region
    $region42: #{transformer_forward.1} parent=1 // pred_check
      _
    $region43: #{transformer_forward.1} parent=1 // pred_check_branch
      %148 = sbr.rel (0) target = $region45
    $region44: #{transformer_forward.1} parent=1 // pred_region
      _
    $region45: #{transformer_forward.1} parent=1 // pred_fallthru
      _
    // Predicated region
    $region46: #{transformer_forward.1} parent=1 // pred_check
      _
    $region47: #{transformer_forward.1} parent=1 // pred_check_branch
      %150 = sbr.rel (0) target = $region49
    $region48: #{transformer_forward.1} parent=1 // pred_region
      _
    $region49: #{transformer_forward.1} parent=1 // pred_fallthru
      _
    // Predicated region
    $region50: #{transformer_forward.1} parent=1 // pred_check
      _
    $region51: #{transformer_forward.1} parent=1 // pred_check_branch
      %152 = sbr.rel (0) target = $region53
    $region52: #{transformer_forward.1} parent=1 // pred_region
      %154 = dma.done [#allocation5], 32
    $region53: #{transformer_forward.1} parent=1 // pred_fallthru
      _
    // Predicated region
    $region54: #{transformer_forward.1} parent=1 // pred_check
      _
    $region55: #{transformer_forward.1} parent=1 // pred_check_branch
      %156 = sbr.rel (0) target = $region57
    $region56: #{transformer_forward.1} parent=1 // pred_region
      %158 = dma.done [#allocation7], 32
    $region57: #{transformer_forward.1} parent=1 // pred_fallthru
      _
    // Predicated region
    $region58: #{transformer_forward.1} parent=1 // pred_check
      _
    $region59: #{transformer_forward.1} parent=1 // pred_check_branch
      %160 = sbr.rel (0) target = $region61
    $region60: #{transformer_forward.1} parent=1 // pred_region
      %162 = dma.done [#allocation3], 2048
    $region61: #{transformer_forward.1} parent=1 // pred_fallthru
      _
    // Predicated region
    $region62: #{transformer_forward.1} parent=1 // pred_check
      _
    $region63: #{transformer_forward.1} parent=1 // pred_check_branch
      %164 = sbr.rel (0) target = $region65
    $region64: #{transformer_forward.1} parent=1 // pred_region
      %166 = dma.done [#allocation10], 2048
    $region65: #{transformer_forward.1} parent=1 // pred_fallthru
      _
    // Predicated region
    $region66: #{transformer_forward.1} parent=1 // pred_check
      _
    $region67: #{transformer_forward.1} parent=1 // pred_check_branch
      %168 = sbr.rel (0) target = $region69
    $region68: #{transformer_forward.1} parent=1 // pred_region
      %170 = dma.done [#allocation10], 256
    $region69: #{transformer_forward.1} parent=1 // pred_fallthru
      _
    // Predicated region
    $region70: #{transformer_forward.1} parent=1 // pred_check
      _
    $region71: #{transformer_forward.1} parent=1 // pred_check_branch
      %172 = sbr.rel (0) target = $region73
    $region72: #{transformer_forward.1} parent=1 // pred_region
      %174 = dma.done [#allocation13], 6144
    $region73: #{transformer_forward.1} parent=1 // pred_fallthru
      _
    // Predicated region
    $region74: #{transformer_forward.1} parent=1 // pred_check
      _
    $region75: #{transformer_forward.1} parent=1 // pred_check_branch
      %176 = sbr.rel (0) target = $region77
    $region76: #{transformer_forward.1} parent=1 // pred_region
      %178 = dma.done [#allocation13], 1024
    $region77: #{transformer_forward.1} parent=1 // pred_fallthru
      _
    // Predicated region
    $region78: #{transformer_forward.1} parent=1 // pred_check
      _
    $region79: #{transformer_forward.1} parent=1 // pred_check_branch
      %180 = sbr.rel (0) target = $region81
    $region80: #{transformer_forward.1} parent=1 // pred_region
      %182 = dma.done [#allocation16], 2048
    $region81: #{transformer_forward.1} parent=1 // pred_fallthru
      _
    // Predicated region
    $region82: #{transformer_forward.1} parent=1 // pred_check
      _
    $region83: #{transformer_forward.1} parent=1 // pred_check_branch
      %184 = sbr.rel (0) target = $region85
    $region84: #{transformer_forward.1} parent=1 // pred_region
      %186 = dma.done [#allocation16], 256
    $region85: #{transformer_forward.1} parent=1 // pred_fallthru
      _
    // Predicated region
    $region86: #{transformer_forward.1} parent=1 // pred_check
      _
    $region87: #{transformer_forward.1} parent=1 // pred_check_branch
      %188 = sbr.rel (0) target = $region89
    $region88: #{transformer_forward.1} parent=1 // pred_region
      %190 = dma.done [#allocation19], 768
    $region89: #{transformer_forward.1} parent=1 // pred_fallthru
      _
    %191 = sfence
    %v193 = vlaneseq
    %v194 = vand.u32 %v193, 127
    %s195 = sld [smem:[#allocation2]]
    %v196 = vstv %s195
    %vm197 = vcmp.eq.s32.totalorder %v194, %v196
    %v198 = vsel %vm197, 1, 0
    %v199 = vcvt.s32.f32 %v198
    %s200 = sld [smem:[#allocation2 + $0x1]]
    %v201 = vstv %s200
    %vm202 = vcmp.eq.s32.totalorder %v194, %v201
    %v203 = vsel %vm202, 1, 0
    %v204 = vcvt.s32.f32 %v203
    %s205 = sld [smem:[#allocation2 + $0x2]]
    %v206 = vstv %s205
    %vm207 = vcmp.eq.s32.totalorder %v194, %v206
    %v208 = vsel %vm207, 1, 0
    %v209 = vcvt.s32.f32 %v208
    %s210 = sld [smem:[#allocation2 + $0x3]]
    %v211 = vstv %s210
    %vm212 = vcmp.eq.s32.totalorder %v194, %v211
    %v213 = vsel %vm212, 1, 0
    %v214 = vcvt.s32.f32 %v213
    %s215 = sld [smem:[#allocation2 + $0x4]]
    %v216 = vstv %s215
    %vm217 = vcmp.eq.s32.totalorder %v194, %v216
    %v218 = vsel %vm217, 1, 0
    %v219 = vcvt.s32.f32 %v218
    %s220 = sld [smem:[#allocation2 + $0x5]]
    %v221 = vstv %s220
    %vm222 = vcmp.eq.s32.totalorder %v194, %v221
    %v223 = vsel %vm222, 1, 0
    %v224 = vcvt.s32.f32 %v223
    %s225 = sld [smem:[#allocation2 + $0x6]]
    %v226 = vstv %s225
    %vm227 = vcmp.eq.s32.totalorder %v194, %v226
    %v228 = vsel %vm227, 1, 0
    %v229 = vcvt.s32.f32 %v228
    %s230 = sld [smem:[#allocation2 + $0x7]]
    %v231 = vstv %s230
    %vm232 = vcmp.eq.s32.totalorder %v194, %v231
    %v233 = vsel %vm232, 1, 0
    %v234 = vcvt.s32.f32 %v233
    %s235 = sld [smem:[#allocation2 + $0x80]]
    %v236 = vstv %s235
    %vm237 = vcmp.eq.s32.totalorder %v194, %v236
    %v238 = vsel %vm237, 1, 0
    %v239 = vcvt.s32.f32 %v238
    %s240 = sld [smem:[#allocation2 + $0x81]]
    %v241 = vstv %s240
    %vm242 = vcmp.eq.s32.totalorder %v194, %v241
    %v243 = vsel %vm242, 1, 0
    %v244 = vcvt.s32.f32 %v243
    %s245 = sld [smem:[#allocation2 + $0x82]]
    %v246 = vstv %s245
    %vm247 = vcmp.eq.s32.totalorder %v194, %v246
    %v248 = vsel %vm247, 1, 0
    %v249 = vcvt.s32.f32 %v248
    %s250 = sld [smem:[#allocation2 + $0x83]]
    %v251 = vstv %s250
    %vm252 = vcmp.eq.s32.totalorder %v194, %v251
    %v253 = vsel %vm252, 1, 0
    %v254 = vcvt.s32.f32 %v253
    %s255 = sld [smem:[#allocation2 + $0x84]]
    %v256 = vstv %s255
    %vm257 = vcmp.eq.s32.totalorder %v194, %v256
    %v258 = vsel %vm257, 1, 0
    %v259 = vcvt.s32.f32 %v258
    %s260 = sld [smem:[#allocation2 + $0x85]]
    %v261 = vstv %s260
    %vm262 = vcmp.eq.s32.totalorder %v194, %v261
    %v263 = vsel %vm262, 1, 0
    %v264 = vcvt.s32.f32 %v263
    %s265 = sld [smem:[#allocation2 + $0x86]]
    %v266 = vstv %s265
    %vm267 = vcmp.eq.s32.totalorder %v194, %v266
    %v268 = vsel %vm267, 1, 0
    %v269 = vcvt.s32.f32 %v268
    %s270 = sld [smem:[#allocation2 + $0x87]]
    %v271 = vstv %s270
    %vm272 = vcmp.eq.s32.totalorder %v194, %v271
    %v273 = vsel %vm272, 1, 0
    %v274 = vcvt.s32.f32 %v273
    %vm275 = vcmask 1040384
    %v276 = vsel %vm275, %v199, %v204
    %vm277 = vcmask 1041408
    %v278 = vsel %vm277, %v276, %v209
    %vm279 = vcmask 1042432
    %v280 = vsel %vm279, %v278, %v214
    %vm281 = vcmask 1043456
    %v282 = vsel %vm281, %v280, %v219
    %vm283 = vcmask 1044480
    %v284 = vsel %vm283, %v282, %v224
    %vm285 = vcmask 1045504
    %v286 = vsel %vm285, %v284, %v229
    %vm287 = vcmask 1046528
    %v288 = vsel %vm287, %v286, %v234
    %v289 = vsel %vm275, %v239, %v244
    %v290 = vsel %vm277, %v289, %v249
    %v291 = vsel %vm279, %v290, %v254
    %v292 = vsel %vm281, %v291, %v259
    %v293 = vsel %vm283, %v292, %v264
    %v294 = vsel %vm285, %v293, %v269
    %v295 = vsel %vm287, %v294, %v274
    %v296 = vld [vmem:[#allocation8] sm:$0xff]
    %v297 = vld [vmem:[#allocation8 + $0x8] sm:$0xff]
    %v298 = vld [vmem:[#allocation8 + $0x10] sm:$0xff]
    %v299 = vld [vmem:[#allocation8 + $0x18] sm:$0xff]
    %v300 = vld [vmem:[#allocation8 + $0x20] sm:$0xff]
    %v301 = vld [vmem:[#allocation8 + $0x28] sm:$0xff]
    %v302 = vld [vmem:[#allocation8 + $0x30] sm:$0xff]
    %v303 = vld [vmem:[#allocation8 + $0x38] sm:$0xff]
    %v304 = vld [vmem:[#allocation8 + $0x40] sm:$0xff]
    %v305 = vld [vmem:[#allocation8 + $0x48] sm:$0xff]
    %v306 = vld [vmem:[#allocation8 + $0x50] sm:$0xff]
    %v307 = vld [vmem:[#allocation8 + $0x58] sm:$0xff]
    %v308 = vld [vmem:[#allocation8 + $0x60] sm:$0xff]
    %v309 = vld [vmem:[#allocation8 + $0x68] sm:$0xff]
    %v310 = vld [vmem:[#allocation8 + $0x70] sm:$0xff]
    %v311 = vld [vmem:[#allocation8 + $0x78] sm:$0xff]
    %v312 = vld [vmem:[#allocation11] sm:$0xff]
    %313 = vmatpush.msra.mxu0 %v311
    %314 = vmatpush.msra.mxu0 %v310
    %315 = vmatpush.msra.mxu0 %v309
    %316 = vmatpush.msra.mxu0 %v308
    %317 = vmatpush.msra.mxu0 %v307
    %318 = vmatpush.msra.mxu0 %v306
    %319 = vmatpush.msra.mxu0 %v305
    %320 = vmatpush.msra.mxu0 %v304
    %321 = vmatpush.msra.mxu0 %v303
    %322 = vmatpush.msra.mxu0 %v302
    %323 = vmatpush.msra.mxu0 %v301
    %324 = vmatpush.msra.mxu0 %v300
    %325 = vmatpush.msra.mxu0 %v299
    %326 = vmatpush.msra.mxu0 %v298
    %327 = vmatpush.msra.mxu0 %v297
    %328 = vmatpush.msra.mxu0 %v296
    %329 = vmatmul.f32.gmra.mxu0 %v288
    %v330 = vpop.f32.mrf.mxu0
    %v331 = vadd.f32 %v312, %v330
    %332 = vmatmul.f32.gmra.mxu0 %v295
    %v333 = vpop.f32.mrf.mxu0
    %v334 = vadd.f32 %v312, %v333
    %335 = vdwg.mxu0
    %s336 = sld [smem:[#allocation6]]
    %v337 = vstv %s336
    %vm338 = vcmp.eq.s32.totalorder %v194, %v337
    %v339 = vsel %vm338, 1, 0
    %v340 = vcvt.s32.f32 %v339
    %s341 = sld [smem:[#allocation6 + $0x1]]
    %v342 = vstv %s341
    %vm343 = vcmp.eq.s32.totalorder %v194, %v342
    %v344 = vsel %vm343, 1, 0
    %v345 = vcvt.s32.f32 %v344
    %s346 = sld [smem:[#allocation6 + $0x2]]
    %v347 = vstv %s346
    %vm348 = vcmp.eq.s32.totalorder %v194, %v347
    %v349 = vsel %vm348, 1, 0
    %v350 = vcvt.s32.f32 %v349
    %s351 = sld [smem:[#allocation6 + $0x3]]
    %v352 = vstv %s351
    %vm353 = vcmp.eq.s32.totalorder %v194, %v352
    %v354 = vsel %vm353, 1, 0
    %v355 = vcvt.s32.f32 %v354
    %s356 = sld [smem:[#allocation6 + $0x4]]
    %v357 = vstv %s356
    %vm358 = vcmp.eq.s32.totalorder %v194, %v357
    %v359 = vsel %vm358, 1, 0
    %v360 = vcvt.s32.f32 %v359
    %s361 = sld [smem:[#allocation6 + $0x5]]
    %v362 = vstv %s361
    %vm363 = vcmp.eq.s32.totalorder %v194, %v362
    %v364 = vsel %vm363, 1, 0
    %v365 = vcvt.s32.f32 %v364
    %s366 = sld [smem:[#allocation6 + $0x6]]
    %v367 = vstv %s366
    %vm368 = vcmp.eq.s32.totalorder %v194, %v367
    %v369 = vsel %vm368, 1, 0
    %v370 = vcvt.s32.f32 %v369
    %s371 = sld [smem:[#allocation6 + $0x7]]
    %v372 = vstv %s371
    %vm373 = vcmp.eq.s32.totalorder %v194, %v372
    %v374 = vsel %vm373, 1, 0
    %v375 = vcvt.s32.f32 %v374
    %s376 = sld [smem:[#allocation6 + $0x80]]
    %v377 = vstv %s376
    %vm378 = vcmp.eq.s32.totalorder %v194, %v377
    %v379 = vsel %vm378, 1, 0
    %v380 = vcvt.s32.f32 %v379
    %s381 = sld [smem:[#allocation6 + $0x81]]
    %v382 = vstv %s381
    %vm383 = vcmp.eq.s32.totalorder %v194, %v382
    %v384 = vsel %vm383, 1, 0
    %v385 = vcvt.s32.f32 %v384
    %s386 = sld [smem:[#allocation6 + $0x82]]
    %v387 = vstv %s386
    %vm388 = vcmp.eq.s32.totalorder %v194, %v387
    %v389 = vsel %vm388, 1, 0
    %v390 = vcvt.s32.f32 %v389
    %s391 = sld [smem:[#allocation6 + $0x83]]
    %v392 = vstv %s391
    %vm393 = vcmp.eq.s32.totalorder %v194, %v392
    %v394 = vsel %vm393, 1, 0
    %v395 = vcvt.s32.f32 %v394
    %s396 = sld [smem:[#allocation6 + $0x84]]
    %v397 = vstv %s396
    %vm398 = vcmp.eq.s32.totalorder %v194, %v397
    %v399 = vsel %vm398, 1, 0
    %v400 = vcvt.s32.f32 %v399
    %s401 = sld [smem:[#allocation6 + $0x85]]
    %v402 = vstv %s401
    %vm403 = vcmp.eq.s32.totalorder %v194, %v402
    %v404 = vsel %vm403, 1, 0
    %v405 = vcvt.s32.f32 %v404
    %s406 = sld [smem:[#allocation6 + $0x86]]
    %v407 = vstv %s406
    %vm408 = vcmp.eq.s32.totalorder %v194, %v407
    %v409 = vsel %vm408, 1, 0
    %v410 = vcvt.s32.f32 %v409
    %s411 = sld [smem:[#allocation6 + $0x87]]
    %v412 = vstv %s411
    %vm413 = vcmp.eq.s32.totalorder %v194, %v412
    %v414 = vsel %vm413, 1, 0
    %v415 = vcvt.s32.f32 %v414
    %v416 = vsel %vm275, %v340, %v345
    %v417 = vsel %vm277, %v416, %v350
    %v418 = vsel %vm279, %v417, %v355
    %v419 = vsel %vm281, %v418, %v360
    %v420 = vsel %vm283, %v419, %v365
    %v421 = vsel %vm285, %v420, %v370
    %v422 = vsel %vm287, %v421, %v375
    %v423 = vsel %vm275, %v380, %v385
    %v424 = vsel %vm277, %v423, %v390
    %v425 = vsel %vm279, %v424, %v395
    %v426 = vsel %vm281, %v425, %v400
    %v427 = vsel %vm283, %v426, %v405
    %v428 = vsel %vm285, %v427, %v410
    %v429 = vsel %vm287, %v428, %v415
    %v430 = vld [vmem:[#allocation9] sm:$0xff]
    %v431 = vld [vmem:[#allocation9 + $0x8] sm:$0xff]
    %v432 = vld [vmem:[#allocation9 + $0x10] sm:$0xff]
    %v433 = vld [vmem:[#allocation9 + $0x18] sm:$0xff]
    %v434 = vld [vmem:[#allocation9 + $0x20] sm:$0xff]
    %v435 = vld [vmem:[#allocation9 + $0x28] sm:$0xff]
    %v436 = vld [vmem:[#allocation9 + $0x30] sm:$0xff]
    %v437 = vld [vmem:[#allocation9 + $0x38] sm:$0xff]
    %v438 = vld [vmem:[#allocation9 + $0x40] sm:$0xff]
    %v439 = vld [vmem:[#allocation9 + $0x48] sm:$0xff]
    %v440 = vld [vmem:[#allocation9 + $0x50] sm:$0xff]
    %v441 = vld [vmem:[#allocation9 + $0x58] sm:$0xff]
    %v442 = vld [vmem:[#allocation9 + $0x60] sm:$0xff]
    %v443 = vld [vmem:[#allocation9 + $0x68] sm:$0xff]
    %v444 = vld [vmem:[#allocation9 + $0x70] sm:$0xff]
    %v445 = vld [vmem:[#allocation9 + $0x78] sm:$0xff]
    %446 = vmatpush.msra.mxu0 %v445
    %447 = vmatpush.msra.mxu0 %v444
    %448 = vmatpush.msra.mxu0 %v443
    %449 = vmatpush.msra.mxu0 %v442
    %450 = vmatpush.msra.mxu0 %v441
    %451 = vmatpush.msra.mxu0 %v440
    %452 = vmatpush.msra.mxu0 %v439
    %453 = vmatpush.msra.mxu0 %v438
    %454 = vmatpush.msra.mxu0 %v437
    %455 = vmatpush.msra.mxu0 %v436
    %456 = vmatpush.msra.mxu0 %v435
    %457 = vmatpush.msra.mxu0 %v434
    %458 = vmatpush.msra.mxu0 %v433
    %459 = vmatpush.msra.mxu0 %v432
    %460 = vmatpush.msra.mxu0 %v431
    %461 = vmatpush.msra.mxu0 %v430
    %462 = vmatmul.f32.gmra.mxu0 %v422
    %v463 = vpop.f32.mrf.mxu0
    %v464 = vadd.f32 %v312, %v463
    %465 = vmatmul.f32.gmra.mxu0 %v429
    %v466 = vpop.f32.mrf.mxu0
    %v467 = vadd.f32 %v312, %v466
    %468 = vdwg.mxu0
    %p469 = scmp.ne.s32.totalorder %s195, 0
    %s470 = scalar_select %p469, 1.0, 0.0
    %vm471 = vcmp.eq.s32.totalorder %v194, 0
    %v472 = vstv %s470
    %v473 = vsel %vm471, %v472, 0.0
    %p474 = scmp.ne.s32.totalorder %s200, 0
    %s475 = scalar_select %p474, 1.0, 0.0
    %vm476 = vcmp.eq.s32.totalorder %v194, 1
    %v477 = vstv %s475
    %v478 = vsel %vm476, %v477, %v473
    %p479 = scmp.ne.s32.totalorder %s205, 0
    %s480 = scalar_select %p479, 1.0, 0.0
    %vm481 = vcmp.eq.s32.totalorder %v194, 2
    %v482 = vstv %s480
    %v483 = vsel %vm481, %v482, %v478
    %p484 = scmp.ne.s32.totalorder %s210, 0
    %s485 = scalar_select %p484, 1.0, 0.0
    %vm486 = vcmp.eq.s32.totalorder %v194, 3
    %v487 = vstv %s485
    %v488 = vsel %vm486, %v487, %v483
    %p489 = scmp.ne.s32.totalorder %s215, 0
    %s490 = scalar_select %p489, 1.0, 0.0
    %vm491 = vcmp.eq.s32.totalorder %v194, 4
    %v492 = vstv %s490
    %v493 = vsel %vm491, %v492, %v488
    %p494 = scmp.ne.s32.totalorder %s220, 0
    %s495 = scalar_select %p494, 1.0, 0.0
    %vm496 = vcmp.eq.s32.totalorder %v194, 5
    %v497 = vstv %s495
    %v498 = vsel %vm496, %v497, %v493
    %p499 = scmp.ne.s32.totalorder %s225, 0
    %s500 = scalar_select %p499, 1.0, 0.0
    %vm501 = vcmp.eq.s32.totalorder %v194, 6
    %v502 = vstv %s500
    %v503 = vsel %vm501, %v502, %v498
    %p504 = scmp.ne.s32.totalorder %s230, 0
    %s505 = scalar_select %p504, 1.0, 0.0
    %vm506 = vcmp.eq.s32.totalorder %v194, 7
    %v507 = vstv %s505
    %v508 = vsel %vm506, %v507, %v503
    %p509 = scmp.ne.s32.totalorder %s235, 0
    %s510 = scalar_select %p509, 1.0, 0.0
    %v511 = vstv %s510
    %v512 = vsel %vm471, %v511, 0.0
    %p513 = scmp.ne.s32.totalorder %s240, 0
    %s514 = scalar_select %p513, 1.0, 0.0
    %v515 = vstv %s514
    %v516 = vsel %vm476, %v515, %v512
    %p517 = scmp.ne.s32.totalorder %s245, 0
    %s518 = scalar_select %p517, 1.0, 0.0
    %v519 = vstv %s518
    %v520 = vsel %vm481, %v519, %v516
    %p521 = scmp.ne.s32.totalorder %s250, 0
    %s522 = scalar_select %p521, 1.0, 0.0
    %v523 = vstv %s522
    %v524 = vsel %vm486, %v523, %v520
    %p525 = scmp.ne.s32.totalorder %s255, 0
    %s526 = scalar_select %p525, 1.0, 0.0
    %v527 = vstv %s526
    %v528 = vsel %vm491, %v527, %v524
    %p529 = scmp.ne.s32.totalorder %s260, 0
    %s530 = scalar_select %p529, 1.0, 0.0
    %v531 = vstv %s530
    %v532 = vsel %vm496, %v531, %v528
    %p533 = scmp.ne.s32.totalorder %s265, 0
    %s534 = scalar_select %p533, 1.0, 0.0
    %v535 = vstv %s534
    %v536 = vsel %vm501, %v535, %v532
    %p537 = scmp.ne.s32.totalorder %s270, 0
    %s538 = scalar_select %p537, 1.0, 0.0
    %v539 = vstv %s538
    %v540 = vsel %vm506, %v539, %v536
    %v541 = vlaneseq
    %v542 = vshrl.u32 %v541, 7
    %vm543 = vcmp.le.s32.totalorder %v194, %v542
    %vm544 = vcmp.lt.f32.partialorder %v422, 0.5
    %v545 = vsel %vm544, 1, 0
    %546 = vset.pattern.permute.xlu0 0
    %547 = vperm.xlu0 %546, %v545
    %v548 = vpop.permute.xlu0 %547
    %vm549 = vcmp.eq.s32.totalorder %v548, 1
    %vm550 = vmand %vm549, %vm543
    %v551 = vsel %vm550, 1.0, 0.0
    %vm552 = vcmp.lt.f32.partialorder %v429, 0.5
    %v553 = vsel %vm552, 1, 0
    %554 = vset.pattern.permute.xlu0 0
    %555 = vperm.xlu0 %554, %v553
    %v556 = vpop.permute.xlu0 %555
    %vm557 = vcmp.eq.s32.totalorder %v556, 1
    %vm558 = vmand %vm557, %vm543
    %v559 = vsel %vm558, 1.0, 0.0
    %v560 = vld [vmem:[#allocation12] sm:$0xf]
    %v561 = vld [vmem:[#allocation12 + $0x4] sm:$0xf]
    %v562 = vld [vmem:[#allocation12 + $0x8] sm:$0xf]
    %v563 = vld [vmem:[#allocation12 + $0xc] sm:$0xf]
    %v564 = vld [vmem:[#allocation18] sm:$0x1]
    %v565 = vpack.c.bf16 %v334, %v331
    %v567 = vperm.slane %v564, 0
    %v573 = vunpack.c.l.b16 %v560
    %v574 = vunpack.c.l.b16 %v561
    %v575 = vunpack.c.l.b16 %v562
    %v576 = vunpack.c.l.b16 %v563
    %v577 = vpack.c.b16 %v574, %v573
    %v578 = vpack.c.b16 %v576, %v575
    %vm581 = vcmask 261120
    %v583 = vsel %vm581, %v565, 0
    %585 = vmatpush.bf16.msra.mxu0 0
    %586 = vmatpush.bf16.msra.mxu0 0
    %587 = vmatpush.bf16.msra.mxu0 0
    %588 = vmatpush.bf16.msra.mxu0 0
    %589 = vmatpush.bf16.msra.mxu0 0
    %590 = vmatpush.bf16.msra.mxu0 0
    %591 = vmatpush.bf16.msra.mxu0 %v578
    %592 = vmatpush.bf16.msra.mxu0 %v577
    %593 = vmatmul.bf16.gmra.mxu0 %v583
    %v594 = vpop.f32.mrf.mxu0
    %v595 = vadd.f32 %v567, %v594
    %v596 = vpop.f32.mrf.mxu0
    %v597 = vadd.f32 %v567, %v596
    %598 = vdwg.mxu0
    %s599 = scalar_lea.vmem [#allocation12], 16
    %v600 = vld [vmem:[%s599] sm:$0xf]
    %v601 = vld [vmem:[%s599 + $0x4] sm:$0xf]
    %v602 = vld [vmem:[%s599 + $0x8] sm:$0xf]
    %v603 = vld [vmem:[%s599 + $0xc] sm:$0xf]
    %s604 = scalar_lea.vmem [#allocation18], 1
    %v605 = vld [vmem:[%s604] sm:$0x1]
    %v607 = vperm.slane %v605, 0
    %v613 = vunpack.c.l.b16 %v600
    %v614 = vunpack.c.l.b16 %v601
    %v615 = vunpack.c.l.b16 %v602
    %v616 = vunpack.c.l.b16 %v603
    %v617 = vpack.c.b16 %v614, %v613
    %v618 = vpack.c.b16 %v616, %v615
    %621 = vmatpush.bf16.msra.mxu0 0
    %622 = vmatpush.bf16.msra.mxu0 0
    %623 = vmatpush.bf16.msra.mxu0 0
    %624 = vmatpush.bf16.msra.mxu0 0
    %625 = vmatpush.bf16.msra.mxu0 0
    %626 = vmatpush.bf16.msra.mxu0 0
    %627 = vmatpush.bf16.msra.mxu0 %v618
    %628 = vmatpush.bf16.msra.mxu0 %v617
    %629 = vmatmul.bf16.gmra.mxu0 %v583
    %v630 = vpop.f32.mrf.mxu0
    %v631 = vadd.f32 %v607, %v630
    %v632 = vpop.f32.mrf.mxu0
    %v633 = vadd.f32 %v607, %v632
    %634 = vdwg.mxu0
    %s635 = scalar_lea.vmem [#allocation12], 32
    %v636 = vld [vmem:[%s635] sm:$0xf]
    %v637 = vld [vmem:[%s635 + $0x4] sm:$0xf]
    %v638 = vld [vmem:[%s635 + $0x8] sm:$0xf]
    %v639 = vld [vmem:[%s635 + $0xc] sm:$0xf]
    %s640 = scalar_lea.vmem [#allocation18], 2
    %v641 = vld [vmem:[%s640] sm:$0x1]
    %v643 = vperm.slane %v641, 0
    %v649 = vunpack.c.l.b16 %v636
    %v650 = vunpack.c.l.b16 %v637
    %v651 = vunpack.c.l.b16 %v638
    %v652 = vunpack.c.l.b16 %v639
    %v653 = vpack.c.b16 %v650, %v649
    %v654 = vpack.c.b16 %v652, %v651
    %657 = vmatpush.bf16.msra.mxu0 0
    %658 = vmatpush.bf16.msra.mxu0 0
    %659 = vmatpush.bf16.msra.mxu0 0
    %660 = vmatpush.bf16.msra.mxu0 0
    %661 = vmatpush.bf16.msra.mxu0 0
    %662 = vmatpush.bf16.msra.mxu0 0
    %663 = vmatpush.bf16.msra.mxu0 %v654
    %664 = vmatpush.bf16.msra.mxu0 %v653
    %665 = vmatmul.bf16.gmra.mxu0 %v583
    %v666 = vpop.f32.mrf.mxu0
    %v667 = vadd.f32 %v643, %v666
    %v668 = vpop.f32.mrf.mxu0
    %v669 = vadd.f32 %v643, %v668
    %670 = vdwg.mxu0
    %672 = vrot.lane.b32.xlu0 %v595, 120
    %v673 = vpop.permute.xlu0 %672
    %675 = vrot.lane.b32.xlu0 %v595, 112
    %v676 = vpop.permute.xlu0 %675
    %678 = vrot.lane.b32.xlu0 %v595, 104
    %v679 = vpop.permute.xlu0 %678
    %682 = vrot.lane.b32.xlu0 %v597, 120
    %v683 = vpop.permute.xlu0 %682
    %685 = vrot.lane.b32.xlu0 %v597, 112
    %v686 = vpop.permute.xlu0 %685
    %688 = vrot.lane.b32.xlu0 %v597, 104
    %v689 = vpop.permute.xlu0 %688
    %692 = vrot.lane.b32.xlu0 %v631, 120
    %v693 = vpop.permute.xlu0 %692
    %695 = vrot.lane.b32.xlu0 %v631, 112
    %v696 = vpop.permute.xlu0 %695
    %698 = vrot.lane.b32.xlu0 %v631, 104
    %v699 = vpop.permute.xlu0 %698
    %702 = vrot.lane.b32.xlu0 %v633, 120
    %v703 = vpop.permute.xlu0 %702
    %705 = vrot.lane.b32.xlu0 %v633, 112
    %v706 = vpop.permute.xlu0 %705
    %708 = vrot.lane.b32.xlu0 %v633, 104
    %v709 = vpop.permute.xlu0 %708
    %712 = vrot.lane.b32.xlu0 %v667, 120
    %v713 = vpop.permute.xlu0 %712
    %715 = vrot.lane.b32.xlu0 %v667, 112
    %v716 = vpop.permute.xlu0 %715
    %718 = vrot.lane.b32.xlu0 %v667, 104
    %v719 = vpop.permute.xlu0 %718
    %722 = vrot.lane.b32.xlu0 %v669, 120
    %v723 = vpop.permute.xlu0 %722
    %725 = vrot.lane.b32.xlu0 %v669, 112
    %v726 = vpop.permute.xlu0 %725
    %728 = vrot.lane.b32.xlu0 %v669, 104
    %v729 = vpop.permute.xlu0 %728
    %v731 = vpack.c.bf16 %v595, %v595
    %v732 = vpack.c.bf16 %v673, %v673
    %v733 = vpack.c.bf16 %v676, %v676
    %v734 = vpack.c.bf16 %v679, %v679
    %v735 = vpack.c.bf16 %v597, %v597
    %v736 = vpack.c.bf16 %v683, %v683
    %v737 = vpack.c.bf16 %v686, %v686
    %v738 = vpack.c.bf16 %v689, %v689
    %v739 = vpack.c.bf16 %v631, %v631
    %v740 = vpack.c.bf16 %v693, %v693
    %v741 = vpack.c.bf16 %v696, %v696
    %v742 = vpack.c.bf16 %v699, %v699
    %v743 = vpack.c.bf16 %v633, %v633
    %v744 = vpack.c.bf16 %v703, %v703
    %v745 = vpack.c.bf16 %v706, %v706
    %v746 = vpack.c.bf16 %v709, %v709
    %vm747 = vcmask 64512
    %v749 = vsel %vm747, %v731, 0
    %v752 = vsel %vm747, %v739, 0
    %754 = vmatpush.bf16.xpose.msra.mxu0 0
    %755 = vmatpush.bf16.xpose.msra.mxu0 0
    %756 = vmatpush.bf16.xpose.msra.mxu0 0
    %757 = vmatpush.bf16.xpose.msra.mxu0 0
    %758 = vmatpush.bf16.xpose.msra.mxu0 0
    %759 = vmatpush.bf16.xpose.msra.mxu0 0
    %760 = vmatpush.bf16.xpose.msra.mxu0 0
    %761 = vmatpush.bf16.xpose.msra.mxu0 %v752
    %762 = vmatmul.bf16.gmra.mxu0 %v749
    %v763 = vpop.f32.mrf.mxu0
    %v764 = vadd.f32 0.0, %v763
    %v765 = vpop.f32.mrf.mxu0
    %766 = vdwg.mxu0
    %v768 = vsel %vm747, %v732, 0
    %v771 = vsel %vm747, %v740, 0
    %773 = vmatpush.bf16.xpose.msra.mxu0 0
    %774 = vmatpush.bf16.xpose.msra.mxu0 0
    %775 = vmatpush.bf16.xpose.msra.mxu0 0
    %776 = vmatpush.bf16.xpose.msra.mxu0 0
    %777 = vmatpush.bf16.xpose.msra.mxu0 0
    %778 = vmatpush.bf16.xpose.msra.mxu0 0
    %779 = vmatpush.bf16.xpose.msra.mxu0 0
    %780 = vmatpush.bf16.xpose.msra.mxu0 %v771
    %781 = vmatmul.bf16.gmra.mxu0 %v768
    %v782 = vpop.f32.mrf.mxu0
    %v783 = vadd.f32 0.0, %v782
    %v784 = vpop.f32.mrf.mxu0
    %785 = vdwg.mxu0
    %v787 = vsel %vm747, %v733, 0
    %v790 = vsel %vm747, %v741, 0
    %792 = vmatpush.bf16.xpose.msra.mxu0 0
    %793 = vmatpush.bf16.xpose.msra.mxu0 0
    %794 = vmatpush.bf16.xpose.msra.mxu0 0
    %795 = vmatpush.bf16.xpose.msra.mxu0 0
    %796 = vmatpush.bf16.xpose.msra.mxu0 0
    %797 = vmatpush.bf16.xpose.msra.mxu0 0
    %798 = vmatpush.bf16.xpose.msra.mxu0 0
    %799 = vmatpush.bf16.xpose.msra.mxu0 %v790
    %800 = vmatmul.bf16.gmra.mxu0 %v787
    %v801 = vpop.f32.mrf.mxu0
    %v802 = vadd.f32 0.0, %v801
    %v803 = vpop.f32.mrf.mxu0
    %804 = vdwg.mxu0
    %v806 = vsel %vm747, %v734, 0
    %v809 = vsel %vm747, %v742, 0
    %811 = vmatpush.bf16.xpose.msra.mxu0 0
    %812 = vmatpush.bf16.xpose.msra.mxu0 0
    %813 = vmatpush.bf16.xpose.msra.mxu0 0
    %814 = vmatpush.bf16.xpose.msra.mxu0 0
    %815 = vmatpush.bf16.xpose.msra.mxu0 0
    %816 = vmatpush.bf16.xpose.msra.mxu0 0
    %817 = vmatpush.bf16.xpose.msra.mxu0 0
    %818 = vmatpush.bf16.xpose.msra.mxu0 %v809
    %819 = vmatmul.bf16.gmra.mxu0 %v806
    %v820 = vpop.f32.mrf.mxu0
    %v821 = vadd.f32 0.0, %v820
    %v822 = vpop.f32.mrf.mxu0
    %823 = vdwg.mxu0
    %v825 = vsel %vm747, %v735, 0
    %v828 = vsel %vm747, %v743, 0
    %830 = vmatpush.bf16.xpose.msra.mxu0 0
    %831 = vmatpush.bf16.xpose.msra.mxu0 0
    %832 = vmatpush.bf16.xpose.msra.mxu0 0
    %833 = vmatpush.bf16.xpose.msra.mxu0 0
    %834 = vmatpush.bf16.xpose.msra.mxu0 0
    %835 = vmatpush.bf16.xpose.msra.mxu0 0
    %836 = vmatpush.bf16.xpose.msra.mxu0 0
    %837 = vmatpush.bf16.xpose.msra.mxu0 %v828
    %838 = vmatmul.bf16.gmra.mxu0 %v825
    %v839 = vpop.f32.mrf.mxu0
    %v840 = vadd.f32 0.0, %v839
    %v841 = vpop.f32.mrf.mxu0
    %842 = vdwg.mxu0
    %v844 = vsel %vm747, %v736, 0
    %v847 = vsel %vm747, %v744, 0
    %849 = vmatpush.bf16.xpose.msra.mxu0 0
    %850 = vmatpush.bf16.xpose.msra.mxu0 0
    %851 = vmatpush.bf16.xpose.msra.mxu0 0
    %852 = vmatpush.bf16.xpose.msra.mxu0 0
    %853 = vmatpush.bf16.xpose.msra.mxu0 0
    %854 = vmatpush.bf16.xpose.msra.mxu0 0
    %855 = vmatpush.bf16.xpose.msra.mxu0 0
    %856 = vmatpush.bf16.xpose.msra.mxu0 %v847
    %857 = vmatmul.bf16.gmra.mxu0 %v844
    %v858 = vpop.f32.mrf.mxu0
    %v859 = vadd.f32 0.0, %v858
    %v860 = vpop.f32.mrf.mxu0
    %861 = vdwg.mxu0
    %v863 = vsel %vm747, %v737, 0
    %v866 = vsel %vm747, %v745, 0
    %868 = vmatpush.bf16.xpose.msra.mxu0 0
    %869 = vmatpush.bf16.xpose.msra.mxu0 0
    %870 = vmatpush.bf16.xpose.msra.mxu0 0
    %871 = vmatpush.bf16.xpose.msra.mxu0 0
    %872 = vmatpush.bf16.xpose.msra.mxu0 0
    %873 = vmatpush.bf16.xpose.msra.mxu0 0
    %874 = vmatpush.bf16.xpose.msra.mxu0 0
    %875 = vmatpush.bf16.xpose.msra.mxu0 %v866
    %876 = vmatmul.bf16.gmra.mxu0 %v863
    %v877 = vpop.f32.mrf.mxu0
    %v878 = vadd.f32 0.0, %v877
    %v879 = vpop.f32.mrf.mxu0
    %880 = vdwg.mxu0
    %v882 = vsel %vm747, %v738, 0
    %v885 = vsel %vm747, %v746, 0
    %887 = vmatpush.bf16.xpose.msra.mxu0 0
    %888 = vmatpush.bf16.xpose.msra.mxu0 0
    %889 = vmatpush.bf16.xpose.msra.mxu0 0
    %890 = vmatpush.bf16.xpose.msra.mxu0 0
    %891 = vmatpush.bf16.xpose.msra.mxu0 0
    %892 = vmatpush.bf16.xpose.msra.mxu0 0
    %893 = vmatpush.bf16.xpose.msra.mxu0 0
    %894 = vmatpush.bf16.xpose.msra.mxu0 %v885
    %895 = vmatmul.bf16.gmra.mxu0 %v882
    %v896 = vpop.f32.mrf.mxu0
    %v897 = vadd.f32 0.0, %v896
    %v898 = vpop.f32.mrf.mxu0
    %899 = vdwg.mxu0
    %v900 = vmul.f32 %v764, 0.35355338
    %v901 = vmul.f32 %v783, 0.35355338
    %v902 = vmul.f32 %v802, 0.35355338
    %v903 = vmul.f32 %v821, 0.35355338
    %v904 = vmul.f32 %v840, 0.35355338
    %v905 = vmul.f32 %v859, 0.35355338
    %v906 = vmul.f32 %v878, 0.35355338
    %v907 = vmul.f32 %v897, 0.35355338
    %vm908 = vcmp.gt.f32.partialorder %v508, 0.5
    %vm909 = vcmp.gt.f32.partialorder %v540, 0.5
    %v910 = vsel %vm908, 1, 0
    %v911 = vsel %vm909, 1, 0
    %v912 = vperm.slane %v910, 0
    %v913 = vperm.slane %v911, 0
    %vm914 = vcmp.eq.s32.totalorder %v912, 1
    %vm915 = vcmp.eq.s32.totalorder %v913, 1
    %v916 = vsel %vm914, %v900, -1e+09
    %v917 = vsel %vm914, %v901, -1e+09
    %v918 = vsel %vm914, %v902, -1e+09
    %v919 = vsel %vm914, %v903, -1e+09
    %v920 = vsel %vm915, %v904, -1e+09
    %v921 = vsel %vm915, %v905, -1e+09
    %v922 = vsel %vm915, %v906, -1e+09
    %v923 = vsel %vm915, %v907, -1e+09
    %v924 = vsel %vm747, %v916, -inf
    %925 = vmax.xlane.f32.xlu0 %v924
    %v926 = vpop.xlane.xlu0 %925
    %v927 = vsel %vm747, %v917, -inf
    %928 = vmax.xlane.f32.xlu0 %v927
    %v929 = vpop.xlane.xlu0 %928
    %v930 = vsel %vm747, %v918, -inf
    %931 = vmax.xlane.f32.xlu0 %v930
    %v932 = vpop.xlane.xlu0 %931
    %v933 = vsel %vm747, %v919, -inf
    %934 = vmax.xlane.f32.xlu0 %v933
    %v935 = vpop.xlane.xlu0 %934
    %v936 = vsel %vm747, %v920, -inf
    %937 = vmax.xlane.f32.xlu0 %v936
    %v938 = vpop.xlane.xlu0 %937
    %v939 = vsel %vm747, %v921, -inf
    %940 = vmax.xlane.f32.xlu0 %v939
    %v941 = vpop.xlane.xlu0 %940
    %v942 = vsel %vm747, %v922, -inf
    %943 = vmax.xlane.f32.xlu0 %v942
    %v944 = vpop.xlane.xlu0 %943
    %v945 = vsel %vm747, %v923, -inf
    %946 = vmax.xlane.f32.xlu0 %v945
    %v947 = vpop.xlane.xlu0 %946
    %v948 = vsub.f32 %v916, %v926
    %v949 = vsub.f32 %v917, %v929
    %v950 = vsub.f32 %v918, %v932
    %v951 = vsub.f32 %v919, %v935
    %v952 = vsub.f32 %v920, %v938
    %v953 = vsub.f32 %v921, %v941
    %v954 = vsub.f32 %v922, %v944
    %v955 = vsub.f32 %v923, %v947
    %v956 = vmul.f32 %v948, 1.442695
    %v957 = vpow.pop %v956
    %v958 = vmul.f32 %v949, 1.442695
    %v959 = vpow.pop %v958
    %v960 = vmul.f32 %v950, 1.442695
    %v961 = vpow.pop %v960
    %v962 = vmul.f32 %v951, 1.442695
    %v963 = vpow.pop %v962
    %v964 = vmul.f32 %v952, 1.442695
    %v965 = vpow.pop %v964
    %v966 = vmul.f32 %v953, 1.442695
    %v967 = vpow.pop %v966
    %v968 = vmul.f32 %v954, 1.442695
    %v969 = vpow.pop %v968
    %v970 = vmul.f32 %v955, 1.442695
    %v971 = vpow.pop %v970
    %v972 = vsel %vm747, %v957, 0.0
    %973 = vadd.xlane.f32.xlu0 %v972
    %v974 = vpop.xlane.xlu0 %973
    %v975 = vsel %vm747, %v959, 0.0
    %976 = vadd.xlane.f32.xlu0 %v975
    %v977 = vpop.xlane.xlu0 %976
    %v978 = vsel %vm747, %v961, 0.0
    %979 = vadd.xlane.f32.xlu0 %v978
    %v980 = vpop.xlane.xlu0 %979
    %v981 = vsel %vm747, %v963, 0.0
    %982 = vadd.xlane.f32.xlu0 %v981
    %v983 = vpop.xlane.xlu0 %982
    %v984 = vsel %vm747, %v965, 0.0
    %985 = vadd.xlane.f32.xlu0 %v984
    %v986 = vpop.xlane.xlu0 %985
    %v987 = vsel %vm747, %v967, 0.0
    %988 = vadd.xlane.f32.xlu0 %v987
    %v989 = vpop.xlane.xlu0 %988
    %v990 = vsel %vm747, %v969, 0.0
    %991 = vadd.xlane.f32.xlu0 %v990
    %v992 = vpop.xlane.xlu0 %991
    %v993 = vsel %vm747, %v971, 0.0
    %994 = vadd.xlane.f32.xlu0 %v993
    %v995 = vpop.xlane.xlu0 %994
    %v996 = vrcp.pop %v974
    %v997 = vrcp.pop %v977
    %v998 = vrcp.pop %v980
    %v999 = vrcp.pop %v983
    %v1000 = vrcp.pop %v986
    %v1001 = vrcp.pop %v989
    %v1002 = vrcp.pop %v992
    %v1003 = vrcp.pop %v995
    %v1004 = vmul.f32 %v957, %v996
    %v1005 = vmul.f32 %v959, %v997
    %v1006 = vmul.f32 %v961, %v998
    %v1007 = vmul.f32 %v963, %v999
    %v1008 = vmul.f32 %v965, %v1000
    %v1009 = vmul.f32 %v967, %v1001
    %v1010 = vmul.f32 %v969, %v1002
    %v1011 = vmul.f32 %v971, %v1003
    %v1012 = vpack.c.bf16 %v1004, %v1004
    %v1013 = vpack.c.bf16 %v1005, %v1005
    %v1014 = vpack.c.bf16 %v1006, %v1006
    %v1015 = vpack.c.bf16 %v1007, %v1007
    %v1016 = vpack.c.bf16 %v1008, %v1008
    %v1017 = vpack.c.bf16 %v1009, %v1009
    %v1018 = vpack.c.bf16 %v1010, %v1010
    %v1019 = vpack.c.bf16 %v1011, %v1011
    %v1020 = vpack.c.bf16 %v667, %v667
    %v1021 = vpack.c.bf16 %v713, %v713
    %v1022 = vpack.c.bf16 %v716, %v716
    %v1023 = vpack.c.bf16 %v719, %v719
    %v1024 = vpack.c.bf16 %v669, %v669
    %v1025 = vpack.c.bf16 %v723, %v723
    %v1026 = vpack.c.bf16 %v726, %v726
    %v1027 = vpack.c.bf16 %v729, %v729
    %v1029 = vsel %vm747, %v1012, 0
    %v1032 = vsel %vm281, %v1020, 0
    %1034 = vmatpush.bf16.msra.mxu0 0
    %1035 = vmatpush.bf16.msra.mxu0 0
    %1036 = vmatpush.bf16.msra.mxu0 0
    %1037 = vmatpush.bf16.msra.mxu0 0
    %1038 = vmatpush.bf16.msra.mxu0 0
    %1039 = vmatpush.bf16.msra.mxu0 0
    %1040 = vmatpush.bf16.msra.mxu0 0
    %1041 = vmatpush.bf16.msra.mxu0 %v1032
    %1042 = vmatmul.bf16.gmra.mxu0 %v1029
    %v1043 = vpop.f32.mrf.mxu0
    %v1044 = vadd.f32 0.0, %v1043
    %v1045 = vpop.f32.mrf.mxu0
    %1046 = vdwg.mxu0
    %v1048 = vsel %vm747, %v1013, 0
    %v1051 = vsel %vm281, %v1021, 0
    %1053 = vmatpush.bf16.msra.mxu0 0
    %1054 = vmatpush.bf16.msra.mxu0 0
    %1055 = vmatpush.bf16.msra.mxu0 0
    %1056 = vmatpush.bf16.msra.mxu0 0
    %1057 = vmatpush.bf16.msra.mxu0 0
    %1058 = vmatpush.bf16.msra.mxu0 0
    %1059 = vmatpush.bf16.msra.mxu0 0
    %1060 = vmatpush.bf16.msra.mxu0 %v1051
    %1061 = vmatmul.bf16.gmra.mxu0 %v1048
    %v1062 = vpop.f32.mrf.mxu0
    %v1063 = vadd.f32 0.0, %v1062
    %v1064 = vpop.f32.mrf.mxu0
    %1065 = vdwg.mxu0
    %v1067 = vsel %vm747, %v1014, 0
    %v1070 = vsel %vm281, %v1022, 0
    %1072 = vmatpush.bf16.msra.mxu0 0
    %1073 = vmatpush.bf16.msra.mxu0 0
    %1074 = vmatpush.bf16.msra.mxu0 0
    %1075 = vmatpush.bf16.msra.mxu0 0
    %1076 = vmatpush.bf16.msra.mxu0 0
    %1077 = vmatpush.bf16.msra.mxu0 0
    %1078 = vmatpush.bf16.msra.mxu0 0
    %1079 = vmatpush.bf16.msra.mxu0 %v1070
    %1080 = vmatmul.bf16.gmra.mxu0 %v1067
    %v1081 = vpop.f32.mrf.mxu0
    %v1082 = vadd.f32 0.0, %v1081
    %v1083 = vpop.f32.mrf.mxu0
    %1084 = vdwg.mxu0
    %v1086 = vsel %vm747, %v1015, 0
    %v1089 = vsel %vm281, %v1023, 0
    %1091 = vmatpush.bf16.msra.mxu0 0
    %1092 = vmatpush.bf16.msra.mxu0 0
    %1093 = vmatpush.bf16.msra.mxu0 0
    %1094 = vmatpush.bf16.msra.mxu0 0
    %1095 = vmatpush.bf16.msra.mxu0 0
    %1096 = vmatpush.bf16.msra.mxu0 0
    %1097 = vmatpush.bf16.msra.mxu0 0
    %1098 = vmatpush.bf16.msra.mxu0 %v1089
    %1099 = vmatmul.bf16.gmra.mxu0 %v1086
    %v1100 = vpop.f32.mrf.mxu0
    %v1101 = vadd.f32 0.0, %v1100
    %v1102 = vpop.f32.mrf.mxu0
    %1103 = vdwg.mxu0
    %v1105 = vsel %vm747, %v1016, 0
    %v1108 = vsel %vm281, %v1024, 0
    %1110 = vmatpush.bf16.msra.mxu0 0
    %1111 = vmatpush.bf16.msra.mxu0 0
    %1112 = vmatpush.bf16.msra.mxu0 0
    %1113 = vmatpush.bf16.msra.mxu0 0
    %1114 = vmatpush.bf16.msra.mxu0 0
    %1115 = vmatpush.bf16.msra.mxu0 0
    %1116 = vmatpush.bf16.msra.mxu0 0
    %1117 = vmatpush.bf16.msra.mxu0 %v1108
    %1118 = vmatmul.bf16.gmra.mxu0 %v1105
    %v1119 = vpop.f32.mrf.mxu0
    %v1120 = vadd.f32 0.0, %v1119
    %v1121 = vpop.f32.mrf.mxu0
    %1122 = vdwg.mxu0
    %v1124 = vsel %vm747, %v1017, 0
    %v1127 = vsel %vm281, %v1025, 0
    %1129 = vmatpush.bf16.msra.mxu0 0
    %1130 = vmatpush.bf16.msra.mxu0 0
    %1131 = vmatpush.bf16.msra.mxu0 0
    %1132 = vmatpush.bf16.msra.mxu0 0
    %1133 = vmatpush.bf16.msra.mxu0 0
    %1134 = vmatpush.bf16.msra.mxu0 0
    %1135 = vmatpush.bf16.msra.mxu0 0
    %1136 = vmatpush.bf16.msra.mxu0 %v1127
    %1137 = vmatmul.bf16.gmra.mxu0 %v1124
    %v1138 = vpop.f32.mrf.mxu0
    %v1139 = vadd.f32 0.0, %v1138
    %v1140 = vpop.f32.mrf.mxu0
    %1141 = vdwg.mxu0
    %v1143 = vsel %vm747, %v1018, 0
    %v1146 = vsel %vm281, %v1026, 0
    %1148 = vmatpush.bf16.msra.mxu0 0
    %1149 = vmatpush.bf16.msra.mxu0 0
    %1150 = vmatpush.bf16.msra.mxu0 0
    %1151 = vmatpush.bf16.msra.mxu0 0
    %1152 = vmatpush.bf16.msra.mxu0 0
    %1153 = vmatpush.bf16.msra.mxu0 0
    %1154 = vmatpush.bf16.msra.mxu0 0
    %1155 = vmatpush.bf16.msra.mxu0 %v1146
    %1156 = vmatmul.bf16.gmra.mxu0 %v1143
    %v1157 = vpop.f32.mrf.mxu0
    %v1158 = vadd.f32 0.0, %v1157
    %v1159 = vpop.f32.mrf.mxu0
    %1160 = vdwg.mxu0
    %v1162 = vsel %vm747, %v1019, 0
    %v1165 = vsel %vm281, %v1027, 0
    %1167 = vmatpush.bf16.msra.mxu0 0
    %1168 = vmatpush.bf16.msra.mxu0 0
    %1169 = vmatpush.bf16.msra.mxu0 0
    %1170 = vmatpush.bf16.msra.mxu0 0
    %1171 = vmatpush.bf16.msra.mxu0 0
    %1172 = vmatpush.bf16.msra.mxu0 0
    %1173 = vmatpush.bf16.msra.mxu0 0
    %1174 = vmatpush.bf16.msra.mxu0 %v1165
    %1175 = vmatmul.bf16.gmra.mxu0 %v1162
    %v1176 = vpop.f32.mrf.mxu0
    %v1177 = vadd.f32 0.0, %v1176
    %v1178 = vpop.f32.mrf.mxu0
    %1179 = vdwg.mxu0
    %1181 = vrot.lane.b32.xlu0 %v1063, 8
    %v1182 = vpop.permute.xlu0 %1181
    %1185 = vrot.lane.b32.xlu0 %v1082, 16
    %v1186 = vpop.permute.xlu0 %1185
    %1189 = vrot.lane.b32.xlu0 %v1101, 24
    %v1190 = vpop.permute.xlu0 %1189
    %v1192 = vsel %vm747, %v1044, %v1182
    %vm1193 = vcmask 130048
    %v1194 = vsel %vm1193, %v1192, %v1186
    %vm1195 = vcmask 195584
    %v1196 = vsel %vm1195, %v1194, %v1190
    %1198 = vrot.lane.b32.xlu0 %v1139, 8
    %v1199 = vpop.permute.xlu0 %1198
    %1202 = vrot.lane.b32.xlu0 %v1158, 16
    %v1203 = vpop.permute.xlu0 %1202
    %1206 = vrot.lane.b32.xlu0 %v1177, 24
    %v1207 = vpop.permute.xlu0 %1206
    %v1209 = vsel %vm747, %v1120, %v1199
    %v1210 = vsel %vm1193, %v1209, %v1203
    %v1211 = vsel %vm1195, %v1210, %v1207
    %s1212 = scalar_lea.vmem [#allocation12], 48
    %v1213 = vld [vmem:[%s1212] sm:$0xf]
    %v1214 = vld [vmem:[%s1212 + $0x4] sm:$0xf]
    %v1215 = vld [vmem:[%s1212 + $0x8] sm:$0xf]
    %v1216 = vld [vmem:[%s1212 + $0xc] sm:$0xf]
    %s1217 = scalar_lea.vmem [#allocation18], 3
    %v1218 = vld [vmem:[%s1217] sm:$0x1]
    %v1219 = vpack.c.bf16 %v1211, %v1196
    %v1221 = vperm.slane %v1218, 0
    %v1227 = vunpack.c.l.b16 %v1213
    %v1228 = vunpack.c.l.b16 %v1214
    %v1229 = vunpack.c.l.b16 %v1215
    %v1230 = vunpack.c.l.b16 %v1216
    %v1231 = vpack.c.b16 %v1228, %v1227
    %v1232 = vpack.c.b16 %v1230, %v1229
    %v1236 = vsel %vm581, %v1219, 0
    %1238 = vmatpush.bf16.msra.mxu0 0
    %1239 = vmatpush.bf16.msra.mxu0 0
    %1240 = vmatpush.bf16.msra.mxu0 0
    %1241 = vmatpush.bf16.msra.mxu0 0
    %1242 = vmatpush.bf16.msra.mxu0 0
    %1243 = vmatpush.bf16.msra.mxu0 0
    %1244 = vmatpush.bf16.msra.mxu0 %v1232
    %1245 = vmatpush.bf16.msra.mxu0 %v1231
    %1246 = vmatmul.bf16.gmra.mxu0 %v1236
    %v1247 = vpop.f32.mrf.mxu0
    %v1248 = vadd.f32 %v1221, %v1247
    %v1249 = vpop.f32.mrf.mxu0
    %v1250 = vadd.f32 %v1221, %v1249
    %1251 = vdwg.mxu0
    %v1252 = vadd.f32 %v331, %v1248
    %v1253 = vadd.f32 %v334, %v1250
    %s1254 = scalar_lea.vmem [#allocation18], 28
    %v1255 = vld [vmem:[%s1254] sm:$0x1]
    %s1256 = scalar_lea.vmem [#allocation18], 38
    %v1257 = vld [vmem:[%s1256] sm:$0x1]
    %v1258 = vsel %vm581, %v1252, 0.0
    %1259 = vadd.xlane.f32.xlu0 %v1258
    %v1260 = vpop.xlane.xlu0 %1259
    %v1261 = vsel %vm581, %v1253, 0.0
    %1262 = vadd.xlane.f32.xlu0 %v1261
    %v1263 = vpop.xlane.xlu0 %1262
    %v1264 = vrcp.pop 32.0
    %v1265 = vmul.f32 32.0, %v1264
    %v1266 = vsub.f32 1.0, %v1265
    %v1267 = vmul.f32 %v1264, %v1266
    %v1268 = vadd.f32 %v1264, %v1267
    %vm1269 = vweird.f32 %v1264
    %v1270 = vsel %vm1269, %v1264, %v1268
    %v1271 = vmul.f32 %v1260, %v1270
    %v1272 = vmul.f32 %v1263, %v1270
    %v1273 = vsub.f32 %v1252, %v1271
    %v1274 = vsub.f32 %v1253, %v1272
    %v1275 = vmul.f32 %v1273, %v1273
    %v1276 = vmul.f32 %v1274, %v1274
    %v1277 = vsel %vm581, %v1275, 0.0
    %1278 = vadd.xlane.f32.xlu0 %v1277
    %v1279 = vpop.xlane.xlu0 %1278
    %v1280 = vsel %vm581, %v1276, 0.0
    %1281 = vadd.xlane.f32.xlu0 %v1280
    %v1282 = vpop.xlane.xlu0 %1281
    %v1283 = vmul.f32 %v1279, %v1270
    %v1284 = vmul.f32 %v1282, %v1270
    %v1285 = vadd.f32 %v1283, 1e-05
    %v1286 = vadd.f32 %v1284, 1e-05
    %v1287 = vrsqrt.pop %v1285
    %v1288 = vmul.f32 %v1287, %v1285
    %v1289 = vmul.f32 %v1288, %v1287
    %v1290 = vmul.f32 0.5, %v1289
    %v1291 = vsub.f32 1.5, %v1290
    %v1292 = vmul.f32 %v1287, %v1291
    %vm1293 = vweird.f32 %v1285
    %vm1294 = vweird.f32 %v1287
    %vm1295 = vmor %vm1293, %vm1294
    %v1296 = vsel %vm1295, %v1287, %v1292
    %v1297 = vrsqrt.pop %v1286
    %v1298 = vmul.f32 %v1297, %v1286
    %v1299 = vmul.f32 %v1298, %v1297
    %v1300 = vmul.f32 0.5, %v1299
    %v1301 = vsub.f32 1.5, %v1300
    %v1302 = vmul.f32 %v1297, %v1301
    %vm1303 = vweird.f32 %v1286
    %vm1304 = vweird.f32 %v1297
    %vm1305 = vmor %vm1303, %vm1304
    %v1306 = vsel %vm1305, %v1297, %v1302
    %v1307 = vmul.f32 %v1273, %v1296
    %v1308 = vmul.f32 %v1274, %v1306
    %v1310 = vperm.slane %v1255, 0
    %v1312 = vmul.f32 %v1307, %v1310
    %v1313 = vmul.f32 %v1308, %v1310
    %v1315 = vperm.slane %v1257, 0
    %v1317 = vadd.f32 %v1312, %v1315
    %v1318 = vadd.f32 %v1313, %v1315
    %v1319 = vld [vmem:[#allocation14] sm:$0xf]
    %v1320 = vld [vmem:[#allocation14 + $0x4] sm:$0xf]
    %v1321 = vld [vmem:[#allocation14 + $0x8] sm:$0xf]
    %v1322 = vld [vmem:[#allocation14 + $0xc] sm:$0xf]
    %v1323 = vld [vmem:[%s10] sm:$0x1]
    %v1324 = vpack.c.bf16 %v1318, %v1317
    %v1326 = vperm.slane %v1323, 0
    %v1332 = vunpack.c.l.b16 %v1319
    %v1333 = vunpack.c.l.b16 %v1320
    %v1334 = vunpack.c.l.b16 %v1321
    %v1335 = vunpack.c.l.b16 %v1322
    %v1336 = vpack.c.b16 %v1333, %v1332
    %v1337 = vpack.c.b16 %v1335, %v1334
    %v1341 = vsel %vm581, %v1324, 0
    %1343 = vmatpush.bf16.msra.mxu0 0
    %1344 = vmatpush.bf16.msra.mxu0 0
    %1345 = vmatpush.bf16.msra.mxu0 0
    %1346 = vmatpush.bf16.msra.mxu0 0
    %1347 = vmatpush.bf16.msra.mxu0 0
    %1348 = vmatpush.bf16.msra.mxu0 0
    %1349 = vmatpush.bf16.msra.mxu0 %v1337
    %1350 = vmatpush.bf16.msra.mxu0 %v1336
    %1351 = vmatmul.bf16.gmra.mxu0 %v1341
    %v1352 = vpop.f32.mrf.mxu0
    %v1353 = vadd.f32 %v1326, %v1352
    %v1354 = vpop.f32.mrf.mxu0
    %v1355 = vadd.f32 %v1326, %v1354
    %1356 = vdwg.mxu0
    %v1357 = vmax.f32 %v1353, 0.0
    %v1358 = vmax.f32 %v1355, 0.0
    %v1359 = vld [vmem:[#allocation15] sm:$0xf]
    %v1360 = vld [vmem:[#allocation15 + $0x4] sm:$0xf]
    %v1361 = vld [vmem:[#allocation15 + $0x8] sm:$0xf]
    %v1362 = vld [vmem:[#allocation15 + $0xc] sm:$0xf]
    %v1363 = vld [vmem:[#allocation15 + $0x10] sm:$0xf]
    %v1364 = vld [vmem:[#allocation15 + $0x14] sm:$0xf]
    %v1365 = vld [vmem:[#allocation15 + $0x18] sm:$0xf]
    %v1366 = vld [vmem:[#allocation15 + $0x1c] sm:$0xf]
    %s1367 = scalar_lea.vmem [#allocation18], 24
    %v1368 = vld [vmem:[%s1367] sm:$0x1]
    %v1369 = vpack.c.bf16 %v1358, %v1357
    %v1371 = vperm.slane %v1368, 0
    %v1381 = vunpack.c.l.b16 %v1359
    %v1382 = vunpack.c.l.b16 %v1360
    %v1383 = vunpack.c.l.b16 %v1361
    %v1384 = vunpack.c.l.b16 %v1362
    %v1385 = vunpack.c.l.b16 %v1363
    %v1386 = vunpack.c.l.b16 %v1364
    %v1387 = vunpack.c.l.b16 %v1365
    %v1388 = vunpack.c.l.b16 %v1366
    %v1389 = vpack.c.b16 %v1382, %v1381
    %v1390 = vpack.c.b16 %v1384, %v1383
    %v1391 = vpack.c.b16 %v1386, %v1385
    %v1392 = vpack.c.b16 %v1388, %v1387
    %vm1397 = vcmask 523264
    %v1399 = vsel %vm1397, %v1369, 0
    %1401 = vmatpush.bf16.msra.mxu0 0
    %1402 = vmatpush.bf16.msra.mxu0 0
    %1403 = vmatpush.bf16.msra.mxu0 0
    %1404 = vmatpush.bf16.msra.mxu0 0
    %1405 = vmatpush.bf16.msra.mxu0 %v1392
    %1406 = vmatpush.bf16.msra.mxu0 %v1391
    %1407 = vmatpush.bf16.msra.mxu0 %v1390
    %1408 = vmatpush.bf16.msra.mxu0 %v1389
    %1409 = vmatmul.bf16.gmra.mxu0 %v1399
    %v1410 = vpop.f32.mrf.mxu0
    %v1411 = vadd.f32 %v1371, %v1410
    %v1412 = vpop.f32.mrf.mxu0
    %v1413 = vadd.f32 %v1371, %v1412
    %1414 = vdwg.mxu0
    %v1415 = vadd.f32 %v1317, %v1411
    %v1416 = vadd.f32 %v1318, %v1413
    %s1417 = scalar_lea.vmem [#allocation18], 29
    %v1418 = vld [vmem:[%s1417] sm:$0x1]
    %s1419 = scalar_lea.vmem [#allocation18], 39
    %v1420 = vld [vmem:[%s1419] sm:$0x1]
    %v1421 = vsel %vm581, %v1415, 0.0
    %1422 = vadd.xlane.f32.xlu0 %v1421
    %v1423 = vpop.xlane.xlu0 %1422
    %v1424 = vsel %vm581, %v1416, 0.0
    %1425 = vadd.xlane.f32.xlu0 %v1424
    %v1426 = vpop.xlane.xlu0 %1425
    %v1427 = vmul.f32 %v1423, %v1270
    %v1428 = vmul.f32 %v1426, %v1270
    %v1429 = vsub.f32 %v1415, %v1427
    %v1430 = vsub.f32 %v1416, %v1428
    %v1431 = vmul.f32 %v1429, %v1429
    %v1432 = vmul.f32 %v1430, %v1430
    %v1433 = vsel %vm581, %v1431, 0.0
    %1434 = vadd.xlane.f32.xlu0 %v1433
    %v1435 = vpop.xlane.xlu0 %1434
    %v1436 = vsel %vm581, %v1432, 0.0
    %1437 = vadd.xlane.f32.xlu0 %v1436
    %v1438 = vpop.xlane.xlu0 %1437
    %v1439 = vmul.f32 %v1435, %v1270
    %v1440 = vmul.f32 %v1438, %v1270
    %v1441 = vadd.f32 %v1439, 1e-05
    %v1442 = vadd.f32 %v1440, 1e-05
    %v1443 = vrsqrt.pop %v1441
    %v1444 = vmul.f32 %v1443, %v1441
    %v1445 = vmul.f32 %v1444, %v1443
    %v1446 = vmul.f32 0.5, %v1445
    %v1447 = vsub.f32 1.5, %v1446
    %v1448 = vmul.f32 %v1443, %v1447
    %vm1449 = vweird.f32 %v1441
    %vm1450 = vweird.f32 %v1443
    %vm1451 = vmor %vm1449, %vm1450
    %v1452 = vsel %vm1451, %v1443, %v1448
    %v1453 = vrsqrt.pop %v1442
    %v1454 = vmul.f32 %v1453, %v1442
    %v1455 = vmul.f32 %v1454, %v1453
    %v1456 = vmul.f32 0.5, %v1455
    %v1457 = vsub.f32 1.5, %v1456
    %v1458 = vmul.f32 %v1453, %v1457
    %vm1459 = vweird.f32 %v1442
    %vm1460 = vweird.f32 %v1453
    %vm1461 = vmor %vm1459, %vm1460
    %v1462 = vsel %vm1461, %v1453, %v1458
    %v1463 = vmul.f32 %v1429, %v1452
    %v1464 = vmul.f32 %v1430, %v1462
    %v1466 = vperm.slane %v1418, 0
    %v1468 = vmul.f32 %v1463, %v1466
    %v1469 = vmul.f32 %v1464, %v1466
    %v1471 = vperm.slane %v1420, 0
    %v1473 = vadd.f32 %v1468, %v1471
    %v1474 = vadd.f32 %v1469, %v1471
    %s1475 = scalar_lea.vmem [#allocation12], 64
    %v1476 = vld [vmem:[%s1475] sm:$0xf]
    %v1477 = vld [vmem:[%s1475 + $0x4] sm:$0xf]
    %v1478 = vld [vmem:[%s1475 + $0x8] sm:$0xf]
    %v1479 = vld [vmem:[%s1475 + $0xc] sm:$0xf]
    %s1480 = scalar_lea.vmem [#allocation18], 4
    %v1481 = vld [vmem:[%s1480] sm:$0x1]
    %v1482 = vpack.c.bf16 %v1474, %v1473
    %v1484 = vperm.slane %v1481, 0
    %v1490 = vunpack.c.l.b16 %v1476
    %v1491 = vunpack.c.l.b16 %v1477
    %v1492 = vunpack.c.l.b16 %v1478
    %v1493 = vunpack.c.l.b16 %v1479
    %v1494 = vpack.c.b16 %v1491, %v1490
    %v1495 = vpack.c.b16 %v1493, %v1492
    %v1499 = vsel %vm581, %v1482, 0
    %1501 = vmatpush.bf16.msra.mxu0 0
    %1502 = vmatpush.bf16.msra.mxu0 0
    %1503 = vmatpush.bf16.msra.mxu0 0
    %1504 = vmatpush.bf16.msra.mxu0 0
    %1505 = vmatpush.bf16.msra.mxu0 0
    %1506 = vmatpush.bf16.msra.mxu0 0
    %1507 = vmatpush.bf16.msra.mxu0 %v1495
    %1508 = vmatpush.bf16.msra.mxu0 %v1494
    %1509 = vmatmul.bf16.gmra.mxu0 %v1499
    %v1510 = vpop.f32.mrf.mxu0
    %v1511 = vadd.f32 %v1484, %v1510
    %v1512 = vpop.f32.mrf.mxu0
    %v1513 = vadd.f32 %v1484, %v1512
    %1514 = vdwg.mxu0
    %s1515 = scalar_lea.vmem [#allocation12], 80
    %v1516 = vld [vmem:[%s1515] sm:$0xf]
    %v1517 = vld [vmem:[%s1515 + $0x4] sm:$0xf]
    %v1518 = vld [vmem:[%s1515 + $0x8] sm:$0xf]
    %v1519 = vld [vmem:[%s1515 + $0xc] sm:$0xf]
    %s1520 = scalar_lea.vmem [#allocation18], 5
    %v1521 = vld [vmem:[%s1520] sm:$0x1]
    %v1523 = vperm.slane %v1521, 0
    %v1529 = vunpack.c.l.b16 %v1516
    %v1530 = vunpack.c.l.b16 %v1517
    %v1531 = vunpack.c.l.b16 %v1518
    %v1532 = vunpack.c.l.b16 %v1519
    %v1533 = vpack.c.b16 %v1530, %v1529
    %v1534 = vpack.c.b16 %v1532, %v1531
    %1537 = vmatpush.bf16.msra.mxu0 0
    %1538 = vmatpush.bf16.msra.mxu0 0
    %1539 = vmatpush.bf16.msra.mxu0 0
    %1540 = vmatpush.bf16.msra.mxu0 0
    %1541 = vmatpush.bf16.msra.mxu0 0
    %1542 = vmatpush.bf16.msra.mxu0 0
    %1543 = vmatpush.bf16.msra.mxu0 %v1534
    %1544 = vmatpush.bf16.msra.mxu0 %v1533
    %1545 = vmatmul.bf16.gmra.mxu0 %v1499
    %v1546 = vpop.f32.mrf.mxu0
    %v1547 = vadd.f32 %v1523, %v1546
    %v1548 = vpop.f32.mrf.mxu0
    %v1549 = vadd.f32 %v1523, %v1548
    %1550 = vdwg.mxu0
    %s1551 = scalar_lea.vmem [#allocation12], 96
    %v1552 = vld [vmem:[%s1551] sm:$0xf]
    %v1553 = vld [vmem:[%s1551 + $0x4] sm:$0xf]
    %v1554 = vld [vmem:[%s1551 + $0x8] sm:$0xf]
    %v1555 = vld [vmem:[%s1551 + $0xc] sm:$0xf]
    %s1556 = scalar_lea.vmem [#allocation18], 6
    %v1557 = vld [vmem:[%s1556] sm:$0x1]
    %v1559 = vperm.slane %v1557, 0
    %v1565 = vunpack.c.l.b16 %v1552
    %v1566 = vunpack.c.l.b16 %v1553
    %v1567 = vunpack.c.l.b16 %v1554
    %v1568 = vunpack.c.l.b16 %v1555
    %v1569 = vpack.c.b16 %v1566, %v1565
    %v1570 = vpack.c.b16 %v1568, %v1567
    %1573 = vmatpush.bf16.msra.mxu0 0
    %1574 = vmatpush.bf16.msra.mxu0 0
    %1575 = vmatpush.bf16.msra.mxu0 0
    %1576 = vmatpush.bf16.msra.mxu0 0
    %1577 = vmatpush.bf16.msra.mxu0 0
    %1578 = vmatpush.bf16.msra.mxu0 0
    %1579 = vmatpush.bf16.msra.mxu0 %v1570
    %1580 = vmatpush.bf16.msra.mxu0 %v1569
    %1581 = vmatmul.bf16.gmra.mxu0 %v1499
    %v1582 = vpop.f32.mrf.mxu0
    %v1583 = vadd.f32 %v1559, %v1582
    %v1584 = vpop.f32.mrf.mxu0
    %v1585 = vadd.f32 %v1559, %v1584
    %1586 = vdwg.mxu0
    %1588 = vrot.lane.b32.xlu0 %v1511, 120
    %v1589 = vpop.permute.xlu0 %1588
    %1591 = vrot.lane.b32.xlu0 %v1511, 112
    %v1592 = vpop.permute.xlu0 %1591
    %1594 = vrot.lane.b32.xlu0 %v1511, 104
    %v1595 = vpop.permute.xlu0 %1594
    %1598 = vrot.lane.b32.xlu0 %v1513, 120
    %v1599 = vpop.permute.xlu0 %1598
    %1601 = vrot.lane.b32.xlu0 %v1513, 112
    %v1602 = vpop.permute.xlu0 %1601
    %1604 = vrot.lane.b32.xlu0 %v1513, 104
    %v1605 = vpop.permute.xlu0 %1604
    %1608 = vrot.lane.b32.xlu0 %v1547, 120
    %v1609 = vpop.permute.xlu0 %1608
    %1611 = vrot.lane.b32.xlu0 %v1547, 112
    %v1612 = vpop.permute.xlu0 %1611
    %1614 = vrot.lane.b32.xlu0 %v1547, 104
    %v1615 = vpop.permute.xlu0 %1614
    %1618 = vrot.lane.b32.xlu0 %v1549, 120
    %v1619 = vpop.permute.xlu0 %1618
    %1621 = vrot.lane.b32.xlu0 %v1549, 112
    %v1622 = vpop.permute.xlu0 %1621
    %1624 = vrot.lane.b32.xlu0 %v1549, 104
    %v1625 = vpop.permute.xlu0 %1624
    %1628 = vrot.lane.b32.xlu0 %v1583, 120
    %v1629 = vpop.permute.xlu0 %1628
    %1631 = vrot.lane.b32.xlu0 %v1583, 112
    %v1632 = vpop.permute.xlu0 %1631
    %1634 = vrot.lane.b32.xlu0 %v1583, 104
    %v1635 = vpop.permute.xlu0 %1634
    %1638 = vrot.lane.b32.xlu0 %v1585, 120
    %v1639 = vpop.permute.xlu0 %1638
    %1641 = vrot.lane.b32.xlu0 %v1585, 112
    %v1642 = vpop.permute.xlu0 %1641
    %1644 = vrot.lane.b32.xlu0 %v1585, 104
    %v1645 = vpop.permute.xlu0 %1644
    %v1647 = vpack.c.bf16 %v1511, %v1511
    %v1648 = vpack.c.bf16 %v1589, %v1589
    %v1649 = vpack.c.bf16 %v1592, %v1592
    %v1650 = vpack.c.bf16 %v1595, %v1595
    %v1651 = vpack.c.bf16 %v1513, %v1513
    %v1652 = vpack.c.bf16 %v1599, %v1599
    %v1653 = vpack.c.bf16 %v1602, %v1602
    %v1654 = vpack.c.bf16 %v1605, %v1605
    %v1655 = vpack.c.bf16 %v1547, %v1547
    %v1656 = vpack.c.bf16 %v1609, %v1609
    %v1657 = vpack.c.bf16 %v1612, %v1612
    %v1658 = vpack.c.bf16 %v1615, %v1615
    %v1659 = vpack.c.bf16 %v1549, %v1549
    %v1660 = vpack.c.bf16 %v1619, %v1619
    %v1661 = vpack.c.bf16 %v1622, %v1622
    %v1662 = vpack.c.bf16 %v1625, %v1625
    %v1664 = vsel %vm747, %v1647, 0
    %v1667 = vsel %vm747, %v1655, 0
    %1669 = vmatpush.bf16.xpose.msra.mxu0 0
    %1670 = vmatpush.bf16.xpose.msra.mxu0 0
    %1671 = vmatpush.bf16.xpose.msra.mxu0 0
    %1672 = vmatpush.bf16.xpose.msra.mxu0 0
    %1673 = vmatpush.bf16.xpose.msra.mxu0 0
    %1674 = vmatpush.bf16.xpose.msra.mxu0 0
    %1675 = vmatpush.bf16.xpose.msra.mxu0 0
    %1676 = vmatpush.bf16.xpose.msra.mxu0 %v1667
    %1677 = vmatmul.bf16.gmra.mxu0 %v1664
    %v1678 = vpop.f32.mrf.mxu0
    %v1679 = vadd.f32 0.0, %v1678
    %v1680 = vpop.f32.mrf.mxu0
    %1681 = vdwg.mxu0
    %v1683 = vsel %vm747, %v1648, 0
    %v1686 = vsel %vm747, %v1656, 0
    %1688 = vmatpush.bf16.xpose.msra.mxu0 0
    %1689 = vmatpush.bf16.xpose.msra.mxu0 0
    %1690 = vmatpush.bf16.xpose.msra.mxu0 0
    %1691 = vmatpush.bf16.xpose.msra.mxu0 0
    %1692 = vmatpush.bf16.xpose.msra.mxu0 0
    %1693 = vmatpush.bf16.xpose.msra.mxu0 0
    %1694 = vmatpush.bf16.xpose.msra.mxu0 0
    %1695 = vmatpush.bf16.xpose.msra.mxu0 %v1686
    %1696 = vmatmul.bf16.gmra.mxu0 %v1683
    %v1697 = vpop.f32.mrf.mxu0
    %v1698 = vadd.f32 0.0, %v1697
    %v1699 = vpop.f32.mrf.mxu0
    %1700 = vdwg.mxu0
    %v1702 = vsel %vm747, %v1649, 0
    %v1705 = vsel %vm747, %v1657, 0
    %1707 = vmatpush.bf16.xpose.msra.mxu0 0
    %1708 = vmatpush.bf16.xpose.msra.mxu0 0
    %1709 = vmatpush.bf16.xpose.msra.mxu0 0
    %1710 = vmatpush.bf16.xpose.msra.mxu0 0
    %1711 = vmatpush.bf16.xpose.msra.mxu0 0
    %1712 = vmatpush.bf16.xpose.msra.mxu0 0
    %1713 = vmatpush.bf16.xpose.msra.mxu0 0
    %1714 = vmatpush.bf16.xpose.msra.mxu0 %v1705
    %1715 = vmatmul.bf16.gmra.mxu0 %v1702
    %v1716 = vpop.f32.mrf.mxu0
    %v1717 = vadd.f32 0.0, %v1716
    %v1718 = vpop.f32.mrf.mxu0
    %1719 = vdwg.mxu0
    %v1721 = vsel %vm747, %v1650, 0
    %v1724 = vsel %vm747, %v1658, 0
    %1726 = vmatpush.bf16.xpose.msra.mxu0 0
    %1727 = vmatpush.bf16.xpose.msra.mxu0 0
    %1728 = vmatpush.bf16.xpose.msra.mxu0 0
    %1729 = vmatpush.bf16.xpose.msra.mxu0 0
    %1730 = vmatpush.bf16.xpose.msra.mxu0 0
    %1731 = vmatpush.bf16.xpose.msra.mxu0 0
    %1732 = vmatpush.bf16.xpose.msra.mxu0 0
    %1733 = vmatpush.bf16.xpose.msra.mxu0 %v1724
    %1734 = vmatmul.bf16.gmra.mxu0 %v1721
    %v1735 = vpop.f32.mrf.mxu0
    %v1736 = vadd.f32 0.0, %v1735
    %v1737 = vpop.f32.mrf.mxu0
    %1738 = vdwg.mxu0
    %v1740 = vsel %vm747, %v1651, 0
    %v1743 = vsel %vm747, %v1659, 0
    %1745 = vmatpush.bf16.xpose.msra.mxu0 0
    %1746 = vmatpush.bf16.xpose.msra.mxu0 0
    %1747 = vmatpush.bf16.xpose.msra.mxu0 0
    %1748 = vmatpush.bf16.xpose.msra.mxu0 0
    %1749 = vmatpush.bf16.xpose.msra.mxu0 0
    %1750 = vmatpush.bf16.xpose.msra.mxu0 0
    %1751 = vmatpush.bf16.xpose.msra.mxu0 0
    %1752 = vmatpush.bf16.xpose.msra.mxu0 %v1743
    %1753 = vmatmul.bf16.gmra.mxu0 %v1740
    %v1754 = vpop.f32.mrf.mxu0
    %v1755 = vadd.f32 0.0, %v1754
    %v1756 = vpop.f32.mrf.mxu0
    %1757 = vdwg.mxu0
    %v1759 = vsel %vm747, %v1652, 0
    %v1762 = vsel %vm747, %v1660, 0
    %1764 = vmatpush.bf16.xpose.msra.mxu0 0
    %1765 = vmatpush.bf16.xpose.msra.mxu0 0
    %1766 = vmatpush.bf16.xpose.msra.mxu0 0
    %1767 = vmatpush.bf16.xpose.msra.mxu0 0
    %1768 = vmatpush.bf16.xpose.msra.mxu0 0
    %1769 = vmatpush.bf16.xpose.msra.mxu0 0
    %1770 = vmatpush.bf16.xpose.msra.mxu0 0
    %1771 = vmatpush.bf16.xpose.msra.mxu0 %v1762
    %1772 = vmatmul.bf16.gmra.mxu0 %v1759
    %v1773 = vpop.f32.mrf.mxu0
    %v1774 = vadd.f32 0.0, %v1773
    %v1775 = vpop.f32.mrf.mxu0
    %1776 = vdwg.mxu0
    %v1778 = vsel %vm747, %v1653, 0
    %v1781 = vsel %vm747, %v1661, 0
    %1783 = vmatpush.bf16.xpose.msra.mxu0 0
    %1784 = vmatpush.bf16.xpose.msra.mxu0 0
    %1785 = vmatpush.bf16.xpose.msra.mxu0 0
    %1786 = vmatpush.bf16.xpose.msra.mxu0 0
    %1787 = vmatpush.bf16.xpose.msra.mxu0 0
    %1788 = vmatpush.bf16.xpose.msra.mxu0 0
    %1789 = vmatpush.bf16.xpose.msra.mxu0 0
    %1790 = vmatpush.bf16.xpose.msra.mxu0 %v1781
    %1791 = vmatmul.bf16.gmra.mxu0 %v1778
    %v1792 = vpop.f32.mrf.mxu0
    %v1793 = vadd.f32 0.0, %v1792
    %v1794 = vpop.f32.mrf.mxu0
    %1795 = vdwg.mxu0
    %v1797 = vsel %vm747, %v1654, 0
    %v1800 = vsel %vm747, %v1662, 0
    %1802 = vmatpush.bf16.xpose.msra.mxu0 0
    %1803 = vmatpush.bf16.xpose.msra.mxu0 0
    %1804 = vmatpush.bf16.xpose.msra.mxu0 0
    %1805 = vmatpush.bf16.xpose.msra.mxu0 0
    %1806 = vmatpush.bf16.xpose.msra.mxu0 0
    %1807 = vmatpush.bf16.xpose.msra.mxu0 0
    %1808 = vmatpush.bf16.xpose.msra.mxu0 0
    %1809 = vmatpush.bf16.xpose.msra.mxu0 %v1800
    %1810 = vmatmul.bf16.gmra.mxu0 %v1797
    %v1811 = vpop.f32.mrf.mxu0
    %v1812 = vadd.f32 0.0, %v1811
    %v1813 = vpop.f32.mrf.mxu0
    %1814 = vdwg.mxu0
    %v1815 = vmul.f32 %v1679, 0.35355338
    %v1816 = vmul.f32 %v1698, 0.35355338
    %v1817 = vmul.f32 %v1717, 0.35355338
    %v1818 = vmul.f32 %v1736, 0.35355338
    %v1819 = vmul.f32 %v1755, 0.35355338
    %v1820 = vmul.f32 %v1774, 0.35355338
    %v1821 = vmul.f32 %v1793, 0.35355338
    %v1822 = vmul.f32 %v1812, 0.35355338
    %v1823 = vsel %vm914, %v1815, -1e+09
    %v1824 = vsel %vm914, %v1816, -1e+09
    %v1825 = vsel %vm914, %v1817, -1e+09
    %v1826 = vsel %vm914, %v1818, -1e+09
    %v1827 = vsel %vm915, %v1819, -1e+09
    %v1828 = vsel %vm915, %v1820, -1e+09
    %v1829 = vsel %vm915, %v1821, -1e+09
    %v1830 = vsel %vm915, %v1822, -1e+09
    %v1831 = vsel %vm747, %v1823, -inf
    %1832 = vmax.xlane.f32.xlu0 %v1831
    %v1833 = vpop.xlane.xlu0 %1832
    %v1834 = vsel %vm747, %v1824, -inf
    %1835 = vmax.xlane.f32.xlu0 %v1834
    %v1836 = vpop.xlane.xlu0 %1835
    %v1837 = vsel %vm747, %v1825, -inf
    %1838 = vmax.xlane.f32.xlu0 %v1837
    %v1839 = vpop.xlane.xlu0 %1838
    %v1840 = vsel %vm747, %v1826, -inf
    %1841 = vmax.xlane.f32.xlu0 %v1840
    %v1842 = vpop.xlane.xlu0 %1841
    %v1843 = vsel %vm747, %v1827, -inf
    %1844 = vmax.xlane.f32.xlu0 %v1843
    %v1845 = vpop.xlane.xlu0 %1844
    %v1846 = vsel %vm747, %v1828, -inf
    %1847 = vmax.xlane.f32.xlu0 %v1846
    %v1848 = vpop.xlane.xlu0 %1847
    %v1849 = vsel %vm747, %v1829, -inf
    %1850 = vmax.xlane.f32.xlu0 %v1849
    %v1851 = vpop.xlane.xlu0 %1850
    %v1852 = vsel %vm747, %v1830, -inf
    %1853 = vmax.xlane.f32.xlu0 %v1852
    %v1854 = vpop.xlane.xlu0 %1853
    %v1855 = vsub.f32 %v1823, %v1833
    %v1856 = vsub.f32 %v1824, %v1836
    %v1857 = vsub.f32 %v1825, %v1839
    %v1858 = vsub.f32 %v1826, %v1842
    %v1859 = vsub.f32 %v1827, %v1845
    %v1860 = vsub.f32 %v1828, %v1848
    %v1861 = vsub.f32 %v1829, %v1851
    %v1862 = vsub.f32 %v1830, %v1854
    %v1863 = vmul.f32 %v1855, 1.442695
    %v1864 = vpow.pop %v1863
    %v1865 = vmul.f32 %v1856, 1.442695
    %v1866 = vpow.pop %v1865
    %v1867 = vmul.f32 %v1857, 1.442695
    %v1868 = vpow.pop %v1867
    %v1869 = vmul.f32 %v1858, 1.442695
    %v1870 = vpow.pop %v1869
    %v1871 = vmul.f32 %v1859, 1.442695
    %v1872 = vpow.pop %v1871
    %v1873 = vmul.f32 %v1860, 1.442695
    %v1874 = vpow.pop %v1873
    %v1875 = vmul.f32 %v1861, 1.442695
    %v1876 = vpow.pop %v1875
    %v1877 = vmul.f32 %v1862, 1.442695
    %v1878 = vpow.pop %v1877
    %v1879 = vsel %vm747, %v1864, 0.0
    %1880 = vadd.xlane.f32.xlu0 %v1879
    %v1881 = vpop.xlane.xlu0 %1880
    %v1882 = vsel %vm747, %v1866, 0.0
    %1883 = vadd.xlane.f32.xlu0 %v1882
    %v1884 = vpop.xlane.xlu0 %1883
    %v1885 = vsel %vm747, %v1868, 0.0
    %1886 = vadd.xlane.f32.xlu0 %v1885
    %v1887 = vpop.xlane.xlu0 %1886
    %v1888 = vsel %vm747, %v1870, 0.0
    %1889 = vadd.xlane.f32.xlu0 %v1888
    %v1890 = vpop.xlane.xlu0 %1889
    %v1891 = vsel %vm747, %v1872, 0.0
    %1892 = vadd.xlane.f32.xlu0 %v1891
    %v1893 = vpop.xlane.xlu0 %1892
    %v1894 = vsel %vm747, %v1874, 0.0
    %1895 = vadd.xlane.f32.xlu0 %v1894
    %v1896 = vpop.xlane.xlu0 %1895
    %v1897 = vsel %vm747, %v1876, 0.0
    %1898 = vadd.xlane.f32.xlu0 %v1897
    %v1899 = vpop.xlane.xlu0 %1898
    %v1900 = vsel %vm747, %v1878, 0.0
    %1901 = vadd.xlane.f32.xlu0 %v1900
    %v1902 = vpop.xlane.xlu0 %1901
    %v1903 = vrcp.pop %v1881
    %v1904 = vrcp.pop %v1884
    %v1905 = vrcp.pop %v1887
    %v1906 = vrcp.pop %v1890
    %v1907 = vrcp.pop %v1893
    %v1908 = vrcp.pop %v1896
    %v1909 = vrcp.pop %v1899
    %v1910 = vrcp.pop %v1902
    %v1911 = vmul.f32 %v1864, %v1903
    %v1912 = vmul.f32 %v1866, %v1904
    %v1913 = vmul.f32 %v1868, %v1905
    %v1914 = vmul.f32 %v1870, %v1906
    %v1915 = vmul.f32 %v1872, %v1907
    %v1916 = vmul.f32 %v1874, %v1908
    %v1917 = vmul.f32 %v1876, %v1909
    %v1918 = vmul.f32 %v1878, %v1910
    %v1919 = vpack.c.bf16 %v1911, %v1911
    %v1920 = vpack.c.bf16 %v1912, %v1912
    %v1921 = vpack.c.bf16 %v1913, %v1913
    %v1922 = vpack.c.bf16 %v1914, %v1914
    %v1923 = vpack.c.bf16 %v1915, %v1915
    %v1924 = vpack.c.bf16 %v1916, %v1916
    %v1925 = vpack.c.bf16 %v1917, %v1917
    %v1926 = vpack.c.bf16 %v1918, %v1918
    %v1927 = vpack.c.bf16 %v1583, %v1583
    %v1928 = vpack.c.bf16 %v1629, %v1629
    %v1929 = vpack.c.bf16 %v1632, %v1632
    %v1930 = vpack.c.bf16 %v1635, %v1635
    %v1931 = vpack.c.bf16 %v1585, %v1585
    %v1932 = vpack.c.bf16 %v1639, %v1639
    %v1933 = vpack.c.bf16 %v1642, %v1642
    %v1934 = vpack.c.bf16 %v1645, %v1645
    %v1936 = vsel %vm747, %v1919, 0
    %v1939 = vsel %vm281, %v1927, 0
    %1941 = vmatpush.bf16.msra.mxu0 0
    %1942 = vmatpush.bf16.msra.mxu0 0
    %1943 = vmatpush.bf16.msra.mxu0 0
    %1944 = vmatpush.bf16.msra.mxu0 0
    %1945 = vmatpush.bf16.msra.mxu0 0
    %1946 = vmatpush.bf16.msra.mxu0 0
    %1947 = vmatpush.bf16.msra.mxu0 0
    %1948 = vmatpush.bf16.msra.mxu0 %v1939
    %1949 = vmatmul.bf16.gmra.mxu0 %v1936
    %v1950 = vpop.f32.mrf.mxu0
    %v1951 = vadd.f32 0.0, %v1950
    %v1952 = vpop.f32.mrf.mxu0
    %1953 = vdwg.mxu0
    %v1955 = vsel %vm747, %v1920, 0
    %v1958 = vsel %vm281, %v1928, 0
    %1960 = vmatpush.bf16.msra.mxu0 0
    %1961 = vmatpush.bf16.msra.mxu0 0
    %1962 = vmatpush.bf16.msra.mxu0 0
    %1963 = vmatpush.bf16.msra.mxu0 0
    %1964 = vmatpush.bf16.msra.mxu0 0
    %1965 = vmatpush.bf16.msra.mxu0 0
    %1966 = vmatpush.bf16.msra.mxu0 0
    %1967 = vmatpush.bf16.msra.mxu0 %v1958
    %1968 = vmatmul.bf16.gmra.mxu0 %v1955
    %v1969 = vpop.f32.mrf.mxu0
    %v1970 = vadd.f32 0.0, %v1969
    %v1971 = vpop.f32.mrf.mxu0
    %1972 = vdwg.mxu0
    %v1974 = vsel %vm747, %v1921, 0
    %v1977 = vsel %vm281, %v1929, 0
    %1979 = vmatpush.bf16.msra.mxu0 0
    %1980 = vmatpush.bf16.msra.mxu0 0
    %1981 = vmatpush.bf16.msra.mxu0 0
    %1982 = vmatpush.bf16.msra.mxu0 0
    %1983 = vmatpush.bf16.msra.mxu0 0
    %1984 = vmatpush.bf16.msra.mxu0 0
    %1985 = vmatpush.bf16.msra.mxu0 0
    %1986 = vmatpush.bf16.msra.mxu0 %v1977
    %1987 = vmatmul.bf16.gmra.mxu0 %v1974
    %v1988 = vpop.f32.mrf.mxu0
    %v1989 = vadd.f32 0.0, %v1988
    %v1990 = vpop.f32.mrf.mxu0
    %1991 = vdwg.mxu0
    %v1993 = vsel %vm747, %v1922, 0
    %v1996 = vsel %vm281, %v1930, 0
    %1998 = vmatpush.bf16.msra.mxu0 0
    %1999 = vmatpush.bf16.msra.mxu0 0
    %2000 = vmatpush.bf16.msra.mxu0 0
    %2001 = vmatpush.bf16.msra.mxu0 0
    %2002 = vmatpush.bf16.msra.mxu0 0
    %2003 = vmatpush.bf16.msra.mxu0 0
    %2004 = vmatpush.bf16.msra.mxu0 0
    %2005 = vmatpush.bf16.msra.mxu0 %v1996
    %2006 = vmatmul.bf16.gmra.mxu0 %v1993
    %v2007 = vpop.f32.mrf.mxu0
    %v2008 = vadd.f32 0.0, %v2007
    %v2009 = vpop.f32.mrf.mxu0
    %2010 = vdwg.mxu0
    %v2012 = vsel %vm747, %v1923, 0
    %v2015 = vsel %vm281, %v1931, 0
    %2017 = vmatpush.bf16.msra.mxu0 0
    %2018 = vmatpush.bf16.msra.mxu0 0
    %2019 = vmatpush.bf16.msra.mxu0 0
    %2020 = vmatpush.bf16.msra.mxu0 0
    %2021 = vmatpush.bf16.msra.mxu0 0
    %2022 = vmatpush.bf16.msra.mxu0 0
    %2023 = vmatpush.bf16.msra.mxu0 0
    %2024 = vmatpush.bf16.msra.mxu0 %v2015
    %2025 = vmatmul.bf16.gmra.mxu0 %v2012
    %v2026 = vpop.f32.mrf.mxu0
    %v2027 = vadd.f32 0.0, %v2026
    %v2028 = vpop.f32.mrf.mxu0
    %2029 = vdwg.mxu0
    %v2031 = vsel %vm747, %v1924, 0
    %v2034 = vsel %vm281, %v1932, 0
    %2036 = vmatpush.bf16.msra.mxu0 0
    %2037 = vmatpush.bf16.msra.mxu0 0
    %2038 = vmatpush.bf16.msra.mxu0 0
    %2039 = vmatpush.bf16.msra.mxu0 0
    %2040 = vmatpush.bf16.msra.mxu0 0
    %2041 = vmatpush.bf16.msra.mxu0 0
    %2042 = vmatpush.bf16.msra.mxu0 0
    %2043 = vmatpush.bf16.msra.mxu0 %v2034
    %2044 = vmatmul.bf16.gmra.mxu0 %v2031
    %v2045 = vpop.f32.mrf.mxu0
    %v2046 = vadd.f32 0.0, %v2045
    %v2047 = vpop.f32.mrf.mxu0
    %2048 = vdwg.mxu0
    %v2050 = vsel %vm747, %v1925, 0
    %v2053 = vsel %vm281, %v1933, 0
    %2055 = vmatpush.bf16.msra.mxu0 0
    %2056 = vmatpush.bf16.msra.mxu0 0
    %2057 = vmatpush.bf16.msra.mxu0 0
    %2058 = vmatpush.bf16.msra.mxu0 0
    %2059 = vmatpush.bf16.msra.mxu0 0
    %2060 = vmatpush.bf16.msra.mxu0 0
    %2061 = vmatpush.bf16.msra.mxu0 0
    %2062 = vmatpush.bf16.msra.mxu0 %v2053
    %2063 = vmatmul.bf16.gmra.mxu0 %v2050
    %v2064 = vpop.f32.mrf.mxu0
    %v2065 = vadd.f32 0.0, %v2064
    %v2066 = vpop.f32.mrf.mxu0
    %2067 = vdwg.mxu0
    %v2069 = vsel %vm747, %v1926, 0
    %v2072 = vsel %vm281, %v1934, 0
    %2074 = vmatpush.bf16.msra.mxu0 0
    %2075 = vmatpush.bf16.msra.mxu0 0
    %2076 = vmatpush.bf16.msra.mxu0 0
    %2077 = vmatpush.bf16.msra.mxu0 0
    %2078 = vmatpush.bf16.msra.mxu0 0
    %2079 = vmatpush.bf16.msra.mxu0 0
    %2080 = vmatpush.bf16.msra.mxu0 0
    %2081 = vmatpush.bf16.msra.mxu0 %v2072
    %2082 = vmatmul.bf16.gmra.mxu0 %v2069
    %v2083 = vpop.f32.mrf.mxu0
    %v2084 = vadd.f32 0.0, %v2083
    %v2085 = vpop.f32.mrf.mxu0
    %2086 = vdwg.mxu0
    %2088 = vrot.lane.b32.xlu0 %v1970, 8
    %v2089 = vpop.permute.xlu0 %2088
    %2092 = vrot.lane.b32.xlu0 %v1989, 16
    %v2093 = vpop.permute.xlu0 %2092
    %2096 = vrot.lane.b32.xlu0 %v2008, 24
    %v2097 = vpop.permute.xlu0 %2096
    %v2099 = vsel %vm747, %v1951, %v2089
    %v2100 = vsel %vm1193, %v2099, %v2093
    %v2101 = vsel %vm1195, %v2100, %v2097
    %2103 = vrot.lane.b32.xlu0 %v2046, 8
    %v2104 = vpop.permute.xlu0 %2103
    %2107 = vrot.lane.b32.xlu0 %v2065, 16
    %v2108 = vpop.permute.xlu0 %2107
    %2111 = vrot.lane.b32.xlu0 %v2084, 24
    %v2112 = vpop.permute.xlu0 %2111
    %v2114 = vsel %vm747, %v2027, %v2104
    %v2115 = vsel %vm1193, %v2114, %v2108
    %v2116 = vsel %vm1195, %v2115, %v2112
    %s2117 = scalar_lea.vmem [#allocation12], 112
    %v2118 = vld [vmem:[%s2117] sm:$0xf]
    %v2119 = vld [vmem:[%s2117 + $0x4] sm:$0xf]
    %v2120 = vld [vmem:[%s2117 + $0x8] sm:$0xf]
    %v2121 = vld [vmem:[%s2117 + $0xc] sm:$0xf]
    %s2122 = scalar_lea.vmem [#allocation18], 7
    %v2123 = vld [vmem:[%s2122] sm:$0x1]
    %v2124 = vpack.c.bf16 %v2116, %v2101
    %v2126 = vperm.slane %v2123, 0
    %v2132 = vunpack.c.l.b16 %v2118
    %v2133 = vunpack.c.l.b16 %v2119
    %v2134 = vunpack.c.l.b16 %v2120
    %v2135 = vunpack.c.l.b16 %v2121
    %v2136 = vpack.c.b16 %v2133, %v2132
    %v2137 = vpack.c.b16 %v2135, %v2134
    %v2141 = vsel %vm581, %v2124, 0
    %2143 = vmatpush.bf16.msra.mxu0 0
    %2144 = vmatpush.bf16.msra.mxu0 0
    %2145 = vmatpush.bf16.msra.mxu0 0
    %2146 = vmatpush.bf16.msra.mxu0 0
    %2147 = vmatpush.bf16.msra.mxu0 0
    %2148 = vmatpush.bf16.msra.mxu0 0
    %2149 = vmatpush.bf16.msra.mxu0 %v2137
    %2150 = vmatpush.bf16.msra.mxu0 %v2136
    %2151 = vmatmul.bf16.gmra.mxu0 %v2141
    %v2152 = vpop.f32.mrf.mxu0
    %v2153 = vadd.f32 %v2126, %v2152
    %v2154 = vpop.f32.mrf.mxu0
    %v2155 = vadd.f32 %v2126, %v2154
    %2156 = vdwg.mxu0
    %v2157 = vadd.f32 %v1473, %v2153
    %v2158 = vadd.f32 %v1474, %v2155
    %s2159 = scalar_lea.vmem [#allocation18], 30
    %v2160 = vld [vmem:[%s2159] sm:$0x1]
    %s2161 = scalar_lea.vmem [#allocation18], 40
    %v2162 = vld [vmem:[%s2161] sm:$0x1]
    %v2163 = vsel %vm581, %v2157, 0.0
    %2164 = vadd.xlane.f32.xlu0 %v2163
    %v2165 = vpop.xlane.xlu0 %2164
    %v2166 = vsel %vm581, %v2158, 0.0
    %2167 = vadd.xlane.f32.xlu0 %v2166
    %v2168 = vpop.xlane.xlu0 %2167
    %v2169 = vmul.f32 %v2165, %v1270
    %v2170 = vmul.f32 %v2168, %v1270
    %v2171 = vsub.f32 %v2157, %v2169
    %v2172 = vsub.f32 %v2158, %v2170
    %v2173 = vmul.f32 %v2171, %v2171
    %v2174 = vmul.f32 %v2172, %v2172
    %v2175 = vsel %vm581, %v2173, 0.0
    %2176 = vadd.xlane.f32.xlu0 %v2175
    %v2177 = vpop.xlane.xlu0 %2176
    %v2178 = vsel %vm581, %v2174, 0.0
    %2179 = vadd.xlane.f32.xlu0 %v2178
    %v2180 = vpop.xlane.xlu0 %2179
    %v2181 = vmul.f32 %v2177, %v1270
    %v2182 = vmul.f32 %v2180, %v1270
    %v2183 = vadd.f32 %v2181, 1e-05
    %v2184 = vadd.f32 %v2182, 1e-05
    %v2185 = vrsqrt.pop %v2183
    %v2186 = vmul.f32 %v2185, %v2183
    %v2187 = vmul.f32 %v2186, %v2185
    %v2188 = vmul.f32 0.5, %v2187
    %v2189 = vsub.f32 1.5, %v2188
    %v2190 = vmul.f32 %v2185, %v2189
    %vm2191 = vweird.f32 %v2183
    %vm2192 = vweird.f32 %v2185
    %vm2193 = vmor %vm2191, %vm2192
    %v2194 = vsel %vm2193, %v2185, %v2190
    %v2195 = vrsqrt.pop %v2184
    %v2196 = vmul.f32 %v2195, %v2184
    %v2197 = vmul.f32 %v2196, %v2195
    %v2198 = vmul.f32 0.5, %v2197
    %v2199 = vsub.f32 1.5, %v2198
    %v2200 = vmul.f32 %v2195, %v2199
    %vm2201 = vweird.f32 %v2184
    %vm2202 = vweird.f32 %v2195
    %vm2203 = vmor %vm2201, %vm2202
    %v2204 = vsel %vm2203, %v2195, %v2200
    %v2205 = vmul.f32 %v2171, %v2194
    %v2206 = vmul.f32 %v2172, %v2204
    %v2208 = vperm.slane %v2160, 0
    %v2210 = vmul.f32 %v2205, %v2208
    %v2211 = vmul.f32 %v2206, %v2208
    %v2213 = vperm.slane %v2162, 0
    %v2215 = vadd.f32 %v2210, %v2213
    %v2216 = vadd.f32 %v2211, %v2213
    %s2217 = scalar_lea.vmem [#allocation14], 16
    %v2218 = vld [vmem:[%s2217] sm:$0xf]
    %v2219 = vld [vmem:[%s2217 + $0x4] sm:$0xf]
    %v2220 = vld [vmem:[%s2217 + $0x8] sm:$0xf]
    %v2221 = vld [vmem:[%s2217 + $0xc] sm:$0xf]
    %s2222 = scalar_lea.vmem %s10, 1
    %v2223 = vld [vmem:[%s2222] sm:$0x1]
    %v2224 = vpack.c.bf16 %v2216, %v2215
    %v2226 = vperm.slane %v2223, 0
    %v2232 = vunpack.c.l.b16 %v2218
    %v2233 = vunpack.c.l.b16 %v2219
    %v2234 = vunpack.c.l.b16 %v2220
    %v2235 = vunpack.c.l.b16 %v2221
    %v2236 = vpack.c.b16 %v2233, %v2232
    %v2237 = vpack.c.b16 %v2235, %v2234
    %v2241 = vsel %vm581, %v2224, 0
    %2243 = vmatpush.bf16.msra.mxu0 0
    %2244 = vmatpush.bf16.msra.mxu0 0
    %2245 = vmatpush.bf16.msra.mxu0 0
    %2246 = vmatpush.bf16.msra.mxu0 0
    %2247 = vmatpush.bf16.msra.mxu0 0
    %2248 = vmatpush.bf16.msra.mxu0 0
    %2249 = vmatpush.bf16.msra.mxu0 %v2237
    %2250 = vmatpush.bf16.msra.mxu0 %v2236
    %2251 = vmatmul.bf16.gmra.mxu0 %v2241
    %v2252 = vpop.f32.mrf.mxu0
    %v2253 = vadd.f32 %v2226, %v2252
    %v2254 = vpop.f32.mrf.mxu0
    %v2255 = vadd.f32 %v2226, %v2254
    %2256 = vdwg.mxu0
    %v2257 = vmax.f32 %v2253, 0.0
    %v2258 = vmax.f32 %v2255, 0.0
    %s2259 = scalar_lea.vmem [#allocation15], 32
    %v2260 = vld [vmem:[%s2259] sm:$0xf]
    %v2261 = vld [vmem:[%s2259 + $0x4] sm:$0xf]
    %v2262 = vld [vmem:[%s2259 + $0x8] sm:$0xf]
    %v2263 = vld [vmem:[%s2259 + $0xc] sm:$0xf]
    %v2264 = vld [vmem:[%s2259 + $0x10] sm:$0xf]
    %v2265 = vld [vmem:[%s2259 + $0x14] sm:$0xf]
    %v2266 = vld [vmem:[%s2259 + $0x18] sm:$0xf]
    %v2267 = vld [vmem:[%s2259 + $0x1c] sm:$0xf]
    %s2268 = scalar_lea.vmem [#allocation18], 25
    %v2269 = vld [vmem:[%s2268] sm:$0x1]
    %v2270 = vpack.c.bf16 %v2258, %v2257
    %v2272 = vperm.slane %v2269, 0
    %v2282 = vunpack.c.l.b16 %v2260
    %v2283 = vunpack.c.l.b16 %v2261
    %v2284 = vunpack.c.l.b16 %v2262
    %v2285 = vunpack.c.l.b16 %v2263
    %v2286 = vunpack.c.l.b16 %v2264
    %v2287 = vunpack.c.l.b16 %v2265
    %v2288 = vunpack.c.l.b16 %v2266
    %v2289 = vunpack.c.l.b16 %v2267
    %v2290 = vpack.c.b16 %v2283, %v2282
    %v2291 = vpack.c.b16 %v2285, %v2284
    %v2292 = vpack.c.b16 %v2287, %v2286
    %v2293 = vpack.c.b16 %v2289, %v2288
    %v2299 = vsel %vm1397, %v2270, 0
    %2301 = vmatpush.bf16.msra.mxu0 0
    %2302 = vmatpush.bf16.msra.mxu0 0
    %2303 = vmatpush.bf16.msra.mxu0 0
    %2304 = vmatpush.bf16.msra.mxu0 0
    %2305 = vmatpush.bf16.msra.mxu0 %v2293
    %2306 = vmatpush.bf16.msra.mxu0 %v2292
    %2307 = vmatpush.bf16.msra.mxu0 %v2291
    %2308 = vmatpush.bf16.msra.mxu0 %v2290
    %2309 = vmatmul.bf16.gmra.mxu0 %v2299
    %v2310 = vpop.f32.mrf.mxu0
    %v2311 = vadd.f32 %v2272, %v2310
    %v2312 = vpop.f32.mrf.mxu0
    %v2313 = vadd.f32 %v2272, %v2312
    %2314 = vdwg.mxu0
    %v2315 = vadd.f32 %v2215, %v2311
    %v2316 = vadd.f32 %v2216, %v2313
    %s2317 = scalar_lea.vmem [#allocation18], 31
    %v2318 = vld [vmem:[%s2317] sm:$0x1]
    %s2319 = scalar_lea.vmem [#allocation18], 41
    %v2320 = vld [vmem:[%s2319] sm:$0x1]
    %v2321 = vsel %vm581, %v2315, 0.0
    %2322 = vadd.xlane.f32.xlu0 %v2321
    %v2323 = vpop.xlane.xlu0 %2322
    %v2324 = vsel %vm581, %v2316, 0.0
    %2325 = vadd.xlane.f32.xlu0 %v2324
    %v2326 = vpop.xlane.xlu0 %2325
    %v2327 = vmul.f32 %v2323, %v1270
    %v2328 = vmul.f32 %v2326, %v1270
    %v2329 = vsub.f32 %v2315, %v2327
    %v2330 = vsub.f32 %v2316, %v2328
    %v2331 = vmul.f32 %v2329, %v2329
    %v2332 = vmul.f32 %v2330, %v2330
    %v2333 = vsel %vm581, %v2331, 0.0
    %2334 = vadd.xlane.f32.xlu0 %v2333
    %v2335 = vpop.xlane.xlu0 %2334
    %v2336 = vsel %vm581, %v2332, 0.0
    %2337 = vadd.xlane.f32.xlu0 %v2336
    %v2338 = vpop.xlane.xlu0 %2337
    %v2339 = vmul.f32 %v2335, %v1270
    %v2340 = vmul.f32 %v2338, %v1270
    %v2341 = vadd.f32 %v2339, 1e-05
    %v2342 = vadd.f32 %v2340, 1e-05
    %v2343 = vrsqrt.pop %v2341
    %v2344 = vmul.f32 %v2343, %v2341
    %v2345 = vmul.f32 %v2344, %v2343
    %v2346 = vmul.f32 0.5, %v2345
    %v2347 = vsub.f32 1.5, %v2346
    %v2348 = vmul.f32 %v2343, %v2347
    %vm2349 = vweird.f32 %v2341
    %vm2350 = vweird.f32 %v2343
    %vm2351 = vmor %vm2349, %vm2350
    %v2352 = vsel %vm2351, %v2343, %v2348
    %v2353 = vrsqrt.pop %v2342
    %v2354 = vmul.f32 %v2353, %v2342
    %v2355 = vmul.f32 %v2354, %v2353
    %v2356 = vmul.f32 0.5, %v2355
    %v2357 = vsub.f32 1.5, %v2356
    %v2358 = vmul.f32 %v2353, %v2357
    %vm2359 = vweird.f32 %v2342
    %vm2360 = vweird.f32 %v2353
    %vm2361 = vmor %vm2359, %vm2360
    %v2362 = vsel %vm2361, %v2353, %v2358
    %v2363 = vmul.f32 %v2329, %v2352
    %v2364 = vmul.f32 %v2330, %v2362
    %v2366 = vperm.slane %v2318, 0
    %v2368 = vmul.f32 %v2363, %v2366
    %v2369 = vmul.f32 %v2364, %v2366
    %v2371 = vperm.slane %v2320, 0
    %v2373 = vadd.f32 %v2368, %v2371
    %v2374 = vadd.f32 %v2369, %v2371
    %s2375 = scalar_lea.vmem [#allocation12], 128
    %v2376 = vld [vmem:[%s2375] sm:$0xf]
    %v2377 = vld [vmem:[%s2375 + $0x4] sm:$0xf]
    %v2378 = vld [vmem:[%s2375 + $0x8] sm:$0xf]
    %v2379 = vld [vmem:[%s2375 + $0xc] sm:$0xf]
    %s2380 = scalar_lea.vmem [#allocation18], 8
    %v2381 = vld [vmem:[%s2380] sm:$0x1]
    %v2382 = vpack.c.bf16 %v467, %v464
    %v2384 = vperm.slane %v2381, 0
    %v2390 = vunpack.c.l.b16 %v2376
    %v2391 = vunpack.c.l.b16 %v2377
    %v2392 = vunpack.c.l.b16 %v2378
    %v2393 = vunpack.c.l.b16 %v2379
    %v2394 = vpack.c.b16 %v2391, %v2390
    %v2395 = vpack.c.b16 %v2393, %v2392
    %v2399 = vsel %vm581, %v2382, 0
    %2401 = vmatpush.bf16.msra.mxu0 0
    %2402 = vmatpush.bf16.msra.mxu0 0
    %2403 = vmatpush.bf16.msra.mxu0 0
    %2404 = vmatpush.bf16.msra.mxu0 0
    %2405 = vmatpush.bf16.msra.mxu0 0
    %2406 = vmatpush.bf16.msra.mxu0 0
    %2407 = vmatpush.bf16.msra.mxu0 %v2395
    %2408 = vmatpush.bf16.msra.mxu0 %v2394
    %2409 = vmatmul.bf16.gmra.mxu0 %v2399
    %v2410 = vpop.f32.mrf.mxu0
    %v2411 = vadd.f32 %v2384, %v2410
    %v2412 = vpop.f32.mrf.mxu0
    %v2413 = vadd.f32 %v2384, %v2412
    %2414 = vdwg.mxu0
    %s2415 = scalar_lea.vmem [#allocation12], 144
    %v2416 = vld [vmem:[%s2415] sm:$0xf]
    %v2417 = vld [vmem:[%s2415 + $0x4] sm:$0xf]
    %v2418 = vld [vmem:[%s2415 + $0x8] sm:$0xf]
    %v2419 = vld [vmem:[%s2415 + $0xc] sm:$0xf]
    %s2420 = scalar_lea.vmem [#allocation18], 9
    %v2421 = vld [vmem:[%s2420] sm:$0x1]
    %v2423 = vperm.slane %v2421, 0
    %v2429 = vunpack.c.l.b16 %v2416
    %v2430 = vunpack.c.l.b16 %v2417
    %v2431 = vunpack.c.l.b16 %v2418
    %v2432 = vunpack.c.l.b16 %v2419
    %v2433 = vpack.c.b16 %v2430, %v2429
    %v2434 = vpack.c.b16 %v2432, %v2431
    %2437 = vmatpush.bf16.msra.mxu0 0
    %2438 = vmatpush.bf16.msra.mxu0 0
    %2439 = vmatpush.bf16.msra.mxu0 0
    %2440 = vmatpush.bf16.msra.mxu0 0
    %2441 = vmatpush.bf16.msra.mxu0 0
    %2442 = vmatpush.bf16.msra.mxu0 0
    %2443 = vmatpush.bf16.msra.mxu0 %v2434
    %2444 = vmatpush.bf16.msra.mxu0 %v2433
    %2445 = vmatmul.bf16.gmra.mxu0 %v2399
    %v2446 = vpop.f32.mrf.mxu0
    %v2447 = vadd.f32 %v2423, %v2446
    %v2448 = vpop.f32.mrf.mxu0
    %v2449 = vadd.f32 %v2423, %v2448
    %2450 = vdwg.mxu0
    %s2451 = scalar_lea.vmem [#allocation12], 160
    %v2452 = vld [vmem:[%s2451] sm:$0xf]
    %v2453 = vld [vmem:[%s2451 + $0x4] sm:$0xf]
    %v2454 = vld [vmem:[%s2451 + $0x8] sm:$0xf]
    %v2455 = vld [vmem:[%s2451 + $0xc] sm:$0xf]
    %s2456 = scalar_lea.vmem [#allocation18], 10
    %v2457 = vld [vmem:[%s2456] sm:$0x1]
    %v2459 = vperm.slane %v2457, 0
    %v2465 = vunpack.c.l.b16 %v2452
    %v2466 = vunpack.c.l.b16 %v2453
    %v2467 = vunpack.c.l.b16 %v2454
    %v2468 = vunpack.c.l.b16 %v2455
    %v2469 = vpack.c.b16 %v2466, %v2465
    %v2470 = vpack.c.b16 %v2468, %v2467
    %2473 = vmatpush.bf16.msra.mxu0 0
    %2474 = vmatpush.bf16.msra.mxu0 0
    %2475 = vmatpush.bf16.msra.mxu0 0
    %2476 = vmatpush.bf16.msra.mxu0 0
    %2477 = vmatpush.bf16.msra.mxu0 0
    %2478 = vmatpush.bf16.msra.mxu0 0
    %2479 = vmatpush.bf16.msra.mxu0 %v2470
    %2480 = vmatpush.bf16.msra.mxu0 %v2469
    %2481 = vmatmul.bf16.gmra.mxu0 %v2399
    %v2482 = vpop.f32.mrf.mxu0
    %v2483 = vadd.f32 %v2459, %v2482
    %v2484 = vpop.f32.mrf.mxu0
    %v2485 = vadd.f32 %v2459, %v2484
    %2486 = vdwg.mxu0
    %2488 = vrot.lane.b32.xlu0 %v2411, 120
    %v2489 = vpop.permute.xlu0 %2488
    %2491 = vrot.lane.b32.xlu0 %v2411, 112
    %v2492 = vpop.permute.xlu0 %2491
    %2494 = vrot.lane.b32.xlu0 %v2411, 104
    %v2495 = vpop.permute.xlu0 %2494
    %2498 = vrot.lane.b32.xlu0 %v2413, 120
    %v2499 = vpop.permute.xlu0 %2498
    %2501 = vrot.lane.b32.xlu0 %v2413, 112
    %v2502 = vpop.permute.xlu0 %2501
    %2504 = vrot.lane.b32.xlu0 %v2413, 104
    %v2505 = vpop.permute.xlu0 %2504
    %2508 = vrot.lane.b32.xlu0 %v2447, 120
    %v2509 = vpop.permute.xlu0 %2508
    %2511 = vrot.lane.b32.xlu0 %v2447, 112
    %v2512 = vpop.permute.xlu0 %2511
    %2514 = vrot.lane.b32.xlu0 %v2447, 104
    %v2515 = vpop.permute.xlu0 %2514
    %2518 = vrot.lane.b32.xlu0 %v2449, 120
    %v2519 = vpop.permute.xlu0 %2518
    %2521 = vrot.lane.b32.xlu0 %v2449, 112
    %v2522 = vpop.permute.xlu0 %2521
    %2524 = vrot.lane.b32.xlu0 %v2449, 104
    %v2525 = vpop.permute.xlu0 %2524
    %2528 = vrot.lane.b32.xlu0 %v2483, 120
    %v2529 = vpop.permute.xlu0 %2528
    %2531 = vrot.lane.b32.xlu0 %v2483, 112
    %v2532 = vpop.permute.xlu0 %2531
    %2534 = vrot.lane.b32.xlu0 %v2483, 104
    %v2535 = vpop.permute.xlu0 %2534
    %2538 = vrot.lane.b32.xlu0 %v2485, 120
    %v2539 = vpop.permute.xlu0 %2538
    %2541 = vrot.lane.b32.xlu0 %v2485, 112
    %v2542 = vpop.permute.xlu0 %2541
    %2544 = vrot.lane.b32.xlu0 %v2485, 104
    %v2545 = vpop.permute.xlu0 %2544
    %v2547 = vpack.c.bf16 %v2411, %v2411
    %v2548 = vpack.c.bf16 %v2489, %v2489
    %v2549 = vpack.c.bf16 %v2492, %v2492
    %v2550 = vpack.c.bf16 %v2495, %v2495
    %v2551 = vpack.c.bf16 %v2413, %v2413
    %v2552 = vpack.c.bf16 %v2499, %v2499
    %v2553 = vpack.c.bf16 %v2502, %v2502
    %v2554 = vpack.c.bf16 %v2505, %v2505
    %v2555 = vpack.c.bf16 %v2447, %v2447
    %v2556 = vpack.c.bf16 %v2509, %v2509
    %v2557 = vpack.c.bf16 %v2512, %v2512
    %v2558 = vpack.c.bf16 %v2515, %v2515
    %v2559 = vpack.c.bf16 %v2449, %v2449
    %v2560 = vpack.c.bf16 %v2519, %v2519
    %v2561 = vpack.c.bf16 %v2522, %v2522
    %v2562 = vpack.c.bf16 %v2525, %v2525
    %v2564 = vsel %vm747, %v2547, 0
    %v2567 = vsel %vm747, %v2555, 0
    %2569 = vmatpush.bf16.xpose.msra.mxu0 0
    %2570 = vmatpush.bf16.xpose.msra.mxu0 0
    %2571 = vmatpush.bf16.xpose.msra.mxu0 0
    %2572 = vmatpush.bf16.xpose.msra.mxu0 0
    %2573 = vmatpush.bf16.xpose.msra.mxu0 0
    %2574 = vmatpush.bf16.xpose.msra.mxu0 0
    %2575 = vmatpush.bf16.xpose.msra.mxu0 0
    %2576 = vmatpush.bf16.xpose.msra.mxu0 %v2567
    %2577 = vmatmul.bf16.gmra.mxu0 %v2564
    %v2578 = vpop.f32.mrf.mxu0
    %v2579 = vadd.f32 0.0, %v2578
    %v2580 = vpop.f32.mrf.mxu0
    %2581 = vdwg.mxu0
    %v2583 = vsel %vm747, %v2548, 0
    %v2586 = vsel %vm747, %v2556, 0
    %2588 = vmatpush.bf16.xpose.msra.mxu0 0
    %2589 = vmatpush.bf16.xpose.msra.mxu0 0
    %2590 = vmatpush.bf16.xpose.msra.mxu0 0
    %2591 = vmatpush.bf16.xpose.msra.mxu0 0
    %2592 = vmatpush.bf16.xpose.msra.mxu0 0
    %2593 = vmatpush.bf16.xpose.msra.mxu0 0
    %2594 = vmatpush.bf16.xpose.msra.mxu0 0
    %2595 = vmatpush.bf16.xpose.msra.mxu0 %v2586
    %2596 = vmatmul.bf16.gmra.mxu0 %v2583
    %v2597 = vpop.f32.mrf.mxu0
    %v2598 = vadd.f32 0.0, %v2597
    %v2599 = vpop.f32.mrf.mxu0
    %2600 = vdwg.mxu0
    %v2602 = vsel %vm747, %v2549, 0
    %v2605 = vsel %vm747, %v2557, 0
    %2607 = vmatpush.bf16.xpose.msra.mxu0 0
    %2608 = vmatpush.bf16.xpose.msra.mxu0 0
    %2609 = vmatpush.bf16.xpose.msra.mxu0 0
    %2610 = vmatpush.bf16.xpose.msra.mxu0 0
    %2611 = vmatpush.bf16.xpose.msra.mxu0 0
    %2612 = vmatpush.bf16.xpose.msra.mxu0 0
    %2613 = vmatpush.bf16.xpose.msra.mxu0 0
    %2614 = vmatpush.bf16.xpose.msra.mxu0 %v2605
    %2615 = vmatmul.bf16.gmra.mxu0 %v2602
    %v2616 = vpop.f32.mrf.mxu0
    %v2617 = vadd.f32 0.0, %v2616
    %v2618 = vpop.f32.mrf.mxu0
    %2619 = vdwg.mxu0
    %v2621 = vsel %vm747, %v2550, 0
    %v2624 = vsel %vm747, %v2558, 0
    %2626 = vmatpush.bf16.xpose.msra.mxu0 0
    %2627 = vmatpush.bf16.xpose.msra.mxu0 0
    %2628 = vmatpush.bf16.xpose.msra.mxu0 0
    %2629 = vmatpush.bf16.xpose.msra.mxu0 0
    %2630 = vmatpush.bf16.xpose.msra.mxu0 0
    %2631 = vmatpush.bf16.xpose.msra.mxu0 0
    %2632 = vmatpush.bf16.xpose.msra.mxu0 0
    %2633 = vmatpush.bf16.xpose.msra.mxu0 %v2624
    %2634 = vmatmul.bf16.gmra.mxu0 %v2621
    %v2635 = vpop.f32.mrf.mxu0
    %v2636 = vadd.f32 0.0, %v2635
    %v2637 = vpop.f32.mrf.mxu0
    %2638 = vdwg.mxu0
    %v2640 = vsel %vm747, %v2551, 0
    %v2643 = vsel %vm747, %v2559, 0
    %2645 = vmatpush.bf16.xpose.msra.mxu0 0
    %2646 = vmatpush.bf16.xpose.msra.mxu0 0
    %2647 = vmatpush.bf16.xpose.msra.mxu0 0
    %2648 = vmatpush.bf16.xpose.msra.mxu0 0
    %2649 = vmatpush.bf16.xpose.msra.mxu0 0
    %2650 = vmatpush.bf16.xpose.msra.mxu0 0
    %2651 = vmatpush.bf16.xpose.msra.mxu0 0
    %2652 = vmatpush.bf16.xpose.msra.mxu0 %v2643
    %2653 = vmatmul.bf16.gmra.mxu0 %v2640
    %v2654 = vpop.f32.mrf.mxu0
    %v2655 = vadd.f32 0.0, %v2654
    %v2656 = vpop.f32.mrf.mxu0
    %2657 = vdwg.mxu0
    %v2659 = vsel %vm747, %v2552, 0
    %v2662 = vsel %vm747, %v2560, 0
    %2664 = vmatpush.bf16.xpose.msra.mxu0 0
    %2665 = vmatpush.bf16.xpose.msra.mxu0 0
    %2666 = vmatpush.bf16.xpose.msra.mxu0 0
    %2667 = vmatpush.bf16.xpose.msra.mxu0 0
    %2668 = vmatpush.bf16.xpose.msra.mxu0 0
    %2669 = vmatpush.bf16.xpose.msra.mxu0 0
    %2670 = vmatpush.bf16.xpose.msra.mxu0 0
    %2671 = vmatpush.bf16.xpose.msra.mxu0 %v2662
    %2672 = vmatmul.bf16.gmra.mxu0 %v2659
    %v2673 = vpop.f32.mrf.mxu0
    %v2674 = vadd.f32 0.0, %v2673
    %v2675 = vpop.f32.mrf.mxu0
    %2676 = vdwg.mxu0
    %v2678 = vsel %vm747, %v2553, 0
    %v2681 = vsel %vm747, %v2561, 0
    %2683 = vmatpush.bf16.xpose.msra.mxu0 0
    %2684 = vmatpush.bf16.xpose.msra.mxu0 0
    %2685 = vmatpush.bf16.xpose.msra.mxu0 0
    %2686 = vmatpush.bf16.xpose.msra.mxu0 0
    %2687 = vmatpush.bf16.xpose.msra.mxu0 0
    %2688 = vmatpush.bf16.xpose.msra.mxu0 0
    %2689 = vmatpush.bf16.xpose.msra.mxu0 0
    %2690 = vmatpush.bf16.xpose.msra.mxu0 %v2681
    %2691 = vmatmul.bf16.gmra.mxu0 %v2678
    %v2692 = vpop.f32.mrf.mxu0
    %v2693 = vadd.f32 0.0, %v2692
    %v2694 = vpop.f32.mrf.mxu0
    %2695 = vdwg.mxu0
    %v2697 = vsel %vm747, %v2554, 0
    %v2700 = vsel %vm747, %v2562, 0
    %2702 = vmatpush.bf16.xpose.msra.mxu0 0
    %2703 = vmatpush.bf16.xpose.msra.mxu0 0
    %2704 = vmatpush.bf16.xpose.msra.mxu0 0
    %2705 = vmatpush.bf16.xpose.msra.mxu0 0
    %2706 = vmatpush.bf16.xpose.msra.mxu0 0
    %2707 = vmatpush.bf16.xpose.msra.mxu0 0
    %2708 = vmatpush.bf16.xpose.msra.mxu0 0
    %2709 = vmatpush.bf16.xpose.msra.mxu0 %v2700
    %2710 = vmatmul.bf16.gmra.mxu0 %v2697
    %v2711 = vpop.f32.mrf.mxu0
    %v2712 = vadd.f32 0.0, %v2711
    %v2713 = vpop.f32.mrf.mxu0
    %2714 = vdwg.mxu0
    %v2715 = vmul.f32 %v2579, 0.35355338
    %v2716 = vmul.f32 %v2598, 0.35355338
    %v2717 = vmul.f32 %v2617, 0.35355338
    %v2718 = vmul.f32 %v2636, 0.35355338
    %v2719 = vmul.f32 %v2655, 0.35355338
    %v2720 = vmul.f32 %v2674, 0.35355338
    %v2721 = vmul.f32 %v2693, 0.35355338
    %v2722 = vmul.f32 %v2712, 0.35355338
    %vm2723 = vcmp.gt.f32.partialorder %v551, 0.5
    %vm2724 = vcmp.gt.f32.partialorder %v559, 0.5
    %v2725 = vsel %vm2723, %v2715, -1e+09
    %v2726 = vsel %vm2723, %v2716, -1e+09
    %v2727 = vsel %vm2723, %v2717, -1e+09
    %v2728 = vsel %vm2723, %v2718, -1e+09
    %v2729 = vsel %vm2724, %v2719, -1e+09
    %v2730 = vsel %vm2724, %v2720, -1e+09
    %v2731 = vsel %vm2724, %v2721, -1e+09
    %v2732 = vsel %vm2724, %v2722, -1e+09
    %v2733 = vsel %vm747, %v2725, -inf
    %2734 = vmax.xlane.f32.xlu0 %v2733
    %v2735 = vpop.xlane.xlu0 %2734
    %v2736 = vsel %vm747, %v2726, -inf
    %2737 = vmax.xlane.f32.xlu0 %v2736
    %v2738 = vpop.xlane.xlu0 %2737
    %v2739 = vsel %vm747, %v2727, -inf
    %2740 = vmax.xlane.f32.xlu0 %v2739
    %v2741 = vpop.xlane.xlu0 %2740
    %v2742 = vsel %vm747, %v2728, -inf
    %2743 = vmax.xlane.f32.xlu0 %v2742
    %v2744 = vpop.xlane.xlu0 %2743
    %v2745 = vsel %vm747, %v2729, -inf
    %2746 = vmax.xlane.f32.xlu0 %v2745
    %v2747 = vpop.xlane.xlu0 %2746
    %v2748 = vsel %vm747, %v2730, -inf
    %2749 = vmax.xlane.f32.xlu0 %v2748
    %v2750 = vpop.xlane.xlu0 %2749
    %v2751 = vsel %vm747, %v2731, -inf
    %2752 = vmax.xlane.f32.xlu0 %v2751
    %v2753 = vpop.xlane.xlu0 %2752
    %v2754 = vsel %vm747, %v2732, -inf
    %2755 = vmax.xlane.f32.xlu0 %v2754
    %v2756 = vpop.xlane.xlu0 %2755
    %v2757 = vsub.f32 %v2725, %v2735
    %v2758 = vsub.f32 %v2726, %v2738
    %v2759 = vsub.f32 %v2727, %v2741
    %v2760 = vsub.f32 %v2728, %v2744
    %v2761 = vsub.f32 %v2729, %v2747
    %v2762 = vsub.f32 %v2730, %v2750
    %v2763 = vsub.f32 %v2731, %v2753
    %v2764 = vsub.f32 %v2732, %v2756
    %v2765 = vmul.f32 %v2757, 1.442695
    %v2766 = vpow.pop %v2765
    %v2767 = vmul.f32 %v2758, 1.442695
    %v2768 = vpow.pop %v2767
    %v2769 = vmul.f32 %v2759, 1.442695
    %v2770 = vpow.pop %v2769
    %v2771 = vmul.f32 %v2760, 1.442695
    %v2772 = vpow.pop %v2771
    %v2773 = vmul.f32 %v2761, 1.442695
    %v2774 = vpow.pop %v2773
    %v2775 = vmul.f32 %v2762, 1.442695
    %v2776 = vpow.pop %v2775
    %v2777 = vmul.f32 %v2763, 1.442695
    %v2778 = vpow.pop %v2777
    %v2779 = vmul.f32 %v2764, 1.442695
    %v2780 = vpow.pop %v2779
    %v2781 = vsel %vm747, %v2766, 0.0
    %2782 = vadd.xlane.f32.xlu0 %v2781
    %v2783 = vpop.xlane.xlu0 %2782
    %v2784 = vsel %vm747, %v2768, 0.0
    %2785 = vadd.xlane.f32.xlu0 %v2784
    %v2786 = vpop.xlane.xlu0 %2785
    %v2787 = vsel %vm747, %v2770, 0.0
    %2788 = vadd.xlane.f32.xlu0 %v2787
    %v2789 = vpop.xlane.xlu0 %2788
    %v2790 = vsel %vm747, %v2772, 0.0
    %2791 = vadd.xlane.f32.xlu0 %v2790
    %v2792 = vpop.xlane.xlu0 %2791
    %v2793 = vsel %vm747, %v2774, 0.0
    %2794 = vadd.xlane.f32.xlu0 %v2793
    %v2795 = vpop.xlane.xlu0 %2794
    %v2796 = vsel %vm747, %v2776, 0.0
    %2797 = vadd.xlane.f32.xlu0 %v2796
    %v2798 = vpop.xlane.xlu0 %2797
    %v2799 = vsel %vm747, %v2778, 0.0
    %2800 = vadd.xlane.f32.xlu0 %v2799
    %v2801 = vpop.xlane.xlu0 %2800
    %v2802 = vsel %vm747, %v2780, 0.0
    %2803 = vadd.xlane.f32.xlu0 %v2802
    %v2804 = vpop.xlane.xlu0 %2803
    %v2805 = vrcp.pop %v2783
    %v2806 = vrcp.pop %v2786
    %v2807 = vrcp.pop %v2789
    %v2808 = vrcp.pop %v2792
    %v2809 = vrcp.pop %v2795
    %v2810 = vrcp.pop %v2798
    %v2811 = vrcp.pop %v2801
    %v2812 = vrcp.pop %v2804
    %v2813 = vmul.f32 %v2766, %v2805
    %v2814 = vmul.f32 %v2768, %v2806
    %v2815 = vmul.f32 %v2770, %v2807
    %v2816 = vmul.f32 %v2772, %v2808
    %v2817 = vmul.f32 %v2774, %v2809
    %v2818 = vmul.f32 %v2776, %v2810
    %v2819 = vmul.f32 %v2778, %v2811
    %v2820 = vmul.f32 %v2780, %v2812
    %v2821 = vpack.c.bf16 %v2813, %v2813
    %v2822 = vpack.c.bf16 %v2814, %v2814
    %v2823 = vpack.c.bf16 %v2815, %v2815
    %v2824 = vpack.c.bf16 %v2816, %v2816
    %v2825 = vpack.c.bf16 %v2817, %v2817
    %v2826 = vpack.c.bf16 %v2818, %v2818
    %v2827 = vpack.c.bf16 %v2819, %v2819
    %v2828 = vpack.c.bf16 %v2820, %v2820
    %v2829 = vpack.c.bf16 %v2483, %v2483
    %v2830 = vpack.c.bf16 %v2529, %v2529
    %v2831 = vpack.c.bf16 %v2532, %v2532
    %v2832 = vpack.c.bf16 %v2535, %v2535
    %v2833 = vpack.c.bf16 %v2485, %v2485
    %v2834 = vpack.c.bf16 %v2539, %v2539
    %v2835 = vpack.c.bf16 %v2542, %v2542
    %v2836 = vpack.c.bf16 %v2545, %v2545
    %v2838 = vsel %vm747, %v2821, 0
    %v2841 = vsel %vm281, %v2829, 0
    %2843 = vmatpush.bf16.msra.mxu0 0
    %2844 = vmatpush.bf16.msra.mxu0 0
    %2845 = vmatpush.bf16.msra.mxu0 0
    %2846 = vmatpush.bf16.msra.mxu0 0
    %2847 = vmatpush.bf16.msra.mxu0 0
    %2848 = vmatpush.bf16.msra.mxu0 0
    %2849 = vmatpush.bf16.msra.mxu0 0
    %2850 = vmatpush.bf16.msra.mxu0 %v2841
    %2851 = vmatmul.bf16.gmra.mxu0 %v2838
    %v2852 = vpop.f32.mrf.mxu0
    %v2853 = vadd.f32 0.0, %v2852
    %v2854 = vpop.f32.mrf.mxu0
    %2855 = vdwg.mxu0
    %v2857 = vsel %vm747, %v2822, 0
    %v2860 = vsel %vm281, %v2830, 0
    %2862 = vmatpush.bf16.msra.mxu0 0
    %2863 = vmatpush.bf16.msra.mxu0 0
    %2864 = vmatpush.bf16.msra.mxu0 0
    %2865 = vmatpush.bf16.msra.mxu0 0
    %2866 = vmatpush.bf16.msra.mxu0 0
    %2867 = vmatpush.bf16.msra.mxu0 0
    %2868 = vmatpush.bf16.msra.mxu0 0
    %2869 = vmatpush.bf16.msra.mxu0 %v2860
    %2870 = vmatmul.bf16.gmra.mxu0 %v2857
    %v2871 = vpop.f32.mrf.mxu0
    %v2872 = vadd.f32 0.0, %v2871
    %v2873 = vpop.f32.mrf.mxu0
    %2874 = vdwg.mxu0
    %v2876 = vsel %vm747, %v2823, 0
    %v2879 = vsel %vm281, %v2831, 0
    %2881 = vmatpush.bf16.msra.mxu0 0
    %2882 = vmatpush.bf16.msra.mxu0 0
    %2883 = vmatpush.bf16.msra.mxu0 0
    %2884 = vmatpush.bf16.msra.mxu0 0
    %2885 = vmatpush.bf16.msra.mxu0 0
    %2886 = vmatpush.bf16.msra.mxu0 0
    %2887 = vmatpush.bf16.msra.mxu0 0
    %2888 = vmatpush.bf16.msra.mxu0 %v2879
    %2889 = vmatmul.bf16.gmra.mxu0 %v2876
    %v2890 = vpop.f32.mrf.mxu0
    %v2891 = vadd.f32 0.0, %v2890
    %v2892 = vpop.f32.mrf.mxu0
    %2893 = vdwg.mxu0
    %v2895 = vsel %vm747, %v2824, 0
    %v2898 = vsel %vm281, %v2832, 0
    %2900 = vmatpush.bf16.msra.mxu0 0
    %2901 = vmatpush.bf16.msra.mxu0 0
    %2902 = vmatpush.bf16.msra.mxu0 0
    %2903 = vmatpush.bf16.msra.mxu0 0
    %2904 = vmatpush.bf16.msra.mxu0 0
    %2905 = vmatpush.bf16.msra.mxu0 0
    %2906 = vmatpush.bf16.msra.mxu0 0
    %2907 = vmatpush.bf16.msra.mxu0 %v2898
    %2908 = vmatmul.bf16.gmra.mxu0 %v2895
    %v2909 = vpop.f32.mrf.mxu0
    %v2910 = vadd.f32 0.0, %v2909
    %v2911 = vpop.f32.mrf.mxu0
    %2912 = vdwg.mxu0
    %v2914 = vsel %vm747, %v2825, 0
    %v2917 = vsel %vm281, %v2833, 0
    %2919 = vmatpush.bf16.msra.mxu0 0
    %2920 = vmatpush.bf16.msra.mxu0 0
    %2921 = vmatpush.bf16.msra.mxu0 0
    %2922 = vmatpush.bf16.msra.mxu0 0
    %2923 = vmatpush.bf16.msra.mxu0 0
    %2924 = vmatpush.bf16.msra.mxu0 0
    %2925 = vmatpush.bf16.msra.mxu0 0
    %2926 = vmatpush.bf16.msra.mxu0 %v2917
    %2927 = vmatmul.bf16.gmra.mxu0 %v2914
    %v2928 = vpop.f32.mrf.mxu0
    %v2929 = vadd.f32 0.0, %v2928
    %v2930 = vpop.f32.mrf.mxu0
    %2931 = vdwg.mxu0
    %v2933 = vsel %vm747, %v2826, 0
    %v2936 = vsel %vm281, %v2834, 0
    %2938 = vmatpush.bf16.msra.mxu0 0
    %2939 = vmatpush.bf16.msra.mxu0 0
    %2940 = vmatpush.bf16.msra.mxu0 0
    %2941 = vmatpush.bf16.msra.mxu0 0
    %2942 = vmatpush.bf16.msra.mxu0 0
    %2943 = vmatpush.bf16.msra.mxu0 0
    %2944 = vmatpush.bf16.msra.mxu0 0
    %2945 = vmatpush.bf16.msra.mxu0 %v2936
    %2946 = vmatmul.bf16.gmra.mxu0 %v2933
    %v2947 = vpop.f32.mrf.mxu0
    %v2948 = vadd.f32 0.0, %v2947
    %v2949 = vpop.f32.mrf.mxu0
    %2950 = vdwg.mxu0
    %v2952 = vsel %vm747, %v2827, 0
    %v2955 = vsel %vm281, %v2835, 0
    %2957 = vmatpush.bf16.msra.mxu0 0
    %2958 = vmatpush.bf16.msra.mxu0 0
    %2959 = vmatpush.bf16.msra.mxu0 0
    %2960 = vmatpush.bf16.msra.mxu0 0
    %2961 = vmatpush.bf16.msra.mxu0 0
    %2962 = vmatpush.bf16.msra.mxu0 0
    %2963 = vmatpush.bf16.msra.mxu0 0
    %2964 = vmatpush.bf16.msra.mxu0 %v2955
    %2965 = vmatmul.bf16.gmra.mxu0 %v2952
    %v2966 = vpop.f32.mrf.mxu0
    %v2967 = vadd.f32 0.0, %v2966
    %v2968 = vpop.f32.mrf.mxu0
    %2969 = vdwg.mxu0
    %v2971 = vsel %vm747, %v2828, 0
    %v2974 = vsel %vm281, %v2836, 0
    %2976 = vmatpush.bf16.msra.mxu0 0
    %2977 = vmatpush.bf16.msra.mxu0 0
    %2978 = vmatpush.bf16.msra.mxu0 0
    %2979 = vmatpush.bf16.msra.mxu0 0
    %2980 = vmatpush.bf16.msra.mxu0 0
    %2981 = vmatpush.bf16.msra.mxu0 0
    %2982 = vmatpush.bf16.msra.mxu0 0
    %2983 = vmatpush.bf16.msra.mxu0 %v2974
    %2984 = vmatmul.bf16.gmra.mxu0 %v2971
    %v2985 = vpop.f32.mrf.mxu0
    %v2986 = vadd.f32 0.0, %v2985
    %v2987 = vpop.f32.mrf.mxu0
    %2988 = vdwg.mxu0
    %2990 = vrot.lane.b32.xlu0 %v2872, 8
    %v2991 = vpop.permute.xlu0 %2990
    %2994 = vrot.lane.b32.xlu0 %v2891, 16
    %v2995 = vpop.permute.xlu0 %2994
    %2998 = vrot.lane.b32.xlu0 %v2910, 24
    %v2999 = vpop.permute.xlu0 %2998
    %v3001 = vsel %vm747, %v2853, %v2991
    %v3002 = vsel %vm1193, %v3001, %v2995
    %v3003 = vsel %vm1195, %v3002, %v2999
    %3005 = vrot.lane.b32.xlu0 %v2948, 8
    %v3006 = vpop.permute.xlu0 %3005
    %3009 = vrot.lane.b32.xlu0 %v2967, 16
    %v3010 = vpop.permute.xlu0 %3009
    %3013 = vrot.lane.b32.xlu0 %v2986, 24
    %v3014 = vpop.permute.xlu0 %3013
    %v3016 = vsel %vm747, %v2929, %v3006
    %v3017 = vsel %vm1193, %v3016, %v3010
    %v3018 = vsel %vm1195, %v3017, %v3014
    %s3019 = scalar_lea.vmem [#allocation12], 176
    %v3020 = vld [vmem:[%s3019] sm:$0xf]
    %v3021 = vld [vmem:[%s3019 + $0x4] sm:$0xf]
    %v3022 = vld [vmem:[%s3019 + $0x8] sm:$0xf]
    %v3023 = vld [vmem:[%s3019 + $0xc] sm:$0xf]
    %s3024 = scalar_lea.vmem [#allocation18], 11
    %v3025 = vld [vmem:[%s3024] sm:$0x1]
    %v3026 = vpack.c.bf16 %v3018, %v3003
    %v3028 = vperm.slane %v3025, 0
    %v3034 = vunpack.c.l.b16 %v3020
    %v3035 = vunpack.c.l.b16 %v3021
    %v3036 = vunpack.c.l.b16 %v3022
    %v3037 = vunpack.c.l.b16 %v3023
    %v3038 = vpack.c.b16 %v3035, %v3034
    %v3039 = vpack.c.b16 %v3037, %v3036
    %v3043 = vsel %vm581, %v3026, 0
    %3045 = vmatpush.bf16.msra.mxu0 0
    %3046 = vmatpush.bf16.msra.mxu0 0
    %3047 = vmatpush.bf16.msra.mxu0 0
    %3048 = vmatpush.bf16.msra.mxu0 0
    %3049 = vmatpush.bf16.msra.mxu0 0
    %3050 = vmatpush.bf16.msra.mxu0 0
    %3051 = vmatpush.bf16.msra.mxu0 %v3039
    %3052 = vmatpush.bf16.msra.mxu0 %v3038
    %3053 = vmatmul.bf16.gmra.mxu0 %v3043
    %v3054 = vpop.f32.mrf.mxu0
    %v3055 = vadd.f32 %v3028, %v3054
    %v3056 = vpop.f32.mrf.mxu0
    %v3057 = vadd.f32 %v3028, %v3056
    %3058 = vdwg.mxu0
    %v3059 = vadd.f32 %v464, %v3055
    %v3060 = vadd.f32 %v467, %v3057
    %s3061 = scalar_lea.vmem [#allocation18], 32
    %v3062 = vld [vmem:[%s3061] sm:$0x1]
    %s3063 = scalar_lea.vmem [#allocation18], 42
    %v3064 = vld [vmem:[%s3063] sm:$0x1]
    %v3065 = vsel %vm581, %v3059, 0.0
    %3066 = vadd.xlane.f32.xlu0 %v3065
    %v3067 = vpop.xlane.xlu0 %3066
    %v3068 = vsel %vm581, %v3060, 0.0
    %3069 = vadd.xlane.f32.xlu0 %v3068
    %v3070 = vpop.xlane.xlu0 %3069
    %v3071 = vmul.f32 %v3067, %v1270
    %v3072 = vmul.f32 %v3070, %v1270
    %v3073 = vsub.f32 %v3059, %v3071
    %v3074 = vsub.f32 %v3060, %v3072
    %v3075 = vmul.f32 %v3073, %v3073
    %v3076 = vmul.f32 %v3074, %v3074
    %v3077 = vsel %vm581, %v3075, 0.0
    %3078 = vadd.xlane.f32.xlu0 %v3077
    %v3079 = vpop.xlane.xlu0 %3078
    %v3080 = vsel %vm581, %v3076, 0.0
    %3081 = vadd.xlane.f32.xlu0 %v3080
    %v3082 = vpop.xlane.xlu0 %3081
    %v3083 = vmul.f32 %v3079, %v1270
    %v3084 = vmul.f32 %v3082, %v1270
    %v3085 = vadd.f32 %v3083, 1e-05
    %v3086 = vadd.f32 %v3084, 1e-05
    %v3087 = vrsqrt.pop %v3085
    %v3088 = vmul.f32 %v3087, %v3085
    %v3089 = vmul.f32 %v3088, %v3087
    %v3090 = vmul.f32 0.5, %v3089
    %v3091 = vsub.f32 1.5, %v3090
    %v3092 = vmul.f32 %v3087, %v3091
    %vm3093 = vweird.f32 %v3085
    %vm3094 = vweird.f32 %v3087
    %vm3095 = vmor %vm3093, %vm3094
    %v3096 = vsel %vm3095, %v3087, %v3092
    %v3097 = vrsqrt.pop %v3086
    %v3098 = vmul.f32 %v3097, %v3086
    %v3099 = vmul.f32 %v3098, %v3097
    %v3100 = vmul.f32 0.5, %v3099
    %v3101 = vsub.f32 1.5, %v3100
    %v3102 = vmul.f32 %v3097, %v3101
    %vm3103 = vweird.f32 %v3086
    %vm3104 = vweird.f32 %v3097
    %vm3105 = vmor %vm3103, %vm3104
    %v3106 = vsel %vm3105, %v3097, %v3102
    %v3107 = vmul.f32 %v3073, %v3096
    %v3108 = vmul.f32 %v3074, %v3106
    %v3110 = vperm.slane %v3062, 0
    %v3112 = vmul.f32 %v3107, %v3110
    %v3113 = vmul.f32 %v3108, %v3110
    %v3115 = vperm.slane %v3064, 0
    %v3117 = vadd.f32 %v3112, %v3115
    %v3118 = vadd.f32 %v3113, %v3115
    %s3119 = scalar_lea.vmem [#allocation12], 256
    %v3120 = vld [vmem:[%s3119] sm:$0xf]
    %v3121 = vld [vmem:[%s3119 + $0x4] sm:$0xf]
    %v3122 = vld [vmem:[%s3119 + $0x8] sm:$0xf]
    %v3123 = vld [vmem:[%s3119 + $0xc] sm:$0xf]
    %s3124 = scalar_lea.vmem [#allocation18], 16
    %v3125 = vld [vmem:[%s3124] sm:$0x1]
    %v3126 = vpack.c.bf16 %v3118, %v3117
    %v3128 = vperm.slane %v3125, 0
    %v3134 = vunpack.c.l.b16 %v3120
    %v3135 = vunpack.c.l.b16 %v3121
    %v3136 = vunpack.c.l.b16 %v3122
    %v3137 = vunpack.c.l.b16 %v3123
    %v3138 = vpack.c.b16 %v3135, %v3134
    %v3139 = vpack.c.b16 %v3137, %v3136
    %v3143 = vsel %vm581, %v3126, 0
    %3145 = vmatpush.bf16.msra.mxu0 0
    %3146 = vmatpush.bf16.msra.mxu0 0
    %3147 = vmatpush.bf16.msra.mxu0 0
    %3148 = vmatpush.bf16.msra.mxu0 0
    %3149 = vmatpush.bf16.msra.mxu0 0
    %3150 = vmatpush.bf16.msra.mxu0 0
    %3151 = vmatpush.bf16.msra.mxu0 %v3139
    %3152 = vmatpush.bf16.msra.mxu0 %v3138
    %3153 = vmatmul.bf16.gmra.mxu0 %v3143
    %v3154 = vpop.f32.mrf.mxu0
    %v3155 = vadd.f32 %v3128, %v3154
    %v3156 = vpop.f32.mrf.mxu0
    %v3157 = vadd.f32 %v3128, %v3156
    %3158 = vdwg.mxu0
    %s3159 = scalar_lea.vmem [#allocation12], 272
    %v3160 = vld [vmem:[%s3159] sm:$0xf]
    %v3161 = vld [vmem:[%s3159 + $0x4] sm:$0xf]
    %v3162 = vld [vmem:[%s3159 + $0x8] sm:$0xf]
    %v3163 = vld [vmem:[%s3159 + $0xc] sm:$0xf]
    %s3164 = scalar_lea.vmem [#allocation18], 17
    %v3165 = vld [vmem:[%s3164] sm:$0x1]
    %v3166 = vpack.c.bf16 %v2374, %v2373
    %v3168 = vperm.slane %v3165, 0
    %v3174 = vunpack.c.l.b16 %v3160
    %v3175 = vunpack.c.l.b16 %v3161
    %v3176 = vunpack.c.l.b16 %v3162
    %v3177 = vunpack.c.l.b16 %v3163
    %v3178 = vpack.c.b16 %v3175, %v3174
    %v3179 = vpack.c.b16 %v3177, %v3176
    %v3183 = vsel %vm581, %v3166, 0
    %3185 = vmatpush.bf16.msra.mxu0 0
    %3186 = vmatpush.bf16.msra.mxu0 0
    %3187 = vmatpush.bf16.msra.mxu0 0
    %3188 = vmatpush.bf16.msra.mxu0 0
    %3189 = vmatpush.bf16.msra.mxu0 0
    %3190 = vmatpush.bf16.msra.mxu0 0
    %3191 = vmatpush.bf16.msra.mxu0 %v3179
    %3192 = vmatpush.bf16.msra.mxu0 %v3178
    %3193 = vmatmul.bf16.gmra.mxu0 %v3183
    %v3194 = vpop.f32.mrf.mxu0
    %v3195 = vadd.f32 %v3168, %v3194
    %v3196 = vpop.f32.mrf.mxu0
    %v3197 = vadd.f32 %v3168, %v3196
    %3198 = vdwg.mxu0
    %s3199 = scalar_lea.vmem [#allocation12], 288
    %v3200 = vld [vmem:[%s3199] sm:$0xf]
    %v3201 = vld [vmem:[%s3199 + $0x4] sm:$0xf]
    %v3202 = vld [vmem:[%s3199 + $0x8] sm:$0xf]
    %v3203 = vld [vmem:[%s3199 + $0xc] sm:$0xf]
    %s3204 = scalar_lea.vmem [#allocation18], 18
    %v3205 = vld [vmem:[%s3204] sm:$0x1]
    %v3207 = vperm.slane %v3205, 0
    %v3213 = vunpack.c.l.b16 %v3200
    %v3214 = vunpack.c.l.b16 %v3201
    %v3215 = vunpack.c.l.b16 %v3202
    %v3216 = vunpack.c.l.b16 %v3203
    %v3217 = vpack.c.b16 %v3214, %v3213
    %v3218 = vpack.c.b16 %v3216, %v3215
    %3221 = vmatpush.bf16.msra.mxu0 0
    %3222 = vmatpush.bf16.msra.mxu0 0
    %3223 = vmatpush.bf16.msra.mxu0 0
    %3224 = vmatpush.bf16.msra.mxu0 0
    %3225 = vmatpush.bf16.msra.mxu0 0
    %3226 = vmatpush.bf16.msra.mxu0 0
    %3227 = vmatpush.bf16.msra.mxu0 %v3218
    %3228 = vmatpush.bf16.msra.mxu0 %v3217
    %3229 = vmatmul.bf16.gmra.mxu0 %v3183
    %v3230 = vpop.f32.mrf.mxu0
    %v3231 = vadd.f32 %v3207, %v3230
    %v3232 = vpop.f32.mrf.mxu0
    %v3233 = vadd.f32 %v3207, %v3232
    %3234 = vdwg.mxu0
    %3236 = vrot.lane.b32.xlu0 %v3155, 120
    %v3237 = vpop.permute.xlu0 %3236
    %3239 = vrot.lane.b32.xlu0 %v3155, 112
    %v3240 = vpop.permute.xlu0 %3239
    %3242 = vrot.lane.b32.xlu0 %v3155, 104
    %v3243 = vpop.permute.xlu0 %3242
    %3246 = vrot.lane.b32.xlu0 %v3157, 120
    %v3247 = vpop.permute.xlu0 %3246
    %3249 = vrot.lane.b32.xlu0 %v3157, 112
    %v3250 = vpop.permute.xlu0 %3249
    %3252 = vrot.lane.b32.xlu0 %v3157, 104
    %v3253 = vpop.permute.xlu0 %3252
    %3256 = vrot.lane.b32.xlu0 %v3195, 120
    %v3257 = vpop.permute.xlu0 %3256
    %3259 = vrot.lane.b32.xlu0 %v3195, 112
    %v3260 = vpop.permute.xlu0 %3259
    %3262 = vrot.lane.b32.xlu0 %v3195, 104
    %v3263 = vpop.permute.xlu0 %3262
    %3266 = vrot.lane.b32.xlu0 %v3197, 120
    %v3267 = vpop.permute.xlu0 %3266
    %3269 = vrot.lane.b32.xlu0 %v3197, 112
    %v3270 = vpop.permute.xlu0 %3269
    %3272 = vrot.lane.b32.xlu0 %v3197, 104
    %v3273 = vpop.permute.xlu0 %3272
    %3276 = vrot.lane.b32.xlu0 %v3231, 120
    %v3277 = vpop.permute.xlu0 %3276
    %3279 = vrot.lane.b32.xlu0 %v3231, 112
    %v3280 = vpop.permute.xlu0 %3279
    %3282 = vrot.lane.b32.xlu0 %v3231, 104
    %v3283 = vpop.permute.xlu0 %3282
    %3286 = vrot.lane.b32.xlu0 %v3233, 120
    %v3287 = vpop.permute.xlu0 %3286
    %3289 = vrot.lane.b32.xlu0 %v3233, 112
    %v3290 = vpop.permute.xlu0 %3289
    %3292 = vrot.lane.b32.xlu0 %v3233, 104
    %v3293 = vpop.permute.xlu0 %3292
    %v3295 = vpack.c.bf16 %v3155, %v3155
    %v3296 = vpack.c.bf16 %v3237, %v3237
    %v3297 = vpack.c.bf16 %v3240, %v3240
    %v3298 = vpack.c.bf16 %v3243, %v3243
    %v3299 = vpack.c.bf16 %v3157, %v3157
    %v3300 = vpack.c.bf16 %v3247, %v3247
    %v3301 = vpack.c.bf16 %v3250, %v3250
    %v3302 = vpack.c.bf16 %v3253, %v3253
    %v3303 = vpack.c.bf16 %v3195, %v3195
    %v3304 = vpack.c.bf16 %v3257, %v3257
    %v3305 = vpack.c.bf16 %v3260, %v3260
    %v3306 = vpack.c.bf16 %v3263, %v3263
    %v3307 = vpack.c.bf16 %v3197, %v3197
    %v3308 = vpack.c.bf16 %v3267, %v3267
    %v3309 = vpack.c.bf16 %v3270, %v3270
    %v3310 = vpack.c.bf16 %v3273, %v3273
    %v3312 = vsel %vm747, %v3295, 0
    %v3315 = vsel %vm747, %v3303, 0
    %3317 = vmatpush.bf16.xpose.msra.mxu0 0
    %3318 = vmatpush.bf16.xpose.msra.mxu0 0
    %3319 = vmatpush.bf16.xpose.msra.mxu0 0
    %3320 = vmatpush.bf16.xpose.msra.mxu0 0
    %3321 = vmatpush.bf16.xpose.msra.mxu0 0
    %3322 = vmatpush.bf16.xpose.msra.mxu0 0
    %3323 = vmatpush.bf16.xpose.msra.mxu0 0
    %3324 = vmatpush.bf16.xpose.msra.mxu0 %v3315
    %3325 = vmatmul.bf16.gmra.mxu0 %v3312
    %v3326 = vpop.f32.mrf.mxu0
    %v3327 = vadd.f32 0.0, %v3326
    %v3328 = vpop.f32.mrf.mxu0
    %3329 = vdwg.mxu0
    %v3331 = vsel %vm747, %v3296, 0
    %v3334 = vsel %vm747, %v3304, 0
    %3336 = vmatpush.bf16.xpose.msra.mxu0 0
    %3337 = vmatpush.bf16.xpose.msra.mxu0 0
    %3338 = vmatpush.bf16.xpose.msra.mxu0 0
    %3339 = vmatpush.bf16.xpose.msra.mxu0 0
    %3340 = vmatpush.bf16.xpose.msra.mxu0 0
    %3341 = vmatpush.bf16.xpose.msra.mxu0 0
    %3342 = vmatpush.bf16.xpose.msra.mxu0 0
    %3343 = vmatpush.bf16.xpose.msra.mxu0 %v3334
    %3344 = vmatmul.bf16.gmra.mxu0 %v3331
    %v3345 = vpop.f32.mrf.mxu0
    %v3346 = vadd.f32 0.0, %v3345
    %v3347 = vpop.f32.mrf.mxu0
    %3348 = vdwg.mxu0
    %v3350 = vsel %vm747, %v3297, 0
    %v3353 = vsel %vm747, %v3305, 0
    %3355 = vmatpush.bf16.xpose.msra.mxu0 0
    %3356 = vmatpush.bf16.xpose.msra.mxu0 0
    %3357 = vmatpush.bf16.xpose.msra.mxu0 0
    %3358 = vmatpush.bf16.xpose.msra.mxu0 0
    %3359 = vmatpush.bf16.xpose.msra.mxu0 0
    %3360 = vmatpush.bf16.xpose.msra.mxu0 0
    %3361 = vmatpush.bf16.xpose.msra.mxu0 0
    %3362 = vmatpush.bf16.xpose.msra.mxu0 %v3353
    %3363 = vmatmul.bf16.gmra.mxu0 %v3350
    %v3364 = vpop.f32.mrf.mxu0
    %v3365 = vadd.f32 0.0, %v3364
    %v3366 = vpop.f32.mrf.mxu0
    %3367 = vdwg.mxu0
    %v3369 = vsel %vm747, %v3298, 0
    %v3372 = vsel %vm747, %v3306, 0
    %3374 = vmatpush.bf16.xpose.msra.mxu0 0
    %3375 = vmatpush.bf16.xpose.msra.mxu0 0
    %3376 = vmatpush.bf16.xpose.msra.mxu0 0
    %3377 = vmatpush.bf16.xpose.msra.mxu0 0
    %3378 = vmatpush.bf16.xpose.msra.mxu0 0
    %3379 = vmatpush.bf16.xpose.msra.mxu0 0
    %3380 = vmatpush.bf16.xpose.msra.mxu0 0
    %3381 = vmatpush.bf16.xpose.msra.mxu0 %v3372
    %3382 = vmatmul.bf16.gmra.mxu0 %v3369
    %v3383 = vpop.f32.mrf.mxu0
    %v3384 = vadd.f32 0.0, %v3383
    %v3385 = vpop.f32.mrf.mxu0
    %3386 = vdwg.mxu0
    %v3388 = vsel %vm747, %v3299, 0
    %v3391 = vsel %vm747, %v3307, 0
    %3393 = vmatpush.bf16.xpose.msra.mxu0 0
    %3394 = vmatpush.bf16.xpose.msra.mxu0 0
    %3395 = vmatpush.bf16.xpose.msra.mxu0 0
    %3396 = vmatpush.bf16.xpose.msra.mxu0 0
    %3397 = vmatpush.bf16.xpose.msra.mxu0 0
    %3398 = vmatpush.bf16.xpose.msra.mxu0 0
    %3399 = vmatpush.bf16.xpose.msra.mxu0 0
    %3400 = vmatpush.bf16.xpose.msra.mxu0 %v3391
    %3401 = vmatmul.bf16.gmra.mxu0 %v3388
    %v3402 = vpop.f32.mrf.mxu0
    %v3403 = vadd.f32 0.0, %v3402
    %v3404 = vpop.f32.mrf.mxu0
    %3405 = vdwg.mxu0
    %v3407 = vsel %vm747, %v3300, 0
    %v3410 = vsel %vm747, %v3308, 0
    %3412 = vmatpush.bf16.xpose.msra.mxu0 0
    %3413 = vmatpush.bf16.xpose.msra.mxu0 0
    %3414 = vmatpush.bf16.xpose.msra.mxu0 0
    %3415 = vmatpush.bf16.xpose.msra.mxu0 0
    %3416 = vmatpush.bf16.xpose.msra.mxu0 0
    %3417 = vmatpush.bf16.xpose.msra.mxu0 0
    %3418 = vmatpush.bf16.xpose.msra.mxu0 0
    %3419 = vmatpush.bf16.xpose.msra.mxu0 %v3410
    %3420 = vmatmul.bf16.gmra.mxu0 %v3407
    %v3421 = vpop.f32.mrf.mxu0
    %v3422 = vadd.f32 0.0, %v3421
    %v3423 = vpop.f32.mrf.mxu0
    %3424 = vdwg.mxu0
    %v3426 = vsel %vm747, %v3301, 0
    %v3429 = vsel %vm747, %v3309, 0
    %3431 = vmatpush.bf16.xpose.msra.mxu0 0
    %3432 = vmatpush.bf16.xpose.msra.mxu0 0
    %3433 = vmatpush.bf16.xpose.msra.mxu0 0
    %3434 = vmatpush.bf16.xpose.msra.mxu0 0
    %3435 = vmatpush.bf16.xpose.msra.mxu0 0
    %3436 = vmatpush.bf16.xpose.msra.mxu0 0
    %3437 = vmatpush.bf16.xpose.msra.mxu0 0
    %3438 = vmatpush.bf16.xpose.msra.mxu0 %v3429
    %3439 = vmatmul.bf16.gmra.mxu0 %v3426
    %v3440 = vpop.f32.mrf.mxu0
    %v3441 = vadd.f32 0.0, %v3440
    %v3442 = vpop.f32.mrf.mxu0
    %3443 = vdwg.mxu0
    %v3445 = vsel %vm747, %v3302, 0
    %v3448 = vsel %vm747, %v3310, 0
    %3450 = vmatpush.bf16.xpose.msra.mxu0 0
    %3451 = vmatpush.bf16.xpose.msra.mxu0 0
    %3452 = vmatpush.bf16.xpose.msra.mxu0 0
    %3453 = vmatpush.bf16.xpose.msra.mxu0 0
    %3454 = vmatpush.bf16.xpose.msra.mxu0 0
    %3455 = vmatpush.bf16.xpose.msra.mxu0 0
    %3456 = vmatpush.bf16.xpose.msra.mxu0 0
    %3457 = vmatpush.bf16.xpose.msra.mxu0 %v3448
    %3458 = vmatmul.bf16.gmra.mxu0 %v3445
    %v3459 = vpop.f32.mrf.mxu0
    %v3460 = vadd.f32 0.0, %v3459
    %v3461 = vpop.f32.mrf.mxu0
    %3462 = vdwg.mxu0
    %v3463 = vmul.f32 %v3327, 0.35355338
    %v3464 = vmul.f32 %v3346, 0.35355338
    %v3465 = vmul.f32 %v3365, 0.35355338
    %v3466 = vmul.f32 %v3384, 0.35355338
    %v3467 = vmul.f32 %v3403, 0.35355338
    %v3468 = vmul.f32 %v3422, 0.35355338
    %v3469 = vmul.f32 %v3441, 0.35355338
    %v3470 = vmul.f32 %v3460, 0.35355338
    %v3471 = vsel %vm914, %v3463, -1e+09
    %v3472 = vsel %vm914, %v3464, -1e+09
    %v3473 = vsel %vm914, %v3465, -1e+09
    %v3474 = vsel %vm914, %v3466, -1e+09
    %v3475 = vsel %vm915, %v3467, -1e+09
    %v3476 = vsel %vm915, %v3468, -1e+09
    %v3477 = vsel %vm915, %v3469, -1e+09
    %v3478 = vsel %vm915, %v3470, -1e+09
    %v3479 = vsel %vm747, %v3471, -inf
    %3480 = vmax.xlane.f32.xlu0 %v3479
    %v3481 = vpop.xlane.xlu0 %3480
    %v3482 = vsel %vm747, %v3472, -inf
    %3483 = vmax.xlane.f32.xlu0 %v3482
    %v3484 = vpop.xlane.xlu0 %3483
    %v3485 = vsel %vm747, %v3473, -inf
    %3486 = vmax.xlane.f32.xlu0 %v3485
    %v3487 = vpop.xlane.xlu0 %3486
    %v3488 = vsel %vm747, %v3474, -inf
    %3489 = vmax.xlane.f32.xlu0 %v3488
    %v3490 = vpop.xlane.xlu0 %3489
    %v3491 = vsel %vm747, %v3475, -inf
    %3492 = vmax.xlane.f32.xlu0 %v3491
    %v3493 = vpop.xlane.xlu0 %3492
    %v3494 = vsel %vm747, %v3476, -inf
    %3495 = vmax.xlane.f32.xlu0 %v3494
    %v3496 = vpop.xlane.xlu0 %3495
    %v3497 = vsel %vm747, %v3477, -inf
    %3498 = vmax.xlane.f32.xlu0 %v3497
    %v3499 = vpop.xlane.xlu0 %3498
    %v3500 = vsel %vm747, %v3478, -inf
    %3501 = vmax.xlane.f32.xlu0 %v3500
    %v3502 = vpop.xlane.xlu0 %3501
    %v3503 = vsub.f32 %v3471, %v3481
    %v3504 = vsub.f32 %v3472, %v3484
    %v3505 = vsub.f32 %v3473, %v3487
    %v3506 = vsub.f32 %v3474, %v3490
    %v3507 = vsub.f32 %v3475, %v3493
    %v3508 = vsub.f32 %v3476, %v3496
    %v3509 = vsub.f32 %v3477, %v3499
    %v3510 = vsub.f32 %v3478, %v3502
    %v3511 = vmul.f32 %v3503, 1.442695
    %v3512 = vpow.pop %v3511
    %v3513 = vmul.f32 %v3504, 1.442695
    %v3514 = vpow.pop %v3513
    %v3515 = vmul.f32 %v3505, 1.442695
    %v3516 = vpow.pop %v3515
    %v3517 = vmul.f32 %v3506, 1.442695
    %v3518 = vpow.pop %v3517
    %v3519 = vmul.f32 %v3507, 1.442695
    %v3520 = vpow.pop %v3519
    %v3521 = vmul.f32 %v3508, 1.442695
    %v3522 = vpow.pop %v3521
    %v3523 = vmul.f32 %v3509, 1.442695
    %v3524 = vpow.pop %v3523
    %v3525 = vmul.f32 %v3510, 1.442695
    %v3526 = vpow.pop %v3525
    %v3527 = vsel %vm747, %v3512, 0.0
    %3528 = vadd.xlane.f32.xlu0 %v3527
    %v3529 = vpop.xlane.xlu0 %3528
    %v3530 = vsel %vm747, %v3514, 0.0
    %3531 = vadd.xlane.f32.xlu0 %v3530
    %v3532 = vpop.xlane.xlu0 %3531
    %v3533 = vsel %vm747, %v3516, 0.0
    %3534 = vadd.xlane.f32.xlu0 %v3533
    %v3535 = vpop.xlane.xlu0 %3534
    %v3536 = vsel %vm747, %v3518, 0.0
    %3537 = vadd.xlane.f32.xlu0 %v3536
    %v3538 = vpop.xlane.xlu0 %3537
    %v3539 = vsel %vm747, %v3520, 0.0
    %3540 = vadd.xlane.f32.xlu0 %v3539
    %v3541 = vpop.xlane.xlu0 %3540
    %v3542 = vsel %vm747, %v3522, 0.0
    %3543 = vadd.xlane.f32.xlu0 %v3542
    %v3544 = vpop.xlane.xlu0 %3543
    %v3545 = vsel %vm747, %v3524, 0.0
    %3546 = vadd.xlane.f32.xlu0 %v3545
    %v3547 = vpop.xlane.xlu0 %3546
    %v3548 = vsel %vm747, %v3526, 0.0
    %3549 = vadd.xlane.f32.xlu0 %v3548
    %v3550 = vpop.xlane.xlu0 %3549
    %v3551 = vrcp.pop %v3529
    %v3552 = vrcp.pop %v3532
    %v3553 = vrcp.pop %v3535
    %v3554 = vrcp.pop %v3538
    %v3555 = vrcp.pop %v3541
    %v3556 = vrcp.pop %v3544
    %v3557 = vrcp.pop %v3547
    %v3558 = vrcp.pop %v3550
    %v3559 = vmul.f32 %v3512, %v3551
    %v3560 = vmul.f32 %v3514, %v3552
    %v3561 = vmul.f32 %v3516, %v3553
    %v3562 = vmul.f32 %v3518, %v3554
    %v3563 = vmul.f32 %v3520, %v3555
    %v3564 = vmul.f32 %v3522, %v3556
    %v3565 = vmul.f32 %v3524, %v3557
    %v3566 = vmul.f32 %v3526, %v3558
    %v3567 = vpack.c.bf16 %v3559, %v3559
    %v3568 = vpack.c.bf16 %v3560, %v3560
    %v3569 = vpack.c.bf16 %v3561, %v3561
    %v3570 = vpack.c.bf16 %v3562, %v3562
    %v3571 = vpack.c.bf16 %v3563, %v3563
    %v3572 = vpack.c.bf16 %v3564, %v3564
    %v3573 = vpack.c.bf16 %v3565, %v3565
    %v3574 = vpack.c.bf16 %v3566, %v3566
    %v3575 = vpack.c.bf16 %v3231, %v3231
    %v3576 = vpack.c.bf16 %v3277, %v3277
    %v3577 = vpack.c.bf16 %v3280, %v3280
    %v3578 = vpack.c.bf16 %v3283, %v3283
    %v3579 = vpack.c.bf16 %v3233, %v3233
    %v3580 = vpack.c.bf16 %v3287, %v3287
    %v3581 = vpack.c.bf16 %v3290, %v3290
    %v3582 = vpack.c.bf16 %v3293, %v3293
    %v3584 = vsel %vm747, %v3567, 0
    %v3587 = vsel %vm281, %v3575, 0
    %3589 = vmatpush.bf16.msra.mxu0 0
    %3590 = vmatpush.bf16.msra.mxu0 0
    %3591 = vmatpush.bf16.msra.mxu0 0
    %3592 = vmatpush.bf16.msra.mxu0 0
    %3593 = vmatpush.bf16.msra.mxu0 0
    %3594 = vmatpush.bf16.msra.mxu0 0
    %3595 = vmatpush.bf16.msra.mxu0 0
    %3596 = vmatpush.bf16.msra.mxu0 %v3587
    %3597 = vmatmul.bf16.gmra.mxu0 %v3584
    %v3598 = vpop.f32.mrf.mxu0
    %v3599 = vadd.f32 0.0, %v3598
    %v3600 = vpop.f32.mrf.mxu0
    %3601 = vdwg.mxu0
    %v3603 = vsel %vm747, %v3568, 0
    %v3606 = vsel %vm281, %v3576, 0
    %3608 = vmatpush.bf16.msra.mxu0 0
    %3609 = vmatpush.bf16.msra.mxu0 0
    %3610 = vmatpush.bf16.msra.mxu0 0
    %3611 = vmatpush.bf16.msra.mxu0 0
    %3612 = vmatpush.bf16.msra.mxu0 0
    %3613 = vmatpush.bf16.msra.mxu0 0
    %3614 = vmatpush.bf16.msra.mxu0 0
    %3615 = vmatpush.bf16.msra.mxu0 %v3606
    %3616 = vmatmul.bf16.gmra.mxu0 %v3603
    %v3617 = vpop.f32.mrf.mxu0
    %v3618 = vadd.f32 0.0, %v3617
    %v3619 = vpop.f32.mrf.mxu0
    %3620 = vdwg.mxu0
    %v3622 = vsel %vm747, %v3569, 0
    %v3625 = vsel %vm281, %v3577, 0
    %3627 = vmatpush.bf16.msra.mxu0 0
    %3628 = vmatpush.bf16.msra.mxu0 0
    %3629 = vmatpush.bf16.msra.mxu0 0
    %3630 = vmatpush.bf16.msra.mxu0 0
    %3631 = vmatpush.bf16.msra.mxu0 0
    %3632 = vmatpush.bf16.msra.mxu0 0
    %3633 = vmatpush.bf16.msra.mxu0 0
    %3634 = vmatpush.bf16.msra.mxu0 %v3625
    %3635 = vmatmul.bf16.gmra.mxu0 %v3622
    %v3636 = vpop.f32.mrf.mxu0
    %v3637 = vadd.f32 0.0, %v3636
    %v3638 = vpop.f32.mrf.mxu0
    %3639 = vdwg.mxu0
    %v3641 = vsel %vm747, %v3570, 0
    %v3644 = vsel %vm281, %v3578, 0
    %3646 = vmatpush.bf16.msra.mxu0 0
    %3647 = vmatpush.bf16.msra.mxu0 0
    %3648 = vmatpush.bf16.msra.mxu0 0
    %3649 = vmatpush.bf16.msra.mxu0 0
    %3650 = vmatpush.bf16.msra.mxu0 0
    %3651 = vmatpush.bf16.msra.mxu0 0
    %3652 = vmatpush.bf16.msra.mxu0 0
    %3653 = vmatpush.bf16.msra.mxu0 %v3644
    %3654 = vmatmul.bf16.gmra.mxu0 %v3641
    %v3655 = vpop.f32.mrf.mxu0
    %v3656 = vadd.f32 0.0, %v3655
    %v3657 = vpop.f32.mrf.mxu0
    %3658 = vdwg.mxu0
    %v3660 = vsel %vm747, %v3571, 0
    %v3663 = vsel %vm281, %v3579, 0
    %3665 = vmatpush.bf16.msra.mxu0 0
    %3666 = vmatpush.bf16.msra.mxu0 0
    %3667 = vmatpush.bf16.msra.mxu0 0
    %3668 = vmatpush.bf16.msra.mxu0 0
    %3669 = vmatpush.bf16.msra.mxu0 0
    %3670 = vmatpush.bf16.msra.mxu0 0
    %3671 = vmatpush.bf16.msra.mxu0 0
    %3672 = vmatpush.bf16.msra.mxu0 %v3663
    %3673 = vmatmul.bf16.gmra.mxu0 %v3660
    %v3674 = vpop.f32.mrf.mxu0
    %v3675 = vadd.f32 0.0, %v3674
    %v3676 = vpop.f32.mrf.mxu0
    %3677 = vdwg.mxu0
    %v3679 = vsel %vm747, %v3572, 0
    %v3682 = vsel %vm281, %v3580, 0
    %3684 = vmatpush.bf16.msra.mxu0 0
    %3685 = vmatpush.bf16.msra.mxu0 0
    %3686 = vmatpush.bf16.msra.mxu0 0
    %3687 = vmatpush.bf16.msra.mxu0 0
    %3688 = vmatpush.bf16.msra.mxu0 0
    %3689 = vmatpush.bf16.msra.mxu0 0
    %3690 = vmatpush.bf16.msra.mxu0 0
    %3691 = vmatpush.bf16.msra.mxu0 %v3682
    %3692 = vmatmul.bf16.gmra.mxu0 %v3679
    %v3693 = vpop.f32.mrf.mxu0
    %v3694 = vadd.f32 0.0, %v3693
    %v3695 = vpop.f32.mrf.mxu0
    %3696 = vdwg.mxu0
    %v3698 = vsel %vm747, %v3573, 0
    %v3701 = vsel %vm281, %v3581, 0
    %3703 = vmatpush.bf16.msra.mxu0 0
    %3704 = vmatpush.bf16.msra.mxu0 0
    %3705 = vmatpush.bf16.msra.mxu0 0
    %3706 = vmatpush.bf16.msra.mxu0 0
    %3707 = vmatpush.bf16.msra.mxu0 0
    %3708 = vmatpush.bf16.msra.mxu0 0
    %3709 = vmatpush.bf16.msra.mxu0 0
    %3710 = vmatpush.bf16.msra.mxu0 %v3701
    %3711 = vmatmul.bf16.gmra.mxu0 %v3698
    %v3712 = vpop.f32.mrf.mxu0
    %v3713 = vadd.f32 0.0, %v3712
    %v3714 = vpop.f32.mrf.mxu0
    %3715 = vdwg.mxu0
    %v3717 = vsel %vm747, %v3574, 0
    %v3720 = vsel %vm281, %v3582, 0
    %3722 = vmatpush.bf16.msra.mxu0 0
    %3723 = vmatpush.bf16.msra.mxu0 0
    %3724 = vmatpush.bf16.msra.mxu0 0
    %3725 = vmatpush.bf16.msra.mxu0 0
    %3726 = vmatpush.bf16.msra.mxu0 0
    %3727 = vmatpush.bf16.msra.mxu0 0
    %3728 = vmatpush.bf16.msra.mxu0 0
    %3729 = vmatpush.bf16.msra.mxu0 %v3720
    %3730 = vmatmul.bf16.gmra.mxu0 %v3717
    %v3731 = vpop.f32.mrf.mxu0
    %v3732 = vadd.f32 0.0, %v3731
    %v3733 = vpop.f32.mrf.mxu0
    %3734 = vdwg.mxu0
    %3736 = vrot.lane.b32.xlu0 %v3618, 8
    %v3737 = vpop.permute.xlu0 %3736
    %3740 = vrot.lane.b32.xlu0 %v3637, 16
    %v3741 = vpop.permute.xlu0 %3740
    %3744 = vrot.lane.b32.xlu0 %v3656, 24
    %v3745 = vpop.permute.xlu0 %3744
    %v3747 = vsel %vm747, %v3599, %v3737
    %v3748 = vsel %vm1193, %v3747, %v3741
    %v3749 = vsel %vm1195, %v3748, %v3745
    %3751 = vrot.lane.b32.xlu0 %v3694, 8
    %v3752 = vpop.permute.xlu0 %3751
    %3755 = vrot.lane.b32.xlu0 %v3713, 16
    %v3756 = vpop.permute.xlu0 %3755
    %3759 = vrot.lane.b32.xlu0 %v3732, 24
    %v3760 = vpop.permute.xlu0 %3759
    %v3762 = vsel %vm747, %v3675, %v3752
    %v3763 = vsel %vm1193, %v3762, %v3756
    %v3764 = vsel %vm1195, %v3763, %v3760
    %s3765 = scalar_lea.vmem [#allocation12], 304
    %v3766 = vld [vmem:[%s3765] sm:$0xf]
    %v3767 = vld [vmem:[%s3765 + $0x4] sm:$0xf]
    %v3768 = vld [vmem:[%s3765 + $0x8] sm:$0xf]
    %v3769 = vld [vmem:[%s3765 + $0xc] sm:$0xf]
    %s3770 = scalar_lea.vmem [#allocation18], 19
    %v3771 = vld [vmem:[%s3770] sm:$0x1]
    %v3772 = vpack.c.bf16 %v3764, %v3749
    %v3774 = vperm.slane %v3771, 0
    %v3780 = vunpack.c.l.b16 %v3766
    %v3781 = vunpack.c.l.b16 %v3767
    %v3782 = vunpack.c.l.b16 %v3768
    %v3783 = vunpack.c.l.b16 %v3769
    %v3784 = vpack.c.b16 %v3781, %v3780
    %v3785 = vpack.c.b16 %v3783, %v3782
    %v3789 = vsel %vm581, %v3772, 0
    %3791 = vmatpush.bf16.msra.mxu0 0
    %3792 = vmatpush.bf16.msra.mxu0 0
    %3793 = vmatpush.bf16.msra.mxu0 0
    %3794 = vmatpush.bf16.msra.mxu0 0
    %3795 = vmatpush.bf16.msra.mxu0 0
    %3796 = vmatpush.bf16.msra.mxu0 0
    %3797 = vmatpush.bf16.msra.mxu0 %v3785
    %3798 = vmatpush.bf16.msra.mxu0 %v3784
    %3799 = vmatmul.bf16.gmra.mxu0 %v3789
    %v3800 = vpop.f32.mrf.mxu0
    %v3801 = vadd.f32 %v3774, %v3800
    %v3802 = vpop.f32.mrf.mxu0
    %v3803 = vadd.f32 %v3774, %v3802
    %3804 = vdwg.mxu0
    %v3805 = vadd.f32 %v3117, %v3801
    %v3806 = vadd.f32 %v3118, %v3803
    %s3807 = scalar_lea.vmem [#allocation18], 33
    %v3808 = vld [vmem:[%s3807] sm:$0x1]
    %s3809 = scalar_lea.vmem [#allocation18], 43
    %v3810 = vld [vmem:[%s3809] sm:$0x1]
    %v3811 = vsel %vm581, %v3805, 0.0
    %3812 = vadd.xlane.f32.xlu0 %v3811
    %v3813 = vpop.xlane.xlu0 %3812
    %v3814 = vsel %vm581, %v3806, 0.0
    %3815 = vadd.xlane.f32.xlu0 %v3814
    %v3816 = vpop.xlane.xlu0 %3815
    %v3817 = vmul.f32 %v3813, %v1270
    %v3818 = vmul.f32 %v3816, %v1270
    %v3819 = vsub.f32 %v3805, %v3817
    %v3820 = vsub.f32 %v3806, %v3818
    %v3821 = vmul.f32 %v3819, %v3819
    %v3822 = vmul.f32 %v3820, %v3820
    %v3823 = vsel %vm581, %v3821, 0.0
    %3824 = vadd.xlane.f32.xlu0 %v3823
    %v3825 = vpop.xlane.xlu0 %3824
    %v3826 = vsel %vm581, %v3822, 0.0
    %3827 = vadd.xlane.f32.xlu0 %v3826
    %v3828 = vpop.xlane.xlu0 %3827
    %v3829 = vmul.f32 %v3825, %v1270
    %v3830 = vmul.f32 %v3828, %v1270
    %v3831 = vadd.f32 %v3829, 1e-05
    %v3832 = vadd.f32 %v3830, 1e-05
    %v3833 = vrsqrt.pop %v3831
    %v3834 = vmul.f32 %v3833, %v3831
    %v3835 = vmul.f32 %v3834, %v3833
    %v3836 = vmul.f32 0.5, %v3835
    %v3837 = vsub.f32 1.5, %v3836
    %v3838 = vmul.f32 %v3833, %v3837
    %vm3839 = vweird.f32 %v3831
    %vm3840 = vweird.f32 %v3833
    %vm3841 = vmor %vm3839, %vm3840
    %v3842 = vsel %vm3841, %v3833, %v3838
    %v3843 = vrsqrt.pop %v3832
    %v3844 = vmul.f32 %v3843, %v3832
    %v3845 = vmul.f32 %v3844, %v3843
    %v3846 = vmul.f32 0.5, %v3845
    %v3847 = vsub.f32 1.5, %v3846
    %v3848 = vmul.f32 %v3843, %v3847
    %vm3849 = vweird.f32 %v3832
    %vm3850 = vweird.f32 %v3843
    %vm3851 = vmor %vm3849, %vm3850
    %v3852 = vsel %vm3851, %v3843, %v3848
    %v3853 = vmul.f32 %v3819, %v3842
    %v3854 = vmul.f32 %v3820, %v3852
    %v3856 = vperm.slane %v3808, 0
    %v3858 = vmul.f32 %v3853, %v3856
    %v3859 = vmul.f32 %v3854, %v3856
    %v3861 = vperm.slane %v3810, 0
    %v3863 = vadd.f32 %v3858, %v3861
    %v3864 = vadd.f32 %v3859, %v3861
    %s3865 = scalar_lea.vmem [#allocation14], 32
    %v3866 = vld [vmem:[%s3865] sm:$0xf]
    %v3867 = vld [vmem:[%s3865 + $0x4] sm:$0xf]
    %v3868 = vld [vmem:[%s3865 + $0x8] sm:$0xf]
    %v3869 = vld [vmem:[%s3865 + $0xc] sm:$0xf]
    %s3870 = scalar_lea.vmem %s10, 2
    %v3871 = vld [vmem:[%s3870] sm:$0x1]
    %v3872 = vpack.c.bf16 %v3864, %v3863
    %v3874 = vperm.slane %v3871, 0
    %v3880 = vunpack.c.l.b16 %v3866
    %v3881 = vunpack.c.l.b16 %v3867
    %v3882 = vunpack.c.l.b16 %v3868
    %v3883 = vunpack.c.l.b16 %v3869
    %v3884 = vpack.c.b16 %v3881, %v3880
    %v3885 = vpack.c.b16 %v3883, %v3882
    %v3889 = vsel %vm581, %v3872, 0
    %3891 = vmatpush.bf16.msra.mxu0 0
    %3892 = vmatpush.bf16.msra.mxu0 0
    %3893 = vmatpush.bf16.msra.mxu0 0
    %3894 = vmatpush.bf16.msra.mxu0 0
    %3895 = vmatpush.bf16.msra.mxu0 0
    %3896 = vmatpush.bf16.msra.mxu0 0
    %3897 = vmatpush.bf16.msra.mxu0 %v3885
    %3898 = vmatpush.bf16.msra.mxu0 %v3884
    %3899 = vmatmul.bf16.gmra.mxu0 %v3889
    %v3900 = vpop.f32.mrf.mxu0
    %v3901 = vadd.f32 %v3874, %v3900
    %v3902 = vpop.f32.mrf.mxu0
    %v3903 = vadd.f32 %v3874, %v3902
    %3904 = vdwg.mxu0
    %v3905 = vmax.f32 %v3901, 0.0
    %v3906 = vmax.f32 %v3903, 0.0
    %s3907 = scalar_lea.vmem [#allocation15], 64
    %v3908 = vld [vmem:[%s3907] sm:$0xf]
    %v3909 = vld [vmem:[%s3907 + $0x4] sm:$0xf]
    %v3910 = vld [vmem:[%s3907 + $0x8] sm:$0xf]
    %v3911 = vld [vmem:[%s3907 + $0xc] sm:$0xf]
    %v3912 = vld [vmem:[%s3907 + $0x10] sm:$0xf]
    %v3913 = vld [vmem:[%s3907 + $0x14] sm:$0xf]
    %v3914 = vld [vmem:[%s3907 + $0x18] sm:$0xf]
    %v3915 = vld [vmem:[%s3907 + $0x1c] sm:$0xf]
    %s3916 = scalar_lea.vmem [#allocation18], 26
    %v3917 = vld [vmem:[%s3916] sm:$0x1]
    %v3918 = vpack.c.bf16 %v3906, %v3905
    %v3920 = vperm.slane %v3917, 0
    %v3930 = vunpack.c.l.b16 %v3908
    %v3931 = vunpack.c.l.b16 %v3909
    %v3932 = vunpack.c.l.b16 %v3910
    %v3933 = vunpack.c.l.b16 %v3911
    %v3934 = vunpack.c.l.b16 %v3912
    %v3935 = vunpack.c.l.b16 %v3913
    %v3936 = vunpack.c.l.b16 %v3914
    %v3937 = vunpack.c.l.b16 %v3915
    %v3938 = vpack.c.b16 %v3931, %v3930
    %v3939 = vpack.c.b16 %v3933, %v3932
    %v3940 = vpack.c.b16 %v3935, %v3934
    %v3941 = vpack.c.b16 %v3937, %v3936
    %v3947 = vsel %vm1397, %v3918, 0
    %3949 = vmatpush.bf16.msra.mxu0 0
    %3950 = vmatpush.bf16.msra.mxu0 0
    %3951 = vmatpush.bf16.msra.mxu0 0
    %3952 = vmatpush.bf16.msra.mxu0 0
    %3953 = vmatpush.bf16.msra.mxu0 %v3941
    %3954 = vmatpush.bf16.msra.mxu0 %v3940
    %3955 = vmatpush.bf16.msra.mxu0 %v3939
    %3956 = vmatpush.bf16.msra.mxu0 %v3938
    %3957 = vmatmul.bf16.gmra.mxu0 %v3947
    %v3958 = vpop.f32.mrf.mxu0
    %v3959 = vadd.f32 %v3920, %v3958
    %v3960 = vpop.f32.mrf.mxu0
    %v3961 = vadd.f32 %v3920, %v3960
    %3962 = vdwg.mxu0
    %v3963 = vadd.f32 %v3863, %v3959
    %v3964 = vadd.f32 %v3864, %v3961
    %s3965 = scalar_lea.vmem [#allocation18], 34
    %v3966 = vld [vmem:[%s3965] sm:$0x1]
    %s3967 = scalar_lea.vmem [#allocation18], 44
    %v3968 = vld [vmem:[%s3967] sm:$0x1]
    %v3969 = vsel %vm581, %v3963, 0.0
    %3970 = vadd.xlane.f32.xlu0 %v3969
    %v3971 = vpop.xlane.xlu0 %3970
    %v3972 = vsel %vm581, %v3964, 0.0
    %3973 = vadd.xlane.f32.xlu0 %v3972
    %v3974 = vpop.xlane.xlu0 %3973
    %v3975 = vmul.f32 %v3971, %v1270
    %v3976 = vmul.f32 %v3974, %v1270
    %v3977 = vsub.f32 %v3963, %v3975
    %v3978 = vsub.f32 %v3964, %v3976
    %v3979 = vmul.f32 %v3977, %v3977
    %v3980 = vmul.f32 %v3978, %v3978
    %v3981 = vsel %vm581, %v3979, 0.0
    %3982 = vadd.xlane.f32.xlu0 %v3981
    %v3983 = vpop.xlane.xlu0 %3982
    %v3984 = vsel %vm581, %v3980, 0.0
    %3985 = vadd.xlane.f32.xlu0 %v3984
    %v3986 = vpop.xlane.xlu0 %3985
    %v3987 = vmul.f32 %v3983, %v1270
    %v3988 = vmul.f32 %v3986, %v1270
    %v3989 = vadd.f32 %v3987, 1e-05
    %v3990 = vadd.f32 %v3988, 1e-05
    %v3991 = vrsqrt.pop %v3989
    %v3992 = vmul.f32 %v3991, %v3989
    %v3993 = vmul.f32 %v3992, %v3991
    %v3994 = vmul.f32 0.5, %v3993
    %v3995 = vsub.f32 1.5, %v3994
    %v3996 = vmul.f32 %v3991, %v3995
    %vm3997 = vweird.f32 %v3989
    %vm3998 = vweird.f32 %v3991
    %vm3999 = vmor %vm3997, %vm3998
    %v4000 = vsel %vm3999, %v3991, %v3996
    %v4001 = vrsqrt.pop %v3990
    %v4002 = vmul.f32 %v4001, %v3990
    %v4003 = vmul.f32 %v4002, %v4001
    %v4004 = vmul.f32 0.5, %v4003
    %v4005 = vsub.f32 1.5, %v4004
    %v4006 = vmul.f32 %v4001, %v4005
    %vm4007 = vweird.f32 %v3990
    %vm4008 = vweird.f32 %v4001
    %vm4009 = vmor %vm4007, %vm4008
    %v4010 = vsel %vm4009, %v4001, %v4006
    %v4011 = vmul.f32 %v3977, %v4000
    %v4012 = vmul.f32 %v3978, %v4010
    %v4014 = vperm.slane %v3966, 0
    %v4016 = vmul.f32 %v4011, %v4014
    %v4017 = vmul.f32 %v4012, %v4014
    %v4019 = vperm.slane %v3968, 0
    %v4021 = vadd.f32 %v4016, %v4019
    %v4022 = vadd.f32 %v4017, %v4019
    %s4023 = scalar_lea.vmem [#allocation12], 192
    %v4024 = vld [vmem:[%s4023] sm:$0xf]
    %v4025 = vld [vmem:[%s4023 + $0x4] sm:$0xf]
    %v4026 = vld [vmem:[%s4023 + $0x8] sm:$0xf]
    %v4027 = vld [vmem:[%s4023 + $0xc] sm:$0xf]
    %s4028 = scalar_lea.vmem [#allocation18], 12
    %v4029 = vld [vmem:[%s4028] sm:$0x1]
    %v4030 = vpack.c.bf16 %v4022, %v4021
    %v4032 = vperm.slane %v4029, 0
    %v4038 = vunpack.c.l.b16 %v4024
    %v4039 = vunpack.c.l.b16 %v4025
    %v4040 = vunpack.c.l.b16 %v4026
    %v4041 = vunpack.c.l.b16 %v4027
    %v4042 = vpack.c.b16 %v4039, %v4038
    %v4043 = vpack.c.b16 %v4041, %v4040
    %v4047 = vsel %vm581, %v4030, 0
    %4049 = vmatpush.bf16.msra.mxu0 0
    %4050 = vmatpush.bf16.msra.mxu0 0
    %4051 = vmatpush.bf16.msra.mxu0 0
    %4052 = vmatpush.bf16.msra.mxu0 0
    %4053 = vmatpush.bf16.msra.mxu0 0
    %4054 = vmatpush.bf16.msra.mxu0 0
    %4055 = vmatpush.bf16.msra.mxu0 %v4043
    %4056 = vmatpush.bf16.msra.mxu0 %v4042
    %4057 = vmatmul.bf16.gmra.mxu0 %v4047
    %v4058 = vpop.f32.mrf.mxu0
    %v4059 = vadd.f32 %v4032, %v4058
    %v4060 = vpop.f32.mrf.mxu0
    %v4061 = vadd.f32 %v4032, %v4060
    %4062 = vdwg.mxu0
    %s4063 = scalar_lea.vmem [#allocation12], 208
    %v4064 = vld [vmem:[%s4063] sm:$0xf]
    %v4065 = vld [vmem:[%s4063 + $0x4] sm:$0xf]
    %v4066 = vld [vmem:[%s4063 + $0x8] sm:$0xf]
    %v4067 = vld [vmem:[%s4063 + $0xc] sm:$0xf]
    %s4068 = scalar_lea.vmem [#allocation18], 13
    %v4069 = vld [vmem:[%s4068] sm:$0x1]
    %v4071 = vperm.slane %v4069, 0
    %v4077 = vunpack.c.l.b16 %v4064
    %v4078 = vunpack.c.l.b16 %v4065
    %v4079 = vunpack.c.l.b16 %v4066
    %v4080 = vunpack.c.l.b16 %v4067
    %v4081 = vpack.c.b16 %v4078, %v4077
    %v4082 = vpack.c.b16 %v4080, %v4079
    %4085 = vmatpush.bf16.msra.mxu0 0
    %4086 = vmatpush.bf16.msra.mxu0 0
    %4087 = vmatpush.bf16.msra.mxu0 0
    %4088 = vmatpush.bf16.msra.mxu0 0
    %4089 = vmatpush.bf16.msra.mxu0 0
    %4090 = vmatpush.bf16.msra.mxu0 0
    %4091 = vmatpush.bf16.msra.mxu0 %v4082
    %4092 = vmatpush.bf16.msra.mxu0 %v4081
    %4093 = vmatmul.bf16.gmra.mxu0 %v4047
    %v4094 = vpop.f32.mrf.mxu0
    %v4095 = vadd.f32 %v4071, %v4094
    %v4096 = vpop.f32.mrf.mxu0
    %v4097 = vadd.f32 %v4071, %v4096
    %4098 = vdwg.mxu0
    %s4099 = scalar_lea.vmem [#allocation12], 224
    %v4100 = vld [vmem:[%s4099] sm:$0xf]
    %v4101 = vld [vmem:[%s4099 + $0x4] sm:$0xf]
    %v4102 = vld [vmem:[%s4099 + $0x8] sm:$0xf]
    %v4103 = vld [vmem:[%s4099 + $0xc] sm:$0xf]
    %s4104 = scalar_lea.vmem [#allocation18], 14
    %v4105 = vld [vmem:[%s4104] sm:$0x1]
    %v4107 = vperm.slane %v4105, 0
    %v4113 = vunpack.c.l.b16 %v4100
    %v4114 = vunpack.c.l.b16 %v4101
    %v4115 = vunpack.c.l.b16 %v4102
    %v4116 = vunpack.c.l.b16 %v4103
    %v4117 = vpack.c.b16 %v4114, %v4113
    %v4118 = vpack.c.b16 %v4116, %v4115
    %4121 = vmatpush.bf16.msra.mxu0 0
    %4122 = vmatpush.bf16.msra.mxu0 0
    %4123 = vmatpush.bf16.msra.mxu0 0
    %4124 = vmatpush.bf16.msra.mxu0 0
    %4125 = vmatpush.bf16.msra.mxu0 0
    %4126 = vmatpush.bf16.msra.mxu0 0
    %4127 = vmatpush.bf16.msra.mxu0 %v4118
    %4128 = vmatpush.bf16.msra.mxu0 %v4117
    %4129 = vmatmul.bf16.gmra.mxu0 %v4047
    %v4130 = vpop.f32.mrf.mxu0
    %v4131 = vadd.f32 %v4107, %v4130
    %v4132 = vpop.f32.mrf.mxu0
    %v4133 = vadd.f32 %v4107, %v4132
    %4134 = vdwg.mxu0
    %4136 = vrot.lane.b32.xlu0 %v4059, 120
    %v4137 = vpop.permute.xlu0 %4136
    %4139 = vrot.lane.b32.xlu0 %v4059, 112
    %v4140 = vpop.permute.xlu0 %4139
    %4142 = vrot.lane.b32.xlu0 %v4059, 104
    %v4143 = vpop.permute.xlu0 %4142
    %4146 = vrot.lane.b32.xlu0 %v4061, 120
    %v4147 = vpop.permute.xlu0 %4146
    %4149 = vrot.lane.b32.xlu0 %v4061, 112
    %v4150 = vpop.permute.xlu0 %4149
    %4152 = vrot.lane.b32.xlu0 %v4061, 104
    %v4153 = vpop.permute.xlu0 %4152
    %4156 = vrot.lane.b32.xlu0 %v4095, 120
    %v4157 = vpop.permute.xlu0 %4156
    %4159 = vrot.lane.b32.xlu0 %v4095, 112
    %v4160 = vpop.permute.xlu0 %4159
    %4162 = vrot.lane.b32.xlu0 %v4095, 104
    %v4163 = vpop.permute.xlu0 %4162
    %4166 = vrot.lane.b32.xlu0 %v4097, 120
    %v4167 = vpop.permute.xlu0 %4166
    %4169 = vrot.lane.b32.xlu0 %v4097, 112
    %v4170 = vpop.permute.xlu0 %4169
    %4172 = vrot.lane.b32.xlu0 %v4097, 104
    %v4173 = vpop.permute.xlu0 %4172
    %4176 = vrot.lane.b32.xlu0 %v4131, 120
    %v4177 = vpop.permute.xlu0 %4176
    %4179 = vrot.lane.b32.xlu0 %v4131, 112
    %v4180 = vpop.permute.xlu0 %4179
    %4182 = vrot.lane.b32.xlu0 %v4131, 104
    %v4183 = vpop.permute.xlu0 %4182
    %4186 = vrot.lane.b32.xlu0 %v4133, 120
    %v4187 = vpop.permute.xlu0 %4186
    %4189 = vrot.lane.b32.xlu0 %v4133, 112
    %v4190 = vpop.permute.xlu0 %4189
    %4192 = vrot.lane.b32.xlu0 %v4133, 104
    %v4193 = vpop.permute.xlu0 %4192
    %v4195 = vpack.c.bf16 %v4059, %v4059
    %v4196 = vpack.c.bf16 %v4137, %v4137
    %v4197 = vpack.c.bf16 %v4140, %v4140
    %v4198 = vpack.c.bf16 %v4143, %v4143
    %v4199 = vpack.c.bf16 %v4061, %v4061
    %v4200 = vpack.c.bf16 %v4147, %v4147
    %v4201 = vpack.c.bf16 %v4150, %v4150
    %v4202 = vpack.c.bf16 %v4153, %v4153
    %v4203 = vpack.c.bf16 %v4095, %v4095
    %v4204 = vpack.c.bf16 %v4157, %v4157
    %v4205 = vpack.c.bf16 %v4160, %v4160
    %v4206 = vpack.c.bf16 %v4163, %v4163
    %v4207 = vpack.c.bf16 %v4097, %v4097
    %v4208 = vpack.c.bf16 %v4167, %v4167
    %v4209 = vpack.c.bf16 %v4170, %v4170
    %v4210 = vpack.c.bf16 %v4173, %v4173
    %v4212 = vsel %vm747, %v4195, 0
    %v4215 = vsel %vm747, %v4203, 0
    %4217 = vmatpush.bf16.xpose.msra.mxu0 0
    %4218 = vmatpush.bf16.xpose.msra.mxu0 0
    %4219 = vmatpush.bf16.xpose.msra.mxu0 0
    %4220 = vmatpush.bf16.xpose.msra.mxu0 0
    %4221 = vmatpush.bf16.xpose.msra.mxu0 0
    %4222 = vmatpush.bf16.xpose.msra.mxu0 0
    %4223 = vmatpush.bf16.xpose.msra.mxu0 0
    %4224 = vmatpush.bf16.xpose.msra.mxu0 %v4215
    %4225 = vmatmul.bf16.gmra.mxu0 %v4212
    %v4226 = vpop.f32.mrf.mxu0
    %v4227 = vadd.f32 0.0, %v4226
    %v4228 = vpop.f32.mrf.mxu0
    %4229 = vdwg.mxu0
    %v4231 = vsel %vm747, %v4196, 0
    %v4234 = vsel %vm747, %v4204, 0
    %4236 = vmatpush.bf16.xpose.msra.mxu0 0
    %4237 = vmatpush.bf16.xpose.msra.mxu0 0
    %4238 = vmatpush.bf16.xpose.msra.mxu0 0
    %4239 = vmatpush.bf16.xpose.msra.mxu0 0
    %4240 = vmatpush.bf16.xpose.msra.mxu0 0
    %4241 = vmatpush.bf16.xpose.msra.mxu0 0
    %4242 = vmatpush.bf16.xpose.msra.mxu0 0
    %4243 = vmatpush.bf16.xpose.msra.mxu0 %v4234
    %4244 = vmatmul.bf16.gmra.mxu0 %v4231
    %v4245 = vpop.f32.mrf.mxu0
    %v4246 = vadd.f32 0.0, %v4245
    %v4247 = vpop.f32.mrf.mxu0
    %4248 = vdwg.mxu0
    %v4250 = vsel %vm747, %v4197, 0
    %v4253 = vsel %vm747, %v4205, 0
    %4255 = vmatpush.bf16.xpose.msra.mxu0 0
    %4256 = vmatpush.bf16.xpose.msra.mxu0 0
    %4257 = vmatpush.bf16.xpose.msra.mxu0 0
    %4258 = vmatpush.bf16.xpose.msra.mxu0 0
    %4259 = vmatpush.bf16.xpose.msra.mxu0 0
    %4260 = vmatpush.bf16.xpose.msra.mxu0 0
    %4261 = vmatpush.bf16.xpose.msra.mxu0 0
    %4262 = vmatpush.bf16.xpose.msra.mxu0 %v4253
    %4263 = vmatmul.bf16.gmra.mxu0 %v4250
    %v4264 = vpop.f32.mrf.mxu0
    %v4265 = vadd.f32 0.0, %v4264
    %v4266 = vpop.f32.mrf.mxu0
    %4267 = vdwg.mxu0
    %v4269 = vsel %vm747, %v4198, 0
    %v4272 = vsel %vm747, %v4206, 0
    %4274 = vmatpush.bf16.xpose.msra.mxu0 0
    %4275 = vmatpush.bf16.xpose.msra.mxu0 0
    %4276 = vmatpush.bf16.xpose.msra.mxu0 0
    %4277 = vmatpush.bf16.xpose.msra.mxu0 0
    %4278 = vmatpush.bf16.xpose.msra.mxu0 0
    %4279 = vmatpush.bf16.xpose.msra.mxu0 0
    %4280 = vmatpush.bf16.xpose.msra.mxu0 0
    %4281 = vmatpush.bf16.xpose.msra.mxu0 %v4272
    %4282 = vmatmul.bf16.gmra.mxu0 %v4269
    %v4283 = vpop.f32.mrf.mxu0
    %v4284 = vadd.f32 0.0, %v4283
    %v4285 = vpop.f32.mrf.mxu0
    %4286 = vdwg.mxu0
    %v4288 = vsel %vm747, %v4199, 0
    %v4291 = vsel %vm747, %v4207, 0
    %4293 = vmatpush.bf16.xpose.msra.mxu0 0
    %4294 = vmatpush.bf16.xpose.msra.mxu0 0
    %4295 = vmatpush.bf16.xpose.msra.mxu0 0
    %4296 = vmatpush.bf16.xpose.msra.mxu0 0
    %4297 = vmatpush.bf16.xpose.msra.mxu0 0
    %4298 = vmatpush.bf16.xpose.msra.mxu0 0
    %4299 = vmatpush.bf16.xpose.msra.mxu0 0
    %4300 = vmatpush.bf16.xpose.msra.mxu0 %v4291
    %4301 = vmatmul.bf16.gmra.mxu0 %v4288
    %v4302 = vpop.f32.mrf.mxu0
    %v4303 = vadd.f32 0.0, %v4302
    %v4304 = vpop.f32.mrf.mxu0
    %4305 = vdwg.mxu0
    %v4307 = vsel %vm747, %v4200, 0
    %v4310 = vsel %vm747, %v4208, 0
    %4312 = vmatpush.bf16.xpose.msra.mxu0 0
    %4313 = vmatpush.bf16.xpose.msra.mxu0 0
    %4314 = vmatpush.bf16.xpose.msra.mxu0 0
    %4315 = vmatpush.bf16.xpose.msra.mxu0 0
    %4316 = vmatpush.bf16.xpose.msra.mxu0 0
    %4317 = vmatpush.bf16.xpose.msra.mxu0 0
    %4318 = vmatpush.bf16.xpose.msra.mxu0 0
    %4319 = vmatpush.bf16.xpose.msra.mxu0 %v4310
    %4320 = vmatmul.bf16.gmra.mxu0 %v4307
    %v4321 = vpop.f32.mrf.mxu0
    %v4322 = vadd.f32 0.0, %v4321
    %v4323 = vpop.f32.mrf.mxu0
    %4324 = vdwg.mxu0
    %v4326 = vsel %vm747, %v4201, 0
    %v4329 = vsel %vm747, %v4209, 0
    %4331 = vmatpush.bf16.xpose.msra.mxu0 0
    %4332 = vmatpush.bf16.xpose.msra.mxu0 0
    %4333 = vmatpush.bf16.xpose.msra.mxu0 0
    %4334 = vmatpush.bf16.xpose.msra.mxu0 0
    %4335 = vmatpush.bf16.xpose.msra.mxu0 0
    %4336 = vmatpush.bf16.xpose.msra.mxu0 0
    %4337 = vmatpush.bf16.xpose.msra.mxu0 0
    %4338 = vmatpush.bf16.xpose.msra.mxu0 %v4329
    %4339 = vmatmul.bf16.gmra.mxu0 %v4326
    %v4340 = vpop.f32.mrf.mxu0
    %v4341 = vadd.f32 0.0, %v4340
    %v4342 = vpop.f32.mrf.mxu0
    %4343 = vdwg.mxu0
    %v4345 = vsel %vm747, %v4202, 0
    %v4348 = vsel %vm747, %v4210, 0
    %4350 = vmatpush.bf16.xpose.msra.mxu0 0
    %4351 = vmatpush.bf16.xpose.msra.mxu0 0
    %4352 = vmatpush.bf16.xpose.msra.mxu0 0
    %4353 = vmatpush.bf16.xpose.msra.mxu0 0
    %4354 = vmatpush.bf16.xpose.msra.mxu0 0
    %4355 = vmatpush.bf16.xpose.msra.mxu0 0
    %4356 = vmatpush.bf16.xpose.msra.mxu0 0
    %4357 = vmatpush.bf16.xpose.msra.mxu0 %v4348
    %4358 = vmatmul.bf16.gmra.mxu0 %v4345
    %v4359 = vpop.f32.mrf.mxu0
    %v4360 = vadd.f32 0.0, %v4359
    %v4361 = vpop.f32.mrf.mxu0
    %4362 = vdwg.mxu0
    %v4363 = vmul.f32 %v4227, 0.35355338
    %v4364 = vmul.f32 %v4246, 0.35355338
    %v4365 = vmul.f32 %v4265, 0.35355338
    %v4366 = vmul.f32 %v4284, 0.35355338
    %v4367 = vmul.f32 %v4303, 0.35355338
    %v4368 = vmul.f32 %v4322, 0.35355338
    %v4369 = vmul.f32 %v4341, 0.35355338
    %v4370 = vmul.f32 %v4360, 0.35355338
    %v4371 = vsel %vm2723, %v4363, -1e+09
    %v4372 = vsel %vm2723, %v4364, -1e+09
    %v4373 = vsel %vm2723, %v4365, -1e+09
    %v4374 = vsel %vm2723, %v4366, -1e+09
    %v4375 = vsel %vm2724, %v4367, -1e+09
    %v4376 = vsel %vm2724, %v4368, -1e+09
    %v4377 = vsel %vm2724, %v4369, -1e+09
    %v4378 = vsel %vm2724, %v4370, -1e+09
    %v4379 = vsel %vm747, %v4371, -inf
    %4380 = vmax.xlane.f32.xlu0 %v4379
    %v4381 = vpop.xlane.xlu0 %4380
    %v4382 = vsel %vm747, %v4372, -inf
    %4383 = vmax.xlane.f32.xlu0 %v4382
    %v4384 = vpop.xlane.xlu0 %4383
    %v4385 = vsel %vm747, %v4373, -inf
    %4386 = vmax.xlane.f32.xlu0 %v4385
    %v4387 = vpop.xlane.xlu0 %4386
    %v4388 = vsel %vm747, %v4374, -inf
    %4389 = vmax.xlane.f32.xlu0 %v4388
    %v4390 = vpop.xlane.xlu0 %4389
    %v4391 = vsel %vm747, %v4375, -inf
    %4392 = vmax.xlane.f32.xlu0 %v4391
    %v4393 = vpop.xlane.xlu0 %4392
    %v4394 = vsel %vm747, %v4376, -inf
    %4395 = vmax.xlane.f32.xlu0 %v4394
    %v4396 = vpop.xlane.xlu0 %4395
    %v4397 = vsel %vm747, %v4377, -inf
    %4398 = vmax.xlane.f32.xlu0 %v4397
    %v4399 = vpop.xlane.xlu0 %4398
    %v4400 = vsel %vm747, %v4378, -inf
    %4401 = vmax.xlane.f32.xlu0 %v4400
    %v4402 = vpop.xlane.xlu0 %4401
    %v4403 = vsub.f32 %v4371, %v4381
    %v4404 = vsub.f32 %v4372, %v4384
    %v4405 = vsub.f32 %v4373, %v4387
    %v4406 = vsub.f32 %v4374, %v4390
    %v4407 = vsub.f32 %v4375, %v4393
    %v4408 = vsub.f32 %v4376, %v4396
    %v4409 = vsub.f32 %v4377, %v4399
    %v4410 = vsub.f32 %v4378, %v4402
    %v4411 = vmul.f32 %v4403, 1.442695
    %v4412 = vpow.pop %v4411
    %v4413 = vmul.f32 %v4404, 1.442695
    %v4414 = vpow.pop %v4413
    %v4415 = vmul.f32 %v4405, 1.442695
    %v4416 = vpow.pop %v4415
    %v4417 = vmul.f32 %v4406, 1.442695
    %v4418 = vpow.pop %v4417
    %v4419 = vmul.f32 %v4407, 1.442695
    %v4420 = vpow.pop %v4419
    %v4421 = vmul.f32 %v4408, 1.442695
    %v4422 = vpow.pop %v4421
    %v4423 = vmul.f32 %v4409, 1.442695
    %v4424 = vpow.pop %v4423
    %v4425 = vmul.f32 %v4410, 1.442695
    %v4426 = vpow.pop %v4425
    %v4427 = vsel %vm747, %v4412, 0.0
    %4428 = vadd.xlane.f32.xlu0 %v4427
    %v4429 = vpop.xlane.xlu0 %4428
    %v4430 = vsel %vm747, %v4414, 0.0
    %4431 = vadd.xlane.f32.xlu0 %v4430
    %v4432 = vpop.xlane.xlu0 %4431
    %v4433 = vsel %vm747, %v4416, 0.0
    %4434 = vadd.xlane.f32.xlu0 %v4433
    %v4435 = vpop.xlane.xlu0 %4434
    %v4436 = vsel %vm747, %v4418, 0.0
    %4437 = vadd.xlane.f32.xlu0 %v4436
    %v4438 = vpop.xlane.xlu0 %4437
    %v4439 = vsel %vm747, %v4420, 0.0
    %4440 = vadd.xlane.f32.xlu0 %v4439
    %v4441 = vpop.xlane.xlu0 %4440
    %v4442 = vsel %vm747, %v4422, 0.0
    %4443 = vadd.xlane.f32.xlu0 %v4442
    %v4444 = vpop.xlane.xlu0 %4443
    %v4445 = vsel %vm747, %v4424, 0.0
    %4446 = vadd.xlane.f32.xlu0 %v4445
    %v4447 = vpop.xlane.xlu0 %4446
    %v4448 = vsel %vm747, %v4426, 0.0
    %4449 = vadd.xlane.f32.xlu0 %v4448
    %v4450 = vpop.xlane.xlu0 %4449
    %v4451 = vrcp.pop %v4429
    %v4452 = vrcp.pop %v4432
    %v4453 = vrcp.pop %v4435
    %v4454 = vrcp.pop %v4438
    %v4455 = vrcp.pop %v4441
    %v4456 = vrcp.pop %v4444
    %v4457 = vrcp.pop %v4447
    %v4458 = vrcp.pop %v4450
    %v4459 = vmul.f32 %v4412, %v4451
    %v4460 = vmul.f32 %v4414, %v4452
    %v4461 = vmul.f32 %v4416, %v4453
    %v4462 = vmul.f32 %v4418, %v4454
    %v4463 = vmul.f32 %v4420, %v4455
    %v4464 = vmul.f32 %v4422, %v4456
    %v4465 = vmul.f32 %v4424, %v4457
    %v4466 = vmul.f32 %v4426, %v4458
    %v4467 = vpack.c.bf16 %v4459, %v4459
    %v4468 = vpack.c.bf16 %v4460, %v4460
    %v4469 = vpack.c.bf16 %v4461, %v4461
    %v4470 = vpack.c.bf16 %v4462, %v4462
    %v4471 = vpack.c.bf16 %v4463, %v4463
    %v4472 = vpack.c.bf16 %v4464, %v4464
    %v4473 = vpack.c.bf16 %v4465, %v4465
    %v4474 = vpack.c.bf16 %v4466, %v4466
    %v4475 = vpack.c.bf16 %v4131, %v4131
    %v4476 = vpack.c.bf16 %v4177, %v4177
    %v4477 = vpack.c.bf16 %v4180, %v4180
    %v4478 = vpack.c.bf16 %v4183, %v4183
    %v4479 = vpack.c.bf16 %v4133, %v4133
    %v4480 = vpack.c.bf16 %v4187, %v4187
    %v4481 = vpack.c.bf16 %v4190, %v4190
    %v4482 = vpack.c.bf16 %v4193, %v4193
    %v4484 = vsel %vm747, %v4467, 0
    %v4487 = vsel %vm281, %v4475, 0
    %4489 = vmatpush.bf16.msra.mxu0 0
    %4490 = vmatpush.bf16.msra.mxu0 0
    %4491 = vmatpush.bf16.msra.mxu0 0
    %4492 = vmatpush.bf16.msra.mxu0 0
    %4493 = vmatpush.bf16.msra.mxu0 0
    %4494 = vmatpush.bf16.msra.mxu0 0
    %4495 = vmatpush.bf16.msra.mxu0 0
    %4496 = vmatpush.bf16.msra.mxu0 %v4487
    %4497 = vmatmul.bf16.gmra.mxu0 %v4484
    %v4498 = vpop.f32.mrf.mxu0
    %v4499 = vadd.f32 0.0, %v4498
    %v4500 = vpop.f32.mrf.mxu0
    %4501 = vdwg.mxu0
    %v4503 = vsel %vm747, %v4468, 0
    %v4506 = vsel %vm281, %v4476, 0
    %4508 = vmatpush.bf16.msra.mxu0 0
    %4509 = vmatpush.bf16.msra.mxu0 0
    %4510 = vmatpush.bf16.msra.mxu0 0
    %4511 = vmatpush.bf16.msra.mxu0 0
    %4512 = vmatpush.bf16.msra.mxu0 0
    %4513 = vmatpush.bf16.msra.mxu0 0
    %4514 = vmatpush.bf16.msra.mxu0 0
    %4515 = vmatpush.bf16.msra.mxu0 %v4506
    %4516 = vmatmul.bf16.gmra.mxu0 %v4503
    %v4517 = vpop.f32.mrf.mxu0
    %v4518 = vadd.f32 0.0, %v4517
    %v4519 = vpop.f32.mrf.mxu0
    %4520 = vdwg.mxu0
    %v4522 = vsel %vm747, %v4469, 0
    %v4525 = vsel %vm281, %v4477, 0
    %4527 = vmatpush.bf16.msra.mxu0 0
    %4528 = vmatpush.bf16.msra.mxu0 0
    %4529 = vmatpush.bf16.msra.mxu0 0
    %4530 = vmatpush.bf16.msra.mxu0 0
    %4531 = vmatpush.bf16.msra.mxu0 0
    %4532 = vmatpush.bf16.msra.mxu0 0
    %4533 = vmatpush.bf16.msra.mxu0 0
    %4534 = vmatpush.bf16.msra.mxu0 %v4525
    %4535 = vmatmul.bf16.gmra.mxu0 %v4522
    %v4536 = vpop.f32.mrf.mxu0
    %v4537 = vadd.f32 0.0, %v4536
    %v4538 = vpop.f32.mrf.mxu0
    %4539 = vdwg.mxu0
    %v4541 = vsel %vm747, %v4470, 0
    %v4544 = vsel %vm281, %v4478, 0
    %4546 = vmatpush.bf16.msra.mxu0 0
    %4547 = vmatpush.bf16.msra.mxu0 0
    %4548 = vmatpush.bf16.msra.mxu0 0
    %4549 = vmatpush.bf16.msra.mxu0 0
    %4550 = vmatpush.bf16.msra.mxu0 0
    %4551 = vmatpush.bf16.msra.mxu0 0
    %4552 = vmatpush.bf16.msra.mxu0 0
    %4553 = vmatpush.bf16.msra.mxu0 %v4544
    %4554 = vmatmul.bf16.gmra.mxu0 %v4541
    %v4555 = vpop.f32.mrf.mxu0
    %v4556 = vadd.f32 0.0, %v4555
    %v4557 = vpop.f32.mrf.mxu0
    %4558 = vdwg.mxu0
    %v4560 = vsel %vm747, %v4471, 0
    %v4563 = vsel %vm281, %v4479, 0
    %4565 = vmatpush.bf16.msra.mxu0 0
    %4566 = vmatpush.bf16.msra.mxu0 0
    %4567 = vmatpush.bf16.msra.mxu0 0
    %4568 = vmatpush.bf16.msra.mxu0 0
    %4569 = vmatpush.bf16.msra.mxu0 0
    %4570 = vmatpush.bf16.msra.mxu0 0
    %4571 = vmatpush.bf16.msra.mxu0 0
    %4572 = vmatpush.bf16.msra.mxu0 %v4563
    %4573 = vmatmul.bf16.gmra.mxu0 %v4560
    %v4574 = vpop.f32.mrf.mxu0
    %v4575 = vadd.f32 0.0, %v4574
    %v4576 = vpop.f32.mrf.mxu0
    %4577 = vdwg.mxu0
    %v4579 = vsel %vm747, %v4472, 0
    %v4582 = vsel %vm281, %v4480, 0
    %4584 = vmatpush.bf16.msra.mxu0 0
    %4585 = vmatpush.bf16.msra.mxu0 0
    %4586 = vmatpush.bf16.msra.mxu0 0
    %4587 = vmatpush.bf16.msra.mxu0 0
    %4588 = vmatpush.bf16.msra.mxu0 0
    %4589 = vmatpush.bf16.msra.mxu0 0
    %4590 = vmatpush.bf16.msra.mxu0 0
    %4591 = vmatpush.bf16.msra.mxu0 %v4582
    %4592 = vmatmul.bf16.gmra.mxu0 %v4579
    %v4593 = vpop.f32.mrf.mxu0
    %v4594 = vadd.f32 0.0, %v4593
    %v4595 = vpop.f32.mrf.mxu0
    %4596 = vdwg.mxu0
    %v4598 = vsel %vm747, %v4473, 0
    %v4601 = vsel %vm281, %v4481, 0
    %4603 = vmatpush.bf16.msra.mxu0 0
    %4604 = vmatpush.bf16.msra.mxu0 0
    %4605 = vmatpush.bf16.msra.mxu0 0
    %4606 = vmatpush.bf16.msra.mxu0 0
    %4607 = vmatpush.bf16.msra.mxu0 0
    %4608 = vmatpush.bf16.msra.mxu0 0
    %4609 = vmatpush.bf16.msra.mxu0 0
    %4610 = vmatpush.bf16.msra.mxu0 %v4601
    %4611 = vmatmul.bf16.gmra.mxu0 %v4598
    %v4612 = vpop.f32.mrf.mxu0
    %v4613 = vadd.f32 0.0, %v4612
    %v4614 = vpop.f32.mrf.mxu0
    %4615 = vdwg.mxu0
    %v4617 = vsel %vm747, %v4474, 0
    %v4620 = vsel %vm281, %v4482, 0
    %4622 = vmatpush.bf16.msra.mxu0 0
    %4623 = vmatpush.bf16.msra.mxu0 0
    %4624 = vmatpush.bf16.msra.mxu0 0
    %4625 = vmatpush.bf16.msra.mxu0 0
    %4626 = vmatpush.bf16.msra.mxu0 0
    %4627 = vmatpush.bf16.msra.mxu0 0
    %4628 = vmatpush.bf16.msra.mxu0 0
    %4629 = vmatpush.bf16.msra.mxu0 %v4620
    %4630 = vmatmul.bf16.gmra.mxu0 %v4617
    %v4631 = vpop.f32.mrf.mxu0
    %v4632 = vadd.f32 0.0, %v4631
    %v4633 = vpop.f32.mrf.mxu0
    %4634 = vdwg.mxu0
    %4636 = vrot.lane.b32.xlu0 %v4518, 8
    %v4637 = vpop.permute.xlu0 %4636
    %4640 = vrot.lane.b32.xlu0 %v4537, 16
    %v4641 = vpop.permute.xlu0 %4640
    %4644 = vrot.lane.b32.xlu0 %v4556, 24
    %v4645 = vpop.permute.xlu0 %4644
    %v4647 = vsel %vm747, %v4499, %v4637
    %v4648 = vsel %vm1193, %v4647, %v4641
    %v4649 = vsel %vm1195, %v4648, %v4645
    %4651 = vrot.lane.b32.xlu0 %v4594, 8
    %v4652 = vpop.permute.xlu0 %4651
    %4655 = vrot.lane.b32.xlu0 %v4613, 16
    %v4656 = vpop.permute.xlu0 %4655
    %4659 = vrot.lane.b32.xlu0 %v4632, 24
    %v4660 = vpop.permute.xlu0 %4659
    %v4662 = vsel %vm747, %v4575, %v4652
    %v4663 = vsel %vm1193, %v4662, %v4656
    %v4664 = vsel %vm1195, %v4663, %v4660
    %s4665 = scalar_lea.vmem [#allocation12], 240
    %v4666 = vld [vmem:[%s4665] sm:$0xf]
    %v4667 = vld [vmem:[%s4665 + $0x4] sm:$0xf]
    %v4668 = vld [vmem:[%s4665 + $0x8] sm:$0xf]
    %v4669 = vld [vmem:[%s4665 + $0xc] sm:$0xf]
    %s4670 = scalar_lea.vmem [#allocation18], 15
    %v4671 = vld [vmem:[%s4670] sm:$0x1]
    %v4672 = vpack.c.bf16 %v4664, %v4649
    %v4674 = vperm.slane %v4671, 0
    %v4680 = vunpack.c.l.b16 %v4666
    %v4681 = vunpack.c.l.b16 %v4667
    %v4682 = vunpack.c.l.b16 %v4668
    %v4683 = vunpack.c.l.b16 %v4669
    %v4684 = vpack.c.b16 %v4681, %v4680
    %v4685 = vpack.c.b16 %v4683, %v4682
    %v4689 = vsel %vm581, %v4672, 0
    %4691 = vmatpush.bf16.msra.mxu0 0
    %4692 = vmatpush.bf16.msra.mxu0 0
    %4693 = vmatpush.bf16.msra.mxu0 0
    %4694 = vmatpush.bf16.msra.mxu0 0
    %4695 = vmatpush.bf16.msra.mxu0 0
    %4696 = vmatpush.bf16.msra.mxu0 0
    %4697 = vmatpush.bf16.msra.mxu0 %v4685
    %4698 = vmatpush.bf16.msra.mxu0 %v4684
    %4699 = vmatmul.bf16.gmra.mxu0 %v4689
    %v4700 = vpop.f32.mrf.mxu0
    %v4701 = vadd.f32 %v4674, %v4700
    %v4702 = vpop.f32.mrf.mxu0
    %v4703 = vadd.f32 %v4674, %v4702
    %4704 = vdwg.mxu0
    %v4705 = vadd.f32 %v4021, %v4701
    %v4706 = vadd.f32 %v4022, %v4703
    %s4707 = scalar_lea.vmem [#allocation18], 35
    %v4708 = vld [vmem:[%s4707] sm:$0x1]
    %s4709 = scalar_lea.vmem [#allocation18], 45
    %v4710 = vld [vmem:[%s4709] sm:$0x1]
    %v4711 = vsel %vm581, %v4705, 0.0
    %4712 = vadd.xlane.f32.xlu0 %v4711
    %v4713 = vpop.xlane.xlu0 %4712
    %v4714 = vsel %vm581, %v4706, 0.0
    %4715 = vadd.xlane.f32.xlu0 %v4714
    %v4716 = vpop.xlane.xlu0 %4715
    %v4717 = vmul.f32 %v4713, %v1270
    %v4718 = vmul.f32 %v4716, %v1270
    %v4719 = vsub.f32 %v4705, %v4717
    %v4720 = vsub.f32 %v4706, %v4718
    %v4721 = vmul.f32 %v4719, %v4719
    %v4722 = vmul.f32 %v4720, %v4720
    %v4723 = vsel %vm581, %v4721, 0.0
    %4724 = vadd.xlane.f32.xlu0 %v4723
    %v4725 = vpop.xlane.xlu0 %4724
    %v4726 = vsel %vm581, %v4722, 0.0
    %4727 = vadd.xlane.f32.xlu0 %v4726
    %v4728 = vpop.xlane.xlu0 %4727
    %v4729 = vmul.f32 %v4725, %v1270
    %v4730 = vmul.f32 %v4728, %v1270
    %v4731 = vadd.f32 %v4729, 1e-05
    %v4732 = vadd.f32 %v4730, 1e-05
    %v4733 = vrsqrt.pop %v4731
    %v4734 = vmul.f32 %v4733, %v4731
    %v4735 = vmul.f32 %v4734, %v4733
    %v4736 = vmul.f32 0.5, %v4735
    %v4737 = vsub.f32 1.5, %v4736
    %v4738 = vmul.f32 %v4733, %v4737
    %vm4739 = vweird.f32 %v4731
    %vm4740 = vweird.f32 %v4733
    %vm4741 = vmor %vm4739, %vm4740
    %v4742 = vsel %vm4741, %v4733, %v4738
    %v4743 = vrsqrt.pop %v4732
    %v4744 = vmul.f32 %v4743, %v4732
    %v4745 = vmul.f32 %v4744, %v4743
    %v4746 = vmul.f32 0.5, %v4745
    %v4747 = vsub.f32 1.5, %v4746
    %v4748 = vmul.f32 %v4743, %v4747
    %vm4749 = vweird.f32 %v4732
    %vm4750 = vweird.f32 %v4743
    %vm4751 = vmor %vm4749, %vm4750
    %v4752 = vsel %vm4751, %v4743, %v4748
    %v4753 = vmul.f32 %v4719, %v4742
    %v4754 = vmul.f32 %v4720, %v4752
    %v4756 = vperm.slane %v4708, 0
    %v4758 = vmul.f32 %v4753, %v4756
    %v4759 = vmul.f32 %v4754, %v4756
    %v4761 = vperm.slane %v4710, 0
    %v4763 = vadd.f32 %v4758, %v4761
    %v4764 = vadd.f32 %v4759, %v4761
    %s4765 = scalar_lea.vmem [#allocation12], 320
    %v4766 = vld [vmem:[%s4765] sm:$0xf]
    %v4767 = vld [vmem:[%s4765 + $0x4] sm:$0xf]
    %v4768 = vld [vmem:[%s4765 + $0x8] sm:$0xf]
    %v4769 = vld [vmem:[%s4765 + $0xc] sm:$0xf]
    %s4770 = scalar_lea.vmem [#allocation18], 20
    %v4771 = vld [vmem:[%s4770] sm:$0x1]
    %v4772 = vpack.c.bf16 %v4764, %v4763
    %v4774 = vperm.slane %v4771, 0
    %v4780 = vunpack.c.l.b16 %v4766
    %v4781 = vunpack.c.l.b16 %v4767
    %v4782 = vunpack.c.l.b16 %v4768
    %v4783 = vunpack.c.l.b16 %v4769
    %v4784 = vpack.c.b16 %v4781, %v4780
    %v4785 = vpack.c.b16 %v4783, %v4782
    %v4789 = vsel %vm581, %v4772, 0
    %4791 = vmatpush.bf16.msra.mxu0 0
    %4792 = vmatpush.bf16.msra.mxu0 0
    %4793 = vmatpush.bf16.msra.mxu0 0
    %4794 = vmatpush.bf16.msra.mxu0 0
    %4795 = vmatpush.bf16.msra.mxu0 0
    %4796 = vmatpush.bf16.msra.mxu0 0
    %4797 = vmatpush.bf16.msra.mxu0 %v4785
    %4798 = vmatpush.bf16.msra.mxu0 %v4784
    %4799 = vmatmul.bf16.gmra.mxu0 %v4789
    %v4800 = vpop.f32.mrf.mxu0
    %v4801 = vadd.f32 %v4774, %v4800
    %v4802 = vpop.f32.mrf.mxu0
    %v4803 = vadd.f32 %v4774, %v4802
    %4804 = vdwg.mxu0
    %s4805 = scalar_lea.vmem [#allocation12], 336
    %v4806 = vld [vmem:[%s4805] sm:$0xf]
    %v4807 = vld [vmem:[%s4805 + $0x4] sm:$0xf]
    %v4808 = vld [vmem:[%s4805 + $0x8] sm:$0xf]
    %v4809 = vld [vmem:[%s4805 + $0xc] sm:$0xf]
    %s4810 = scalar_lea.vmem [#allocation18], 21
    %v4811 = vld [vmem:[%s4810] sm:$0x1]
    %v4813 = vperm.slane %v4811, 0
    %v4819 = vunpack.c.l.b16 %v4806
    %v4820 = vunpack.c.l.b16 %v4807
    %v4821 = vunpack.c.l.b16 %v4808
    %v4822 = vunpack.c.l.b16 %v4809
    %v4823 = vpack.c.b16 %v4820, %v4819
    %v4824 = vpack.c.b16 %v4822, %v4821
    %4827 = vmatpush.bf16.msra.mxu0 0
    %4828 = vmatpush.bf16.msra.mxu0 0
    %4829 = vmatpush.bf16.msra.mxu0 0
    %4830 = vmatpush.bf16.msra.mxu0 0
    %4831 = vmatpush.bf16.msra.mxu0 0
    %4832 = vmatpush.bf16.msra.mxu0 0
    %4833 = vmatpush.bf16.msra.mxu0 %v4824
    %4834 = vmatpush.bf16.msra.mxu0 %v4823
    %4835 = vmatmul.bf16.gmra.mxu0 %v3183
    %v4836 = vpop.f32.mrf.mxu0
    %v4837 = vadd.f32 %v4813, %v4836
    %v4838 = vpop.f32.mrf.mxu0
    %v4839 = vadd.f32 %v4813, %v4838
    %4840 = vdwg.mxu0
    %s4841 = scalar_lea.vmem [#allocation12], 352
    %v4842 = vld [vmem:[%s4841] sm:$0xf]
    %v4843 = vld [vmem:[%s4841 + $0x4] sm:$0xf]
    %v4844 = vld [vmem:[%s4841 + $0x8] sm:$0xf]
    %v4845 = vld [vmem:[%s4841 + $0xc] sm:$0xf]
    %s4846 = scalar_lea.vmem [#allocation18], 22
    %v4847 = vld [vmem:[%s4846] sm:$0x1]
    %v4849 = vperm.slane %v4847, 0
    %v4855 = vunpack.c.l.b16 %v4842
    %v4856 = vunpack.c.l.b16 %v4843
    %v4857 = vunpack.c.l.b16 %v4844
    %v4858 = vunpack.c.l.b16 %v4845
    %v4859 = vpack.c.b16 %v4856, %v4855
    %v4860 = vpack.c.b16 %v4858, %v4857
    %4863 = vmatpush.bf16.msra.mxu0 0
    %4864 = vmatpush.bf16.msra.mxu0 0
    %4865 = vmatpush.bf16.msra.mxu0 0
    %4866 = vmatpush.bf16.msra.mxu0 0
    %4867 = vmatpush.bf16.msra.mxu0 0
    %4868 = vmatpush.bf16.msra.mxu0 0
    %4869 = vmatpush.bf16.msra.mxu0 %v4860
    %4870 = vmatpush.bf16.msra.mxu0 %v4859
    %4871 = vmatmul.bf16.gmra.mxu0 %v3183
    %v4872 = vpop.f32.mrf.mxu0
    %v4873 = vadd.f32 %v4849, %v4872
    %v4874 = vpop.f32.mrf.mxu0
    %v4875 = vadd.f32 %v4849, %v4874
    %4876 = vdwg.mxu0
    %4878 = vrot.lane.b32.xlu0 %v4801, 120
    %v4879 = vpop.permute.xlu0 %4878
    %4881 = vrot.lane.b32.xlu0 %v4801, 112
    %v4882 = vpop.permute.xlu0 %4881
    %4884 = vrot.lane.b32.xlu0 %v4801, 104
    %v4885 = vpop.permute.xlu0 %4884
    %4888 = vrot.lane.b32.xlu0 %v4803, 120
    %v4889 = vpop.permute.xlu0 %4888
    %4891 = vrot.lane.b32.xlu0 %v4803, 112
    %v4892 = vpop.permute.xlu0 %4891
    %4894 = vrot.lane.b32.xlu0 %v4803, 104
    %v4895 = vpop.permute.xlu0 %4894
    %4898 = vrot.lane.b32.xlu0 %v4837, 120
    %v4899 = vpop.permute.xlu0 %4898
    %4901 = vrot.lane.b32.xlu0 %v4837, 112
    %v4902 = vpop.permute.xlu0 %4901
    %4904 = vrot.lane.b32.xlu0 %v4837, 104
    %v4905 = vpop.permute.xlu0 %4904
    %4908 = vrot.lane.b32.xlu0 %v4839, 120
    %v4909 = vpop.permute.xlu0 %4908
    %4911 = vrot.lane.b32.xlu0 %v4839, 112
    %v4912 = vpop.permute.xlu0 %4911
    %4914 = vrot.lane.b32.xlu0 %v4839, 104
    %v4915 = vpop.permute.xlu0 %4914
    %4918 = vrot.lane.b32.xlu0 %v4873, 120
    %v4919 = vpop.permute.xlu0 %4918
    %4921 = vrot.lane.b32.xlu0 %v4873, 112
    %v4922 = vpop.permute.xlu0 %4921
    %4924 = vrot.lane.b32.xlu0 %v4873, 104
    %v4925 = vpop.permute.xlu0 %4924
    %4928 = vrot.lane.b32.xlu0 %v4875, 120
    %v4929 = vpop.permute.xlu0 %4928
    %4931 = vrot.lane.b32.xlu0 %v4875, 112
    %v4932 = vpop.permute.xlu0 %4931
    %4934 = vrot.lane.b32.xlu0 %v4875, 104
    %v4935 = vpop.permute.xlu0 %4934
    %v4937 = vpack.c.bf16 %v4801, %v4801
    %v4938 = vpack.c.bf16 %v4879, %v4879
    %v4939 = vpack.c.bf16 %v4882, %v4882
    %v4940 = vpack.c.bf16 %v4885, %v4885
    %v4941 = vpack.c.bf16 %v4803, %v4803
    %v4942 = vpack.c.bf16 %v4889, %v4889
    %v4943 = vpack.c.bf16 %v4892, %v4892
    %v4944 = vpack.c.bf16 %v4895, %v4895
    %v4945 = vpack.c.bf16 %v4837, %v4837
    %v4946 = vpack.c.bf16 %v4899, %v4899
    %v4947 = vpack.c.bf16 %v4902, %v4902
    %v4948 = vpack.c.bf16 %v4905, %v4905
    %v4949 = vpack.c.bf16 %v4839, %v4839
    %v4950 = vpack.c.bf16 %v4909, %v4909
    %v4951 = vpack.c.bf16 %v4912, %v4912
    %v4952 = vpack.c.bf16 %v4915, %v4915
    %v4954 = vsel %vm747, %v4937, 0
    %v4957 = vsel %vm747, %v4945, 0
    %4959 = vmatpush.bf16.xpose.msra.mxu0 0
    %4960 = vmatpush.bf16.xpose.msra.mxu0 0
    %4961 = vmatpush.bf16.xpose.msra.mxu0 0
    %4962 = vmatpush.bf16.xpose.msra.mxu0 0
    %4963 = vmatpush.bf16.xpose.msra.mxu0 0
    %4964 = vmatpush.bf16.xpose.msra.mxu0 0
    %4965 = vmatpush.bf16.xpose.msra.mxu0 0
    %4966 = vmatpush.bf16.xpose.msra.mxu0 %v4957
    %4967 = vmatmul.bf16.gmra.mxu0 %v4954
    %v4968 = vpop.f32.mrf.mxu0
    %v4969 = vadd.f32 0.0, %v4968
    %v4970 = vpop.f32.mrf.mxu0
    %4971 = vdwg.mxu0
    %v4973 = vsel %vm747, %v4938, 0
    %v4976 = vsel %vm747, %v4946, 0
    %4978 = vmatpush.bf16.xpose.msra.mxu0 0
    %4979 = vmatpush.bf16.xpose.msra.mxu0 0
    %4980 = vmatpush.bf16.xpose.msra.mxu0 0
    %4981 = vmatpush.bf16.xpose.msra.mxu0 0
    %4982 = vmatpush.bf16.xpose.msra.mxu0 0
    %4983 = vmatpush.bf16.xpose.msra.mxu0 0
    %4984 = vmatpush.bf16.xpose.msra.mxu0 0
    %4985 = vmatpush.bf16.xpose.msra.mxu0 %v4976
    %4986 = vmatmul.bf16.gmra.mxu0 %v4973
    %v4987 = vpop.f32.mrf.mxu0
    %v4988 = vadd.f32 0.0, %v4987
    %v4989 = vpop.f32.mrf.mxu0
    %4990 = vdwg.mxu0
    %v4992 = vsel %vm747, %v4939, 0
    %v4995 = vsel %vm747, %v4947, 0
    %4997 = vmatpush.bf16.xpose.msra.mxu0 0
    %4998 = vmatpush.bf16.xpose.msra.mxu0 0
    %4999 = vmatpush.bf16.xpose.msra.mxu0 0
    %5000 = vmatpush.bf16.xpose.msra.mxu0 0
    %5001 = vmatpush.bf16.xpose.msra.mxu0 0
    %5002 = vmatpush.bf16.xpose.msra.mxu0 0
    %5003 = vmatpush.bf16.xpose.msra.mxu0 0
    %5004 = vmatpush.bf16.xpose.msra.mxu0 %v4995
    %5005 = vmatmul.bf16.gmra.mxu0 %v4992
    %v5006 = vpop.f32.mrf.mxu0
    %v5007 = vadd.f32 0.0, %v5006
    %v5008 = vpop.f32.mrf.mxu0
    %5009 = vdwg.mxu0
    %v5011 = vsel %vm747, %v4940, 0
    %v5014 = vsel %vm747, %v4948, 0
    %5016 = vmatpush.bf16.xpose.msra.mxu0 0
    %5017 = vmatpush.bf16.xpose.msra.mxu0 0
    %5018 = vmatpush.bf16.xpose.msra.mxu0 0
    %5019 = vmatpush.bf16.xpose.msra.mxu0 0
    %5020 = vmatpush.bf16.xpose.msra.mxu0 0
    %5021 = vmatpush.bf16.xpose.msra.mxu0 0
    %5022 = vmatpush.bf16.xpose.msra.mxu0 0
    %5023 = vmatpush.bf16.xpose.msra.mxu0 %v5014
    %5024 = vmatmul.bf16.gmra.mxu0 %v5011
    %v5025 = vpop.f32.mrf.mxu0
    %v5026 = vadd.f32 0.0, %v5025
    %v5027 = vpop.f32.mrf.mxu0
    %5028 = vdwg.mxu0
    %v5030 = vsel %vm747, %v4941, 0
    %v5033 = vsel %vm747, %v4949, 0
    %5035 = vmatpush.bf16.xpose.msra.mxu0 0
    %5036 = vmatpush.bf16.xpose.msra.mxu0 0
    %5037 = vmatpush.bf16.xpose.msra.mxu0 0
    %5038 = vmatpush.bf16.xpose.msra.mxu0 0
    %5039 = vmatpush.bf16.xpose.msra.mxu0 0
    %5040 = vmatpush.bf16.xpose.msra.mxu0 0
    %5041 = vmatpush.bf16.xpose.msra.mxu0 0
    %5042 = vmatpush.bf16.xpose.msra.mxu0 %v5033
    %5043 = vmatmul.bf16.gmra.mxu0 %v5030
    %v5044 = vpop.f32.mrf.mxu0
    %v5045 = vadd.f32 0.0, %v5044
    %v5046 = vpop.f32.mrf.mxu0
    %5047 = vdwg.mxu0
    %v5049 = vsel %vm747, %v4942, 0
    %v5052 = vsel %vm747, %v4950, 0
    %5054 = vmatpush.bf16.xpose.msra.mxu0 0
    %5055 = vmatpush.bf16.xpose.msra.mxu0 0
    %5056 = vmatpush.bf16.xpose.msra.mxu0 0
    %5057 = vmatpush.bf16.xpose.msra.mxu0 0
    %5058 = vmatpush.bf16.xpose.msra.mxu0 0
    %5059 = vmatpush.bf16.xpose.msra.mxu0 0
    %5060 = vmatpush.bf16.xpose.msra.mxu0 0
    %5061 = vmatpush.bf16.xpose.msra.mxu0 %v5052
    %5062 = vmatmul.bf16.gmra.mxu0 %v5049
    %v5063 = vpop.f32.mrf.mxu0
    %v5064 = vadd.f32 0.0, %v5063
    %v5065 = vpop.f32.mrf.mxu0
    %5066 = vdwg.mxu0
    %v5068 = vsel %vm747, %v4943, 0
    %v5071 = vsel %vm747, %v4951, 0
    %5073 = vmatpush.bf16.xpose.msra.mxu0 0
    %5074 = vmatpush.bf16.xpose.msra.mxu0 0
    %5075 = vmatpush.bf16.xpose.msra.mxu0 0
    %5076 = vmatpush.bf16.xpose.msra.mxu0 0
    %5077 = vmatpush.bf16.xpose.msra.mxu0 0
    %5078 = vmatpush.bf16.xpose.msra.mxu0 0
    %5079 = vmatpush.bf16.xpose.msra.mxu0 0
    %5080 = vmatpush.bf16.xpose.msra.mxu0 %v5071
    %5081 = vmatmul.bf16.gmra.mxu0 %v5068
    %v5082 = vpop.f32.mrf.mxu0
    %v5083 = vadd.f32 0.0, %v5082
    %v5084 = vpop.f32.mrf.mxu0
    %5085 = vdwg.mxu0
    %v5087 = vsel %vm747, %v4944, 0
    %v5090 = vsel %vm747, %v4952, 0
    %5092 = vmatpush.bf16.xpose.msra.mxu0 0
    %5093 = vmatpush.bf16.xpose.msra.mxu0 0
    %5094 = vmatpush.bf16.xpose.msra.mxu0 0
    %5095 = vmatpush.bf16.xpose.msra.mxu0 0
    %5096 = vmatpush.bf16.xpose.msra.mxu0 0
    %5097 = vmatpush.bf16.xpose.msra.mxu0 0
    %5098 = vmatpush.bf16.xpose.msra.mxu0 0
    %5099 = vmatpush.bf16.xpose.msra.mxu0 %v5090
    %5100 = vmatmul.bf16.gmra.mxu0 %v5087
    %v5101 = vpop.f32.mrf.mxu0
    %v5102 = vadd.f32 0.0, %v5101
    %v5103 = vpop.f32.mrf.mxu0
    %5104 = vdwg.mxu0
    %v5105 = vmul.f32 %v4969, 0.35355338
    %v5106 = vmul.f32 %v4988, 0.35355338
    %v5107 = vmul.f32 %v5007, 0.35355338
    %v5108 = vmul.f32 %v5026, 0.35355338
    %v5109 = vmul.f32 %v5045, 0.35355338
    %v5110 = vmul.f32 %v5064, 0.35355338
    %v5111 = vmul.f32 %v5083, 0.35355338
    %v5112 = vmul.f32 %v5102, 0.35355338
    %v5113 = vsel %vm914, %v5105, -1e+09
    %v5114 = vsel %vm914, %v5106, -1e+09
    %v5115 = vsel %vm914, %v5107, -1e+09
    %v5116 = vsel %vm914, %v5108, -1e+09
    %v5117 = vsel %vm915, %v5109, -1e+09
    %v5118 = vsel %vm915, %v5110, -1e+09
    %v5119 = vsel %vm915, %v5111, -1e+09
    %v5120 = vsel %vm915, %v5112, -1e+09
    %v5121 = vsel %vm747, %v5113, -inf
    %5122 = vmax.xlane.f32.xlu0 %v5121
    %v5123 = vpop.xlane.xlu0 %5122
    %v5124 = vsel %vm747, %v5114, -inf
    %5125 = vmax.xlane.f32.xlu0 %v5124
    %v5126 = vpop.xlane.xlu0 %5125
    %v5127 = vsel %vm747, %v5115, -inf
    %5128 = vmax.xlane.f32.xlu0 %v5127
    %v5129 = vpop.xlane.xlu0 %5128
    %v5130 = vsel %vm747, %v5116, -inf
    %5131 = vmax.xlane.f32.xlu0 %v5130
    %v5132 = vpop.xlane.xlu0 %5131
    %v5133 = vsel %vm747, %v5117, -inf
    %5134 = vmax.xlane.f32.xlu0 %v5133
    %v5135 = vpop.xlane.xlu0 %5134
    %v5136 = vsel %vm747, %v5118, -inf
    %5137 = vmax.xlane.f32.xlu0 %v5136
    %v5138 = vpop.xlane.xlu0 %5137
    %v5139 = vsel %vm747, %v5119, -inf
    %5140 = vmax.xlane.f32.xlu0 %v5139
    %v5141 = vpop.xlane.xlu0 %5140
    %v5142 = vsel %vm747, %v5120, -inf
    %5143 = vmax.xlane.f32.xlu0 %v5142
    %v5144 = vpop.xlane.xlu0 %5143
    %v5145 = vsub.f32 %v5113, %v5123
    %v5146 = vsub.f32 %v5114, %v5126
    %v5147 = vsub.f32 %v5115, %v5129
    %v5148 = vsub.f32 %v5116, %v5132
    %v5149 = vsub.f32 %v5117, %v5135
    %v5150 = vsub.f32 %v5118, %v5138
    %v5151 = vsub.f32 %v5119, %v5141
    %v5152 = vsub.f32 %v5120, %v5144
    %v5153 = vmul.f32 %v5145, 1.442695
    %v5154 = vpow.pop %v5153
    %v5155 = vmul.f32 %v5146, 1.442695
    %v5156 = vpow.pop %v5155
    %v5157 = vmul.f32 %v5147, 1.442695
    %v5158 = vpow.pop %v5157
    %v5159 = vmul.f32 %v5148, 1.442695
    %v5160 = vpow.pop %v5159
    %v5161 = vmul.f32 %v5149, 1.442695
    %v5162 = vpow.pop %v5161
    %v5163 = vmul.f32 %v5150, 1.442695
    %v5164 = vpow.pop %v5163
    %v5165 = vmul.f32 %v5151, 1.442695
    %v5166 = vpow.pop %v5165
    %v5167 = vmul.f32 %v5152, 1.442695
    %v5168 = vpow.pop %v5167
    %v5169 = vsel %vm747, %v5154, 0.0
    %5170 = vadd.xlane.f32.xlu0 %v5169
    %v5171 = vpop.xlane.xlu0 %5170
    %v5172 = vsel %vm747, %v5156, 0.0
    %5173 = vadd.xlane.f32.xlu0 %v5172
    %v5174 = vpop.xlane.xlu0 %5173
    %v5175 = vsel %vm747, %v5158, 0.0
    %5176 = vadd.xlane.f32.xlu0 %v5175
    %v5177 = vpop.xlane.xlu0 %5176
    %v5178 = vsel %vm747, %v5160, 0.0
    %5179 = vadd.xlane.f32.xlu0 %v5178
    %v5180 = vpop.xlane.xlu0 %5179
    %v5181 = vsel %vm747, %v5162, 0.0
    %5182 = vadd.xlane.f32.xlu0 %v5181
    %v5183 = vpop.xlane.xlu0 %5182
    %v5184 = vsel %vm747, %v5164, 0.0
    %5185 = vadd.xlane.f32.xlu0 %v5184
    %v5186 = vpop.xlane.xlu0 %5185
    %v5187 = vsel %vm747, %v5166, 0.0
    %5188 = vadd.xlane.f32.xlu0 %v5187
    %v5189 = vpop.xlane.xlu0 %5188
    %v5190 = vsel %vm747, %v5168, 0.0
    %5191 = vadd.xlane.f32.xlu0 %v5190
    %v5192 = vpop.xlane.xlu0 %5191
    %v5193 = vrcp.pop %v5171
    %v5194 = vrcp.pop %v5174
    %v5195 = vrcp.pop %v5177
    %v5196 = vrcp.pop %v5180
    %v5197 = vrcp.pop %v5183
    %v5198 = vrcp.pop %v5186
    %v5199 = vrcp.pop %v5189
    %v5200 = vrcp.pop %v5192
    %v5201 = vmul.f32 %v5154, %v5193
    %v5202 = vmul.f32 %v5156, %v5194
    %v5203 = vmul.f32 %v5158, %v5195
    %v5204 = vmul.f32 %v5160, %v5196
    %v5205 = vmul.f32 %v5162, %v5197
    %v5206 = vmul.f32 %v5164, %v5198
    %v5207 = vmul.f32 %v5166, %v5199
    %v5208 = vmul.f32 %v5168, %v5200
    %v5209 = vpack.c.bf16 %v5201, %v5201
    %v5210 = vpack.c.bf16 %v5202, %v5202
    %v5211 = vpack.c.bf16 %v5203, %v5203
    %v5212 = vpack.c.bf16 %v5204, %v5204
    %v5213 = vpack.c.bf16 %v5205, %v5205
    %v5214 = vpack.c.bf16 %v5206, %v5206
    %v5215 = vpack.c.bf16 %v5207, %v5207
    %v5216 = vpack.c.bf16 %v5208, %v5208
    %v5217 = vpack.c.bf16 %v4873, %v4873
    %v5218 = vpack.c.bf16 %v4919, %v4919
    %v5219 = vpack.c.bf16 %v4922, %v4922
    %v5220 = vpack.c.bf16 %v4925, %v4925
    %v5221 = vpack.c.bf16 %v4875, %v4875
    %v5222 = vpack.c.bf16 %v4929, %v4929
    %v5223 = vpack.c.bf16 %v4932, %v4932
    %v5224 = vpack.c.bf16 %v4935, %v4935
    %v5226 = vsel %vm747, %v5209, 0
    %v5229 = vsel %vm281, %v5217, 0
    %5231 = vmatpush.bf16.msra.mxu0 0
    %5232 = vmatpush.bf16.msra.mxu0 0
    %5233 = vmatpush.bf16.msra.mxu0 0
    %5234 = vmatpush.bf16.msra.mxu0 0
    %5235 = vmatpush.bf16.msra.mxu0 0
    %5236 = vmatpush.bf16.msra.mxu0 0
    %5237 = vmatpush.bf16.msra.mxu0 0
    %5238 = vmatpush.bf16.msra.mxu0 %v5229
    %5239 = vmatmul.bf16.gmra.mxu0 %v5226
    %v5240 = vpop.f32.mrf.mxu0
    %v5241 = vadd.f32 0.0, %v5240
    %v5242 = vpop.f32.mrf.mxu0
    %5243 = vdwg.mxu0
    %v5245 = vsel %vm747, %v5210, 0
    %v5248 = vsel %vm281, %v5218, 0
    %5250 = vmatpush.bf16.msra.mxu0 0
    %5251 = vmatpush.bf16.msra.mxu0 0
    %5252 = vmatpush.bf16.msra.mxu0 0
    %5253 = vmatpush.bf16.msra.mxu0 0
    %5254 = vmatpush.bf16.msra.mxu0 0
    %5255 = vmatpush.bf16.msra.mxu0 0
    %5256 = vmatpush.bf16.msra.mxu0 0
    %5257 = vmatpush.bf16.msra.mxu0 %v5248
    %5258 = vmatmul.bf16.gmra.mxu0 %v5245
    %v5259 = vpop.f32.mrf.mxu0
    %v5260 = vadd.f32 0.0, %v5259
    %v5261 = vpop.f32.mrf.mxu0
    %5262 = vdwg.mxu0
    %v5264 = vsel %vm747, %v5211, 0
    %v5267 = vsel %vm281, %v5219, 0
    %5269 = vmatpush.bf16.msra.mxu0 0
    %5270 = vmatpush.bf16.msra.mxu0 0
    %5271 = vmatpush.bf16.msra.mxu0 0
    %5272 = vmatpush.bf16.msra.mxu0 0
    %5273 = vmatpush.bf16.msra.mxu0 0
    %5274 = vmatpush.bf16.msra.mxu0 0
    %5275 = vmatpush.bf16.msra.mxu0 0
    %5276 = vmatpush.bf16.msra.mxu0 %v5267
    %5277 = vmatmul.bf16.gmra.mxu0 %v5264
    %v5278 = vpop.f32.mrf.mxu0
    %v5279 = vadd.f32 0.0, %v5278
    %v5280 = vpop.f32.mrf.mxu0
    %5281 = vdwg.mxu0
    %v5283 = vsel %vm747, %v5212, 0
    %v5286 = vsel %vm281, %v5220, 0
    %5288 = vmatpush.bf16.msra.mxu0 0
    %5289 = vmatpush.bf16.msra.mxu0 0
    %5290 = vmatpush.bf16.msra.mxu0 0
    %5291 = vmatpush.bf16.msra.mxu0 0
    %5292 = vmatpush.bf16.msra.mxu0 0
    %5293 = vmatpush.bf16.msra.mxu0 0
    %5294 = vmatpush.bf16.msra.mxu0 0
    %5295 = vmatpush.bf16.msra.mxu0 %v5286
    %5296 = vmatmul.bf16.gmra.mxu0 %v5283
    %v5297 = vpop.f32.mrf.mxu0
    %v5298 = vadd.f32 0.0, %v5297
    %v5299 = vpop.f32.mrf.mxu0
    %5300 = vdwg.mxu0
    %v5302 = vsel %vm747, %v5213, 0
    %v5305 = vsel %vm281, %v5221, 0
    %5307 = vmatpush.bf16.msra.mxu0 0
    %5308 = vmatpush.bf16.msra.mxu0 0
    %5309 = vmatpush.bf16.msra.mxu0 0
    %5310 = vmatpush.bf16.msra.mxu0 0
    %5311 = vmatpush.bf16.msra.mxu0 0
    %5312 = vmatpush.bf16.msra.mxu0 0
    %5313 = vmatpush.bf16.msra.mxu0 0
    %5314 = vmatpush.bf16.msra.mxu0 %v5305
    %5315 = vmatmul.bf16.gmra.mxu0 %v5302
    %v5316 = vpop.f32.mrf.mxu0
    %v5317 = vadd.f32 0.0, %v5316
    %v5318 = vpop.f32.mrf.mxu0
    %5319 = vdwg.mxu0
    %v5321 = vsel %vm747, %v5214, 0
    %v5324 = vsel %vm281, %v5222, 0
    %5326 = vmatpush.bf16.msra.mxu0 0
    %5327 = vmatpush.bf16.msra.mxu0 0
    %5328 = vmatpush.bf16.msra.mxu0 0
    %5329 = vmatpush.bf16.msra.mxu0 0
    %5330 = vmatpush.bf16.msra.mxu0 0
    %5331 = vmatpush.bf16.msra.mxu0 0
    %5332 = vmatpush.bf16.msra.mxu0 0
    %5333 = vmatpush.bf16.msra.mxu0 %v5324
    %5334 = vmatmul.bf16.gmra.mxu0 %v5321
    %v5335 = vpop.f32.mrf.mxu0
    %v5336 = vadd.f32 0.0, %v5335
    %v5337 = vpop.f32.mrf.mxu0
    %5338 = vdwg.mxu0
    %v5340 = vsel %vm747, %v5215, 0
    %v5343 = vsel %vm281, %v5223, 0
    %5345 = vmatpush.bf16.msra.mxu0 0
    %5346 = vmatpush.bf16.msra.mxu0 0
    %5347 = vmatpush.bf16.msra.mxu0 0
    %5348 = vmatpush.bf16.msra.mxu0 0
    %5349 = vmatpush.bf16.msra.mxu0 0
    %5350 = vmatpush.bf16.msra.mxu0 0
    %5351 = vmatpush.bf16.msra.mxu0 0
    %5352 = vmatpush.bf16.msra.mxu0 %v5343
    %5353 = vmatmul.bf16.gmra.mxu0 %v5340
    %v5354 = vpop.f32.mrf.mxu0
    %v5355 = vadd.f32 0.0, %v5354
    %v5356 = vpop.f32.mrf.mxu0
    %5357 = vdwg.mxu0
    %v5359 = vsel %vm747, %v5216, 0
    %v5362 = vsel %vm281, %v5224, 0
    %5364 = vmatpush.bf16.msra.mxu0 0
    %5365 = vmatpush.bf16.msra.mxu0 0
    %5366 = vmatpush.bf16.msra.mxu0 0
    %5367 = vmatpush.bf16.msra.mxu0 0
    %5368 = vmatpush.bf16.msra.mxu0 0
    %5369 = vmatpush.bf16.msra.mxu0 0
    %5370 = vmatpush.bf16.msra.mxu0 0
    %5371 = vmatpush.bf16.msra.mxu0 %v5362
    %5372 = vmatmul.bf16.gmra.mxu0 %v5359
    %v5373 = vpop.f32.mrf.mxu0
    %v5374 = vadd.f32 0.0, %v5373
    %v5375 = vpop.f32.mrf.mxu0
    %5376 = vdwg.mxu0
    %5378 = vrot.lane.b32.xlu0 %v5260, 8
    %v5379 = vpop.permute.xlu0 %5378
    %5382 = vrot.lane.b32.xlu0 %v5279, 16
    %v5383 = vpop.permute.xlu0 %5382
    %5386 = vrot.lane.b32.xlu0 %v5298, 24
    %v5387 = vpop.permute.xlu0 %5386
    %v5389 = vsel %vm747, %v5241, %v5379
    %v5390 = vsel %vm1193, %v5389, %v5383
    %v5391 = vsel %vm1195, %v5390, %v5387
    %5393 = vrot.lane.b32.xlu0 %v5336, 8
    %v5394 = vpop.permute.xlu0 %5393
    %5397 = vrot.lane.b32.xlu0 %v5355, 16
    %v5398 = vpop.permute.xlu0 %5397
    %5401 = vrot.lane.b32.xlu0 %v5374, 24
    %v5402 = vpop.permute.xlu0 %5401
    %v5404 = vsel %vm747, %v5317, %v5394
    %v5405 = vsel %vm1193, %v5404, %v5398
    %v5406 = vsel %vm1195, %v5405, %v5402
    %s5407 = scalar_lea.vmem [#allocation12], 368
    %v5408 = vld [vmem:[%s5407] sm:$0xf]
    %v5409 = vld [vmem:[%s5407 + $0x4] sm:$0xf]
    %v5410 = vld [vmem:[%s5407 + $0x8] sm:$0xf]
    %v5411 = vld [vmem:[%s5407 + $0xc] sm:$0xf]
    %s5412 = scalar_lea.vmem [#allocation18], 23
    %v5413 = vld [vmem:[%s5412] sm:$0x1]
    %v5414 = vpack.c.bf16 %v5406, %v5391
    %v5416 = vperm.slane %v5413, 0
    %v5422 = vunpack.c.l.b16 %v5408
    %v5423 = vunpack.c.l.b16 %v5409
    %v5424 = vunpack.c.l.b16 %v5410
    %v5425 = vunpack.c.l.b16 %v5411
    %v5426 = vpack.c.b16 %v5423, %v5422
    %v5427 = vpack.c.b16 %v5425, %v5424
    %v5431 = vsel %vm581, %v5414, 0
    %5433 = vmatpush.bf16.msra.mxu0 0
    %5434 = vmatpush.bf16.msra.mxu0 0
    %5435 = vmatpush.bf16.msra.mxu0 0
    %5436 = vmatpush.bf16.msra.mxu0 0
    %5437 = vmatpush.bf16.msra.mxu0 0
    %5438 = vmatpush.bf16.msra.mxu0 0
    %5439 = vmatpush.bf16.msra.mxu0 %v5427
    %5440 = vmatpush.bf16.msra.mxu0 %v5426
    %5441 = vmatmul.bf16.gmra.mxu0 %v5431
    %v5442 = vpop.f32.mrf.mxu0
    %v5443 = vadd.f32 %v5416, %v5442
    %v5444 = vpop.f32.mrf.mxu0
    %v5445 = vadd.f32 %v5416, %v5444
    %5446 = vdwg.mxu0
    %v5447 = vadd.f32 %v4763, %v5443
    %v5448 = vadd.f32 %v4764, %v5445
    %s5449 = scalar_lea.vmem [#allocation18], 36
    %v5450 = vld [vmem:[%s5449] sm:$0x1]
    %s5451 = scalar_lea.vmem [#allocation18], 46
    %v5452 = vld [vmem:[%s5451] sm:$0x1]
    %v5453 = vsel %vm581, %v5447, 0.0
    %5454 = vadd.xlane.f32.xlu0 %v5453
    %v5455 = vpop.xlane.xlu0 %5454
    %v5456 = vsel %vm581, %v5448, 0.0
    %5457 = vadd.xlane.f32.xlu0 %v5456
    %v5458 = vpop.xlane.xlu0 %5457
    %v5459 = vmul.f32 %v5455, %v1270
    %v5460 = vmul.f32 %v5458, %v1270
    %v5461 = vsub.f32 %v5447, %v5459
    %v5462 = vsub.f32 %v5448, %v5460
    %v5463 = vmul.f32 %v5461, %v5461
    %v5464 = vmul.f32 %v5462, %v5462
    %v5465 = vsel %vm581, %v5463, 0.0
    %5466 = vadd.xlane.f32.xlu0 %v5465
    %v5467 = vpop.xlane.xlu0 %5466
    %v5468 = vsel %vm581, %v5464, 0.0
    %5469 = vadd.xlane.f32.xlu0 %v5468
    %v5470 = vpop.xlane.xlu0 %5469
    %v5471 = vmul.f32 %v5467, %v1270
    %v5472 = vmul.f32 %v5470, %v1270
    %v5473 = vadd.f32 %v5471, 1e-05
    %v5474 = vadd.f32 %v5472, 1e-05
    %v5475 = vrsqrt.pop %v5473
    %v5476 = vmul.f32 %v5475, %v5473
    %v5477 = vmul.f32 %v5476, %v5475
    %v5478 = vmul.f32 0.5, %v5477
    %v5479 = vsub.f32 1.5, %v5478
    %v5480 = vmul.f32 %v5475, %v5479
    %vm5481 = vweird.f32 %v5473
    %vm5482 = vweird.f32 %v5475
    %vm5483 = vmor %vm5481, %vm5482
    %v5484 = vsel %vm5483, %v5475, %v5480
    %v5485 = vrsqrt.pop %v5474
    %v5486 = vmul.f32 %v5485, %v5474
    %v5487 = vmul.f32 %v5486, %v5485
    %v5488 = vmul.f32 0.5, %v5487
    %v5489 = vsub.f32 1.5, %v5488
    %v5490 = vmul.f32 %v5485, %v5489
    %vm5491 = vweird.f32 %v5474
    %vm5492 = vweird.f32 %v5485
    %vm5493 = vmor %vm5491, %vm5492
    %v5494 = vsel %vm5493, %v5485, %v5490
    %v5495 = vmul.f32 %v5461, %v5484
    %v5496 = vmul.f32 %v5462, %v5494
    %v5498 = vperm.slane %v5450, 0
    %v5500 = vmul.f32 %v5495, %v5498
    %v5501 = vmul.f32 %v5496, %v5498
    %v5503 = vperm.slane %v5452, 0
    %v5505 = vadd.f32 %v5500, %v5503
    %v5506 = vadd.f32 %v5501, %v5503
    %s5507 = scalar_lea.vmem [#allocation14], 48
    %v5508 = vld [vmem:[%s5507] sm:$0xf]
    %v5509 = vld [vmem:[%s5507 + $0x4] sm:$0xf]
    %v5510 = vld [vmem:[%s5507 + $0x8] sm:$0xf]
    %v5511 = vld [vmem:[%s5507 + $0xc] sm:$0xf]
    %s5512 = scalar_lea.vmem %s10, 3
    %v5513 = vld [vmem:[%s5512] sm:$0x1]
    %v5514 = vpack.c.bf16 %v5506, %v5505
    %v5516 = vperm.slane %v5513, 0
    %v5522 = vunpack.c.l.b16 %v5508
    %v5523 = vunpack.c.l.b16 %v5509
    %v5524 = vunpack.c.l.b16 %v5510
    %v5525 = vunpack.c.l.b16 %v5511
    %v5526 = vpack.c.b16 %v5523, %v5522
    %v5527 = vpack.c.b16 %v5525, %v5524
    %v5531 = vsel %vm581, %v5514, 0
    %5533 = vmatpush.bf16.msra.mxu0 0
    %5534 = vmatpush.bf16.msra.mxu0 0
    %5535 = vmatpush.bf16.msra.mxu0 0
    %5536 = vmatpush.bf16.msra.mxu0 0
    %5537 = vmatpush.bf16.msra.mxu0 0
    %5538 = vmatpush.bf16.msra.mxu0 0
    %5539 = vmatpush.bf16.msra.mxu0 %v5527
    %5540 = vmatpush.bf16.msra.mxu0 %v5526
    %5541 = vmatmul.bf16.gmra.mxu0 %v5531
    %v5542 = vpop.f32.mrf.mxu0
    %v5543 = vadd.f32 %v5516, %v5542
    %v5544 = vpop.f32.mrf.mxu0
    %v5545 = vadd.f32 %v5516, %v5544
    %5546 = vdwg.mxu0
    %v5547 = vmax.f32 %v5543, 0.0
    %v5548 = vmax.f32 %v5545, 0.0
    %s5549 = scalar_lea.vmem [#allocation15], 96
    %v5550 = vld [vmem:[%s5549] sm:$0xf]
    %v5551 = vld [vmem:[%s5549 + $0x4] sm:$0xf]
    %v5552 = vld [vmem:[%s5549 + $0x8] sm:$0xf]
    %v5553 = vld [vmem:[%s5549 + $0xc] sm:$0xf]
    %v5554 = vld [vmem:[%s5549 + $0x10] sm:$0xf]
    %v5555 = vld [vmem:[%s5549 + $0x14] sm:$0xf]
    %v5556 = vld [vmem:[%s5549 + $0x18] sm:$0xf]
    %v5557 = vld [vmem:[%s5549 + $0x1c] sm:$0xf]
    %s5558 = scalar_lea.vmem [#allocation18], 27
    %v5559 = vld [vmem:[%s5558] sm:$0x1]
    %v5560 = vpack.c.bf16 %v5548, %v5547
    %v5562 = vperm.slane %v5559, 0
    %v5572 = vunpack.c.l.b16 %v5550
    %v5573 = vunpack.c.l.b16 %v5551
    %v5574 = vunpack.c.l.b16 %v5552
    %v5575 = vunpack.c.l.b16 %v5553
    %v5576 = vunpack.c.l.b16 %v5554
    %v5577 = vunpack.c.l.b16 %v5555
    %v5578 = vunpack.c.l.b16 %v5556
    %v5579 = vunpack.c.l.b16 %v5557
    %v5580 = vpack.c.b16 %v5573, %v5572
    %v5581 = vpack.c.b16 %v5575, %v5574
    %v5582 = vpack.c.b16 %v5577, %v5576
    %v5583 = vpack.c.b16 %v5579, %v5578
    %v5589 = vsel %vm1397, %v5560, 0
    %5591 = vmatpush.bf16.msra.mxu0 0
    %5592 = vmatpush.bf16.msra.mxu0 0
    %5593 = vmatpush.bf16.msra.mxu0 0
    %5594 = vmatpush.bf16.msra.mxu0 0
    %5595 = vmatpush.bf16.msra.mxu0 %v5583
    %5596 = vmatpush.bf16.msra.mxu0 %v5582
    %5597 = vmatpush.bf16.msra.mxu0 %v5581
    %5598 = vmatpush.bf16.msra.mxu0 %v5580
    %5599 = vmatmul.bf16.gmra.mxu0 %v5589
    %v5600 = vpop.f32.mrf.mxu0
    %v5601 = vadd.f32 %v5562, %v5600
    %v5602 = vpop.f32.mrf.mxu0
    %v5603 = vadd.f32 %v5562, %v5602
    %5604 = vdwg.mxu0
    %v5605 = vadd.f32 %v5505, %v5601
    %v5606 = vadd.f32 %v5506, %v5603
    %s5607 = scalar_lea.vmem [#allocation18], 37
    %v5608 = vld [vmem:[%s5607] sm:$0x1]
    %s5609 = scalar_lea.vmem [#allocation18], 47
    %v5610 = vld [vmem:[%s5609] sm:$0x1]
    %v5611 = vsel %vm581, %v5605, 0.0
    %5612 = vadd.xlane.f32.xlu0 %v5611
    %v5613 = vpop.xlane.xlu0 %5612
    %v5614 = vsel %vm581, %v5606, 0.0
    %5615 = vadd.xlane.f32.xlu0 %v5614
    %v5616 = vpop.xlane.xlu0 %5615
    %v5617 = vmul.f32 %v5613, %v1270
    %v5618 = vmul.f32 %v5616, %v1270
    %v5619 = vsub.f32 %v5605, %v5617
    %v5620 = vsub.f32 %v5606, %v5618
    %v5621 = vmul.f32 %v5619, %v5619
    %v5622 = vmul.f32 %v5620, %v5620
    %v5623 = vsel %vm581, %v5621, 0.0
    %5624 = vadd.xlane.f32.xlu0 %v5623
    %v5625 = vpop.xlane.xlu0 %5624
    %v5626 = vsel %vm581, %v5622, 0.0
    %5627 = vadd.xlane.f32.xlu0 %v5626
    %v5628 = vpop.xlane.xlu0 %5627
    %v5629 = vmul.f32 %v5625, %v1270
    %v5630 = vmul.f32 %v5628, %v1270
    %v5631 = vadd.f32 %v5629, 1e-05
    %v5632 = vadd.f32 %v5630, 1e-05
    %v5633 = vrsqrt.pop %v5631
    %v5634 = vmul.f32 %v5633, %v5631
    %v5635 = vmul.f32 %v5634, %v5633
    %v5636 = vmul.f32 0.5, %v5635
    %v5637 = vsub.f32 1.5, %v5636
    %v5638 = vmul.f32 %v5633, %v5637
    %vm5639 = vweird.f32 %v5631
    %vm5640 = vweird.f32 %v5633
    %vm5641 = vmor %vm5639, %vm5640
    %v5642 = vsel %vm5641, %v5633, %v5638
    %v5643 = vrsqrt.pop %v5632
    %v5644 = vmul.f32 %v5643, %v5632
    %v5645 = vmul.f32 %v5644, %v5643
    %v5646 = vmul.f32 0.5, %v5645
    %v5647 = vsub.f32 1.5, %v5646
    %v5648 = vmul.f32 %v5643, %v5647
    %vm5649 = vweird.f32 %v5632
    %vm5650 = vweird.f32 %v5643
    %vm5651 = vmor %vm5649, %vm5650
    %v5652 = vsel %vm5651, %v5643, %v5648
    %v5653 = vmul.f32 %v5619, %v5642
    %v5654 = vmul.f32 %v5620, %v5652
    %v5656 = vperm.slane %v5608, 0
    %v5658 = vmul.f32 %v5653, %v5656
    %v5659 = vmul.f32 %v5654, %v5656
    %v5661 = vperm.slane %v5610, 0
    %v5663 = vadd.f32 %v5658, %v5661
    %v5664 = vadd.f32 %v5659, %v5661
    %v5665 = vpack.c.bf16 %v5664, %v5663
    %v5666 = vld [vmem:[#allocation17] sm:$0xf]
    %v5667 = vld [vmem:[#allocation17 + $0x4] sm:$0xf]
    %v5668 = vld [vmem:[#allocation17 + $0x8] sm:$0xf]
    %v5669 = vld [vmem:[#allocation17 + $0xc] sm:$0xf]
    %v5670 = vld [vmem:[%s11] sm:$0x1]
    %v5672 = vperm.slane %v5670, 0
    %v5678 = vunpack.c.l.b16 %v5666
    %v5679 = vunpack.c.l.b16 %v5667
    %v5680 = vunpack.c.l.b16 %v5668
    %v5681 = vunpack.c.l.b16 %v5669
    %v5682 = vpack.c.b16 %v5679, %v5678
    %v5683 = vpack.c.b16 %v5681, %v5680
    %v5687 = vsel %vm581, %v5665, 0
    %5689 = vmatpush.bf16.msra.mxu0 0
    %5690 = vmatpush.bf16.msra.mxu0 0
    %5691 = vmatpush.bf16.msra.mxu0 0
    %5692 = vmatpush.bf16.msra.mxu0 0
    %5693 = vmatpush.bf16.msra.mxu0 0
    %5694 = vmatpush.bf16.msra.mxu0 0
    %5695 = vmatpush.bf16.msra.mxu0 %v5683
    %5696 = vmatpush.bf16.msra.mxu0 %v5682
    %5697 = vmatmul.bf16.gmra.mxu0 %v5687
    %v5698 = vpop.f32.mrf.mxu0
    %v5699 = vadd.f32 %v5672, %v5698
    %v5700 = vpop.f32.mrf.mxu0
    %v5701 = vadd.f32 %v5672, %v5700
    %5702 = vdwg.mxu0
    %5703 = vst [vmem:[#allocation20] sm:$0xff] %v5699
    %5704 = vst [vmem:[#allocation20 + $0x8] sm:$0xff] %v5701
    // Predicated region
    $region90: #{transformer_forward.1} parent=1 // pred_check
      _
    $region91: #{transformer_forward.1} parent=1 // pred_check_branch
      %5706 = sbr.rel (0) target = $region93
    $region92: #{transformer_forward.1} parent=1 // pred_region
      %5708 = vsyncadd [#allocation4], 0
      %s5709 = sshll.u32 [#allocation20], 4
      %s5710 = int_to_ptr.vmem [resolvable:$true] %s5709
      %s5711 = sshll.u32 %s12, 4
      %s5712 = int_to_ptr.hbm [resolvable:$true] %s5711
      %5717 = dma.vmem_to_hbm [thread:$0]  %s5710, 256, %s5712, [#allocation4], 128, 128, 8
    $region93: #{transformer_forward.1} parent=1 // pred_fallthru
      _
    // Predicated region
    $region94: #{transformer_forward.1} parent=1 // pred_check
      _
    $region95: #{transformer_forward.1} parent=1 // pred_check_branch
      %5719 = sbr.rel (0) target = $region97
    $region96: #{transformer_forward.1} parent=1 // pred_region
      %5721 = dma.done [#allocation4], 256
    $region97: #{transformer_forward.1} parent=1 // pred_fallthru
      _
    %5722 = vsyncpa [#allocation3], 1
    %5723 = vsyncpa [#allocation10], 1
    %5724 = vsyncpa [#allocation13], 1
    %5725 = vsyncpa [#allocation16], 1
    %5726 = vsyncpa [#allocation19], 1
    %5727 = vsyncpa [#allocation4], 1
    %5728 = vsyncpa [#allocation5], 1
    %5729 = vsyncpa [#allocation7], 1

</llo_original>
